<compile_context>
chip_gen: v6e
topology: v6e:2x2x1
jax: 0.10.0
libtpu: 0.0.40
codegen_flags: <defaults>
</compile_context>

<pallas_src>
import functools
import math

import jax
import jax.numpy as jnp
from jax.experimental import pallas as pl
from jax.experimental.pallas import tpu as pltpu

VMEM = pltpu.MemorySpace.VMEM
F32 = jnp.float32


# --------------------------------------------------------------------------- #
# In-kernel helpers
# --------------------------------------------------------------------------- #
def _attention(x2, batch, seq, n_heads, wqkv_ref, bqkv_ref, wfc_ref, bfc_ref):
    """Multi-head self-attention on a (batch*seq, E) activation value.

    The 1/sqrt(head_dim) scale is pre-folded into the Q columns of wqkv/bqkv.
    Returns the fc output as a (batch*seq, E) value (rows in (b, s) order).
    """
    E = wfc_ref.shape[0]
    d = E // n_heads

    qkv = jnp.dot(x2, wqkv_ref[...], preferred_element_type=F32) + bqkv_ref[...]
    q = qkv[:, 0 * E:1 * E].reshape(batch, seq, E)
    k = qkv[:, 1 * E:2 * E].reshape(batch, seq, E)
    v = qkv[:, 2 * E:3 * E].reshape(batch, seq, E)

    heads = []
    for h in range(n_heads):                       # static unrolled head loop
        qh = q[:, :, h * d:(h + 1) * d]
        kh = k[:, :, h * d:(h + 1) * d]
        vh = v[:, :, h * d:(h + 1) * d]
        e = jnp.einsum('bqd,bkd->bqk', qh, kh, preferred_element_type=F32)
        m = jnp.max(e, axis=-1, keepdims=True)
        p = jnp.exp(e - m)
        inv = pl.reciprocal(jnp.sum(p, axis=-1, keepdims=True), approx=True)
        attn = p * inv                              # dropout = identity (eval)
        heads.append(jnp.einsum('bqk,bkd->bqd', attn, vh,
                                preferred_element_type=F32))

    ctx = jnp.concatenate(heads, axis=-1).reshape(batch * seq, E)
    return jnp.dot(ctx, wfc_ref[...], preferred_element_type=F32) + bfc_ref[...]


# --------------------------------------------------------------------------- #
# Fused forward kernel
# --------------------------------------------------------------------------- #
def _simulator_kernel(cur_ref, hist_ref,
                      item_w_ref, item_b_ref,
                      histemb_w_ref, histemb_b_ref,
                      gru_wih_ref, gru_whh_ref, gru_bih_ref, gru_bhh_ref,
                      iattn_wqkv_ref, iattn_bqkv_ref, iattn_wfc_ref, iattn_bfc_ref,
                      hattn_wqkv_ref, hattn_bqkv_ref, hattn_wfc_ref, hattn_bfc_ref,
                      w1_ref, b1_ref, w2_ref, b2_ref, w3_ref, b3_ref,
                      o_ref,
                      gi_buf, seq_buf, cattn_buf, hattn_buf,
                      *, batch, n_prev, item_num, n_embedding, n_heads):
    B, P, I, E = batch, n_prev, item_num, n_embedding

    # ---- history embeddings: item + feedback fused via block-diagonal weight ----
    # hist_ref rows are (b, p); columns per item i are [feedback_i, item_i].
    # The block-diagonal weight maps them to [item_emb_i, fb_emb_i] per item,
    # which is exactly the concatenated GRU input layout.
    hist_emb = jnp.tanh(
        jnp.dot(hist_ref[...], histemb_w_ref[...], preferred_element_type=F32)
        + histemb_b_ref[...])                                   # (B*P, 2*I*E)

    # ---- GRU over previous page-views; input projection hoisted out of loop ----
    gi_buf[...] = (jnp.dot(hist_emb, gru_wih_ref[...],
                           preferred_element_type=F32)
                   + gru_bih_ref[...])                          # (B*P, 3E)
    whh = gru_whh_ref[...]
    bhh = gru_bhh_ref[...]
    h = jnp.zeros((B, E), F32)                                  # h0 = 0, in vregs
    for t in range(P):                                          # fully unrolled
        gi = gi_buf[pl.ds(t, B, stride=P), :]                   # rows {b*P + t}
        gh = jnp.dot(h, whh, preferred_element_type=F32) + bhh
        r = jax.nn.sigmoid(gi[:, 0:E] + gh[:, 0:E])
        z = jax.nn.sigmoid(gi[:, E:2 * E] + gh[:, E:2 * E])
        n = jnp.tanh(gi[:, 2 * E:3 * E] + r * gh[:, 2 * E:3 * E])
        h = (1.0 - z) * n + z * h
        # store h into (b, t)-ordered rows of the sequence buffer
        for b in range(B):
            seq_buf[b * P + t:b * P + t + 1, :] = h[b:b + 1, :]

    # ---- history self-attention over the GRU output sequence ----
    hattn_buf[...] = _attention(seq_buf[...], B, P, n_heads,
                                hattn_wqkv_ref, hattn_bqkv_ref,
                                hattn_wfc_ref, hattn_bfc_ref)   # (B*P, E)

    # ---- current item embedding + self-attention ----
    cur_emb = jnp.tanh(
        jnp.dot(cur_ref[...], item_w_ref[...], preferred_element_type=F32)
        + item_b_ref[...])                                      # (B*I, E)
    cattn_buf[...] = _attention(cur_emb, B, I, n_heads,
                                iattn_wqkv_ref, iattn_bqkv_ref,
                                iattn_wfc_ref, iattn_bfc_ref)   # (B*I, E)

    # ---- MLP head.  Layer 1 is contracted position-by-position against the
    #      matching row-block of w1 (equivalent to flattening the per-batch
    #      [current | history] features, but avoids a minor-dim reshape). ----
    n_h1 = w1_ref.shape[1]
    h1 = jnp.zeros((B, n_h1), F32) + b1_ref[...]
    for s in range(I):                                          # current positions
        xs = cattn_buf[pl.ds(s, B, stride=I), :]                # rows {b*I + s}
        h1 = h1 + jnp.dot(xs, w1_ref[s * E:(s + 1) * E, :],
                          preferred_element_type=F32)
    for p_ in range(P):                                         # history positions
        xs = hattn_buf[pl.ds(p_, B, stride=P), :]               # rows {b*P + p}
        h1 = h1 + jnp.dot(xs, w1_ref[(I + p_) * E:(I + p_ + 1) * E, :],
                          preferred_element_type=F32)
    h1 = jnp.maximum(h1, 0.0)                                   # Dropout=id, ReLU
    h2 = jnp.maximum(
        jnp.dot(h1, w2_ref[...], preferred_element_type=F32) + b2_ref[...], 0.0)
    logits = jnp.dot(h2, w3_ref[...], preferred_element_type=F32) + b3_ref[...]

    m = jnp.max(logits, axis=-1, keepdims=True)
    lse = m + jnp.log(jnp.sum(jnp.exp(logits - m), axis=-1, keepdims=True))
    o_ref[...] = logits - lse


# --------------------------------------------------------------------------- #
# Parameter init (PyTorch-style uniform init, weights stored as (in, out))
# --------------------------------------------------------------------------- #
def _linear_init(key, fan_in, fan_out):
    k1, k2 = jax.random.split(key)
    bound = 1.0 / math.sqrt(fan_in)
    w = jax.random.uniform(k1, (fan_in, fan_out), F32, -bound, bound)
    b = jax.random.uniform(k2, (1, fan_out), F32, -bound, bound)
    return w, b


def init_params(key, item_size, feedback_size, item_num, n_embedding,
                n_hidden, n_output, n_previous_pv):
    keys = jax.random.split(key, 16)
    p = {}
    p['item_emb_w'], p['item_emb_b'] = _linear_init(keys[0], item_size, n_embedding)
    p['fb_emb_w'], p['fb_emb_b'] = _linear_init(keys[1], feedback_size, n_embedding)

    gru_in = 2 * item_num * n_embedding
    gb = 1.0 / math.sqrt(n_embedding)
    p['gru_w_ih'] = jax.random.uniform(keys[2], (gru_in, 3 * n_embedding), F32, -gb, gb)
    p['gru_w_hh'] = jax.random.uniform(keys[3], (n_embedding, 3 * n_embedding), F32, -gb, gb)
    p['gru_b_ih'] = jax.random.uniform(keys[4], (1, 3 * n_embedding), F32, -gb, gb)
    p['gru_b_hh'] = jax.random.uniform(keys[5], (1, 3 * n_embedding), F32, -gb, gb)

    for name, kk in (('item_attn', keys[6]), ('hist_attn', keys[7])):
        ks = jax.random.split(kk, 4)
        for proj, kkk in zip(('q', 'k', 'v', 'fc'), ks):
            w, b = _linear_init(kkk, n_embedding, n_embedding)
            p[f'{name}_{proj}_w'] = w
            p[f'{name}_{proj}_b'] = b

    mlp_in = (n_previous_pv + item_num) * n_embedding
    p['mlp_w1'], p['mlp_b1'] = _linear_init(keys[8], mlp_in, 2 * n_hidden)
    p['mlp_w2'], p['mlp_b2'] = _linear_init(keys[9], 2 * n_hidden, n_hidden)
    p['mlp_w3'], p['mlp_b3'] = _linear_init(keys[10], n_hidden, n_output)
    return p


# --------------------------------------------------------------------------- #
# Forward wrapper: one fused pallas_call, everything resident in VMEM
# --------------------------------------------------------------------------- #
def simulator_v5_forward(params, current, history, *, item_size, feedback_size,
                         item_num, n_embedding, n_heads):
    B = current.shape[0]
    P = history.shape[1]
    I = item_num
    E = n_embedding
    fs, isz = feedback_size, item_size

    # --- one-time weight repacking (cheap XLA ops, outside the kernel) ---
    # Block-diagonal embedding weight: raw history row
    #   [fb_0, item_0, fb_1, item_1, ...]  ->  [item_emb_0, fb_emb_0, ...]
    histemb_w = jnp.zeros((I * (fs + isz), I * 2 * E), F32)
    for i in range(I):
        r0 = i * (fs + isz)
        c0 = i * 2 * E
        histemb_w = histemb_w.at[r0:r0 + fs, c0 + E:c0 + 2 * E].set(params['fb_emb_w'])
        histemb_w = histemb_w.at[r0 + fs:r0 + fs + isz, c0:c0 + E].set(params['item_emb_w'])
    histemb_b = jnp.tile(
        jnp.concatenate([params['item_emb_b'], params['fb_emb_b']], axis=1), (1, I))

    inv_scale = 1.0 / math.sqrt(E // n_heads)     # folded 1/sqrt(head_dim)

    def qkv_pack(prefix):
        wqkv = jnp.concatenate([params[f'{prefix}_q_w'] * inv_scale,
                                params[f'{prefix}_k_w'],
                                params[f'{prefix}_v_w']], axis=1)
        bqkv = jnp.concatenate([params[f'{prefix}_q_b'] * inv_scale,
                                params[f'{prefix}_k_b'],
                                params[f'{prefix}_v_b']], axis=1)
        return wqkv, bqkv

    iattn_wqkv, iattn_bqkv = qkv_pack('item_attn')
    hattn_wqkv, hattn_bqkv = qkv_pack('hist_attn')

    # Free, contiguous row-major reshapes of the raw inputs (no transposes).
    cur_flat = current.reshape(B * I, isz)                 # rows (b, i)
    hist_flat = history.reshape(B * P, I * (fs + isz))     # rows (b, p)

    kernel = functools.partial(_simulator_kernel, batch=B, n_prev=P,
                               item_num=I, n_embedding=E, n_heads=n_heads)
    n_output = params['mlp_w3'].shape[1]
    n_inputs = 24

    return pl.pallas_call(
        kernel,
        out_shape=jax.ShapeDtypeStruct((B, n_output), F32),
        in_specs=[pl.BlockSpec(memory_space=VMEM)] * n_inputs,
        out_specs=pl.BlockSpec(memory_space=VMEM),
        scratch_shapes=[
            pltpu.VMEM((B * P, 3 * E), F32),   # hoisted GRU input projection
            pltpu.VMEM((B * P, E), F32),       # GRU output sequence, (b, t) rows
            pltpu.VMEM((B * I, E), F32),       # current-attention output
            pltpu.VMEM((B * P, E), F32),       # history-attention output
        ],
        # TODO(synk): for large batch sizes, add a ("parallel",) batch grid and
        # per-batch-block BlockSpecs so the second TensorCore on v7x is used
        # and VMEM residency is bounded; at B=2 a grid is pure overhead.
    )(cur_flat, hist_flat,
      params['item_emb_w'], params['item_emb_b'],
      histemb_w, histemb_b,
      params['gru_w_ih'], params['gru_w_hh'],
      params['gru_b_ih'], params['gru_b_hh'],
      iattn_wqkv, iattn_bqkv, params['item_attn_fc_w'], params['item_attn_fc_b'],
      hattn_wqkv, hattn_bqkv, params['hist_attn_fc_w'], params['hist_attn_fc_b'],
      params['mlp_w1'], params['mlp_b1'],
      params['mlp_w2'], params['mlp_b2'],
      params['mlp_w3'], params['mlp_b3'])


if __name__ == "__main__":
    B = 2
    item_size = 8
    feedback_size = 4
    item_num = 4
    n_embedding = 32
    n_hidden = 32
    n_output = 16
    n_previous_pv = 8
    n_heads = 4

    key = jax.random.PRNGKey(0)
    kp, kc, kh = jax.random.split(key, 3)
    params = init_params(kp, item_size, feedback_size, item_num, n_embedding,
                         n_hidden, n_output, n_previous_pv)
    current = jax.random.normal(kc, (B, item_num * item_size), F32)
    history = jax.random.normal(
        kh, (B, n_previous_pv, item_num, item_size + feedback_size), F32)

    fwd = jax.jit(functools.partial(
        simulator_v5_forward, item_size=item_size, feedback_size=feedback_size,
        item_num=item_num, n_embedding=n_embedding, n_heads=n_heads))

    out = jax.block_until_ready(fwd(params, current, history))
    assert out.shape == (B, n_output)
    assert bool(jnp.all(jnp.isfinite(out)))
    print("KERNEL_OK")
</pallas_src>

<mosaic_0001>
module attributes {stable_mosaic.version = 11 : i64} {
  func.func @_simulator_kernel(%arg0: memref<8x8xf32, #tpu.memory_space<vmem>>, %arg1: memref<16x48xf32, #tpu.memory_space<vmem>>, %arg2: memref<8x32xf32, #tpu.memory_space<vmem>>, %arg3: memref<1x32xf32, #tpu.memory_space<vmem>>, %arg4: memref<48x256xf32, #tpu.memory_space<vmem>>, %arg5: memref<1x256xf32, #tpu.memory_space<vmem>>, %arg6: memref<256x96xf32, #tpu.memory_space<vmem>>, %arg7: memref<32x96xf32, #tpu.memory_space<vmem>>, %arg8: memref<1x96xf32, #tpu.memory_space<vmem>>, %arg9: memref<1x96xf32, #tpu.memory_space<vmem>>, %arg10: memref<32x96xf32, #tpu.memory_space<vmem>>, %arg11: memref<1x96xf32, #tpu.memory_space<vmem>>, %arg12: memref<32x32xf32, #tpu.memory_space<vmem>>, %arg13: memref<1x32xf32, #tpu.memory_space<vmem>>, %arg14: memref<32x96xf32, #tpu.memory_space<vmem>>, %arg15: memref<1x96xf32, #tpu.memory_space<vmem>>, %arg16: memref<32x32xf32, #tpu.memory_space<vmem>>, %arg17: memref<1x32xf32, #tpu.memory_space<vmem>>, %arg18: memref<384x64xf32, #tpu.memory_space<vmem>>, %arg19: memref<1x64xf32, #tpu.memory_space<vmem>>, %arg20: memref<64x32xf32, #tpu.memory_space<vmem>>, %arg21: memref<1x32xf32, #tpu.memory_space<vmem>>, %arg22: memref<32x16xf32, #tpu.memory_space<vmem>>, %arg23: memref<1x16xf32, #tpu.memory_space<vmem>>, %arg24: memref<2x16xf32, #tpu.memory_space<vmem>>, %arg25: memref<16x96xf32, #tpu.memory_space<vmem>>, %arg26: memref<16x32xf32, #tpu.memory_space<vmem>>, %arg27: memref<8x32xf32, #tpu.memory_space<vmem>>, %arg28: memref<16x32xf32, #tpu.memory_space<vmem>>) attributes {dimension_semantics = [], scalar_prefetch = 0 : i64, scratch_operands = 4 : i64, tpu.core_type = #tpu.core_type<tc>} {
    %c0 = arith.constant 0 : index
    %c0_0 = arith.constant 0 : index
    %0 = vector.load %arg1[%c0, %c0_0] : memref<16x48xf32, #tpu.memory_space<vmem>>, vector<16x48xf32>
    %c0_1 = arith.constant 0 : index
    %c0_2 = arith.constant 0 : index
    %1 = vector.load %arg4[%c0_1, %c0_2] : memref<48x256xf32, #tpu.memory_space<vmem>>, vector<48x256xf32>
    %cst = arith.constant dense<0.000000e+00> : vector<16x256xf32>
    %2 = tpu.matmul %0, %1, %cst {dimension_numbers = #tpu.dot_dimension_numbers<[1], [0], [0], [1], [0, 0, 1, 1], [], []>} : vector<16x48xf32>, vector<48x256xf32>, vector<16x256xf32> -> vector<16x256xf32>
    %c0_3 = arith.constant 0 : index
    %c0_4 = arith.constant 0 : index
    %3 = vector.load %arg5[%c0_3, %c0_4] : memref<1x256xf32, #tpu.memory_space<vmem>>, vector<1x256xf32>
    %4 = vector.broadcast %3 : vector<1x256xf32> to vector<16x256xf32>
    %5 = arith.addf %2, %4 : vector<16x256xf32>
    %6 = math.tanh %5 : vector<16x256xf32>
    %c0_5 = arith.constant 0 : index
    %c0_6 = arith.constant 0 : index
    %7 = vector.load %arg6[%c0_5, %c0_6] : memref<256x96xf32, #tpu.memory_space<vmem>>, vector<256x96xf32>
    %cst_7 = arith.constant dense<0.000000e+00> : vector<16x96xf32>
    %8 = tpu.matmul %6, %7, %cst_7 {dimension_numbers = #tpu.dot_dimension_numbers<[1], [0], [0], [1], [0, 0, 1, 1], [], []>} : vector<16x256xf32>, vector<256x96xf32>, vector<16x96xf32> -> vector<16x96xf32>
    %c0_8 = arith.constant 0 : index
    %c0_9 = arith.constant 0 : index
    %9 = vector.load %arg8[%c0_8, %c0_9] : memref<1x96xf32, #tpu.memory_space<vmem>>, vector<1x96xf32>
    %10 = vector.broadcast %9 : vector<1x96xf32> to vector<16x96xf32>
    %11 = arith.addf %8, %10 : vector<16x96xf32>
    %c0_10 = arith.constant 0 : index
    %c0_11 = arith.constant 0 : index
    %12 = vector.load %arg25[%c0_10, %c0_11] : memref<16x96xf32, #tpu.memory_space<vmem>>, vector<16x96xf32>
    tpu.vector_store %arg25[%c0_10, %c0_11], %11 {strides = array<i32>} : memref<16x96xf32, #tpu.memory_space<vmem>>, vector<16x96xf32>,
    %c0_12 = arith.constant 0 : index
    %c0_13 = arith.constant 0 : index
    %13 = vector.load %arg7[%c0_12, %c0_13] : memref<32x96xf32, #tpu.memory_space<vmem>>, vector<32x96xf32>
    %c0_14 = arith.constant 0 : index
    %c0_15 = arith.constant 0 : index
    %14 = vector.load %arg9[%c0_14, %c0_15] : memref<1x96xf32, #tpu.memory_space<vmem>>, vector<1x96xf32>
    %cst_16 = arith.constant 0.000000e+00 : f32
    %15 = vector.broadcast %cst_16 : f32 to vector<2x32xf32>
    %c0_17 = arith.constant 0 : index
    %c0_18 = arith.constant 0 : index
    %16 = tpu.strided_load %arg25[%c0_17, %c0_18] {strides = array<i32: 8, 1>} : memref<16x96xf32, #tpu.memory_space<vmem>>, vector<2x96xf32>
    %cst_19 = arith.constant dense<0.000000e+00> : vector<2x96xf32>
    %17 = tpu.matmul %15, %13, %cst_19 {dimension_numbers = #tpu.dot_dimension_numbers<[1], [0], [0], [1], [0, 0, 1, 1], [], []>} : vector<2x32xf32>, vector<32x96xf32>, vector<2x96xf32> -> vector<2x96xf32>
    %18 = vector.broadcast %14 : vector<1x96xf32> to vector<2x96xf32>
    %19 = arith.addf %17, %18 : vector<2x96xf32>
    %20 = vector.extract_strided_slice %16 {offsets = [0, 0], sizes = [2, 32], strides = [1, 1]} : vector<2x96xf32> to vector<2x32xf32>
    %21 = vector.extract_strided_slice %19 {offsets = [0, 0], sizes = [2, 32], strides = [1, 1]} : vector<2x96xf32> to vector<2x32xf32>
    %22 = arith.addf %20, %21 : vector<2x32xf32>
    %23 = arith.negf %22 : vector<2x32xf32>
    %24 = math.exp %23 : vector<2x32xf32>
    %cst_20 = arith.constant 1.000000e+00 : f32
    %25 = vector.broadcast %cst_20 : f32 to vector<2x32xf32>
    %26 = arith.addf %25, %24 : vector<2x32xf32>
    %27 = arith.divf %25, %26 : vector<2x32xf32>
    %28 = vector.extract_strided_slice %16 {offsets = [0, 32], sizes = [2, 32], strides = [1, 1]} : vector<2x96xf32> to vector<2x32xf32>
    %29 = vector.extract_strided_slice %19 {offsets = [0, 32], sizes = [2, 32], strides = [1, 1]} : vector<2x96xf32> to vector<2x32xf32>
    %30 = arith.addf %28, %29 : vector<2x32xf32>
    %31 = arith.negf %30 : vector<2x32xf32>
    %32 = math.exp %31 : vector<2x32xf32>
    %cst_21 = arith.constant 1.000000e+00 : f32
    %33 = vector.broadcast %cst_21 : f32 to vector<2x32xf32>
    %34 = arith.addf %33, %32 : vector<2x32xf32>
    %35 = arith.divf %33, %34 : vector<2x32xf32>
    %36 = vector.extract_strided_slice %16 {offsets = [0, 64], sizes = [2, 32], strides = [1, 1]} : vector<2x96xf32> to vector<2x32xf32>
    %37 = vector.extract_strided_slice %19 {offsets = [0, 64], sizes = [2, 32], strides = [1, 1]} : vector<2x96xf32> to vector<2x32xf32>
    %38 = arith.mulf %27, %37 : vector<2x32xf32>
    %39 = arith.addf %36, %38 : vector<2x32xf32>
    %40 = math.tanh %39 : vector<2x32xf32>
    %cst_22 = arith.constant 1.000000e+00 : f32
    %41 = vector.broadcast %cst_22 : f32 to vector<2x32xf32>
    %42 = arith.subf %41, %35 : vector<2x32xf32>
    %43 = arith.mulf %42, %40 : vector<2x32xf32>
    %44 = arith.mulf %35, %15 : vector<2x32xf32>
    %45 = arith.addf %43, %44 : vector<2x32xf32>
    %46 = vector.extract_strided_slice %45 {offsets = [0, 0], sizes = [1, 32], strides = [1, 1]} : vector<2x32xf32> to vector<1x32xf32>
    %c0_23 = arith.constant 0 : index
    %c0_24 = arith.constant 0 : index
    %47 = vector.load %arg26[%c0_23, %c0_24] : memref<16x32xf32, #tpu.memory_space<vmem>>, vector<1x32xf32>
    tpu.vector_store %arg26[%c0_23, %c0_24], %46 {strides = array<i32>} : memref<16x32xf32, #tpu.memory_space<vmem>>, vector<1x32xf32>,
    %48 = vector.extract_strided_slice %45 {offsets = [1, 0], sizes = [1, 32], strides = [1, 1]} : vector<2x32xf32> to vector<1x32xf32>
    %c8 = arith.constant 8 : index
    %c0_25 = arith.constant 0 : index
    %49 = vector.load %arg26[%c8, %c0_25] : memref<16x32xf32, #tpu.memory_space<vmem>>, vector<1x32xf32>
    tpu.vector_store %arg26[%c8, %c0_25], %48 {strides = array<i32>} : memref<16x32xf32, #tpu.memory_space<vmem>>, vector<1x32xf32>,
    %c1 = arith.constant 1 : index
    %c0_26 = arith.constant 0 : index
    %50 = tpu.strided_load %arg25[%c1, %c0_26] {strides = array<i32: 8, 1>} : memref<16x96xf32, #tpu.memory_space<vmem>>, vector<2x96xf32>
    %cst_27 = arith.constant dense<0.000000e+00> : vector<2x96xf32>
    %51 = tpu.matmul %45, %13, %cst_27 {dimension_numbers = #tpu.dot_dimension_numbers<[1], [0], [0], [1], [0, 0, 1, 1], [], []>} : vector<2x32xf32>, vector<32x96xf32>, vector<2x96xf32> -> vector<2x96xf32>
    %52 = vector.broadcast %14 : vector<1x96xf32> to vector<2x96xf32>
    %53 = arith.addf %51, %52 : vector<2x96xf32>
    %54 = vector.extract_strided_slice %50 {offsets = [0, 0], sizes = [2, 32], strides = [1, 1]} : vector<2x96xf32> to vector<2x32xf32>
    %55 = vector.extract_strided_slice %53 {offsets = [0, 0], sizes = [2, 32], strides = [1, 1]} : vector<2x96xf32> to vector<2x32xf32>
    %56 = arith.addf %54, %55 : vector<2x32xf32>
    %57 = arith.negf %56 : vector<2x32xf32>
    %58 = math.exp %57 : vector<2x32xf32>
    %cst_28 = arith.constant 1.000000e+00 : f32
    %59 = vector.broadcast %cst_28 : f32 to vector<2x32xf32>
    %60 = arith.addf %59, %58 : vector<2x32xf32>
    %61 = arith.divf %59, %60 : vector<2x32xf32>
    %62 = vector.extract_strided_slice %50 {offsets = [0, 32], sizes = [2, 32], strides = [1, 1]} : vector<2x96xf32> to vector<2x32xf32>
    %63 = vector.extract_strided_slice %53 {offsets = [0, 32], sizes = [2, 32], strides = [1, 1]} : vector<2x96xf32> to vector<2x32xf32>
    %64 = arith.addf %62, %63 : vector<2x32xf32>
    %65 = arith.negf %64 : vector<2x32xf32>
    %66 = math.exp %65 : vector<2x32xf32>
    %cst_29 = arith.constant 1.000000e+00 : f32
    %67 = vector.broadcast %cst_29 : f32 to vector<2x32xf32>
    %68 = arith.addf %67, %66 : vector<2x32xf32>
    %69 = arith.divf %67, %68 : vector<2x32xf32>
    %70 = vector.extract_strided_slice %50 {offsets = [0, 64], sizes = [2, 32], strides = [1, 1]} : vector<2x96xf32> to vector<2x32xf32>
    %71 = vector.extract_strided_slice %53 {offsets = [0, 64], sizes = [2, 32], strides = [1, 1]} : vector<2x96xf32> to vector<2x32xf32>
    %72 = arith.mulf %61, %71 : vector<2x32xf32>
    %73 = arith.addf %70, %72 : vector<2x32xf32>
    %74 = math.tanh %73 : vector<2x32xf32>
    %cst_30 = arith.constant 1.000000e+00 : f32
    %75 = vector.broadcast %cst_30 : f32 to vector<2x32xf32>
    %76 = arith.subf %75, %69 : vector<2x32xf32>
    %77 = arith.mulf %76, %74 : vector<2x32xf32>
    %78 = arith.mulf %69, %45 : vector<2x32xf32>
    %79 = arith.addf %77, %78 : vector<2x32xf32>
    %80 = vector.extract_strided_slice %79 {offsets = [0, 0], sizes = [1, 32], strides = [1, 1]} : vector<2x32xf32> to vector<1x32xf32>
    %c1_31 = arith.constant 1 : index
    %c0_32 = arith.constant 0 : index
    %81 = vector.load %arg26[%c1_31, %c0_32] : memref<16x32xf32, #tpu.memory_space<vmem>>, vector<1x32xf32>
    tpu.vector_store %arg26[%c1_31, %c0_32], %80 {strides = array<i32>} : memref<16x32xf32, #tpu.memory_space<vmem>>, vector<1x32xf32>,
    %82 = vector.extract_strided_slice %79 {offsets = [1, 0], sizes = [1, 32], strides = [1, 1]} : vector<2x32xf32> to vector<1x32xf32>
    %c9 = arith.constant 9 : index
    %c0_33 = arith.constant 0 : index
    %83 = vector.load %arg26[%c9, %c0_33] : memref<16x32xf32, #tpu.memory_space<vmem>>, vector<1x32xf32>
    tpu.vector_store %arg26[%c9, %c0_33], %82 {strides = array<i32>} : memref<16x32xf32, #tpu.memory_space<vmem>>, vector<1x32xf32>,
    %c2 = arith.constant 2 : index
    %c0_34 = arith.constant 0 : index
    %84 = tpu.strided_load %arg25[%c2, %c0_34] {strides = array<i32: 8, 1>} : memref<16x96xf32, #tpu.memory_space<vmem>>, vector<2x96xf32>
    %cst_35 = arith.constant dense<0.000000e+00> : vector<2x96xf32>
    %85 = tpu.matmul %79, %13, %cst_35 {dimension_numbers = #tpu.dot_dimension_numbers<[1], [0], [0], [1], [0, 0, 1, 1], [], []>} : vector<2x32xf32>, vector<32x96xf32>, vector<2x96xf32> -> vector<2x96xf32>
    %86 = vector.broadcast %14 : vector<1x96xf32> to vector<2x96xf32>
    %87 = arith.addf %85, %86 : vector<2x96xf32>
    %88 = vector.extract_strided_slice %84 {offsets = [0, 0], sizes = [2, 32], strides = [1, 1]} : vector<2x96xf32> to vector<2x32xf32>
    %89 = vector.extract_strided_slice %87 {offsets = [0, 0], sizes = [2, 32], strides = [1, 1]} : vector<2x96xf32> to vector<2x32xf32>
    %90 = arith.addf %88, %89 : vector<2x32xf32>
    %91 = arith.negf %90 : vector<2x32xf32>
    %92 = math.exp %91 : vector<2x32xf32>
    %cst_36 = arith.constant 1.000000e+00 : f32
    %93 = vector.broadcast %cst_36 : f32 to vector<2x32xf32>
    %94 = arith.addf %93, %92 : vector<2x32xf32>
    %95 = arith.divf %93, %94 : vector<2x32xf32>
    %96 = vector.extract_strided_slice %84 {offsets = [0, 32], sizes = [2, 32], strides = [1, 1]} : vector<2x96xf32> to vector<2x32xf32>
    %97 = vector.extract_strided_slice %87 {offsets = [0, 32], sizes = [2, 32], strides = [1, 1]} : vector<2x96xf32> to vector<2x32xf32>
    %98 = arith.addf %96, %97 : vector<2x32xf32>
    %99 = arith.negf %98 : vector<2x32xf32>
    %100 = math.exp %99 : vector<2x32xf32>
    %cst_37 = arith.constant 1.000000e+00 : f32
    %101 = vector.broadcast %cst_37 : f32 to vector<2x32xf32>
    %102 = arith.addf %101, %100 : vector<2x32xf32>
    %103 = arith.divf %101, %102 : vector<2x32xf32>
    %104 = vector.extract_strided_slice %84 {offsets = [0, 64], sizes = [2, 32], strides = [1, 1]} : vector<2x96xf32> to vector<2x32xf32>
    %105 = vector.extract_strided_slice %87 {offsets = [0, 64], sizes = [2, 32], strides = [1, 1]} : vector<2x96xf32> to vector<2x32xf32>
    %106 = arith.mulf %95, %105 : vector<2x32xf32>
    %107 = arith.addf %104, %106 : vector<2x32xf32>
    %108 = math.tanh %107 : vector<2x32xf32>
    %cst_38 = arith.constant 1.000000e+00 : f32
    %109 = vector.broadcast %cst_38 : f32 to vector<2x32xf32>
    %110 = arith.subf %109, %103 : vector<2x32xf32>
    %111 = arith.mulf %110, %108 : vector<2x32xf32>
    %112 = arith.mulf %103, %79 : vector<2x32xf32>
    %113 = arith.addf %111, %112 : vector<2x32xf32>
    %114 = vector.extract_strided_slice %113 {offsets = [0, 0], sizes = [1, 32], strides = [1, 1]} : vector<2x32xf32> to vector<1x32xf32>
    %c2_39 = arith.constant 2 : index
    %c0_40 = arith.constant 0 : index
    %115 = vector.load %arg26[%c2_39, %c0_40] : memref<16x32xf32, #tpu.memory_space<vmem>>, vector<1x32xf32>
    tpu.vector_store %arg26[%c2_39, %c0_40], %114 {strides = array<i32>} : memref<16x32xf32, #tpu.memory_space<vmem>>, vector<1x32xf32>,
    %116 = vector.extract_strided_slice %113 {offsets = [1, 0], sizes = [1, 32], strides = [1, 1]} : vector<2x32xf32> to vector<1x32xf32>
    %c10 = arith.constant 10 : index
    %c0_41 = arith.constant 0 : index
    %117 = vector.load %arg26[%c10, %c0_41] : memref<16x32xf32, #tpu.memory_space<vmem>>, vector<1x32xf32>
    tpu.vector_store %arg26[%c10, %c0_41], %116 {strides = array<i32>} : memref<16x32xf32, #tpu.memory_space<vmem>>, vector<1x32xf32>,
    %c3 = arith.constant 3 : index
    %c0_42 = arith.constant 0 : index
    %118 = tpu.strided_load %arg25[%c3, %c0_42] {strides = array<i32: 8, 1>} : memref<16x96xf32, #tpu.memory_space<vmem>>, vector<2x96xf32>
    %cst_43 = arith.constant dense<0.000000e+00> : vector<2x96xf32>
    %119 = tpu.matmul %113, %13, %cst_43 {dimension_numbers = #tpu.dot_dimension_numbers<[1], [0], [0], [1], [0, 0, 1, 1], [], []>} : vector<2x32xf32>, vector<32x96xf32>, vector<2x96xf32> -> vector<2x96xf32>
    %120 = vector.broadcast %14 : vector<1x96xf32> to vector<2x96xf32>
    %121 = arith.addf %119, %120 : vector<2x96xf32>
    %122 = vector.extract_strided_slice %118 {offsets = [0, 0], sizes = [2, 32], strides = [1, 1]} : vector<2x96xf32> to vector<2x32xf32>
    %123 = vector.extract_strided_slice %121 {offsets = [0, 0], sizes = [2, 32], strides = [1, 1]} : vector<2x96xf32> to vector<2x32xf32>
    %124 = arith.addf %122, %123 : vector<2x32xf32>
    %125 = arith.negf %124 : vector<2x32xf32>
    %126 = math.exp %125 : vector<2x32xf32>
    %cst_44 = arith.constant 1.000000e+00 : f32
    %127 = vector.broadcast %cst_44 : f32 to vector<2x32xf32>
    %128 = arith.addf %127, %126 : vector<2x32xf32>
    %129 = arith.divf %127, %128 : vector<2x32xf32>
    %130 = vector.extract_strided_slice %118 {offsets = [0, 32], sizes = [2, 32], strides = [1, 1]} : vector<2x96xf32> to vector<2x32xf32>
    %131 = vector.extract_strided_slice %121 {offsets = [0, 32], sizes = [2, 32], strides = [1, 1]} : vector<2x96xf32> to vector<2x32xf32>
    %132 = arith.addf %130, %131 : vector<2x32xf32>
    %133 = arith.negf %132 : vector<2x32xf32>
    %134 = math.exp %133 : vector<2x32xf32>
    %cst_45 = arith.constant 1.000000e+00 : f32
    %135 = vector.broadcast %cst_45 : f32 to vector<2x32xf32>
    %136 = arith.addf %135, %134 : vector<2x32xf32>
    %137 = arith.divf %135, %136 : vector<2x32xf32>
    %138 = vector.extract_strided_slice %118 {offsets = [0, 64], sizes = [2, 32], strides = [1, 1]} : vector<2x96xf32> to vector<2x32xf32>
    %139 = vector.extract_strided_slice %121 {offsets = [0, 64], sizes = [2, 32], strides = [1, 1]} : vector<2x96xf32> to vector<2x32xf32>
    %140 = arith.mulf %129, %139 : vector<2x32xf32>
    %141 = arith.addf %138, %140 : vector<2x32xf32>
    %142 = math.tanh %141 : vector<2x32xf32>
    %cst_46 = arith.constant 1.000000e+00 : f32
    %143 = vector.broadcast %cst_46 : f32 to vector<2x32xf32>
    %144 = arith.subf %143, %137 : vector<2x32xf32>
    %145 = arith.mulf %144, %142 : vector<2x32xf32>
    %146 = arith.mulf %137, %113 : vector<2x32xf32>
    %147 = arith.addf %145, %146 : vector<2x32xf32>
    %148 = vector.extract_strided_slice %147 {offsets = [0, 0], sizes = [1, 32], strides = [1, 1]} : vector<2x32xf32> to vector<1x32xf32>
    %c3_47 = arith.constant 3 : index
    %c0_48 = arith.constant 0 : index
    %149 = vector.load %arg26[%c3_47, %c0_48] : memref<16x32xf32, #tpu.memory_space<vmem>>, vector<1x32xf32>
    tpu.vector_store %arg26[%c3_47, %c0_48], %148 {strides = array<i32>} : memref<16x32xf32, #tpu.memory_space<vmem>>, vector<1x32xf32>,
    %150 = vector.extract_strided_slice %147 {offsets = [1, 0], sizes = [1, 32], strides = [1, 1]} : vector<2x32xf32> to vector<1x32xf32>
    %c11 = arith.constant 11 : index
    %c0_49 = arith.constant 0 : index
    %151 = vector.load %arg26[%c11, %c0_49] : memref<16x32xf32, #tpu.memory_space<vmem>>, vector<1x32xf32>
    tpu.vector_store %arg26[%c11, %c0_49], %150 {strides = array<i32>} : memref<16x32xf32, #tpu.memory_space<vmem>>, vector<1x32xf32>,
    %c4 = arith.constant 4 : index
    %c0_50 = arith.constant 0 : index
    %152 = tpu.strided_load %arg25[%c4, %c0_50] {strides = array<i32: 8, 1>} : memref<16x96xf32, #tpu.memory_space<vmem>>, vector<2x96xf32>
    %cst_51 = arith.constant dense<0.000000e+00> : vector<2x96xf32>
    %153 = tpu.matmul %147, %13, %cst_51 {dimension_numbers = #tpu.dot_dimension_numbers<[1], [0], [0], [1], [0, 0, 1, 1], [], []>} : vector<2x32xf32>, vector<32x96xf32>, vector<2x96xf32> -> vector<2x96xf32>
    %154 = vector.broadcast %14 : vector<1x96xf32> to vector<2x96xf32>
    %155 = arith.addf %153, %154 : vector<2x96xf32>
    %156 = vector.extract_strided_slice %152 {offsets = [0, 0], sizes = [2, 32], strides = [1, 1]} : vector<2x96xf32> to vector<2x32xf32>
    %157 = vector.extract_strided_slice %155 {offsets = [0, 0], sizes = [2, 32], strides = [1, 1]} : vector<2x96xf32> to vector<2x32xf32>
    %158 = arith.addf %156, %157 : vector<2x32xf32>
    %159 = arith.negf %158 : vector<2x32xf32>
    %160 = math.exp %159 : vector<2x32xf32>
    %cst_52 = arith.constant 1.000000e+00 : f32
    %161 = vector.broadcast %cst_52 : f32 to vector<2x32xf32>
    %162 = arith.addf %161, %160 : vector<2x32xf32>
    %163 = arith.divf %161, %162 : vector<2x32xf32>
    %164 = vector.extract_strided_slice %152 {offsets = [0, 32], sizes = [2, 32], strides = [1, 1]} : vector<2x96xf32> to vector<2x32xf32>
    %165 = vector.extract_strided_slice %155 {offsets = [0, 32], sizes = [2, 32], strides = [1, 1]} : vector<2x96xf32> to vector<2x32xf32>
    %166 = arith.addf %164, %165 : vector<2x32xf32>
    %167 = arith.negf %166 : vector<2x32xf32>
    %168 = math.exp %167 : vector<2x32xf32>
    %cst_53 = arith.constant 1.000000e+00 : f32
    %169 = vector.broadcast %cst_53 : f32 to vector<2x32xf32>
    %170 = arith.addf %169, %168 : vector<2x32xf32>
    %171 = arith.divf %169, %170 : vector<2x32xf32>
    %172 = vector.extract_strided_slice %152 {offsets = [0, 64], sizes = [2, 32], strides = [1, 1]} : vector<2x96xf32> to vector<2x32xf32>
    %173 = vector.extract_strided_slice %155 {offsets = [0, 64], sizes = [2, 32], strides = [1, 1]} : vector<2x96xf32> to vector<2x32xf32>
    %174 = arith.mulf %163, %173 : vector<2x32xf32>
    %175 = arith.addf %172, %174 : vector<2x32xf32>
    %176 = math.tanh %175 : vector<2x32xf32>
    %cst_54 = arith.constant 1.000000e+00 : f32
    %177 = vector.broadcast %cst_54 : f32 to vector<2x32xf32>
    %178 = arith.subf %177, %171 : vector<2x32xf32>
    %179 = arith.mulf %178, %176 : vector<2x32xf32>
    %180 = arith.mulf %171, %147 : vector<2x32xf32>
    %181 = arith.addf %179, %180 : vector<2x32xf32>
    %182 = vector.extract_strided_slice %181 {offsets = [0, 0], sizes = [1, 32], strides = [1, 1]} : vector<2x32xf32> to vector<1x32xf32>
    %c4_55 = arith.constant 4 : index
    %c0_56 = arith.constant 0 : index
    %183 = vector.load %arg26[%c4_55, %c0_56] : memref<16x32xf32, #tpu.memory_space<vmem>>, vector<1x32xf32>
    tpu.vector_store %arg26[%c4_55, %c0_56], %182 {strides = array<i32>} : memref<16x32xf32, #tpu.memory_space<vmem>>, vector<1x32xf32>,
    %184 = vector.extract_strided_slice %181 {offsets = [1, 0], sizes = [1, 32], strides = [1, 1]} : vector<2x32xf32> to vector<1x32xf32>
    %c12 = arith.constant 12 : index
    %c0_57 = arith.constant 0 : index
    %185 = vector.load %arg26[%c12, %c0_57] : memref<16x32xf32, #tpu.memory_space<vmem>>, vector<1x32xf32>
    tpu.vector_store %arg26[%c12, %c0_57], %184 {strides = array<i32>} : memref<16x32xf32, #tpu.memory_space<vmem>>, vector<1x32xf32>,
    %c5 = arith.constant 5 : index
    %c0_58 = arith.constant 0 : index
    %186 = tpu.strided_load %arg25[%c5, %c0_58] {strides = array<i32: 8, 1>} : memref<16x96xf32, #tpu.memory_space<vmem>>, vector<2x96xf32>
    %cst_59 = arith.constant dense<0.000000e+00> : vector<2x96xf32>
    %187 = tpu.matmul %181, %13, %cst_59 {dimension_numbers = #tpu.dot_dimension_numbers<[1], [0], [0], [1], [0, 0, 1, 1], [], []>} : vector<2x32xf32>, vector<32x96xf32>, vector<2x96xf32> -> vector<2x96xf32>
    %188 = vector.broadcast %14 : vector<1x96xf32> to vector<2x96xf32>
    %189 = arith.addf %187, %188 : vector<2x96xf32>
    %190 = vector.extract_strided_slice %186 {offsets = [0, 0], sizes = [2, 32], strides = [1, 1]} : vector<2x96xf32> to vector<2x32xf32>
    %191 = vector.extract_strided_slice %189 {offsets = [0, 0], sizes = [2, 32], strides = [1, 1]} : vector<2x96xf32> to vector<2x32xf32>
    %192 = arith.addf %190, %191 : vector<2x32xf32>
    %193 = arith.negf %192 : vector<2x32xf32>
    %194 = math.exp %193 : vector<2x32xf32>
    %cst_60 = arith.constant 1.000000e+00 : f32
    %195 = vector.broadcast %cst_60 : f32 to vector<2x32xf32>
    %196 = arith.addf %195, %194 : vector<2x32xf32>
    %197 = arith.divf %195, %196 : vector<2x32xf32>
    %198 = vector.extract_strided_slice %186 {offsets = [0, 32], sizes = [2, 32], strides = [1, 1]} : vector<2x96xf32> to vector<2x32xf32>
    %199 = vector.extract_strided_slice %189 {offsets = [0, 32], sizes = [2, 32], strides = [1, 1]} : vector<2x96xf32> to vector<2x32xf32>
    %200 = arith.addf %198, %199 : vector<2x32xf32>
    %201 = arith.negf %200 : vector<2x32xf32>
    %202 = math.exp %201 : vector<2x32xf32>
    %cst_61 = arith.constant 1.000000e+00 : f32
    %203 = vector.broadcast %cst_61 : f32 to vector<2x32xf32>
    %204 = arith.addf %203, %202 : vector<2x32xf32>
    %205 = arith.divf %203, %204 : vector<2x32xf32>
    %206 = vector.extract_strided_slice %186 {offsets = [0, 64], sizes = [2, 32], strides = [1, 1]} : vector<2x96xf32> to vector<2x32xf32>
    %207 = vector.extract_strided_slice %189 {offsets = [0, 64], sizes = [2, 32], strides = [1, 1]} : vector<2x96xf32> to vector<2x32xf32>
    %208 = arith.mulf %197, %207 : vector<2x32xf32>
    %209 = arith.addf %206, %208 : vector<2x32xf32>
    %210 = math.tanh %209 : vector<2x32xf32>
    %cst_62 = arith.constant 1.000000e+00 : f32
    %211 = vector.broadcast %cst_62 : f32 to vector<2x32xf32>
    %212 = arith.subf %211, %205 : vector<2x32xf32>
    %213 = arith.mulf %212, %210 : vector<2x32xf32>
    %214 = arith.mulf %205, %181 : vector<2x32xf32>
    %215 = arith.addf %213, %214 : vector<2x32xf32>
    %216 = vector.extract_strided_slice %215 {offsets = [0, 0], sizes = [1, 32], strides = [1, 1]} : vector<2x32xf32> to vector<1x32xf32>
    %c5_63 = arith.constant 5 : index
    %c0_64 = arith.constant 0 : index
    %217 = vector.load %arg26[%c5_63, %c0_64] : memref<16x32xf32, #tpu.memory_space<vmem>>, vector<1x32xf32>
    tpu.vector_store %arg26[%c5_63, %c0_64], %216 {strides = array<i32>} : memref<16x32xf32, #tpu.memory_space<vmem>>, vector<1x32xf32>,
    %218 = vector.extract_strided_slice %215 {offsets = [1, 0], sizes = [1, 32], strides = [1, 1]} : vector<2x32xf32> to vector<1x32xf32>
    %c13 = arith.constant 13 : index
    %c0_65 = arith.constant 0 : index
    %219 = vector.load %arg26[%c13, %c0_65] : memref<16x32xf32, #tpu.memory_space<vmem>>, vector<1x32xf32>
    tpu.vector_store %arg26[%c13, %c0_65], %218 {strides = array<i32>} : memref<16x32xf32, #tpu.memory_space<vmem>>, vector<1x32xf32>,
    %c6 = arith.constant 6 : index
    %c0_66 = arith.constant 0 : index
    %220 = tpu.strided_load %arg25[%c6, %c0_66] {strides = array<i32: 8, 1>} : memref<16x96xf32, #tpu.memory_space<vmem>>, vector<2x96xf32>
    %cst_67 = arith.constant dense<0.000000e+00> : vector<2x96xf32>
    %221 = tpu.matmul %215, %13, %cst_67 {dimension_numbers = #tpu.dot_dimension_numbers<[1], [0], [0], [1], [0, 0, 1, 1], [], []>} : vector<2x32xf32>, vector<32x96xf32>, vector<2x96xf32> -> vector<2x96xf32>
    %222 = vector.broadcast %14 : vector<1x96xf32> to vector<2x96xf32>
    %223 = arith.addf %221, %222 : vector<2x96xf32>
    %224 = vector.extract_strided_slice %220 {offsets = [0, 0], sizes = [2, 32], strides = [1, 1]} : vector<2x96xf32> to vector<2x32xf32>
    %225 = vector.extract_strided_slice %223 {offsets = [0, 0], sizes = [2, 32], strides = [1, 1]} : vector<2x96xf32> to vector<2x32xf32>
    %226 = arith.addf %224, %225 : vector<2x32xf32>
    %227 = arith.negf %226 : vector<2x32xf32>
    %228 = math.exp %227 : vector<2x32xf32>
    %cst_68 = arith.constant 1.000000e+00 : f32
    %229 = vector.broadcast %cst_68 : f32 to vector<2x32xf32>
    %230 = arith.addf %229, %228 : vector<2x32xf32>
    %231 = arith.divf %229, %230 : vector<2x32xf32>
    %232 = vector.extract_strided_slice %220 {offsets = [0, 32], sizes = [2, 32], strides = [1, 1]} : vector<2x96xf32> to vector<2x32xf32>
    %233 = vector.extract_strided_slice %223 {offsets = [0, 32], sizes = [2, 32], strides = [1, 1]} : vector<2x96xf32> to vector<2x32xf32>
    %234 = arith.addf %232, %233 : vector<2x32xf32>
    %235 = arith.negf %234 : vector<2x32xf32>
    %236 = math.exp %235 : vector<2x32xf32>
    %cst_69 = arith.constant 1.000000e+00 : f32
    %237 = vector.broadcast %cst_69 : f32 to vector<2x32xf32>
    %238 = arith.addf %237, %236 : vector<2x32xf32>
    %239 = arith.divf %237, %238 : vector<2x32xf32>
    %240 = vector.extract_strided_slice %220 {offsets = [0, 64], sizes = [2, 32], strides = [1, 1]} : vector<2x96xf32> to vector<2x32xf32>
    %241 = vector.extract_strided_slice %223 {offsets = [0, 64], sizes = [2, 32], strides = [1, 1]} : vector<2x96xf32> to vector<2x32xf32>
    %242 = arith.mulf %231, %241 : vector<2x32xf32>
    %243 = arith.addf %240, %242 : vector<2x32xf32>
    %244 = math.tanh %243 : vector<2x32xf32>
    %cst_70 = arith.constant 1.000000e+00 : f32
    %245 = vector.broadcast %cst_70 : f32 to vector<2x32xf32>
    %246 = arith.subf %245, %239 : vector<2x32xf32>
    %247 = arith.mulf %246, %244 : vector<2x32xf32>
    %248 = arith.mulf %239, %215 : vector<2x32xf32>
    %249 = arith.addf %247, %248 : vector<2x32xf32>
    %250 = vector.extract_strided_slice %249 {offsets = [0, 0], sizes = [1, 32], strides = [1, 1]} : vector<2x32xf32> to vector<1x32xf32>
    %c6_71 = arith.constant 6 : index
    %c0_72 = arith.constant 0 : index
    %251 = vector.load %arg26[%c6_71, %c0_72] : memref<16x32xf32, #tpu.memory_space<vmem>>, vector<1x32xf32>
    tpu.vector_store %arg26[%c6_71, %c0_72], %250 {strides = array<i32>} : memref<16x32xf32, #tpu.memory_space<vmem>>, vector<1x32xf32>,
    %252 = vector.extract_strided_slice %249 {offsets = [1, 0], sizes = [1, 32], strides = [1, 1]} : vector<2x32xf32> to vector<1x32xf32>
    %c14 = arith.constant 14 : index
    %c0_73 = arith.constant 0 : index
    %253 = vector.load %arg26[%c14, %c0_73] : memref<16x32xf32, #tpu.memory_space<vmem>>, vector<1x32xf32>
    tpu.vector_store %arg26[%c14, %c0_73], %252 {strides = array<i32>} : memref<16x32xf32, #tpu.memory_space<vmem>>, vector<1x32xf32>,
    %c7 = arith.constant 7 : index
    %c0_74 = arith.constant 0 : index
    %254 = tpu.strided_load %arg25[%c7, %c0_74] {strides = array<i32: 8, 1>} : memref<16x96xf32, #tpu.memory_space<vmem>>, vector<2x96xf32>
    %cst_75 = arith.constant dense<0.000000e+00> : vector<2x96xf32>
    %255 = tpu.matmul %249, %13, %cst_75 {dimension_numbers = #tpu.dot_dimension_numbers<[1], [0], [0], [1], [0, 0, 1, 1], [], []>} : vector<2x32xf32>, vector<32x96xf32>, vector<2x96xf32> -> vector<2x96xf32>
    %256 = vector.broadcast %14 : vector<1x96xf32> to vector<2x96xf32>
    %257 = arith.addf %255, %256 : vector<2x96xf32>
    %258 = vector.extract_strided_slice %254 {offsets = [0, 0], sizes = [2, 32], strides = [1, 1]} : vector<2x96xf32> to vector<2x32xf32>
    %259 = vector.extract_strided_slice %257 {offsets = [0, 0], sizes = [2, 32], strides = [1, 1]} : vector<2x96xf32> to vector<2x32xf32>
    %260 = arith.addf %258, %259 : vector<2x32xf32>
    %261 = arith.negf %260 : vector<2x32xf32>
    %262 = math.exp %261 : vector<2x32xf32>
    %cst_76 = arith.constant 1.000000e+00 : f32
    %263 = vector.broadcast %cst_76 : f32 to vector<2x32xf32>
    %264 = arith.addf %263, %262 : vector<2x32xf32>
    %265 = arith.divf %263, %264 : vector<2x32xf32>
    %266 = vector.extract_strided_slice %254 {offsets = [0, 32], sizes = [2, 32], strides = [1, 1]} : vector<2x96xf32> to vector<2x32xf32>
    %267 = vector.extract_strided_slice %257 {offsets = [0, 32], sizes = [2, 32], strides = [1, 1]} : vector<2x96xf32> to vector<2x32xf32>
    %268 = arith.addf %266, %267 : vector<2x32xf32>
    %269 = arith.negf %268 : vector<2x32xf32>
    %270 = math.exp %269 : vector<2x32xf32>
    %cst_77 = arith.constant 1.000000e+00 : f32
    %271 = vector.broadcast %cst_77 : f32 to vector<2x32xf32>
    %272 = arith.addf %271, %270 : vector<2x32xf32>
    %273 = arith.divf %271, %272 : vector<2x32xf32>
    %274 = vector.extract_strided_slice %254 {offsets = [0, 64], sizes = [2, 32], strides = [1, 1]} : vector<2x96xf32> to vector<2x32xf32>
    %275 = vector.extract_strided_slice %257 {offsets = [0, 64], sizes = [2, 32], strides = [1, 1]} : vector<2x96xf32> to vector<2x32xf32>
    %276 = arith.mulf %265, %275 : vector<2x32xf32>
    %277 = arith.addf %274, %276 : vector<2x32xf32>
    %278 = math.tanh %277 : vector<2x32xf32>
    %cst_78 = arith.constant 1.000000e+00 : f32
    %279 = vector.broadcast %cst_78 : f32 to vector<2x32xf32>
    %280 = arith.subf %279, %273 : vector<2x32xf32>
    %281 = arith.mulf %280, %278 : vector<2x32xf32>
    %282 = arith.mulf %273, %249 : vector<2x32xf32>
    %283 = arith.addf %281, %282 : vector<2x32xf32>
    %284 = vector.extract_strided_slice %283 {offsets = [0, 0], sizes = [1, 32], strides = [1, 1]} : vector<2x32xf32> to vector<1x32xf32>
    %c7_79 = arith.constant 7 : index
    %c0_80 = arith.constant 0 : index
    %285 = vector.load %arg26[%c7_79, %c0_80] : memref<16x32xf32, #tpu.memory_space<vmem>>, vector<1x32xf32>
    tpu.vector_store %arg26[%c7_79, %c0_80], %284 {strides = array<i32>} : memref<16x32xf32, #tpu.memory_space<vmem>>, vector<1x32xf32>,
    %286 = vector.extract_strided_slice %283 {offsets = [1, 0], sizes = [1, 32], strides = [1, 1]} : vector<2x32xf32> to vector<1x32xf32>
    %c15 = arith.constant 15 : index
    %c0_81 = arith.constant 0 : index
    %287 = vector.load %arg26[%c15, %c0_81] : memref<16x32xf32, #tpu.memory_space<vmem>>, vector<1x32xf32>
    tpu.vector_store %arg26[%c15, %c0_81], %286 {strides = array<i32>} : memref<16x32xf32, #tpu.memory_space<vmem>>, vector<1x32xf32>,
    %c0_82 = arith.constant 0 : index
    %c0_83 = arith.constant 0 : index
    %288 = vector.load %arg26[%c0_82, %c0_83] : memref<16x32xf32, #tpu.memory_space<vmem>>, vector<16x32xf32>
    %c0_84 = arith.constant 0 : index
    %c0_85 = arith.constant 0 : index
    %289 = vector.load %arg14[%c0_84, %c0_85] : memref<32x96xf32, #tpu.memory_space<vmem>>, vector<32x96xf32>
    %cst_86 = arith.constant dense<0.000000e+00> : vector<16x96xf32>
    %290 = tpu.matmul %288, %289, %cst_86 {dimension_numbers = #tpu.dot_dimension_numbers<[1], [0], [0], [1], [0, 0, 1, 1], [], []>} : vector<16x32xf32>, vector<32x96xf32>, vector<16x96xf32> -> vector<16x96xf32>
    %c0_87 = arith.constant 0 : index
    %c0_88 = arith.constant 0 : index
    %291 = vector.load %arg15[%c0_87, %c0_88] : memref<1x96xf32, #tpu.memory_space<vmem>>, vector<1x96xf32>
    %292 = vector.broadcast %291 : vector<1x96xf32> to vector<16x96xf32>
    %293 = arith.addf %290, %292 : vector<16x96xf32>
    %294 = vector.extract_strided_slice %293 {offsets = [0, 0], sizes = [16, 32], strides = [1, 1]} : vector<16x96xf32> to vector<16x32xf32>
    %295 = vector.shape_cast %294 : vector<16x32xf32> to vector<2x8x32xf32>
    %296 = vector.extract_strided_slice %293 {offsets = [0, 32], sizes = [16, 32], strides = [1, 1]} : vector<16x96xf32> to vector<16x32xf32>
    %297 = vector.shape_cast %296 : vector<16x32xf32> to vector<2x8x32xf32>
    %298 = vector.extract_strided_slice %293 {offsets = [0, 64], sizes = [16, 32], strides = [1, 1]} : vector<16x96xf32> to vector<16x32xf32>
    %299 = vector.shape_cast %298 : vector<16x32xf32> to vector<2x8x32xf32>
    %300 = vector.extract_strided_slice %295 {offsets = [0, 0, 0], sizes = [2, 8, 8], strides = [1, 1, 1]} : vector<2x8x32xf32> to vector<2x8x8xf32>
    %301 = vector.extract_strided_slice %297 {offsets = [0, 0, 0], sizes = [2, 8, 8], strides = [1, 1, 1]} : vector<2x8x32xf32> to vector<2x8x8xf32>
    %302 = vector.extract_strided_slice %299 {offsets = [0, 0, 0], sizes = [2, 8, 8], strides = [1, 1, 1]} : vector<2x8x32xf32> to vector<2x8x8xf32>
    "tpu.trace_start"() <{level = 10 : i32, message = "bqd,bkd->bqk"}> : () -> ()
    %cst_89 = arith.constant dense<0.000000e+00> : vector<2x8x8xf32>
    %303 = tpu.matmul %300, %301, %cst_89 {dimension_numbers = #tpu.dot_dimension_numbers<[2], [2], [1], [1], [0, 0, 0, 1, 1, 1], [0], [0]>} : vector<2x8x8xf32>, vector<2x8x8xf32>, vector<2x8x8xf32> -> vector<2x8x8xf32>
    "tpu.trace_stop"() : () -> ()
    %cst_90 = arith.constant dense<0xFF800000> : vector<2x8xf32>
    %304 = vector.multi_reduction <maximumf>, %303, %cst_90 [2] : vector<2x8x8xf32> to vector<2x8xf32>
    %305 = vector.shape_cast %304 : vector<2x8xf32> to vector<2x8x1xf32>
    %306 = vector.broadcast %305 : vector<2x8x1xf32> to vector<2x8x8xf32>
    %307 = arith.subf %303, %306 : vector<2x8x8xf32>
    %308 = math.exp %307 : vector<2x8x8xf32>
    %cst_91 = arith.constant dense<0.000000e+00> : vector<2x8xf32>
    %309 = vector.multi_reduction <add>, %308, %cst_91 [2] : vector<2x8x8xf32> to vector<2x8xf32>
    %310 = vector.shape_cast %309 : vector<2x8xf32> to vector<2x8x1xf32>
    %311 = tpu.reciprocal %310 {approx = true} : vector<2x8x1xf32> -> vector<2x8x1xf32>
    %312 = vector.broadcast %311 : vector<2x8x1xf32> to vector<2x8x8xf32>
    %313 = arith.mulf %308, %312 : vector<2x8x8xf32>
    "tpu.trace_start"() <{level = 10 : i32, message = "bqk,bkd->bqd"}> : () -> ()
    %cst_92 = arith.constant dense<0.000000e+00> : vector<2x8x8xf32>
    %314 = tpu.matmul %313, %302, %cst_92 {dimension_numbers = #tpu.dot_dimension_numbers<[2], [1], [1], [2], [0, 0, 0, 1, 1, 2], [0], [0]>} : vector<2x8x8xf32>, vector<2x8x8xf32>, vector<2x8x8xf32> -> vector<2x8x8xf32>
    "tpu.trace_stop"() : () -> ()
    %315 = vector.extract_strided_slice %295 {offsets = [0, 0, 8], sizes = [2, 8, 8], strides = [1, 1, 1]} : vector<2x8x32xf32> to vector<2x8x8xf32>
    %316 = vector.extract_strided_slice %297 {offsets = [0, 0, 8], sizes = [2, 8, 8], strides = [1, 1, 1]} : vector<2x8x32xf32> to vector<2x8x8xf32>
    %317 = vector.extract_strided_slice %299 {offsets = [0, 0, 8], sizes = [2, 8, 8], strides = [1, 1, 1]} : vector<2x8x32xf32> to vector<2x8x8xf32>
    "tpu.trace_start"() <{level = 10 : i32, message = "bqd,bkd->bqk"}> : () -> ()
    %cst_93 = arith.constant dense<0.000000e+00> : vector<2x8x8xf32>
    %318 = tpu.matmul %315, %316, %cst_93 {dimension_numbers = #tpu.dot_dimension_numbers<[2], [2], [1], [1], [0, 0, 0, 1, 1, 1], [0], [0]>} : vector<2x8x8xf32>, vector<2x8x8xf32>, vector<2x8x8xf32> -> vector<2x8x8xf32>
    "tpu.trace_stop"() : () -> ()
    %cst_94 = arith.constant dense<0xFF800000> : vector<2x8xf32>
    %319 = vector.multi_reduction <maximumf>, %318, %cst_94 [2] : vector<2x8x8xf32> to vector<2x8xf32>
    %320 = vector.shape_cast %319 : vector<2x8xf32> to vector<2x8x1xf32>
    %321 = vector.broadcast %320 : vector<2x8x1xf32> to vector<2x8x8xf32>
    %322 = arith.subf %318, %321 : vector<2x8x8xf32>
    %323 = math.exp %322 : vector<2x8x8xf32>
    %cst_95 = arith.constant dense<0.000000e+00> : vector<2x8xf32>
    %324 = vector.multi_reduction <add>, %323, %cst_95 [2] : vector<2x8x8xf32> to vector<2x8xf32>
    %325 = vector.shape_cast %324 : vector<2x8xf32> to vector<2x8x1xf32>
    %326 = tpu.reciprocal %325 {approx = true} : vector<2x8x1xf32> -> vector<2x8x1xf32>
    %327 = vector.broadcast %326 : vector<2x8x1xf32> to vector<2x8x8xf32>
    %328 = arith.mulf %323, %327 : vector<2x8x8xf32>
    "tpu.trace_start"() <{level = 10 : i32, message = "bqk,bkd->bqd"}> : () -> ()
    %cst_96 = arith.constant dense<0.000000e+00> : vector<2x8x8xf32>
    %329 = tpu.matmul %328, %317, %cst_96 {dimension_numbers = #tpu.dot_dimension_numbers<[2], [1], [1], [2], [0, 0, 0, 1, 1, 2], [0], [0]>} : vector<2x8x8xf32>, vector<2x8x8xf32>, vector<2x8x8xf32> -> vector<2x8x8xf32>
    "tpu.trace_stop"() : () -> ()
    %330 = vector.extract_strided_slice %295 {offsets = [0, 0, 16], sizes = [2, 8, 8], strides = [1, 1, 1]} : vector<2x8x32xf32> to vector<2x8x8xf32>
    %331 = vector.extract_strided_slice %297 {offsets = [0, 0, 16], sizes = [2, 8, 8], strides = [1, 1, 1]} : vector<2x8x32xf32> to vector<2x8x8xf32>
    %332 = vector.extract_strided_slice %299 {offsets = [0, 0, 16], sizes = [2, 8, 8], strides = [1, 1, 1]} : vector<2x8x32xf32> to vector<2x8x8xf32>
    "tpu.trace_start"() <{level = 10 : i32, message = "bqd,bkd->bqk"}> : () -> ()
    %cst_97 = arith.constant dense<0.000000e+00> : vector<2x8x8xf32>
    %333 = tpu.matmul %330, %331, %cst_97 {dimension_numbers = #tpu.dot_dimension_numbers<[2], [2], [1], [1], [0, 0, 0, 1, 1, 1], [0], [0]>} : vector<2x8x8xf32>, vector<2x8x8xf32>, vector<2x8x8xf32> -> vector<2x8x8xf32>
    "tpu.trace_stop"() : () -> ()
    %cst_98 = arith.constant dense<0xFF800000> : vector<2x8xf32>
    %334 = vector.multi_reduction <maximumf>, %333, %cst_98 [2] : vector<2x8x8xf32> to vector<2x8xf32>
    %335 = vector.shape_cast %334 : vector<2x8xf32> to vector<2x8x1xf32>
    %336 = vector.broadcast %335 : vector<2x8x1xf32> to vector<2x8x8xf32>
    %337 = arith.subf %333, %336 : vector<2x8x8xf32>
    %338 = math.exp %337 : vector<2x8x8xf32>
    %cst_99 = arith.constant dense<0.000000e+00> : vector<2x8xf32>
    %339 = vector.multi_reduction <add>, %338, %cst_99 [2] : vector<2x8x8xf32> to vector<2x8xf32>
    %340 = vector.shape_cast %339 : vector<2x8xf32> to vector<2x8x1xf32>
    %341 = tpu.reciprocal %340 {approx = true} : vector<2x8x1xf32> -> vector<2x8x1xf32>
    %342 = vector.broadcast %341 : vector<2x8x1xf32> to vector<2x8x8xf32>
    %343 = arith.mulf %338, %342 : vector<2x8x8xf32>
    "tpu.trace_start"() <{level = 10 : i32, message = "bqk,bkd->bqd"}> : () -> ()
    %cst_100 = arith.constant dense<0.000000e+00> : vector<2x8x8xf32>
    %344 = tpu.matmul %343, %332, %cst_100 {dimension_numbers = #tpu.dot_dimension_numbers<[2], [1], [1], [2], [0, 0, 0, 1, 1, 2], [0], [0]>} : vector<2x8x8xf32>, vector<2x8x8xf32>, vector<2x8x8xf32> -> vector<2x8x8xf32>
    "tpu.trace_stop"() : () -> ()
    %345 = vector.extract_strided_slice %295 {offsets = [0, 0, 24], sizes = [2, 8, 8], strides = [1, 1, 1]} : vector<2x8x32xf32> to vector<2x8x8xf32>
    %346 = vector.extract_strided_slice %297 {offsets = [0, 0, 24], sizes = [2, 8, 8], strides = [1, 1, 1]} : vector<2x8x32xf32> to vector<2x8x8xf32>
    %347 = vector.extract_strided_slice %299 {offsets = [0, 0, 24], sizes = [2, 8, 8], strides = [1, 1, 1]} : vector<2x8x32xf32> to vector<2x8x8xf32>
    "tpu.trace_start"() <{level = 10 : i32, message = "bqd,bkd->bqk"}> : () -> ()
    %cst_101 = arith.constant dense<0.000000e+00> : vector<2x8x8xf32>
    %348 = tpu.matmul %345, %346, %cst_101 {dimension_numbers = #tpu.dot_dimension_numbers<[2], [2], [1], [1], [0, 0, 0, 1, 1, 1], [0], [0]>} : vector<2x8x8xf32>, vector<2x8x8xf32>, vector<2x8x8xf32> -> vector<2x8x8xf32>
    "tpu.trace_stop"() : () -> ()
    %cst_102 = arith.constant dense<0xFF800000> : vector<2x8xf32>
    %349 = vector.multi_reduction <maximumf>, %348, %cst_102 [2] : vector<2x8x8xf32> to vector<2x8xf32>
    %350 = vector.shape_cast %349 : vector<2x8xf32> to vector<2x8x1xf32>
    %351 = vector.broadcast %350 : vector<2x8x1xf32> to vector<2x8x8xf32>
    %352 = arith.subf %348, %351 : vector<2x8x8xf32>
    %353 = math.exp %352 : vector<2x8x8xf32>
    %cst_103 = arith.constant dense<0.000000e+00> : vector<2x8xf32>
    %354 = vector.multi_reduction <add>, %353, %cst_103 [2] : vector<2x8x8xf32> to vector<2x8xf32>
    %355 = vector.shape_cast %354 : vector<2x8xf32> to vector<2x8x1xf32>
    %356 = tpu.reciprocal %355 {approx = true} : vector<2x8x1xf32> -> vector<2x8x1xf32>
    %357 = vector.broadcast %356 : vector<2x8x1xf32> to vector<2x8x8xf32>
    %358 = arith.mulf %353, %357 : vector<2x8x8xf32>
    "tpu.trace_start"() <{level = 10 : i32, message = "bqk,bkd->bqd"}> : () -> ()
    %cst_104 = arith.constant dense<0.000000e+00> : vector<2x8x8xf32>
    %359 = tpu.matmul %358, %347, %cst_104 {dimension_numbers = #tpu.dot_dimension_numbers<[2], [1], [1], [2], [0, 0, 0, 1, 1, 2], [0], [0]>} : vector<2x8x8xf32>, vector<2x8x8xf32>, vector<2x8x8xf32> -> vector<2x8x8xf32>
    "tpu.trace_stop"() : () -> ()
    %360 = tpu.concatenate %314, %329, %344, %359 in 2 : vector<2x8x8xf32>, vector<2x8x8xf32>, vector<2x8x8xf32>, vector<2x8x8xf32> -> vector<2x8x32xf32>
    %361 = vector.shape_cast %360 : vector<2x8x32xf32> to vector<16x32xf32>
    %c0_105 = arith.constant 0 : index
    %c0_106 = arith.constant 0 : index
    %362 = vector.load %arg16[%c0_105, %c0_106] : memref<32x32xf32, #tpu.memory_space<vmem>>, vector<32x32xf32>
    %cst_107 = arith.constant dense<0.000000e+00> : vector<16x32xf32>
    %363 = tpu.matmul %361, %362, %cst_107 {dimension_numbers = #tpu.dot_dimension_numbers<[1], [0], [0], [1], [0, 0, 1, 1], [], []>} : vector<16x32xf32>, vector<32x32xf32>, vector<16x32xf32> -> vector<16x32xf32>
    %c0_108 = arith.constant 0 : index
    %c0_109 = arith.constant 0 : index
    %364 = vector.load %arg17[%c0_108, %c0_109] : memref<1x32xf32, #tpu.memory_space<vmem>>, vector<1x32xf32>
    %365 = vector.broadcast %364 : vector<1x32xf32> to vector<16x32xf32>
    %366 = arith.addf %363, %365 : vector<16x32xf32>
    %c0_110 = arith.constant 0 : index
    %c0_111 = arith.constant 0 : index
    %367 = vector.load %arg28[%c0_110, %c0_111] : memref<16x32xf32, #tpu.memory_space<vmem>>, vector<16x32xf32>
    tpu.vector_store %arg28[%c0_110, %c0_111], %366 {strides = array<i32>} : memref<16x32xf32, #tpu.memory_space<vmem>>, vector<16x32xf32>,
    %c0_112 = arith.constant 0 : index
    %c0_113 = arith.constant 0 : index
    %368 = vector.load %arg0[%c0_112, %c0_113] : memref<8x8xf32, #tpu.memory_space<vmem>>, vector<8x8xf32>
    %c0_114 = arith.constant 0 : index
    %c0_115 = arith.constant 0 : index
    %369 = vector.load %arg2[%c0_114, %c0_115] : memref<8x32xf32, #tpu.memory_space<vmem>>, vector<8x32xf32>
    %cst_116 = arith.constant dense<0.000000e+00> : vector<8x32xf32>
    %370 = tpu.matmul %368, %369, %cst_116 {dimension_numbers = #tpu.dot_dimension_numbers<[1], [0], [0], [1], [0, 0, 1, 1], [], []>} : vector<8x8xf32>, vector<8x32xf32>, vector<8x32xf32> -> vector<8x32xf32>
    %c0_117 = arith.constant 0 : index
    %c0_118 = arith.constant 0 : index
    %371 = vector.load %arg3[%c0_117, %c0_118] : memref<1x32xf32, #tpu.memory_space<vmem>>, vector<1x32xf32>
    %372 = vector.broadcast %371 : vector<1x32xf32> to vector<8x32xf32>
    %373 = arith.addf %370, %372 : vector<8x32xf32>
    %374 = math.tanh %373 : vector<8x32xf32>
    %c0_119 = arith.constant 0 : index
    %c0_120 = arith.constant 0 : index
    %375 = vector.load %arg10[%c0_119, %c0_120] : memref<32x96xf32, #tpu.memory_space<vmem>>, vector<32x96xf32>
    %cst_121 = arith.constant dense<0.000000e+00> : vector<8x96xf32>
    %376 = tpu.matmul %374, %375, %cst_121 {dimension_numbers = #tpu.dot_dimension_numbers<[1], [0], [0], [1], [0, 0, 1, 1], [], []>} : vector<8x32xf32>, vector<32x96xf32>, vector<8x96xf32> -> vector<8x96xf32>
    %c0_122 = arith.constant 0 : index
    %c0_123 = arith.constant 0 : index
    %377 = vector.load %arg11[%c0_122, %c0_123] : memref<1x96xf32, #tpu.memory_space<vmem>>, vector<1x96xf32>
    %378 = vector.broadcast %377 : vector<1x96xf32> to vector<8x96xf32>
    %379 = arith.addf %376, %378 : vector<8x96xf32>
    %380 = vector.extract_strided_slice %379 {offsets = [0, 0], sizes = [8, 32], strides = [1, 1]} : vector<8x96xf32> to vector<8x32xf32>
    %381 = vector.shape_cast %380 : vector<8x32xf32> to vector<2x4x32xf32>
    %382 = vector.extract_strided_slice %379 {offsets = [0, 32], sizes = [8, 32], strides = [1, 1]} : vector<8x96xf32> to vector<8x32xf32>
    %383 = vector.shape_cast %382 : vector<8x32xf32> to vector<2x4x32xf32>
    %384 = vector.extract_strided_slice %379 {offsets = [0, 64], sizes = [8, 32], strides = [1, 1]} : vector<8x96xf32> to vector<8x32xf32>
    %385 = vector.shape_cast %384 : vector<8x32xf32> to vector<2x4x32xf32>
    %386 = vector.extract_strided_slice %381 {offsets = [0, 0, 0], sizes = [2, 4, 8], strides = [1, 1, 1]} : vector<2x4x32xf32> to vector<2x4x8xf32>
    %387 = vector.extract_strided_slice %383 {offsets = [0, 0, 0], sizes = [2, 4, 8], strides = [1, 1, 1]} : vector<2x4x32xf32> to vector<2x4x8xf32>
    %388 = vector.extract_strided_slice %385 {offsets = [0, 0, 0], sizes = [2, 4, 8], strides = [1, 1, 1]} : vector<2x4x32xf32> to vector<2x4x8xf32>
    "tpu.trace_start"() <{level = 10 : i32, message = "bqd,bkd->bqk"}> : () -> ()
    %cst_124 = arith.constant dense<0.000000e+00> : vector<2x4x4xf32>
    %389 = tpu.matmul %386, %387, %cst_124 {dimension_numbers = #tpu.dot_dimension_numbers<[2], [2], [1], [1], [0, 0, 0, 1, 1, 1], [0], [0]>} : vector<2x4x8xf32>, vector<2x4x8xf32>, vector<2x4x4xf32> -> vector<2x4x4xf32>
    "tpu.trace_stop"() : () -> ()
    %cst_125 = arith.constant dense<0xFF800000> : vector<2x4xf32>
    %390 = vector.multi_reduction <maximumf>, %389, %cst_125 [2] : vector<2x4x4xf32> to vector<2x4xf32>
    %391 = vector.shape_cast %390 : vector<2x4xf32> to vector<2x4x1xf32>
    %392 = vector.broadcast %391 : vector<2x4x1xf32> to vector<2x4x4xf32>
    %393 = arith.subf %389, %392 : vector<2x4x4xf32>
    %394 = math.exp %393 : vector<2x4x4xf32>
    %cst_126 = arith.constant dense<0.000000e+00> : vector<2x4xf32>
    %395 = vector.multi_reduction <add>, %394, %cst_126 [2] : vector<2x4x4xf32> to vector<2x4xf32>
    %396 = vector.shape_cast %395 : vector<2x4xf32> to vector<2x4x1xf32>
    %397 = tpu.reciprocal %396 {approx = true} : vector<2x4x1xf32> -> vector<2x4x1xf32>
    %398 = vector.broadcast %397 : vector<2x4x1xf32> to vector<2x4x4xf32>
    %399 = arith.mulf %394, %398 : vector<2x4x4xf32>
    "tpu.trace_start"() <{level = 10 : i32, message = "bqk,bkd->bqd"}> : () -> ()
    %cst_127 = arith.constant dense<0.000000e+00> : vector<2x4x8xf32>
    %400 = tpu.matmul %399, %388, %cst_127 {dimension_numbers = #tpu.dot_dimension_numbers<[2], [1], [1], [2], [0, 0, 0, 1, 1, 2], [0], [0]>} : vector<2x4x4xf32>, vector<2x4x8xf32>, vector<2x4x8xf32> -> vector<2x4x8xf32>
    "tpu.trace_stop"() : () -> ()
    %401 = vector.extract_strided_slice %381 {offsets = [0, 0, 8], sizes = [2, 4, 8], strides = [1, 1, 1]} : vector<2x4x32xf32> to vector<2x4x8xf32>
    %402 = vector.extract_strided_slice %383 {offsets = [0, 0, 8], sizes = [2, 4, 8], strides = [1, 1, 1]} : vector<2x4x32xf32> to vector<2x4x8xf32>
    %403 = vector.extract_strided_slice %385 {offsets = [0, 0, 8], sizes = [2, 4, 8], strides = [1, 1, 1]} : vector<2x4x32xf32> to vector<2x4x8xf32>
    "tpu.trace_start"() <{level = 10 : i32, message = "bqd,bkd->bqk"}> : () -> ()
    %cst_128 = arith.constant dense<0.000000e+00> : vector<2x4x4xf32>
    %404 = tpu.matmul %401, %402, %cst_128 {dimension_numbers = #tpu.dot_dimension_numbers<[2], [2], [1], [1], [0, 0, 0, 1, 1, 1], [0], [0]>} : vector<2x4x8xf32>, vector<2x4x8xf32>, vector<2x4x4xf32> -> vector<2x4x4xf32>
    "tpu.trace_stop"() : () -> ()
    %cst_129 = arith.constant dense<0xFF800000> : vector<2x4xf32>
    %405 = vector.multi_reduction <maximumf>, %404, %cst_129 [2] : vector<2x4x4xf32> to vector<2x4xf32>
    %406 = vector.shape_cast %405 : vector<2x4xf32> to vector<2x4x1xf32>
    %407 = vector.broadcast %406 : vector<2x4x1xf32> to vector<2x4x4xf32>
    %408 = arith.subf %404, %407 : vector<2x4x4xf32>
    %409 = math.exp %408 : vector<2x4x4xf32>
    %cst_130 = arith.constant dense<0.000000e+00> : vector<2x4xf32>
    %410 = vector.multi_reduction <add>, %409, %cst_130 [2] : vector<2x4x4xf32> to vector<2x4xf32>
    %411 = vector.shape_cast %410 : vector<2x4xf32> to vector<2x4x1xf32>
    %412 = tpu.reciprocal %411 {approx = true} : vector<2x4x1xf32> -> vector<2x4x1xf32>
    %413 = vector.broadcast %412 : vector<2x4x1xf32> to vector<2x4x4xf32>
    %414 = arith.mulf %409, %413 : vector<2x4x4xf32>
    "tpu.trace_start"() <{level = 10 : i32, message = "bqk,bkd->bqd"}> : () -> ()
    %cst_131 = arith.constant dense<0.000000e+00> : vector<2x4x8xf32>
    %415 = tpu.matmul %414, %403, %cst_131 {dimension_numbers = #tpu.dot_dimension_numbers<[2], [1], [1], [2], [0, 0, 0, 1, 1, 2], [0], [0]>} : vector<2x4x4xf32>, vector<2x4x8xf32>, vector<2x4x8xf32> -> vector<2x4x8xf32>
    "tpu.trace_stop"() : () -> ()
    %416 = vector.extract_strided_slice %381 {offsets = [0, 0, 16], sizes = [2, 4, 8], strides = [1, 1, 1]} : vector<2x4x32xf32> to vector<2x4x8xf32>
    %417 = vector.extract_strided_slice %383 {offsets = [0, 0, 16], sizes = [2, 4, 8], strides = [1, 1, 1]} : vector<2x4x32xf32> to vector<2x4x8xf32>
    %418 = vector.extract_strided_slice %385 {offsets = [0, 0, 16], sizes = [2, 4, 8], strides = [1, 1, 1]} : vector<2x4x32xf32> to vector<2x4x8xf32>
    "tpu.trace_start"() <{level = 10 : i32, message = "bqd,bkd->bqk"}> : () -> ()
    %cst_132 = arith.constant dense<0.000000e+00> : vector<2x4x4xf32>
    %419 = tpu.matmul %416, %417, %cst_132 {dimension_numbers = #tpu.dot_dimension_numbers<[2], [2], [1], [1], [0, 0, 0, 1, 1, 1], [0], [0]>} : vector<2x4x8xf32>, vector<2x4x8xf32>, vector<2x4x4xf32> -> vector<2x4x4xf32>
    "tpu.trace_stop"() : () -> ()
    %cst_133 = arith.constant dense<0xFF800000> : vector<2x4xf32>
    %420 = vector.multi_reduction <maximumf>, %419, %cst_133 [2] : vector<2x4x4xf32> to vector<2x4xf32>
    %421 = vector.shape_cast %420 : vector<2x4xf32> to vector<2x4x1xf32>
    %422 = vector.broadcast %421 : vector<2x4x1xf32> to vector<2x4x4xf32>
    %423 = arith.subf %419, %422 : vector<2x4x4xf32>
    %424 = math.exp %423 : vector<2x4x4xf32>
    %cst_134 = arith.constant dense<0.000000e+00> : vector<2x4xf32>
    %425 = vector.multi_reduction <add>, %424, %cst_134 [2] : vector<2x4x4xf32> to vector<2x4xf32>
    %426 = vector.shape_cast %425 : vector<2x4xf32> to vector<2x4x1xf32>
    %427 = tpu.reciprocal %426 {approx = true} : vector<2x4x1xf32> -> vector<2x4x1xf32>
    %428 = vector.broadcast %427 : vector<2x4x1xf32> to vector<2x4x4xf32>
    %429 = arith.mulf %424, %428 : vector<2x4x4xf32>
    "tpu.trace_start"() <{level = 10 : i32, message = "bqk,bkd->bqd"}> : () -> ()
    %cst_135 = arith.constant dense<0.000000e+00> : vector<2x4x8xf32>
    %430 = tpu.matmul %429, %418, %cst_135 {dimension_numbers = #tpu.dot_dimension_numbers<[2], [1], [1], [2], [0, 0, 0, 1, 1, 2], [0], [0]>} : vector<2x4x4xf32>, vector<2x4x8xf32>, vector<2x4x8xf32> -> vector<2x4x8xf32>
    "tpu.trace_stop"() : () -> ()
    %431 = vector.extract_strided_slice %381 {offsets = [0, 0, 24], sizes = [2, 4, 8], strides = [1, 1, 1]} : vector<2x4x32xf32> to vector<2x4x8xf32>
    %432 = vector.extract_strided_slice %383 {offsets = [0, 0, 24], sizes = [2, 4, 8], strides = [1, 1, 1]} : vector<2x4x32xf32> to vector<2x4x8xf32>
    %433 = vector.extract_strided_slice %385 {offsets = [0, 0, 24], sizes = [2, 4, 8], strides = [1, 1, 1]} : vector<2x4x32xf32> to vector<2x4x8xf32>
    "tpu.trace_start"() <{level = 10 : i32, message = "bqd,bkd->bqk"}> : () -> ()
    %cst_136 = arith.constant dense<0.000000e+00> : vector<2x4x4xf32>
    %434 = tpu.matmul %431, %432, %cst_136 {dimension_numbers = #tpu.dot_dimension_numbers<[2], [2], [1], [1], [0, 0, 0, 1, 1, 1], [0], [0]>} : vector<2x4x8xf32>, vector<2x4x8xf32>, vector<2x4x4xf32> -> vector<2x4x4xf32>
    "tpu.trace_stop"() : () -> ()
    %cst_137 = arith.constant dense<0xFF800000> : vector<2x4xf32>
    %435 = vector.multi_reduction <maximumf>, %434, %cst_137 [2] : vector<2x4x4xf32> to vector<2x4xf32>
    %436 = vector.shape_cast %435 : vector<2x4xf32> to vector<2x4x1xf32>
    %437 = vector.broadcast %436 : vector<2x4x1xf32> to vector<2x4x4xf32>
    %438 = arith.subf %434, %437 : vector<2x4x4xf32>
    %439 = math.exp %438 : vector<2x4x4xf32>
    %cst_138 = arith.constant dense<0.000000e+00> : vector<2x4xf32>
    %440 = vector.multi_reduction <add>, %439, %cst_138 [2] : vector<2x4x4xf32> to vector<2x4xf32>
    %441 = vector.shape_cast %440 : vector<2x4xf32> to vector<2x4x1xf32>
    %442 = tpu.reciprocal %441 {approx = true} : vector<2x4x1xf32> -> vector<2x4x1xf32>
    %443 = vector.broadcast %442 : vector<2x4x1xf32> to vector<2x4x4xf32>
    %444 = arith.mulf %439, %443 : vector<2x4x4xf32>
    "tpu.trace_start"() <{level = 10 : i32, message = "bqk,bkd->bqd"}> : () -> ()
    %cst_139 = arith.constant dense<0.000000e+00> : vector<2x4x8xf32>
    %445 = tpu.matmul %444, %433, %cst_139 {dimension_numbers = #tpu.dot_dimension_numbers<[2], [1], [1], [2], [0, 0, 0, 1, 1, 2], [0], [0]>} : vector<2x4x4xf32>, vector<2x4x8xf32>, vector<2x4x8xf32> -> vector<2x4x8xf32>
    "tpu.trace_stop"() : () -> ()
    %446 = tpu.concatenate %400, %415, %430, %445 in 2 : vector<2x4x8xf32>, vector<2x4x8xf32>, vector<2x4x8xf32>, vector<2x4x8xf32> -> vector<2x4x32xf32>
    %447 = vector.shape_cast %446 : vector<2x4x32xf32> to vector<8x32xf32>
    %c0_140 = arith.constant 0 : index
    %c0_141 = arith.constant 0 : index
    %448 = vector.load %arg12[%c0_140, %c0_141] : memref<32x32xf32, #tpu.memory_space<vmem>>, vector<32x32xf32>
    %cst_142 = arith.constant dense<0.000000e+00> : vector<8x32xf32>
    %449 = tpu.matmul %447, %448, %cst_142 {dimension_numbers = #tpu.dot_dimension_numbers<[1], [0], [0], [1], [0, 0, 1, 1], [], []>} : vector<8x32xf32>, vector<32x32xf32>, vector<8x32xf32> -> vector<8x32xf32>
    %c0_143 = arith.constant 0 : index
    %c0_144 = arith.constant 0 : index
    %450 = vector.load %arg13[%c0_143, %c0_144] : memref<1x32xf32, #tpu.memory_space<vmem>>, vector<1x32xf32>
    %451 = vector.broadcast %450 : vector<1x32xf32> to vector<8x32xf32>
    %452 = arith.addf %449, %451 : vector<8x32xf32>
    %c0_145 = arith.constant 0 : index
    %c0_146 = arith.constant 0 : index
    %453 = vector.load %arg27[%c0_145, %c0_146] : memref<8x32xf32, #tpu.memory_space<vmem>>, vector<8x32xf32>
    tpu.vector_store %arg27[%c0_145, %c0_146], %452 {strides = array<i32>} : memref<8x32xf32, #tpu.memory_space<vmem>>, vector<8x32xf32>,
    %cst_147 = arith.constant 0.000000e+00 : f32
    %454 = vector.broadcast %cst_147 : f32 to vector<2x64xf32>
    %c0_148 = arith.constant 0 : index
    %c0_149 = arith.constant 0 : index
    %455 = vector.load %arg19[%c0_148, %c0_149] : memref<1x64xf32, #tpu.memory_space<vmem>>, vector<1x64xf32>
    %456 = vector.broadcast %455 : vector<1x64xf32> to vector<2x64xf32>
    %457 = arith.addf %454, %456 : vector<2x64xf32>
    %c0_150 = arith.constant 0 : index
    %c0_151 = arith.constant 0 : index
    %458 = tpu.strided_load %arg27[%c0_150, %c0_151] {strides = array<i32: 4, 1>} : memref<8x32xf32, #tpu.memory_space<vmem>>, vector<2x32xf32>
    %c0_152 = arith.constant 0 : index
    %c0_153 = arith.constant 0 : index
    %459 = vector.load %arg18[%c0_152, %c0_153] : memref<384x64xf32, #tpu.memory_space<vmem>>, vector<32x64xf32>
    %cst_154 = arith.constant dense<0.000000e+00> : vector<2x64xf32>
    %460 = tpu.matmul %458, %459, %cst_154 {dimension_numbers = #tpu.dot_dimension_numbers<[1], [0], [0], [1], [0, 0, 1, 1], [], []>} : vector<2x32xf32>, vector<32x64xf32>, vector<2x64xf32> -> vector<2x64xf32>
    %461 = arith.addf %457, %460 : vector<2x64xf32>
    %c1_155 = arith.constant 1 : index
    %c0_156 = arith.constant 0 : index
    %462 = tpu.strided_load %arg27[%c1_155, %c0_156] {strides = array<i32: 4, 1>} : memref<8x32xf32, #tpu.memory_space<vmem>>, vector<2x32xf32>
    %c32 = arith.constant 32 : index
    %c0_157 = arith.constant 0 : index
    %463 = vector.load %arg18[%c32, %c0_157] : memref<384x64xf32, #tpu.memory_space<vmem>>, vector<32x64xf32>
    %cst_158 = arith.constant dense<0.000000e+00> : vector<2x64xf32>
    %464 = tpu.matmul %462, %463, %cst_158 {dimension_numbers = #tpu.dot_dimension_numbers<[1], [0], [0], [1], [0, 0, 1, 1], [], []>} : vector<2x32xf32>, vector<32x64xf32>, vector<2x64xf32> -> vector<2x64xf32>
    %465 = arith.addf %461, %464 : vector<2x64xf32>
    %c2_159 = arith.constant 2 : index
    %c0_160 = arith.constant 0 : index
    %466 = tpu.strided_load %arg27[%c2_159, %c0_160] {strides = array<i32: 4, 1>} : memref<8x32xf32, #tpu.memory_space<vmem>>, vector<2x32xf32>
    %c64 = arith.constant 64 : index
    %c0_161 = arith.constant 0 : index
    %467 = vector.load %arg18[%c64, %c0_161] : memref<384x64xf32, #tpu.memory_space<vmem>>, vector<32x64xf32>
    %cst_162 = arith.constant dense<0.000000e+00> : vector<2x64xf32>
    %468 = tpu.matmul %466, %467, %cst_162 {dimension_numbers = #tpu.dot_dimension_numbers<[1], [0], [0], [1], [0, 0, 1, 1], [], []>} : vector<2x32xf32>, vector<32x64xf32>, vector<2x64xf32> -> vector<2x64xf32>
    %469 = arith.addf %465, %468 : vector<2x64xf32>
    %c3_163 = arith.constant 3 : index
    %c0_164 = arith.constant 0 : index
    %470 = tpu.strided_load %arg27[%c3_163, %c0_164] {strides = array<i32: 4, 1>} : memref<8x32xf32, #tpu.memory_space<vmem>>, vector<2x32xf32>
    %c96 = arith.constant 96 : index
    %c0_165 = arith.constant 0 : index
    %471 = vector.load %arg18[%c96, %c0_165] : memref<384x64xf32, #tpu.memory_space<vmem>>, vector<32x64xf32>
    %cst_166 = arith.constant dense<0.000000e+00> : vector<2x64xf32>
    %472 = tpu.matmul %470, %471, %cst_166 {dimension_numbers = #tpu.dot_dimension_numbers<[1], [0], [0], [1], [0, 0, 1, 1], [], []>} : vector<2x32xf32>, vector<32x64xf32>, vector<2x64xf32> -> vector<2x64xf32>
    %473 = arith.addf %469, %472 : vector<2x64xf32>
    %c0_167 = arith.constant 0 : index
    %c0_168 = arith.constant 0 : index
    %474 = tpu.strided_load %arg28[%c0_167, %c0_168] {strides = array<i32: 8, 1>} : memref<16x32xf32, #tpu.memory_space<vmem>>, vector<2x32xf32>
    %c128 = arith.constant 128 : index
    %c0_169 = arith.constant 0 : index
    %475 = vector.load %arg18[%c128, %c0_169] : memref<384x64xf32, #tpu.memory_space<vmem>>, vector<32x64xf32>
    %cst_170 = arith.constant dense<0.000000e+00> : vector<2x64xf32>
    %476 = tpu.matmul %474, %475, %cst_170 {dimension_numbers = #tpu.dot_dimension_numbers<[1], [0], [0], [1], [0, 0, 1, 1], [], []>} : vector<2x32xf32>, vector<32x64xf32>, vector<2x64xf32> -> vector<2x64xf32>
    %477 = arith.addf %473, %476 : vector<2x64xf32>
    %c1_171 = arith.constant 1 : index
    %c0_172 = arith.constant 0 : index
    %478 = tpu.strided_load %arg28[%c1_171, %c0_172] {strides = array<i32: 8, 1>} : memref<16x32xf32, #tpu.memory_space<vmem>>, vector<2x32xf32>
    %c160 = arith.constant 160 : index
    %c0_173 = arith.constant 0 : index
    %479 = vector.load %arg18[%c160, %c0_173] : memref<384x64xf32, #tpu.memory_space<vmem>>, vector<32x64xf32>
    %cst_174 = arith.constant dense<0.000000e+00> : vector<2x64xf32>
    %480 = tpu.matmul %478, %479, %cst_174 {dimension_numbers = #tpu.dot_dimension_numbers<[1], [0], [0], [1], [0, 0, 1, 1], [], []>} : vector<2x32xf32>, vector<32x64xf32>, vector<2x64xf32> -> vector<2x64xf32>
    %481 = arith.addf %477, %480 : vector<2x64xf32>
    %c2_175 = arith.constant 2 : index
    %c0_176 = arith.constant 0 : index
    %482 = tpu.strided_load %arg28[%c2_175, %c0_176] {strides = array<i32: 8, 1>} : memref<16x32xf32, #tpu.memory_space<vmem>>, vector<2x32xf32>
    %c192 = arith.constant 192 : index
    %c0_177 = arith.constant 0 : index
    %483 = vector.load %arg18[%c192, %c0_177] : memref<384x64xf32, #tpu.memory_space<vmem>>, vector<32x64xf32>
    %cst_178 = arith.constant dense<0.000000e+00> : vector<2x64xf32>
    %484 = tpu.matmul %482, %483, %cst_178 {dimension_numbers = #tpu.dot_dimension_numbers<[1], [0], [0], [1], [0, 0, 1, 1], [], []>} : vector<2x32xf32>, vector<32x64xf32>, vector<2x64xf32> -> vector<2x64xf32>
    %485 = arith.addf %481, %484 : vector<2x64xf32>
    %c3_179 = arith.constant 3 : index
    %c0_180 = arith.constant 0 : index
    %486 = tpu.strided_load %arg28[%c3_179, %c0_180] {strides = array<i32: 8, 1>} : memref<16x32xf32, #tpu.memory_space<vmem>>, vector<2x32xf32>
    %c224 = arith.constant 224 : index
    %c0_181 = arith.constant 0 : index
    %487 = vector.load %arg18[%c224, %c0_181] : memref<384x64xf32, #tpu.memory_space<vmem>>, vector<32x64xf32>
    %cst_182 = arith.constant dense<0.000000e+00> : vector<2x64xf32>
    %488 = tpu.matmul %486, %487, %cst_182 {dimension_numbers = #tpu.dot_dimension_numbers<[1], [0], [0], [1], [0, 0, 1, 1], [], []>} : vector<2x32xf32>, vector<32x64xf32>, vector<2x64xf32> -> vector<2x64xf32>
    %489 = arith.addf %485, %488 : vector<2x64xf32>
    %c4_183 = arith.constant 4 : index
    %c0_184 = arith.constant 0 : index
    %490 = tpu.strided_load %arg28[%c4_183, %c0_184] {strides = array<i32: 8, 1>} : memref<16x32xf32, #tpu.memory_space<vmem>>, vector<2x32xf32>
    %c256 = arith.constant 256 : index
    %c0_185 = arith.constant 0 : index
    %491 = vector.load %arg18[%c256, %c0_185] : memref<384x64xf32, #tpu.memory_space<vmem>>, vector<32x64xf32>
    %cst_186 = arith.constant dense<0.000000e+00> : vector<2x64xf32>
    %492 = tpu.matmul %490, %491, %cst_186 {dimension_numbers = #tpu.dot_dimension_numbers<[1], [0], [0], [1], [0, 0, 1, 1], [], []>} : vector<2x32xf32>, vector<32x64xf32>, vector<2x64xf32> -> vector<2x64xf32>
    %493 = arith.addf %489, %492 : vector<2x64xf32>
    %c5_187 = arith.constant 5 : index
    %c0_188 = arith.constant 0 : index
    %494 = tpu.strided_load %arg28[%c5_187, %c0_188] {strides = array<i32: 8, 1>} : memref<16x32xf32, #tpu.memory_space<vmem>>, vector<2x32xf32>
    %c288 = arith.constant 288 : index
    %c0_189 = arith.constant 0 : index
    %495 = vector.load %arg18[%c288, %c0_189] : memref<384x64xf32, #tpu.memory_space<vmem>>, vector<32x64xf32>
    %cst_190 = arith.constant dense<0.000000e+00> : vector<2x64xf32>
    %496 = tpu.matmul %494, %495, %cst_190 {dimension_numbers = #tpu.dot_dimension_numbers<[1], [0], [0], [1], [0, 0, 1, 1], [], []>} : vector<2x32xf32>, vector<32x64xf32>, vector<2x64xf32> -> vector<2x64xf32>
    %497 = arith.addf %493, %496 : vector<2x64xf32>
    %c6_191 = arith.constant 6 : index
    %c0_192 = arith.constant 0 : index
    %498 = tpu.strided_load %arg28[%c6_191, %c0_192] {strides = array<i32: 8, 1>} : memref<16x32xf32, #tpu.memory_space<vmem>>, vector<2x32xf32>
    %c320 = arith.constant 320 : index
    %c0_193 = arith.constant 0 : index
    %499 = vector.load %arg18[%c320, %c0_193] : memref<384x64xf32, #tpu.memory_space<vmem>>, vector<32x64xf32>
    %cst_194 = arith.constant dense<0.000000e+00> : vector<2x64xf32>
    %500 = tpu.matmul %498, %499, %cst_194 {dimension_numbers = #tpu.dot_dimension_numbers<[1], [0], [0], [1], [0, 0, 1, 1], [], []>} : vector<2x32xf32>, vector<32x64xf32>, vector<2x64xf32> -> vector<2x64xf32>
    %501 = arith.addf %497, %500 : vector<2x64xf32>
    %c7_195 = arith.constant 7 : index
    %c0_196 = arith.constant 0 : index
    %502 = tpu.strided_load %arg28[%c7_195, %c0_196] {strides = array<i32: 8, 1>} : memref<16x32xf32, #tpu.memory_space<vmem>>, vector<2x32xf32>
    %c352 = arith.constant 352 : index
    %c0_197 = arith.constant 0 : index
    %503 = vector.load %arg18[%c352, %c0_197] : memref<384x64xf32, #tpu.memory_space<vmem>>, vector<32x64xf32>
    %cst_198 = arith.constant dense<0.000000e+00> : vector<2x64xf32>
    %504 = tpu.matmul %502, %503, %cst_198 {dimension_numbers = #tpu.dot_dimension_numbers<[1], [0], [0], [1], [0, 0, 1, 1], [], []>} : vector<2x32xf32>, vector<32x64xf32>, vector<2x64xf32> -> vector<2x64xf32>
    %505 = arith.addf %501, %504 : vector<2x64xf32>
    %cst_199 = arith.constant 0.000000e+00 : f32
    %506 = vector.broadcast %cst_199 : f32 to vector<2x64xf32>
    %507 = arith.maximumf %505, %506 : vector<2x64xf32>
    %c0_200 = arith.constant 0 : index
    %c0_201 = arith.constant 0 : index
    %508 = vector.load %arg20[%c0_200, %c0_201] : memref<64x32xf32, #tpu.memory_space<vmem>>, vector<64x32xf32>
    %cst_202 = arith.constant dense<0.000000e+00> : vector<2x32xf32>
    %509 = tpu.matmul %507, %508, %cst_202 {dimension_numbers = #tpu.dot_dimension_numbers<[1], [0], [0], [1], [0, 0, 1, 1], [], []>} : vector<2x64xf32>, vector<64x32xf32>, vector<2x32xf32> -> vector<2x32xf32>
    %c0_203 = arith.constant 0 : index
    %c0_204 = arith.constant 0 : index
    %510 = vector.load %arg21[%c0_203, %c0_204] : memref<1x32xf32, #tpu.memory_space<vmem>>, vector<1x32xf32>
    %511 = vector.broadcast %510 : vector<1x32xf32> to vector<2x32xf32>
    %512 = arith.addf %509, %511 : vector<2x32xf32>
    %cst_205 = arith.constant 0.000000e+00 : f32
    %513 = vector.broadcast %cst_205 : f32 to vector<2x32xf32>
    %514 = arith.maximumf %512, %513 : vector<2x32xf32>
    %c0_206 = arith.constant 0 : index
    %c0_207 = arith.constant 0 : index
    %515 = vector.load %arg22[%c0_206, %c0_207] : memref<32x16xf32, #tpu.memory_space<vmem>>, vector<32x16xf32>
    %cst_208 = arith.constant dense<0.000000e+00> : vector<2x16xf32>
    %516 = tpu.matmul %514, %515, %cst_208 {dimension_numbers = #tpu.dot_dimension_numbers<[1], [0], [0], [1], [0, 0, 1, 1], [], []>} : vector<2x32xf32>, vector<32x16xf32>, vector<2x16xf32> -> vector<2x16xf32>
    %c0_209 = arith.constant 0 : index
    %c0_210 = arith.constant 0 : index
    %517 = vector.load %arg23[%c0_209, %c0_210] : memref<1x16xf32, #tpu.memory_space<vmem>>, vector<1x16xf32>
    %518 = vector.broadcast %517 : vector<1x16xf32> to vector<2x16xf32>
    %519 = arith.addf %516, %518 : vector<2x16xf32>
    %cst_211 = arith.constant dense<0xFF800000> : vector<2xf32>
    %520 = vector.multi_reduction <maximumf>, %519, %cst_211 [1] : vector<2x16xf32> to vector<2xf32>
    %521 = vector.shape_cast %520 : vector<2xf32> to vector<2x1xf32>
    %522 = vector.broadcast %521 : vector<2x1xf32> to vector<2x16xf32>
    %523 = arith.subf %519, %522 : vector<2x16xf32>
    %524 = math.exp %523 : vector<2x16xf32>
    %cst_212 = arith.constant dense<0.000000e+00> : vector<2xf32>
    %525 = vector.multi_reduction <add>, %524, %cst_212 [1] : vector<2x16xf32> to vector<2xf32>
    %526 = vector.shape_cast %525 : vector<2xf32> to vector<2x1xf32>
    %527 = math.log %526 : vector<2x1xf32>
    %528 = arith.addf %521, %527 : vector<2x1xf32>
    %529 = vector.broadcast %528 : vector<2x1xf32> to vector<2x16xf32>
    %530 = arith.subf %519, %529 : vector<2x16xf32>
    %c0_213 = arith.constant 0 : index
    %c0_214 = arith.constant 0 : index
    %531 = vector.load %arg24[%c0_213, %c0_214] : memref<2x16xf32, #tpu.memory_space<vmem>>, vector<2x16xf32>
    tpu.vector_store %arg24[%c0_213, %c0_214], %530 {strides = array<i32>} : memref<2x16xf32, #tpu.memory_space<vmem>>, vector<2x16xf32>,
    return
  }
}

</mosaic_0001>

<llo_original>
// kernel: simulator_v5_forward.1
$region0: #{simulator_v5_forward.1}
  #allocation0 [shape = 'u32[]', space=smem, size = 0x4, offset = 0x4, fixed_abs, tag = 'smem constant byte address 0x4 - core index']
  #allocation1 [shape = 'u32[144,128]{1,0:T(1,128)}', space=vmem, size = 0x12000, scoped, tag = 'internal scratch']
  #allocation2 [shape = 'f32[16,96]{1,0:T(8,128)}', space=vmem, size = 0x2000, scoped, tag = 'scratch operand']
  #allocation3 [shape = 'f32[16,32]{1,0:T(8,128)}', space=vmem, size = 0x2000, scoped, tag = 'scratch operand']
  #allocation4 [shape = 'f32[8,32]{1,0:T(8,128)}', space=vmem, size = 0x1000, scoped, tag = 'scratch operand']
  #allocation5 [shape = 'f32[16,32]{1,0:T(8,128)}', space=vmem, size = 0x2000, scoped, tag = 'scratch operand']
  %s0 = inlined_call_operand.vmem [shape: f32[8,8], index: 0, kind: input, shape index: {}]
  %s1 = inlined_call_operand.vmem [shape: f32[16,48], index: 1, kind: input, shape index: {}]
  %s2 = inlined_call_operand.vmem [shape: f32[8,32], index: 2, kind: input, shape index: {}]
  %s3 = inlined_call_operand.vmem [shape: f32[1,32], index: 3, kind: input, shape index: {}]
  %s4 = inlined_call_operand.vmem [shape: f32[48,256], index: 4, kind: input, shape index: {}]
  %s5 = inlined_call_operand.vmem [shape: f32[1,256], index: 5, kind: input, shape index: {}]
  %s6 = inlined_call_operand.vmem [shape: f32[256,96], index: 6, kind: input, shape index: {}]
  %s7 = inlined_call_operand.vmem [shape: f32[32,96], index: 7, kind: input, shape index: {}]
  %s8 = inlined_call_operand.vmem [shape: f32[1,96], index: 8, kind: input, shape index: {}]
  %s9 = inlined_call_operand.vmem [shape: f32[1,96], index: 9, kind: input, shape index: {}]
  %s10 = inlined_call_operand.vmem [shape: f32[32,96], index: 10, kind: input, shape index: {}]
  %s11 = inlined_call_operand.vmem [shape: f32[1,96], index: 11, kind: input, shape index: {}]
  %s12 = inlined_call_operand.vmem [shape: f32[32,32], index: 12, kind: input, shape index: {}]
  %s13 = inlined_call_operand.vmem [shape: f32[1,32], index: 13, kind: input, shape index: {}]
  %s14 = inlined_call_operand.vmem [shape: f32[32,96], index: 14, kind: input, shape index: {}]
  %s15 = inlined_call_operand.vmem [shape: f32[1,96], index: 15, kind: input, shape index: {}]
  %s16 = inlined_call_operand.vmem [shape: f32[32,32], index: 16, kind: input, shape index: {}]
  %s17 = inlined_call_operand.vmem [shape: f32[1,32], index: 17, kind: input, shape index: {}]
  %s18 = inlined_call_operand.vmem [shape: f32[384,64], index: 18, kind: input, shape index: {}]
  %s19 = inlined_call_operand.vmem [shape: f32[1,64], index: 19, kind: input, shape index: {}]
  %s20 = inlined_call_operand.vmem [shape: f32[64,32], index: 20, kind: input, shape index: {}]
  %s21 = inlined_call_operand.vmem [shape: f32[1,32], index: 21, kind: input, shape index: {}]
  %s22 = inlined_call_operand.vmem [shape: f32[32,16], index: 22, kind: input, shape index: {}]
  %s23 = inlined_call_operand.vmem [shape: f32[1,16], index: 23, kind: input, shape index: {}]
  %s24 = inlined_call_operand.hbm [shape: f32[2,16], index: 24, kind: output, shape index: {}]
  %s25 = sld [smem:[#allocation0]]
  $region106: #{simulator_v5_forward.1} parent=0
    _
  %s27 = ssub.s32 1, %s25
  %s28 = scalar_select 0, %s27, %s25
  $region1: #{simulator_v5_forward.1} parent=0
    #allocation6 [shape = 'u8[1024]{0}', space=vmem, size = 0x400, scoped, tag = 'output window, operand 0, single buffered']
    #allocation7 [shape = 's32[1]{0}', space=sflag, size = 0x4, scoped, tag = 'scoped memory for simulator_v5_forward.1']
    %29 = vsyncpa [#allocation7], 0
    // Predicated region
    $region2: #{simulator_v5_forward.1} parent=1 // pred_check
      _
    $region3: #{simulator_v5_forward.1} parent=1 // pred_check_branch
      %31 = sbr.rel (0) target = $region5
    $region4: #{simulator_v5_forward.1} parent=1 // pred_region
      _
    $region5: #{simulator_v5_forward.1} parent=1 // pred_fallthru
      _
    // Predicated region
    $region6: #{simulator_v5_forward.1} parent=1 // pred_check
      _
    $region7: #{simulator_v5_forward.1} parent=1 // pred_check_branch
      %33 = sbr.rel (0) target = $region9
    $region8: #{simulator_v5_forward.1} parent=1 // pred_region
      _
    $region9: #{simulator_v5_forward.1} parent=1 // pred_fallthru
      _
    // Predicated region
    $region10: #{simulator_v5_forward.1} parent=1 // pred_check
      _
    $region11: #{simulator_v5_forward.1} parent=1 // pred_check_branch
      %35 = sbr.rel (0) target = $region13
    $region12: #{simulator_v5_forward.1} parent=1 // pred_region
      _
    $region13: #{simulator_v5_forward.1} parent=1 // pred_fallthru
      _
    // Predicated region
    $region14: #{simulator_v5_forward.1} parent=1 // pred_check
      _
    $region15: #{simulator_v5_forward.1} parent=1 // pred_check_branch
      %37 = sbr.rel (0) target = $region17
    $region16: #{simulator_v5_forward.1} parent=1 // pred_region
      _
    $region17: #{simulator_v5_forward.1} parent=1 // pred_fallthru
      _
    // Predicated region
    $region18: #{simulator_v5_forward.1} parent=1 // pred_check
      _
    $region19: #{simulator_v5_forward.1} parent=1 // pred_check_branch
      %39 = sbr.rel (0) target = $region21
    $region20: #{simulator_v5_forward.1} parent=1 // pred_region
      _
    $region21: #{simulator_v5_forward.1} parent=1 // pred_fallthru
      _
    // Predicated region
    $region22: #{simulator_v5_forward.1} parent=1 // pred_check
      _
    $region23: #{simulator_v5_forward.1} parent=1 // pred_check_branch
      %41 = sbr.rel (0) target = $region25
    $region24: #{simulator_v5_forward.1} parent=1 // pred_region
      _
    $region25: #{simulator_v5_forward.1} parent=1 // pred_fallthru
      _
    // Predicated region
    $region26: #{simulator_v5_forward.1} parent=1 // pred_check
      _
    $region27: #{simulator_v5_forward.1} parent=1 // pred_check_branch
      %43 = sbr.rel (0) target = $region29
    $region28: #{simulator_v5_forward.1} parent=1 // pred_region
      _
    $region29: #{simulator_v5_forward.1} parent=1 // pred_fallthru
      _
    // Predicated region
    $region30: #{simulator_v5_forward.1} parent=1 // pred_check
      _
    $region31: #{simulator_v5_forward.1} parent=1 // pred_check_branch
      %45 = sbr.rel (0) target = $region33
    $region32: #{simulator_v5_forward.1} parent=1 // pred_region
      _
    $region33: #{simulator_v5_forward.1} parent=1 // pred_fallthru
      _
    // Predicated region
    $region34: #{simulator_v5_forward.1} parent=1 // pred_check
      _
    $region35: #{simulator_v5_forward.1} parent=1 // pred_check_branch
      %47 = sbr.rel (0) target = $region37
    $region36: #{simulator_v5_forward.1} parent=1 // pred_region
      _
    $region37: #{simulator_v5_forward.1} parent=1 // pred_fallthru
      _
    // Predicated region
    $region38: #{simulator_v5_forward.1} parent=1 // pred_check
      _
    $region39: #{simulator_v5_forward.1} parent=1 // pred_check_branch
      %49 = sbr.rel (0) target = $region41
    $region40: #{simulator_v5_forward.1} parent=1 // pred_region
      _
    $region41: #{simulator_v5_forward.1} parent=1 // pred_fallthru
      _
    // Predicated region
    $region42: #{simulator_v5_forward.1} parent=1 // pred_check
      _
    $region43: #{simulator_v5_forward.1} parent=1 // pred_check_branch
      %51 = sbr.rel (0) target = $region45
    $region44: #{simulator_v5_forward.1} parent=1 // pred_region
      _
    $region45: #{simulator_v5_forward.1} parent=1 // pred_fallthru
      _
    // Predicated region
    $region46: #{simulator_v5_forward.1} parent=1 // pred_check
      _
    $region47: #{simulator_v5_forward.1} parent=1 // pred_check_branch
      %53 = sbr.rel (0) target = $region49
    $region48: #{simulator_v5_forward.1} parent=1 // pred_region
      _
    $region49: #{simulator_v5_forward.1} parent=1 // pred_fallthru
      _
    // Predicated region
    $region50: #{simulator_v5_forward.1} parent=1 // pred_check
      _
    $region51: #{simulator_v5_forward.1} parent=1 // pred_check_branch
      %55 = sbr.rel (0) target = $region53
    $region52: #{simulator_v5_forward.1} parent=1 // pred_region
      _
    $region53: #{simulator_v5_forward.1} parent=1 // pred_fallthru
      _
    // Predicated region
    $region54: #{simulator_v5_forward.1} parent=1 // pred_check
      _
    $region55: #{simulator_v5_forward.1} parent=1 // pred_check_branch
      %57 = sbr.rel (0) target = $region57
    $region56: #{simulator_v5_forward.1} parent=1 // pred_region
      _
    $region57: #{simulator_v5_forward.1} parent=1 // pred_fallthru
      _
    // Predicated region
    $region58: #{simulator_v5_forward.1} parent=1 // pred_check
      _
    $region59: #{simulator_v5_forward.1} parent=1 // pred_check_branch
      %59 = sbr.rel (0) target = $region61
    $region60: #{simulator_v5_forward.1} parent=1 // pred_region
      _
    $region61: #{simulator_v5_forward.1} parent=1 // pred_fallthru
      _
    // Predicated region
    $region62: #{simulator_v5_forward.1} parent=1 // pred_check
      _
    $region63: #{simulator_v5_forward.1} parent=1 // pred_check_branch
      %61 = sbr.rel (0) target = $region65
    $region64: #{simulator_v5_forward.1} parent=1 // pred_region
      _
    $region65: #{simulator_v5_forward.1} parent=1 // pred_fallthru
      _
    // Predicated region
    $region66: #{simulator_v5_forward.1} parent=1 // pred_check
      _
    $region67: #{simulator_v5_forward.1} parent=1 // pred_check_branch
      %63 = sbr.rel (0) target = $region69
    $region68: #{simulator_v5_forward.1} parent=1 // pred_region
      _
    $region69: #{simulator_v5_forward.1} parent=1 // pred_fallthru
      _
    // Predicated region
    $region70: #{simulator_v5_forward.1} parent=1 // pred_check
      _
    $region71: #{simulator_v5_forward.1} parent=1 // pred_check_branch
      %65 = sbr.rel (0) target = $region73
    $region72: #{simulator_v5_forward.1} parent=1 // pred_region
      _
    $region73: #{simulator_v5_forward.1} parent=1 // pred_fallthru
      _
    // Predicated region
    $region74: #{simulator_v5_forward.1} parent=1 // pred_check
      _
    $region75: #{simulator_v5_forward.1} parent=1 // pred_check_branch
      %67 = sbr.rel (0) target = $region77
    $region76: #{simulator_v5_forward.1} parent=1 // pred_region
      _
    $region77: #{simulator_v5_forward.1} parent=1 // pred_fallthru
      _
    // Predicated region
    $region78: #{simulator_v5_forward.1} parent=1 // pred_check
      _
    $region79: #{simulator_v5_forward.1} parent=1 // pred_check_branch
      %69 = sbr.rel (0) target = $region81
    $region80: #{simulator_v5_forward.1} parent=1 // pred_region
      _
    $region81: #{simulator_v5_forward.1} parent=1 // pred_fallthru
      _
    // Predicated region
    $region82: #{simulator_v5_forward.1} parent=1 // pred_check
      _
    $region83: #{simulator_v5_forward.1} parent=1 // pred_check_branch
      %71 = sbr.rel (0) target = $region85
    $region84: #{simulator_v5_forward.1} parent=1 // pred_region
      _
    $region85: #{simulator_v5_forward.1} parent=1 // pred_fallthru
      _
    // Predicated region
    $region86: #{simulator_v5_forward.1} parent=1 // pred_check
      _
    $region87: #{simulator_v5_forward.1} parent=1 // pred_check_branch
      %73 = sbr.rel (0) target = $region89
    $region88: #{simulator_v5_forward.1} parent=1 // pred_region
      _
    $region89: #{simulator_v5_forward.1} parent=1 // pred_fallthru
      _
    // Predicated region
    $region90: #{simulator_v5_forward.1} parent=1 // pred_check
      _
    $region91: #{simulator_v5_forward.1} parent=1 // pred_check_branch
      %75 = sbr.rel (0) target = $region93
    $region92: #{simulator_v5_forward.1} parent=1 // pred_region
      _
    $region93: #{simulator_v5_forward.1} parent=1 // pred_fallthru
      _
    // Predicated region
    $region94: #{simulator_v5_forward.1} parent=1 // pred_check
      _
    $region95: #{simulator_v5_forward.1} parent=1 // pred_check_branch
      %77 = sbr.rel (0) target = $region97
    $region96: #{simulator_v5_forward.1} parent=1 // pred_region
      _
    $region97: #{simulator_v5_forward.1} parent=1 // pred_fallthru
      _
    %v78 = vld [vmem:[%s1] sm:$0xff]
    %v79 = vld [vmem:[%s1 + $0x8] sm:$0xff]
    %v80 = vld [vmem:[%s4] sm:$0xff]
    %v81 = vld [vmem:[%s4 + $0x8] sm:$0xff]
    %v82 = vld [vmem:[%s4 + $0x10] sm:$0xff]
    %v83 = vld [vmem:[%s4 + $0x18] sm:$0xff]
    %v84 = vld [vmem:[%s4 + $0x20] sm:$0xff]
    %v85 = vld [vmem:[%s4 + $0x28] sm:$0xff]
    %v86 = vld [vmem:[%s4 + $0x30] sm:$0xff]
    %v87 = vld [vmem:[%s4 + $0x38] sm:$0xff]
    %v88 = vld [vmem:[%s4 + $0x40] sm:$0xff]
    %v89 = vld [vmem:[%s4 + $0x48] sm:$0xff]
    %v90 = vld [vmem:[%s4 + $0x50] sm:$0xff]
    %v91 = vld [vmem:[%s4 + $0x58] sm:$0xff]
    %v92 = vld [vmem:[%s5] sm:$0x3]
    %v94 = vlaneseq
    %v95 = vshrl.u32 %v94, 7
    %v96 = vsub.s32 0, %v95
    %v97 = vrot.slane %v92, %v96
    %v98 = vlaneseq
    %v99 = vshrl.u32 %v98, 7
    %v100 = vsub.s32 1, %v99
    %v101 = vrot.slane %v92, %v100
    %vm104 = vcmask 392192
    %v106 = vsel %vm104, %v78, 0
    %v109 = vsel %vm104, %v79, 0
    %111 = vmatprep.subr.mxu0 0.0
    %112 = vmatpush1.msra.mxu0 0.0
    %113 = vmatprep.subr.mxu0 0.0
    %114 = vmatpush1.msra.mxu0 0.0
    %115 = vmatprep.subr.mxu0 0.0
    %116 = vmatpush1.msra.mxu0 0.0
    %117 = vmatprep.subr.mxu0 0.0
    %118 = vmatpush1.msra.mxu0 0.0
    %119 = vmatprep.subr.mxu0 0.0
    %120 = vmatpush1.msra.mxu0 0.0
    %121 = vmatprep.subr.mxu0 0.0
    %122 = vmatpush1.msra.mxu0 0.0
    %123 = vmatprep.subr.mxu0 0.0
    %124 = vmatpush1.msra.mxu0 0.0
    %125 = vmatprep.subr.mxu0 0.0
    %126 = vmatpush1.msra.mxu0 0.0
    %127 = vmatprep.subr.mxu0 0.0
    %128 = vmatpush1.msra.mxu0 0.0
    %129 = vmatprep.subr.mxu0 0.0
    %130 = vmatpush1.msra.mxu0 0.0
    %131 = vmatprep.subr.mxu0 %v91
    %132 = vmatpush1.msra.mxu0 %v90
    %133 = vmatprep.subr.mxu0 %v89
    %134 = vmatpush1.msra.mxu0 %v88
    %135 = vmatprep.subr.mxu0 %v87
    %136 = vmatpush1.msra.mxu0 %v86
    %137 = vmatprep.subr.mxu0 %v85
    %138 = vmatpush1.msra.mxu0 %v84
    %139 = vmatprep.subr.mxu0 %v83
    %140 = vmatpush1.msra.mxu0 %v82
    %141 = vmatprep.subr.mxu0 %v81
    %142 = vmatpush1.msra.mxu0 %v80
    %143 = vmatprep.subr.mxu0 0.0
    %144 = vmatpush2.msra.mxu0 0.0
    %145 = vmatprep.subr.mxu0 0.0
    %146 = vmatpush2.msra.mxu0 0.0
    %147 = vmatprep.subr.mxu0 0.0
    %148 = vmatpush2.msra.mxu0 0.0
    %149 = vmatprep.subr.mxu0 0.0
    %150 = vmatpush2.msra.mxu0 0.0
    %151 = vmatprep.subr.mxu0 0.0
    %152 = vmatpush2.msra.mxu0 0.0
    %153 = vmatprep.subr.mxu0 0.0
    %154 = vmatpush2.msra.mxu0 0.0
    %155 = vmatprep.subr.mxu0 0.0
    %156 = vmatpush2.msra.mxu0 0.0
    %157 = vmatprep.subr.mxu0 0.0
    %158 = vmatpush2.msra.mxu0 0.0
    %159 = vmatprep.subr.mxu0 0.0
    %160 = vmatpush2.msra.mxu0 0.0
    %161 = vmatprep.subr.mxu0 0.0
    %162 = vmatpush2.msra.mxu0 0.0
    %163 = vmatprep.subr.mxu0 0.0
    %164 = vmatpush2.msra.mxu0 0.0
    %165 = vmatprep.subr.mxu0 0.0
    %166 = vmatpush2.msra.mxu0 0.0
    %167 = vmatprep.subr.mxu0 0.0
    %168 = vmatpush2.msra.mxu0 0.0
    %169 = vmatprep.subr.mxu0 0.0
    %170 = vmatpush2.msra.mxu0 0.0
    %171 = vmatprep.subr.mxu0 0.0
    %172 = vmatpush2.msra.mxu0 0.0
    %173 = vmatprep.subr.mxu0 0.0
    %174 = vmatpush2.msra.mxu0 0.0
    %175 = vmatprep.mubr.f32.mxu0 0.0
    %176 = vmatmul.mubr.f32.gmra.mxu0 %v106
    %v177 = vpop.f32.mrf.mxu0
    %v178 = vadd.f32 %v97, %v177
    %v179 = vpop.f32.mrf.mxu0
    %v180 = vadd.f32 %v101, %v179
    %181 = vmatprep.mubr.f32.mxu0 0.0
    %182 = vmatmul.mubr.f32.gmra.mxu0 %v109
    %v183 = vpop.f32.mrf.mxu0
    %v184 = vadd.f32 %v97, %v183
    %v185 = vpop.f32.mrf.mxu0
    %v186 = vadd.f32 %v101, %v185
    %187 = vdwg.mxu0
    %v188 = vtanh.pop %v178
    %v189 = vtanh.pop %v180
    %v190 = vtanh.pop %v184
    %v191 = vtanh.pop %v186
    %v192 = vld [vmem:[%s6] sm:$0xff]
    %v193 = vld [vmem:[%s6 + $0x8] sm:$0xff]
    %v194 = vld [vmem:[%s6 + $0x10] sm:$0xff]
    %v195 = vld [vmem:[%s6 + $0x18] sm:$0xff]
    %v196 = vld [vmem:[%s6 + $0x20] sm:$0xff]
    %v197 = vld [vmem:[%s6 + $0x28] sm:$0xff]
    %v198 = vld [vmem:[%s6 + $0x30] sm:$0xff]
    %v199 = vld [vmem:[%s6 + $0x38] sm:$0xff]
    %v200 = vld [vmem:[%s6 + $0x40] sm:$0xff]
    %v201 = vld [vmem:[%s6 + $0x48] sm:$0xff]
    %v202 = vld [vmem:[%s6 + $0x50] sm:$0xff]
    %v203 = vld [vmem:[%s6 + $0x58] sm:$0xff]
    %v204 = vld [vmem:[%s6 + $0x60] sm:$0xff]
    %v205 = vld [vmem:[%s6 + $0x68] sm:$0xff]
    %v206 = vld [vmem:[%s6 + $0x70] sm:$0xff]
    %v207 = vld [vmem:[%s6 + $0x78] sm:$0xff]
    %v208 = vld [vmem:[%s6 + $0x80] sm:$0xff]
    %v209 = vld [vmem:[%s6 + $0x88] sm:$0xff]
    %v210 = vld [vmem:[%s6 + $0x90] sm:$0xff]
    %v211 = vld [vmem:[%s6 + $0x98] sm:$0xff]
    %v212 = vld [vmem:[%s6 + $0xa0] sm:$0xff]
    %v213 = vld [vmem:[%s6 + $0xa8] sm:$0xff]
    %v214 = vld [vmem:[%s6 + $0xb0] sm:$0xff]
    %v215 = vld [vmem:[%s6 + $0xb8] sm:$0xff]
    %v216 = vld [vmem:[%s6 + $0xc0] sm:$0xff]
    %v217 = vld [vmem:[%s6 + $0xc8] sm:$0xff]
    %v218 = vld [vmem:[%s6 + $0xd0] sm:$0xff]
    %v219 = vld [vmem:[%s6 + $0xd8] sm:$0xff]
    %v220 = vld [vmem:[%s6 + $0xe0] sm:$0xff]
    %v221 = vld [vmem:[%s6 + $0xe8] sm:$0xff]
    %v222 = vld [vmem:[%s6 + $0xf0] sm:$0xff]
    %v223 = vld [vmem:[%s6 + $0xf8] sm:$0xff]
    %v224 = vld [vmem:[%s8] sm:$0x1]
    %v226 = vlaneseq
    %v227 = vshrl.u32 %v226, 7
    %v228 = vsub.s32 0, %v227
    %v229 = vrot.slane %v224, %v228
    %231 = vmatprep.subr.mxu0 0.0
    %232 = vmatpush1.msra.mxu0 %v207
    %233 = vmatprep.subr.mxu0 0.0
    %234 = vmatpush1.msra.mxu0 %v206
    %235 = vmatprep.subr.mxu0 0.0
    %236 = vmatpush1.msra.mxu0 %v205
    %237 = vmatprep.subr.mxu0 0.0
    %238 = vmatpush1.msra.mxu0 %v204
    %239 = vmatprep.subr.mxu0 0.0
    %240 = vmatpush1.msra.mxu0 %v203
    %241 = vmatprep.subr.mxu0 0.0
    %242 = vmatpush1.msra.mxu0 %v202
    %243 = vmatprep.subr.mxu0 0.0
    %244 = vmatpush1.msra.mxu0 %v201
    %245 = vmatprep.subr.mxu0 0.0
    %246 = vmatpush1.msra.mxu0 %v200
    %247 = vmatprep.subr.mxu0 0.0
    %248 = vmatpush1.msra.mxu0 %v199
    %249 = vmatprep.subr.mxu0 0.0
    %250 = vmatpush1.msra.mxu0 %v198
    %251 = vmatprep.subr.mxu0 0.0
    %252 = vmatpush1.msra.mxu0 %v197
    %253 = vmatprep.subr.mxu0 0.0
    %254 = vmatpush1.msra.mxu0 %v196
    %255 = vmatprep.subr.mxu0 0.0
    %256 = vmatpush1.msra.mxu0 %v195
    %257 = vmatprep.subr.mxu0 0.0
    %258 = vmatpush1.msra.mxu0 %v194
    %259 = vmatprep.subr.mxu0 0.0
    %260 = vmatpush1.msra.mxu0 %v193
    %261 = vmatprep.subr.mxu0 0.0
    %262 = vmatpush1.msra.mxu0 %v192
    %263 = vmatprep.subr.mxu0 0.0
    %264 = vmatpush2.msra.mxu0 %v223
    %265 = vmatprep.subr.mxu0 0.0
    %266 = vmatpush2.msra.mxu0 %v222
    %267 = vmatprep.subr.mxu0 0.0
    %268 = vmatpush2.msra.mxu0 %v221
    %269 = vmatprep.subr.mxu0 0.0
    %270 = vmatpush2.msra.mxu0 %v220
    %271 = vmatprep.subr.mxu0 0.0
    %272 = vmatpush2.msra.mxu0 %v219
    %273 = vmatprep.subr.mxu0 0.0
    %274 = vmatpush2.msra.mxu0 %v218
    %275 = vmatprep.subr.mxu0 0.0
    %276 = vmatpush2.msra.mxu0 %v217
    %277 = vmatprep.subr.mxu0 0.0
    %278 = vmatpush2.msra.mxu0 %v216
    %279 = vmatprep.subr.mxu0 0.0
    %280 = vmatpush2.msra.mxu0 %v215
    %281 = vmatprep.subr.mxu0 0.0
    %282 = vmatpush2.msra.mxu0 %v214
    %283 = vmatprep.subr.mxu0 0.0
    %284 = vmatpush2.msra.mxu0 %v213
    %285 = vmatprep.subr.mxu0 0.0
    %286 = vmatpush2.msra.mxu0 %v212
    %287 = vmatprep.subr.mxu0 0.0
    %288 = vmatpush2.msra.mxu0 %v211
    %289 = vmatprep.subr.mxu0 0.0
    %290 = vmatpush2.msra.mxu0 %v210
    %291 = vmatprep.subr.mxu0 0.0
    %292 = vmatpush2.msra.mxu0 %v209
    %293 = vmatprep.subr.mxu0 0.0
    %294 = vmatpush2.msra.mxu0 %v208
    %295 = vmatprep.mubr.f32.mxu0 %v189
    %296 = vmatmul.mubr.f32.gmra.mxu0 %v188
    %v297 = vpop.f32.mrf.mxu0
    %v298 = vadd.f32 %v229, %v297
    %v299 = vpop.f32.mrf.mxu0
    %300 = vmatprep.mubr.f32.mxu0 %v191
    %301 = vmatmul.mubr.f32.gmra.mxu0 %v190
    %v302 = vpop.f32.mrf.mxu0
    %v303 = vadd.f32 %v229, %v302
    %v304 = vpop.f32.mrf.mxu0
    %305 = vdwg.mxu0
    %vm306 = vcmask 785408
    %307 = vst.msk [vmem:[#allocation2] sm:$0xff] %vm306, %v298
    %308 = vst.msk [vmem:[#allocation2 + $0x8] sm:$0xff] %vm306, %v303
    %v309 = vld [vmem:[%s7] sm:$0xff]
    %v310 = vld [vmem:[%s7 + $0x8] sm:$0xff]
    %v311 = vld [vmem:[%s7 + $0x10] sm:$0xff]
    %v312 = vld [vmem:[%s7 + $0x18] sm:$0xff]
    %v313 = vld [vmem:[%s9] sm:$0x1]
    %v314 = vld [vmem:[#allocation2] ss:$8 sm:$0x3]
    %v316 = vlaneseq
    %v317 = vshrl.u32 %v316, 7
    %v318 = vsub.s32 0, %v317
    %v319 = vrot.slane %v313, %v318
    %vm321 = vcmask 261120
    %v323 = vsel %vm321, 0.0, 0
    %325 = vmatprep.subr.mxu0 0.0
    %326 = vmatpush1.msra.mxu0 0.0
    %327 = vmatprep.subr.mxu0 0.0
    %328 = vmatpush1.msra.mxu0 0.0
    %329 = vmatprep.subr.mxu0 0.0
    %330 = vmatpush1.msra.mxu0 0.0
    %331 = vmatprep.subr.mxu0 0.0
    %332 = vmatpush1.msra.mxu0 0.0
    %333 = vmatprep.subr.mxu0 0.0
    %334 = vmatpush1.msra.mxu0 0.0
    %335 = vmatprep.subr.mxu0 0.0
    %336 = vmatpush1.msra.mxu0 0.0
    %337 = vmatprep.subr.mxu0 0.0
    %338 = vmatpush1.msra.mxu0 0.0
    %339 = vmatprep.subr.mxu0 0.0
    %340 = vmatpush1.msra.mxu0 0.0
    %341 = vmatprep.subr.mxu0 0.0
    %342 = vmatpush1.msra.mxu0 0.0
    %343 = vmatprep.subr.mxu0 0.0
    %344 = vmatpush1.msra.mxu0 0.0
    %345 = vmatprep.subr.mxu0 0.0
    %346 = vmatpush1.msra.mxu0 0.0
    %347 = vmatprep.subr.mxu0 0.0
    %348 = vmatpush1.msra.mxu0 0.0
    %349 = vmatprep.subr.mxu0 0.0
    %350 = vmatpush1.msra.mxu0 %v312
    %351 = vmatprep.subr.mxu0 0.0
    %352 = vmatpush1.msra.mxu0 %v311
    %353 = vmatprep.subr.mxu0 0.0
    %354 = vmatpush1.msra.mxu0 %v310
    %355 = vmatprep.subr.mxu0 0.0
    %356 = vmatpush1.msra.mxu0 %v309
    %357 = vmatprep.subr.mxu0 0.0
    %358 = vmatpush2.msra.mxu0 0.0
    %359 = vmatprep.subr.mxu0 0.0
    %360 = vmatpush2.msra.mxu0 0.0
    %361 = vmatprep.subr.mxu0 0.0
    %362 = vmatpush2.msra.mxu0 0.0
    %363 = vmatprep.subr.mxu0 0.0
    %364 = vmatpush2.msra.mxu0 0.0
    %365 = vmatprep.subr.mxu0 0.0
    %366 = vmatpush2.msra.mxu0 0.0
    %367 = vmatprep.subr.mxu0 0.0
    %368 = vmatpush2.msra.mxu0 0.0
    %369 = vmatprep.subr.mxu0 0.0
    %370 = vmatpush2.msra.mxu0 0.0
    %371 = vmatprep.subr.mxu0 0.0
    %372 = vmatpush2.msra.mxu0 0.0
    %373 = vmatprep.subr.mxu0 0.0
    %374 = vmatpush2.msra.mxu0 0.0
    %375 = vmatprep.subr.mxu0 0.0
    %376 = vmatpush2.msra.mxu0 0.0
    %377 = vmatprep.subr.mxu0 0.0
    %378 = vmatpush2.msra.mxu0 0.0
    %379 = vmatprep.subr.mxu0 0.0
    %380 = vmatpush2.msra.mxu0 0.0
    %381 = vmatprep.subr.mxu0 0.0
    %382 = vmatpush2.msra.mxu0 0.0
    %383 = vmatprep.subr.mxu0 0.0
    %384 = vmatpush2.msra.mxu0 0.0
    %385 = vmatprep.subr.mxu0 0.0
    %386 = vmatpush2.msra.mxu0 0.0
    %387 = vmatprep.subr.mxu0 0.0
    %388 = vmatpush2.msra.mxu0 0.0
    %389 = vmatprep.mubr.f32.mxu0 0.0
    %390 = vmatmul.mubr.f32.gmra.mxu0 %v323
    %v391 = vpop.f32.mrf.mxu0
    %v392 = vadd.f32 %v319, %v391
    %v393 = vpop.f32.mrf.mxu0
    %394 = vdwg.mxu0
    %v395 = vadd.f32 %v314, %v392
    %v396 = vxor.u32 %v395, 2147483648
    %v397 = vmul.f32 %v396, 1.442695
    %v398 = vpow.pop %v397
    %v399 = vadd.f32 %v398, 1.0
    %v400 = vrcp.pop %v399
    %v401 = vmul.f32 1.0, %v400
    %403 = vrot.lane.b32.xlu0 %v392, 64
    %v404 = vpop.permute.xlu0 %403
    %v406 = vmul.f32 %v401, %v404
    %408 = vrot.lane.b32.xlu0 %v406, 64
    %v409 = vpop.permute.xlu0 %408
    %v411 = vadd.f32 %v314, %v409
    %v412 = vtanh.pop %v411
    %v413 = vsub.f32 1.0, %v401
    %415 = vrot.lane.b32.xlu0 %v412, 96
    %v416 = vpop.permute.xlu0 %415
    %v418 = vmul.f32 %v413, %v416
    %v419 = vmul.f32 %v401, 0.0
    %v420 = vadd.f32 %v418, %v419
    %422 = vrot.lane.b32.xlu0 %v420, 96
    %v423 = vpop.permute.xlu0 %422
    %vm425 = vcmask 253952
    %426 = vst.msk [vmem:[#allocation3] sm:$0x1] %vm425, %v423
    %vm427 = vcmask 254977
    %428 = vst.msk [vmem:[#allocation3 + $0x7] sm:$0x2] %vm427, %v423
    %s429 = scalar_lea.vmem [#allocation2], 1
    %v430 = vld [vmem:[%s429] ss:$8 sm:$0x3]
    %v431 = vsel %vm321, %v423, 0
    %433 = vmatprep.subr.mxu0 0.0
    %434 = vmatpush1.msra.mxu0 0.0
    %435 = vmatprep.subr.mxu0 0.0
    %436 = vmatpush1.msra.mxu0 0.0
    %437 = vmatprep.subr.mxu0 0.0
    %438 = vmatpush1.msra.mxu0 0.0
    %439 = vmatprep.subr.mxu0 0.0
    %440 = vmatpush1.msra.mxu0 0.0
    %441 = vmatprep.subr.mxu0 0.0
    %442 = vmatpush1.msra.mxu0 0.0
    %443 = vmatprep.subr.mxu0 0.0
    %444 = vmatpush1.msra.mxu0 0.0
    %445 = vmatprep.subr.mxu0 0.0
    %446 = vmatpush1.msra.mxu0 0.0
    %447 = vmatprep.subr.mxu0 0.0
    %448 = vmatpush1.msra.mxu0 0.0
    %449 = vmatprep.subr.mxu0 0.0
    %450 = vmatpush1.msra.mxu0 0.0
    %451 = vmatprep.subr.mxu0 0.0
    %452 = vmatpush1.msra.mxu0 0.0
    %453 = vmatprep.subr.mxu0 0.0
    %454 = vmatpush1.msra.mxu0 0.0
    %455 = vmatprep.subr.mxu0 0.0
    %456 = vmatpush1.msra.mxu0 0.0
    %457 = vmatprep.subr.mxu0 0.0
    %458 = vmatpush1.msra.mxu0 %v312
    %459 = vmatprep.subr.mxu0 0.0
    %460 = vmatpush1.msra.mxu0 %v311
    %461 = vmatprep.subr.mxu0 0.0
    %462 = vmatpush1.msra.mxu0 %v310
    %463 = vmatprep.subr.mxu0 0.0
    %464 = vmatpush1.msra.mxu0 %v309
    %465 = vmatprep.subr.mxu0 0.0
    %466 = vmatpush2.msra.mxu0 0.0
    %467 = vmatprep.subr.mxu0 0.0
    %468 = vmatpush2.msra.mxu0 0.0
    %469 = vmatprep.subr.mxu0 0.0
    %470 = vmatpush2.msra.mxu0 0.0
    %471 = vmatprep.subr.mxu0 0.0
    %472 = vmatpush2.msra.mxu0 0.0
    %473 = vmatprep.subr.mxu0 0.0
    %474 = vmatpush2.msra.mxu0 0.0
    %475 = vmatprep.subr.mxu0 0.0
    %476 = vmatpush2.msra.mxu0 0.0
    %477 = vmatprep.subr.mxu0 0.0
    %478 = vmatpush2.msra.mxu0 0.0
    %479 = vmatprep.subr.mxu0 0.0
    %480 = vmatpush2.msra.mxu0 0.0
    %481 = vmatprep.subr.mxu0 0.0
    %482 = vmatpush2.msra.mxu0 0.0
    %483 = vmatprep.subr.mxu0 0.0
    %484 = vmatpush2.msra.mxu0 0.0
    %485 = vmatprep.subr.mxu0 0.0
    %486 = vmatpush2.msra.mxu0 0.0
    %487 = vmatprep.subr.mxu0 0.0
    %488 = vmatpush2.msra.mxu0 0.0
    %489 = vmatprep.subr.mxu0 0.0
    %490 = vmatpush2.msra.mxu0 0.0
    %491 = vmatprep.subr.mxu0 0.0
    %492 = vmatpush2.msra.mxu0 0.0
    %493 = vmatprep.subr.mxu0 0.0
    %494 = vmatpush2.msra.mxu0 0.0
    %495 = vmatprep.subr.mxu0 0.0
    %496 = vmatpush2.msra.mxu0 0.0
    %497 = vmatprep.mubr.f32.mxu0 0.0
    %498 = vmatmul.mubr.f32.gmra.mxu0 %v431
    %v499 = vpop.f32.mrf.mxu0
    %v500 = vadd.f32 %v319, %v499
    %v501 = vpop.f32.mrf.mxu0
    %502 = vdwg.mxu0
    %v503 = vadd.f32 %v430, %v500
    %v504 = vxor.u32 %v503, 2147483648
    %v505 = vmul.f32 %v504, 1.442695
    %v506 = vpow.pop %v505
    %v507 = vadd.f32 %v506, 1.0
    %v508 = vrcp.pop %v507
    %v509 = vmul.f32 1.0, %v508
    %511 = vrot.lane.b32.xlu0 %v500, 64
    %v512 = vpop.permute.xlu0 %511
    %v514 = vmul.f32 %v509, %v512
    %516 = vrot.lane.b32.xlu0 %v514, 64
    %v517 = vpop.permute.xlu0 %516
    %v519 = vadd.f32 %v430, %v517
    %v520 = vtanh.pop %v519
    %v521 = vsub.f32 1.0, %v509
    %523 = vrot.lane.b32.xlu0 %v520, 96
    %v524 = vpop.permute.xlu0 %523
    %v526 = vmul.f32 %v521, %v524
    %v527 = vmul.f32 %v509, %v420
    %v528 = vadd.f32 %v526, %v527
    %530 = vrot.lane.b32.xlu0 %v528, 96
    %v531 = vpop.permute.xlu0 %530
    %533 = vst.msk [vmem:[#allocation3 + $0x1] sm:$0x1] %vm425, %v531
    %534 = vst.msk [vmem:[#allocation3 + $0x8] sm:$0x2] %vm427, %v531
    %s535 = scalar_lea.vmem [#allocation2], 2
    %v536 = vld [vmem:[%s535] ss:$8 sm:$0x3]
    %v537 = vsel %vm321, %v531, 0
    %539 = vmatprep.subr.mxu0 0.0
    %540 = vmatpush1.msra.mxu0 0.0
    %541 = vmatprep.subr.mxu0 0.0
    %542 = vmatpush1.msra.mxu0 0.0
    %543 = vmatprep.subr.mxu0 0.0
    %544 = vmatpush1.msra.mxu0 0.0
    %545 = vmatprep.subr.mxu0 0.0
    %546 = vmatpush1.msra.mxu0 0.0
    %547 = vmatprep.subr.mxu0 0.0
    %548 = vmatpush1.msra.mxu0 0.0
    %549 = vmatprep.subr.mxu0 0.0
    %550 = vmatpush1.msra.mxu0 0.0
    %551 = vmatprep.subr.mxu0 0.0
    %552 = vmatpush1.msra.mxu0 0.0
    %553 = vmatprep.subr.mxu0 0.0
    %554 = vmatpush1.msra.mxu0 0.0
    %555 = vmatprep.subr.mxu0 0.0
    %556 = vmatpush1.msra.mxu0 0.0
    %557 = vmatprep.subr.mxu0 0.0
    %558 = vmatpush1.msra.mxu0 0.0
    %559 = vmatprep.subr.mxu0 0.0
    %560 = vmatpush1.msra.mxu0 0.0
    %561 = vmatprep.subr.mxu0 0.0
    %562 = vmatpush1.msra.mxu0 0.0
    %563 = vmatprep.subr.mxu0 0.0
    %564 = vmatpush1.msra.mxu0 %v312
    %565 = vmatprep.subr.mxu0 0.0
    %566 = vmatpush1.msra.mxu0 %v311
    %567 = vmatprep.subr.mxu0 0.0
    %568 = vmatpush1.msra.mxu0 %v310
    %569 = vmatprep.subr.mxu0 0.0
    %570 = vmatpush1.msra.mxu0 %v309
    %571 = vmatprep.subr.mxu0 0.0
    %572 = vmatpush2.msra.mxu0 0.0
    %573 = vmatprep.subr.mxu0 0.0
    %574 = vmatpush2.msra.mxu0 0.0
    %575 = vmatprep.subr.mxu0 0.0
    %576 = vmatpush2.msra.mxu0 0.0
    %577 = vmatprep.subr.mxu0 0.0
    %578 = vmatpush2.msra.mxu0 0.0
    %579 = vmatprep.subr.mxu0 0.0
    %580 = vmatpush2.msra.mxu0 0.0
    %581 = vmatprep.subr.mxu0 0.0
    %582 = vmatpush2.msra.mxu0 0.0
    %583 = vmatprep.subr.mxu0 0.0
    %584 = vmatpush2.msra.mxu0 0.0
    %585 = vmatprep.subr.mxu0 0.0
    %586 = vmatpush2.msra.mxu0 0.0
    %587 = vmatprep.subr.mxu0 0.0
    %588 = vmatpush2.msra.mxu0 0.0
    %589 = vmatprep.subr.mxu0 0.0
    %590 = vmatpush2.msra.mxu0 0.0
    %591 = vmatprep.subr.mxu0 0.0
    %592 = vmatpush2.msra.mxu0 0.0
    %593 = vmatprep.subr.mxu0 0.0
    %594 = vmatpush2.msra.mxu0 0.0
    %595 = vmatprep.subr.mxu0 0.0
    %596 = vmatpush2.msra.mxu0 0.0
    %597 = vmatprep.subr.mxu0 0.0
    %598 = vmatpush2.msra.mxu0 0.0
    %599 = vmatprep.subr.mxu0 0.0
    %600 = vmatpush2.msra.mxu0 0.0
    %601 = vmatprep.subr.mxu0 0.0
    %602 = vmatpush2.msra.mxu0 0.0
    %603 = vmatprep.mubr.f32.mxu0 0.0
    %604 = vmatmul.mubr.f32.gmra.mxu0 %v537
    %v605 = vpop.f32.mrf.mxu0
    %v606 = vadd.f32 %v319, %v605
    %v607 = vpop.f32.mrf.mxu0
    %608 = vdwg.mxu0
    %v609 = vadd.f32 %v536, %v606
    %v610 = vxor.u32 %v609, 2147483648
    %v611 = vmul.f32 %v610, 1.442695
    %v612 = vpow.pop %v611
    %v613 = vadd.f32 %v612, 1.0
    %v614 = vrcp.pop %v613
    %v615 = vmul.f32 1.0, %v614
    %617 = vrot.lane.b32.xlu0 %v606, 64
    %v618 = vpop.permute.xlu0 %617
    %v620 = vmul.f32 %v615, %v618
    %622 = vrot.lane.b32.xlu0 %v620, 64
    %v623 = vpop.permute.xlu0 %622
    %v625 = vadd.f32 %v536, %v623
    %v626 = vtanh.pop %v625
    %v627 = vsub.f32 1.0, %v615
    %629 = vrot.lane.b32.xlu0 %v626, 96
    %v630 = vpop.permute.xlu0 %629
    %v632 = vmul.f32 %v627, %v630
    %v633 = vmul.f32 %v615, %v528
    %v634 = vadd.f32 %v632, %v633
    %636 = vrot.lane.b32.xlu0 %v634, 96
    %v637 = vpop.permute.xlu0 %636
    %639 = vst.msk [vmem:[#allocation3 + $0x2] sm:$0x1] %vm425, %v637
    %640 = vst.msk [vmem:[#allocation3 + $0x9] sm:$0x2] %vm427, %v637
    %s641 = scalar_lea.vmem [#allocation2], 3
    %v642 = vld [vmem:[%s641] ss:$8 sm:$0x3]
    %v643 = vsel %vm321, %v637, 0
    %645 = vmatprep.subr.mxu0 0.0
    %646 = vmatpush1.msra.mxu0 0.0
    %647 = vmatprep.subr.mxu0 0.0
    %648 = vmatpush1.msra.mxu0 0.0
    %649 = vmatprep.subr.mxu0 0.0
    %650 = vmatpush1.msra.mxu0 0.0
    %651 = vmatprep.subr.mxu0 0.0
    %652 = vmatpush1.msra.mxu0 0.0
    %653 = vmatprep.subr.mxu0 0.0
    %654 = vmatpush1.msra.mxu0 0.0
    %655 = vmatprep.subr.mxu0 0.0
    %656 = vmatpush1.msra.mxu0 0.0
    %657 = vmatprep.subr.mxu0 0.0
    %658 = vmatpush1.msra.mxu0 0.0
    %659 = vmatprep.subr.mxu0 0.0
    %660 = vmatpush1.msra.mxu0 0.0
    %661 = vmatprep.subr.mxu0 0.0
    %662 = vmatpush1.msra.mxu0 0.0
    %663 = vmatprep.subr.mxu0 0.0
    %664 = vmatpush1.msra.mxu0 0.0
    %665 = vmatprep.subr.mxu0 0.0
    %666 = vmatpush1.msra.mxu0 0.0
    %667 = vmatprep.subr.mxu0 0.0
    %668 = vmatpush1.msra.mxu0 0.0
    %669 = vmatprep.subr.mxu0 0.0
    %670 = vmatpush1.msra.mxu0 %v312
    %671 = vmatprep.subr.mxu0 0.0
    %672 = vmatpush1.msra.mxu0 %v311
    %673 = vmatprep.subr.mxu0 0.0
    %674 = vmatpush1.msra.mxu0 %v310
    %675 = vmatprep.subr.mxu0 0.0
    %676 = vmatpush1.msra.mxu0 %v309
    %677 = vmatprep.subr.mxu0 0.0
    %678 = vmatpush2.msra.mxu0 0.0
    %679 = vmatprep.subr.mxu0 0.0
    %680 = vmatpush2.msra.mxu0 0.0
    %681 = vmatprep.subr.mxu0 0.0
    %682 = vmatpush2.msra.mxu0 0.0
    %683 = vmatprep.subr.mxu0 0.0
    %684 = vmatpush2.msra.mxu0 0.0
    %685 = vmatprep.subr.mxu0 0.0
    %686 = vmatpush2.msra.mxu0 0.0
    %687 = vmatprep.subr.mxu0 0.0
    %688 = vmatpush2.msra.mxu0 0.0
    %689 = vmatprep.subr.mxu0 0.0
    %690 = vmatpush2.msra.mxu0 0.0
    %691 = vmatprep.subr.mxu0 0.0
    %692 = vmatpush2.msra.mxu0 0.0
    %693 = vmatprep.subr.mxu0 0.0
    %694 = vmatpush2.msra.mxu0 0.0
    %695 = vmatprep.subr.mxu0 0.0
    %696 = vmatpush2.msra.mxu0 0.0
    %697 = vmatprep.subr.mxu0 0.0
    %698 = vmatpush2.msra.mxu0 0.0
    %699 = vmatprep.subr.mxu0 0.0
    %700 = vmatpush2.msra.mxu0 0.0
    %701 = vmatprep.subr.mxu0 0.0
    %702 = vmatpush2.msra.mxu0 0.0
    %703 = vmatprep.subr.mxu0 0.0
    %704 = vmatpush2.msra.mxu0 0.0
    %705 = vmatprep.subr.mxu0 0.0
    %706 = vmatpush2.msra.mxu0 0.0
    %707 = vmatprep.subr.mxu0 0.0
    %708 = vmatpush2.msra.mxu0 0.0
    %709 = vmatprep.mubr.f32.mxu0 0.0
    %710 = vmatmul.mubr.f32.gmra.mxu0 %v643
    %v711 = vpop.f32.mrf.mxu0
    %v712 = vadd.f32 %v319, %v711
    %v713 = vpop.f32.mrf.mxu0
    %714 = vdwg.mxu0
    %v715 = vadd.f32 %v642, %v712
    %v716 = vxor.u32 %v715, 2147483648
    %v717 = vmul.f32 %v716, 1.442695
    %v718 = vpow.pop %v717
    %v719 = vadd.f32 %v718, 1.0
    %v720 = vrcp.pop %v719
    %v721 = vmul.f32 1.0, %v720
    %723 = vrot.lane.b32.xlu0 %v712, 64
    %v724 = vpop.permute.xlu0 %723
    %v726 = vmul.f32 %v721, %v724
    %728 = vrot.lane.b32.xlu0 %v726, 64
    %v729 = vpop.permute.xlu0 %728
    %v731 = vadd.f32 %v642, %v729
    %v732 = vtanh.pop %v731
    %v733 = vsub.f32 1.0, %v721
    %735 = vrot.lane.b32.xlu0 %v732, 96
    %v736 = vpop.permute.xlu0 %735
    %v738 = vmul.f32 %v733, %v736
    %v739 = vmul.f32 %v721, %v634
    %v740 = vadd.f32 %v738, %v739
    %742 = vrot.lane.b32.xlu0 %v740, 96
    %v743 = vpop.permute.xlu0 %742
    %745 = vst.msk [vmem:[#allocation3 + $0x3] sm:$0x1] %vm425, %v743
    %746 = vst.msk [vmem:[#allocation3 + $0xa] sm:$0x2] %vm427, %v743
    %s747 = scalar_lea.vmem [#allocation2], 4
    %v748 = vld [vmem:[%s747] ss:$8 sm:$0x3]
    %v749 = vsel %vm321, %v743, 0
    %751 = vmatprep.subr.mxu0 0.0
    %752 = vmatpush1.msra.mxu0 0.0
    %753 = vmatprep.subr.mxu0 0.0
    %754 = vmatpush1.msra.mxu0 0.0
    %755 = vmatprep.subr.mxu0 0.0
    %756 = vmatpush1.msra.mxu0 0.0
    %757 = vmatprep.subr.mxu0 0.0
    %758 = vmatpush1.msra.mxu0 0.0
    %759 = vmatprep.subr.mxu0 0.0
    %760 = vmatpush1.msra.mxu0 0.0
    %761 = vmatprep.subr.mxu0 0.0
    %762 = vmatpush1.msra.mxu0 0.0
    %763 = vmatprep.subr.mxu0 0.0
    %764 = vmatpush1.msra.mxu0 0.0
    %765 = vmatprep.subr.mxu0 0.0
    %766 = vmatpush1.msra.mxu0 0.0
    %767 = vmatprep.subr.mxu0 0.0
    %768 = vmatpush1.msra.mxu0 0.0
    %769 = vmatprep.subr.mxu0 0.0
    %770 = vmatpush1.msra.mxu0 0.0
    %771 = vmatprep.subr.mxu0 0.0
    %772 = vmatpush1.msra.mxu0 0.0
    %773 = vmatprep.subr.mxu0 0.0
    %774 = vmatpush1.msra.mxu0 0.0
    %775 = vmatprep.subr.mxu0 0.0
    %776 = vmatpush1.msra.mxu0 %v312
    %777 = vmatprep.subr.mxu0 0.0
    %778 = vmatpush1.msra.mxu0 %v311
    %779 = vmatprep.subr.mxu0 0.0
    %780 = vmatpush1.msra.mxu0 %v310
    %781 = vmatprep.subr.mxu0 0.0
    %782 = vmatpush1.msra.mxu0 %v309
    %783 = vmatprep.subr.mxu0 0.0
    %784 = vmatpush2.msra.mxu0 0.0
    %785 = vmatprep.subr.mxu0 0.0
    %786 = vmatpush2.msra.mxu0 0.0
    %787 = vmatprep.subr.mxu0 0.0
    %788 = vmatpush2.msra.mxu0 0.0
    %789 = vmatprep.subr.mxu0 0.0
    %790 = vmatpush2.msra.mxu0 0.0
    %791 = vmatprep.subr.mxu0 0.0
    %792 = vmatpush2.msra.mxu0 0.0
    %793 = vmatprep.subr.mxu0 0.0
    %794 = vmatpush2.msra.mxu0 0.0
    %795 = vmatprep.subr.mxu0 0.0
    %796 = vmatpush2.msra.mxu0 0.0
    %797 = vmatprep.subr.mxu0 0.0
    %798 = vmatpush2.msra.mxu0 0.0
    %799 = vmatprep.subr.mxu0 0.0
    %800 = vmatpush2.msra.mxu0 0.0
    %801 = vmatprep.subr.mxu0 0.0
    %802 = vmatpush2.msra.mxu0 0.0
    %803 = vmatprep.subr.mxu0 0.0
    %804 = vmatpush2.msra.mxu0 0.0
    %805 = vmatprep.subr.mxu0 0.0
    %806 = vmatpush2.msra.mxu0 0.0
    %807 = vmatprep.subr.mxu0 0.0
    %808 = vmatpush2.msra.mxu0 0.0
    %809 = vmatprep.subr.mxu0 0.0
    %810 = vmatpush2.msra.mxu0 0.0
    %811 = vmatprep.subr.mxu0 0.0
    %812 = vmatpush2.msra.mxu0 0.0
    %813 = vmatprep.subr.mxu0 0.0
    %814 = vmatpush2.msra.mxu0 0.0
    %815 = vmatprep.mubr.f32.mxu0 0.0
    %816 = vmatmul.mubr.f32.gmra.mxu0 %v749
    %v817 = vpop.f32.mrf.mxu0
    %v818 = vadd.f32 %v319, %v817
    %v819 = vpop.f32.mrf.mxu0
    %820 = vdwg.mxu0
    %v821 = vadd.f32 %v748, %v818
    %v822 = vxor.u32 %v821, 2147483648
    %v823 = vmul.f32 %v822, 1.442695
    %v824 = vpow.pop %v823
    %v825 = vadd.f32 %v824, 1.0
    %v826 = vrcp.pop %v825
    %v827 = vmul.f32 1.0, %v826
    %829 = vrot.lane.b32.xlu0 %v818, 64
    %v830 = vpop.permute.xlu0 %829
    %v832 = vmul.f32 %v827, %v830
    %834 = vrot.lane.b32.xlu0 %v832, 64
    %v835 = vpop.permute.xlu0 %834
    %v837 = vadd.f32 %v748, %v835
    %v838 = vtanh.pop %v837
    %v839 = vsub.f32 1.0, %v827
    %841 = vrot.lane.b32.xlu0 %v838, 96
    %v842 = vpop.permute.xlu0 %841
    %v844 = vmul.f32 %v839, %v842
    %v845 = vmul.f32 %v827, %v740
    %v846 = vadd.f32 %v844, %v845
    %848 = vrot.lane.b32.xlu0 %v846, 96
    %v849 = vpop.permute.xlu0 %848
    %851 = vst.msk [vmem:[#allocation3 + $0x4] sm:$0x1] %vm425, %v849
    %852 = vst.msk [vmem:[#allocation3 + $0xb] sm:$0x2] %vm427, %v849
    %s853 = scalar_lea.vmem [#allocation2], 5
    %v854 = vld [vmem:[%s853] ss:$8 sm:$0x3]
    %v855 = vsel %vm321, %v849, 0
    %857 = vmatprep.subr.mxu0 0.0
    %858 = vmatpush1.msra.mxu0 0.0
    %859 = vmatprep.subr.mxu0 0.0
    %860 = vmatpush1.msra.mxu0 0.0
    %861 = vmatprep.subr.mxu0 0.0
    %862 = vmatpush1.msra.mxu0 0.0
    %863 = vmatprep.subr.mxu0 0.0
    %864 = vmatpush1.msra.mxu0 0.0
    %865 = vmatprep.subr.mxu0 0.0
    %866 = vmatpush1.msra.mxu0 0.0
    %867 = vmatprep.subr.mxu0 0.0
    %868 = vmatpush1.msra.mxu0 0.0
    %869 = vmatprep.subr.mxu0 0.0
    %870 = vmatpush1.msra.mxu0 0.0
    %871 = vmatprep.subr.mxu0 0.0
    %872 = vmatpush1.msra.mxu0 0.0
    %873 = vmatprep.subr.mxu0 0.0
    %874 = vmatpush1.msra.mxu0 0.0
    %875 = vmatprep.subr.mxu0 0.0
    %876 = vmatpush1.msra.mxu0 0.0
    %877 = vmatprep.subr.mxu0 0.0
    %878 = vmatpush1.msra.mxu0 0.0
    %879 = vmatprep.subr.mxu0 0.0
    %880 = vmatpush1.msra.mxu0 0.0
    %881 = vmatprep.subr.mxu0 0.0
    %882 = vmatpush1.msra.mxu0 %v312
    %883 = vmatprep.subr.mxu0 0.0
    %884 = vmatpush1.msra.mxu0 %v311
    %885 = vmatprep.subr.mxu0 0.0
    %886 = vmatpush1.msra.mxu0 %v310
    %887 = vmatprep.subr.mxu0 0.0
    %888 = vmatpush1.msra.mxu0 %v309
    %889 = vmatprep.subr.mxu0 0.0
    %890 = vmatpush2.msra.mxu0 0.0
    %891 = vmatprep.subr.mxu0 0.0
    %892 = vmatpush2.msra.mxu0 0.0
    %893 = vmatprep.subr.mxu0 0.0
    %894 = vmatpush2.msra.mxu0 0.0
    %895 = vmatprep.subr.mxu0 0.0
    %896 = vmatpush2.msra.mxu0 0.0
    %897 = vmatprep.subr.mxu0 0.0
    %898 = vmatpush2.msra.mxu0 0.0
    %899 = vmatprep.subr.mxu0 0.0
    %900 = vmatpush2.msra.mxu0 0.0
    %901 = vmatprep.subr.mxu0 0.0
    %902 = vmatpush2.msra.mxu0 0.0
    %903 = vmatprep.subr.mxu0 0.0
    %904 = vmatpush2.msra.mxu0 0.0
    %905 = vmatprep.subr.mxu0 0.0
    %906 = vmatpush2.msra.mxu0 0.0
    %907 = vmatprep.subr.mxu0 0.0
    %908 = vmatpush2.msra.mxu0 0.0
    %909 = vmatprep.subr.mxu0 0.0
    %910 = vmatpush2.msra.mxu0 0.0
    %911 = vmatprep.subr.mxu0 0.0
    %912 = vmatpush2.msra.mxu0 0.0
    %913 = vmatprep.subr.mxu0 0.0
    %914 = vmatpush2.msra.mxu0 0.0
    %915 = vmatprep.subr.mxu0 0.0
    %916 = vmatpush2.msra.mxu0 0.0
    %917 = vmatprep.subr.mxu0 0.0
    %918 = vmatpush2.msra.mxu0 0.0
    %919 = vmatprep.subr.mxu0 0.0
    %920 = vmatpush2.msra.mxu0 0.0
    %921 = vmatprep.mubr.f32.mxu0 0.0
    %922 = vmatmul.mubr.f32.gmra.mxu0 %v855
    %v923 = vpop.f32.mrf.mxu0
    %v924 = vadd.f32 %v319, %v923
    %v925 = vpop.f32.mrf.mxu0
    %926 = vdwg.mxu0
    %v927 = vadd.f32 %v854, %v924
    %v928 = vxor.u32 %v927, 2147483648
    %v929 = vmul.f32 %v928, 1.442695
    %v930 = vpow.pop %v929
    %v931 = vadd.f32 %v930, 1.0
    %v932 = vrcp.pop %v931
    %v933 = vmul.f32 1.0, %v932
    %935 = vrot.lane.b32.xlu0 %v924, 64
    %v936 = vpop.permute.xlu0 %935
    %v938 = vmul.f32 %v933, %v936
    %940 = vrot.lane.b32.xlu0 %v938, 64
    %v941 = vpop.permute.xlu0 %940
    %v943 = vadd.f32 %v854, %v941
    %v944 = vtanh.pop %v943
    %v945 = vsub.f32 1.0, %v933
    %947 = vrot.lane.b32.xlu0 %v944, 96
    %v948 = vpop.permute.xlu0 %947
    %v950 = vmul.f32 %v945, %v948
    %v951 = vmul.f32 %v933, %v846
    %v952 = vadd.f32 %v950, %v951
    %954 = vrot.lane.b32.xlu0 %v952, 96
    %v955 = vpop.permute.xlu0 %954
    %957 = vst.msk [vmem:[#allocation3 + $0x5] sm:$0x1] %vm425, %v955
    %958 = vst.msk [vmem:[#allocation3 + $0xc] sm:$0x2] %vm427, %v955
    %s959 = scalar_lea.vmem [#allocation2], 6
    %v960 = vld [vmem:[%s959] ss:$8 sm:$0x3]
    %v961 = vsel %vm321, %v955, 0
    %963 = vmatprep.subr.mxu0 0.0
    %964 = vmatpush1.msra.mxu0 0.0
    %965 = vmatprep.subr.mxu0 0.0
    %966 = vmatpush1.msra.mxu0 0.0
    %967 = vmatprep.subr.mxu0 0.0
    %968 = vmatpush1.msra.mxu0 0.0
    %969 = vmatprep.subr.mxu0 0.0
    %970 = vmatpush1.msra.mxu0 0.0
    %971 = vmatprep.subr.mxu0 0.0
    %972 = vmatpush1.msra.mxu0 0.0
    %973 = vmatprep.subr.mxu0 0.0
    %974 = vmatpush1.msra.mxu0 0.0
    %975 = vmatprep.subr.mxu0 0.0
    %976 = vmatpush1.msra.mxu0 0.0
    %977 = vmatprep.subr.mxu0 0.0
    %978 = vmatpush1.msra.mxu0 0.0
    %979 = vmatprep.subr.mxu0 0.0
    %980 = vmatpush1.msra.mxu0 0.0
    %981 = vmatprep.subr.mxu0 0.0
    %982 = vmatpush1.msra.mxu0 0.0
    %983 = vmatprep.subr.mxu0 0.0
    %984 = vmatpush1.msra.mxu0 0.0
    %985 = vmatprep.subr.mxu0 0.0
    %986 = vmatpush1.msra.mxu0 0.0
    %987 = vmatprep.subr.mxu0 0.0
    %988 = vmatpush1.msra.mxu0 %v312
    %989 = vmatprep.subr.mxu0 0.0
    %990 = vmatpush1.msra.mxu0 %v311
    %991 = vmatprep.subr.mxu0 0.0
    %992 = vmatpush1.msra.mxu0 %v310
    %993 = vmatprep.subr.mxu0 0.0
    %994 = vmatpush1.msra.mxu0 %v309
    %995 = vmatprep.subr.mxu0 0.0
    %996 = vmatpush2.msra.mxu0 0.0
    %997 = vmatprep.subr.mxu0 0.0
    %998 = vmatpush2.msra.mxu0 0.0
    %999 = vmatprep.subr.mxu0 0.0
    %1000 = vmatpush2.msra.mxu0 0.0
    %1001 = vmatprep.subr.mxu0 0.0
    %1002 = vmatpush2.msra.mxu0 0.0
    %1003 = vmatprep.subr.mxu0 0.0
    %1004 = vmatpush2.msra.mxu0 0.0
    %1005 = vmatprep.subr.mxu0 0.0
    %1006 = vmatpush2.msra.mxu0 0.0
    %1007 = vmatprep.subr.mxu0 0.0
    %1008 = vmatpush2.msra.mxu0 0.0
    %1009 = vmatprep.subr.mxu0 0.0
    %1010 = vmatpush2.msra.mxu0 0.0
    %1011 = vmatprep.subr.mxu0 0.0
    %1012 = vmatpush2.msra.mxu0 0.0
    %1013 = vmatprep.subr.mxu0 0.0
    %1014 = vmatpush2.msra.mxu0 0.0
    %1015 = vmatprep.subr.mxu0 0.0
    %1016 = vmatpush2.msra.mxu0 0.0
    %1017 = vmatprep.subr.mxu0 0.0
    %1018 = vmatpush2.msra.mxu0 0.0
    %1019 = vmatprep.subr.mxu0 0.0
    %1020 = vmatpush2.msra.mxu0 0.0
    %1021 = vmatprep.subr.mxu0 0.0
    %1022 = vmatpush2.msra.mxu0 0.0
    %1023 = vmatprep.subr.mxu0 0.0
    %1024 = vmatpush2.msra.mxu0 0.0
    %1025 = vmatprep.subr.mxu0 0.0
    %1026 = vmatpush2.msra.mxu0 0.0
    %1027 = vmatprep.mubr.f32.mxu0 0.0
    %1028 = vmatmul.mubr.f32.gmra.mxu0 %v961
    %v1029 = vpop.f32.mrf.mxu0
    %v1030 = vadd.f32 %v319, %v1029
    %v1031 = vpop.f32.mrf.mxu0
    %1032 = vdwg.mxu0
    %v1033 = vadd.f32 %v960, %v1030
    %v1034 = vxor.u32 %v1033, 2147483648
    %v1035 = vmul.f32 %v1034, 1.442695
    %v1036 = vpow.pop %v1035
    %v1037 = vadd.f32 %v1036, 1.0
    %v1038 = vrcp.pop %v1037
    %v1039 = vmul.f32 1.0, %v1038
    %1041 = vrot.lane.b32.xlu0 %v1030, 64
    %v1042 = vpop.permute.xlu0 %1041
    %v1044 = vmul.f32 %v1039, %v1042
    %1046 = vrot.lane.b32.xlu0 %v1044, 64
    %v1047 = vpop.permute.xlu0 %1046
    %v1049 = vadd.f32 %v960, %v1047
    %v1050 = vtanh.pop %v1049
    %v1051 = vsub.f32 1.0, %v1039
    %1053 = vrot.lane.b32.xlu0 %v1050, 96
    %v1054 = vpop.permute.xlu0 %1053
    %v1056 = vmul.f32 %v1051, %v1054
    %v1057 = vmul.f32 %v1039, %v952
    %v1058 = vadd.f32 %v1056, %v1057
    %1060 = vrot.lane.b32.xlu0 %v1058, 96
    %v1061 = vpop.permute.xlu0 %1060
    %1063 = vst.msk [vmem:[#allocation3 + $0x6] sm:$0x1] %vm425, %v1061
    %1064 = vst.msk [vmem:[#allocation3 + $0xd] sm:$0x2] %vm427, %v1061
    %s1065 = scalar_lea.vmem [#allocation2], 7
    %v1066 = vld [vmem:[%s1065] ss:$8 sm:$0x3]
    %v1067 = vsel %vm321, %v1061, 0
    %1069 = vmatprep.subr.mxu0 0.0
    %1070 = vmatpush1.msra.mxu0 0.0
    %1071 = vmatprep.subr.mxu0 0.0
    %1072 = vmatpush1.msra.mxu0 0.0
    %1073 = vmatprep.subr.mxu0 0.0
    %1074 = vmatpush1.msra.mxu0 0.0
    %1075 = vmatprep.subr.mxu0 0.0
    %1076 = vmatpush1.msra.mxu0 0.0
    %1077 = vmatprep.subr.mxu0 0.0
    %1078 = vmatpush1.msra.mxu0 0.0
    %1079 = vmatprep.subr.mxu0 0.0
    %1080 = vmatpush1.msra.mxu0 0.0
    %1081 = vmatprep.subr.mxu0 0.0
    %1082 = vmatpush1.msra.mxu0 0.0
    %1083 = vmatprep.subr.mxu0 0.0
    %1084 = vmatpush1.msra.mxu0 0.0
    %1085 = vmatprep.subr.mxu0 0.0
    %1086 = vmatpush1.msra.mxu0 0.0
    %1087 = vmatprep.subr.mxu0 0.0
    %1088 = vmatpush1.msra.mxu0 0.0
    %1089 = vmatprep.subr.mxu0 0.0
    %1090 = vmatpush1.msra.mxu0 0.0
    %1091 = vmatprep.subr.mxu0 0.0
    %1092 = vmatpush1.msra.mxu0 0.0
    %1093 = vmatprep.subr.mxu0 0.0
    %1094 = vmatpush1.msra.mxu0 %v312
    %1095 = vmatprep.subr.mxu0 0.0
    %1096 = vmatpush1.msra.mxu0 %v311
    %1097 = vmatprep.subr.mxu0 0.0
    %1098 = vmatpush1.msra.mxu0 %v310
    %1099 = vmatprep.subr.mxu0 0.0
    %1100 = vmatpush1.msra.mxu0 %v309
    %1101 = vmatprep.subr.mxu0 0.0
    %1102 = vmatpush2.msra.mxu0 0.0
    %1103 = vmatprep.subr.mxu0 0.0
    %1104 = vmatpush2.msra.mxu0 0.0
    %1105 = vmatprep.subr.mxu0 0.0
    %1106 = vmatpush2.msra.mxu0 0.0
    %1107 = vmatprep.subr.mxu0 0.0
    %1108 = vmatpush2.msra.mxu0 0.0
    %1109 = vmatprep.subr.mxu0 0.0
    %1110 = vmatpush2.msra.mxu0 0.0
    %1111 = vmatprep.subr.mxu0 0.0
    %1112 = vmatpush2.msra.mxu0 0.0
    %1113 = vmatprep.subr.mxu0 0.0
    %1114 = vmatpush2.msra.mxu0 0.0
    %1115 = vmatprep.subr.mxu0 0.0
    %1116 = vmatpush2.msra.mxu0 0.0
    %1117 = vmatprep.subr.mxu0 0.0
    %1118 = vmatpush2.msra.mxu0 0.0
    %1119 = vmatprep.subr.mxu0 0.0
    %1120 = vmatpush2.msra.mxu0 0.0
    %1121 = vmatprep.subr.mxu0 0.0
    %1122 = vmatpush2.msra.mxu0 0.0
    %1123 = vmatprep.subr.mxu0 0.0
    %1124 = vmatpush2.msra.mxu0 0.0
    %1125 = vmatprep.subr.mxu0 0.0
    %1126 = vmatpush2.msra.mxu0 0.0
    %1127 = vmatprep.subr.mxu0 0.0
    %1128 = vmatpush2.msra.mxu0 0.0
    %1129 = vmatprep.subr.mxu0 0.0
    %1130 = vmatpush2.msra.mxu0 0.0
    %1131 = vmatprep.subr.mxu0 0.0
    %1132 = vmatpush2.msra.mxu0 0.0
    %1133 = vmatprep.mubr.f32.mxu0 0.0
    %1134 = vmatmul.mubr.f32.gmra.mxu0 %v1067
    %v1135 = vpop.f32.mrf.mxu0
    %v1136 = vadd.f32 %v319, %v1135
    %v1137 = vpop.f32.mrf.mxu0
    %1138 = vdwg.mxu0
    %v1139 = vadd.f32 %v1066, %v1136
    %v1140 = vxor.u32 %v1139, 2147483648
    %v1141 = vmul.f32 %v1140, 1.442695
    %v1142 = vpow.pop %v1141
    %v1143 = vadd.f32 %v1142, 1.0
    %v1144 = vrcp.pop %v1143
    %v1145 = vmul.f32 1.0, %v1144
    %1147 = vrot.lane.b32.xlu0 %v1136, 64
    %v1148 = vpop.permute.xlu0 %1147
    %v1150 = vmul.f32 %v1145, %v1148
    %1152 = vrot.lane.b32.xlu0 %v1150, 64
    %v1153 = vpop.permute.xlu0 %1152
    %v1155 = vadd.f32 %v1066, %v1153
    %v1156 = vtanh.pop %v1155
    %v1157 = vsub.f32 1.0, %v1145
    %1159 = vrot.lane.b32.xlu0 %v1156, 96
    %v1160 = vpop.permute.xlu0 %1159
    %v1162 = vmul.f32 %v1157, %v1160
    %v1163 = vmul.f32 %v1145, %v1058
    %v1164 = vadd.f32 %v1162, %v1163
    %1166 = vrot.lane.b32.xlu0 %v1164, 96
    %v1167 = vpop.permute.xlu0 %1166
    %1169 = vst.msk [vmem:[#allocation3 + $0x7] sm:$0x1] %vm425, %v1167
    %1170 = vst.msk [vmem:[#allocation3 + $0xe] sm:$0x2] %vm427, %v1167
    %v1171 = vld [vmem:[#allocation3] sm:$0xff]
    %v1172 = vld [vmem:[#allocation3 + $0x8] sm:$0xff]
    %v1173 = vld [vmem:[%s14] sm:$0xff]
    %v1174 = vld [vmem:[%s14 + $0x8] sm:$0xff]
    %v1175 = vld [vmem:[%s14 + $0x10] sm:$0xff]
    %v1176 = vld [vmem:[%s14 + $0x18] sm:$0xff]
    %v1177 = vld [vmem:[%s15] sm:$0x1]
    %v1179 = vlaneseq
    %v1180 = vshrl.u32 %v1179, 7
    %v1181 = vsub.s32 0, %v1180
    %v1182 = vrot.slane %v1177, %v1181
    %v1185 = vsel %vm321, %v1171, 0
    %v1188 = vsel %vm321, %v1172, 0
    %1190 = vmatprep.subr.mxu0 0.0
    %1191 = vmatpush1.msra.mxu0 0.0
    %1192 = vmatprep.subr.mxu0 0.0
    %1193 = vmatpush1.msra.mxu0 0.0
    %1194 = vmatprep.subr.mxu0 0.0
    %1195 = vmatpush1.msra.mxu0 0.0
    %1196 = vmatprep.subr.mxu0 0.0
    %1197 = vmatpush1.msra.mxu0 0.0
    %1198 = vmatprep.subr.mxu0 0.0
    %1199 = vmatpush1.msra.mxu0 0.0
    %1200 = vmatprep.subr.mxu0 0.0
    %1201 = vmatpush1.msra.mxu0 0.0
    %1202 = vmatprep.subr.mxu0 0.0
    %1203 = vmatpush1.msra.mxu0 0.0
    %1204 = vmatprep.subr.mxu0 0.0
    %1205 = vmatpush1.msra.mxu0 0.0
    %1206 = vmatprep.subr.mxu0 0.0
    %1207 = vmatpush1.msra.mxu0 0.0
    %1208 = vmatprep.subr.mxu0 0.0
    %1209 = vmatpush1.msra.mxu0 0.0
    %1210 = vmatprep.subr.mxu0 0.0
    %1211 = vmatpush1.msra.mxu0 0.0
    %1212 = vmatprep.subr.mxu0 0.0
    %1213 = vmatpush1.msra.mxu0 0.0
    %1214 = vmatprep.subr.mxu0 0.0
    %1215 = vmatpush1.msra.mxu0 %v1176
    %1216 = vmatprep.subr.mxu0 0.0
    %1217 = vmatpush1.msra.mxu0 %v1175
    %1218 = vmatprep.subr.mxu0 0.0
    %1219 = vmatpush1.msra.mxu0 %v1174
    %1220 = vmatprep.subr.mxu0 0.0
    %1221 = vmatpush1.msra.mxu0 %v1173
    %1222 = vmatprep.subr.mxu0 0.0
    %1223 = vmatpush2.msra.mxu0 0.0
    %1224 = vmatprep.subr.mxu0 0.0
    %1225 = vmatpush2.msra.mxu0 0.0
    %1226 = vmatprep.subr.mxu0 0.0
    %1227 = vmatpush2.msra.mxu0 0.0
    %1228 = vmatprep.subr.mxu0 0.0
    %1229 = vmatpush2.msra.mxu0 0.0
    %1230 = vmatprep.subr.mxu0 0.0
    %1231 = vmatpush2.msra.mxu0 0.0
    %1232 = vmatprep.subr.mxu0 0.0
    %1233 = vmatpush2.msra.mxu0 0.0
    %1234 = vmatprep.subr.mxu0 0.0
    %1235 = vmatpush2.msra.mxu0 0.0
    %1236 = vmatprep.subr.mxu0 0.0
    %1237 = vmatpush2.msra.mxu0 0.0
    %1238 = vmatprep.subr.mxu0 0.0
    %1239 = vmatpush2.msra.mxu0 0.0
    %1240 = vmatprep.subr.mxu0 0.0
    %1241 = vmatpush2.msra.mxu0 0.0
    %1242 = vmatprep.subr.mxu0 0.0
    %1243 = vmatpush2.msra.mxu0 0.0
    %1244 = vmatprep.subr.mxu0 0.0
    %1245 = vmatpush2.msra.mxu0 0.0
    %1246 = vmatprep.subr.mxu0 0.0
    %1247 = vmatpush2.msra.mxu0 0.0
    %1248 = vmatprep.subr.mxu0 0.0
    %1249 = vmatpush2.msra.mxu0 0.0
    %1250 = vmatprep.subr.mxu0 0.0
    %1251 = vmatpush2.msra.mxu0 0.0
    %1252 = vmatprep.subr.mxu0 0.0
    %1253 = vmatpush2.msra.mxu0 0.0
    %1254 = vmatprep.mubr.f32.mxu0 0.0
    %1255 = vmatmul.mubr.f32.gmra.mxu0 %v1185
    %v1256 = vpop.f32.mrf.mxu0
    %v1257 = vadd.f32 %v1182, %v1256
    %v1258 = vpop.f32.mrf.mxu0
    %1259 = vmatprep.mubr.f32.mxu0 0.0
    %1260 = vmatmul.mubr.f32.gmra.mxu0 %v1188
    %v1261 = vpop.f32.mrf.mxu0
    %v1262 = vadd.f32 %v1182, %v1261
    %v1263 = vpop.f32.mrf.mxu0
    %1264 = vdwg.mxu0
    %1266 = vrot.lane.b32.xlu0 %v1257, 96
    %v1267 = vpop.permute.xlu0 %1266
    %vm1268 = vcmask 64512
    %v1269 = vsel %vm1268, %v1257, 0
    %v1271 = vsel %vm1268, %v1267, 0
    %1273 = vmatprep.subr.mxu0 0.0
    %1274 = vmatpush1.xpose.msra.mxu0 0.0
    %1275 = vmatprep.subr.mxu0 0.0
    %1276 = vmatpush1.xpose.msra.mxu0 0.0
    %1277 = vmatprep.subr.mxu0 0.0
    %1278 = vmatpush1.xpose.msra.mxu0 0.0
    %1279 = vmatprep.subr.mxu0 0.0
    %1280 = vmatpush1.xpose.msra.mxu0 0.0
    %1281 = vmatprep.subr.mxu0 0.0
    %1282 = vmatpush1.xpose.msra.mxu0 0.0
    %1283 = vmatprep.subr.mxu0 0.0
    %1284 = vmatpush1.xpose.msra.mxu0 0.0
    %1285 = vmatprep.subr.mxu0 0.0
    %1286 = vmatpush1.xpose.msra.mxu0 0.0
    %1287 = vmatprep.subr.mxu0 0.0
    %1288 = vmatpush1.xpose.msra.mxu0 0.0
    %1289 = vmatprep.subr.mxu0 0.0
    %1290 = vmatpush1.xpose.msra.mxu0 0.0
    %1291 = vmatprep.subr.mxu0 0.0
    %1292 = vmatpush1.xpose.msra.mxu0 0.0
    %1293 = vmatprep.subr.mxu0 0.0
    %1294 = vmatpush1.xpose.msra.mxu0 0.0
    %1295 = vmatprep.subr.mxu0 0.0
    %1296 = vmatpush1.xpose.msra.mxu0 0.0
    %1297 = vmatprep.subr.mxu0 0.0
    %1298 = vmatpush1.xpose.msra.mxu0 0.0
    %1299 = vmatprep.subr.mxu0 0.0
    %1300 = vmatpush1.xpose.msra.mxu0 0.0
    %1301 = vmatprep.subr.mxu0 0.0
    %1302 = vmatpush1.xpose.msra.mxu0 0.0
    %1303 = vmatprep.subr.mxu0 0.0
    %1304 = vmatpush1.xpose.msra.mxu0 %v1271
    %1305 = vmatprep.subr.mxu0 0.0
    %1306 = vmatpush2.xpose.msra.mxu0 0.0
    %1307 = vmatprep.subr.mxu0 0.0
    %1308 = vmatpush2.xpose.msra.mxu0 0.0
    %1309 = vmatprep.subr.mxu0 0.0
    %1310 = vmatpush2.xpose.msra.mxu0 0.0
    %1311 = vmatprep.subr.mxu0 0.0
    %1312 = vmatpush2.xpose.msra.mxu0 0.0
    %1313 = vmatprep.subr.mxu0 0.0
    %1314 = vmatpush2.xpose.msra.mxu0 0.0
    %1315 = vmatprep.subr.mxu0 0.0
    %1316 = vmatpush2.xpose.msra.mxu0 0.0
    %1317 = vmatprep.subr.mxu0 0.0
    %1318 = vmatpush2.xpose.msra.mxu0 0.0
    %1319 = vmatprep.subr.mxu0 0.0
    %1320 = vmatpush2.xpose.msra.mxu0 0.0
    %1321 = vmatprep.subr.mxu0 0.0
    %1322 = vmatpush2.xpose.msra.mxu0 0.0
    %1323 = vmatprep.subr.mxu0 0.0
    %1324 = vmatpush2.xpose.msra.mxu0 0.0
    %1325 = vmatprep.subr.mxu0 0.0
    %1326 = vmatpush2.xpose.msra.mxu0 0.0
    %1327 = vmatprep.subr.mxu0 0.0
    %1328 = vmatpush2.xpose.msra.mxu0 0.0
    %1329 = vmatprep.subr.mxu0 0.0
    %1330 = vmatpush2.xpose.msra.mxu0 0.0
    %1331 = vmatprep.subr.mxu0 0.0
    %1332 = vmatpush2.xpose.msra.mxu0 0.0
    %1333 = vmatprep.subr.mxu0 0.0
    %1334 = vmatpush2.xpose.msra.mxu0 0.0
    %1335 = vmatprep.subr.mxu0 0.0
    %1336 = vmatpush2.xpose.msra.mxu0 0.0
    %1337 = vmatprep.mubr.f32.mxu0 0.0
    %1338 = vmatmul.mubr.f32.gmra.mxu0 %v1269
    %v1339 = vpop.f32.mrf.mxu0
    %v1340 = vadd.f32 0.0, %v1339
    %v1341 = vpop.f32.mrf.mxu0
    %1342 = vdwg.mxu0
    %1344 = vrot.lane.b32.xlu0 %v1262, 96
    %v1345 = vpop.permute.xlu0 %1344
    %v1346 = vsel %vm1268, %v1262, 0
    %v1348 = vsel %vm1268, %v1345, 0
    %1350 = vmatprep.subr.mxu0 0.0
    %1351 = vmatpush1.xpose.msra.mxu0 0.0
    %1352 = vmatprep.subr.mxu0 0.0
    %1353 = vmatpush1.xpose.msra.mxu0 0.0
    %1354 = vmatprep.subr.mxu0 0.0
    %1355 = vmatpush1.xpose.msra.mxu0 0.0
    %1356 = vmatprep.subr.mxu0 0.0
    %1357 = vmatpush1.xpose.msra.mxu0 0.0
    %1358 = vmatprep.subr.mxu0 0.0
    %1359 = vmatpush1.xpose.msra.mxu0 0.0
    %1360 = vmatprep.subr.mxu0 0.0
    %1361 = vmatpush1.xpose.msra.mxu0 0.0
    %1362 = vmatprep.subr.mxu0 0.0
    %1363 = vmatpush1.xpose.msra.mxu0 0.0
    %1364 = vmatprep.subr.mxu0 0.0
    %1365 = vmatpush1.xpose.msra.mxu0 0.0
    %1366 = vmatprep.subr.mxu0 0.0
    %1367 = vmatpush1.xpose.msra.mxu0 0.0
    %1368 = vmatprep.subr.mxu0 0.0
    %1369 = vmatpush1.xpose.msra.mxu0 0.0
    %1370 = vmatprep.subr.mxu0 0.0
    %1371 = vmatpush1.xpose.msra.mxu0 0.0
    %1372 = vmatprep.subr.mxu0 0.0
    %1373 = vmatpush1.xpose.msra.mxu0 0.0
    %1374 = vmatprep.subr.mxu0 0.0
    %1375 = vmatpush1.xpose.msra.mxu0 0.0
    %1376 = vmatprep.subr.mxu0 0.0
    %1377 = vmatpush1.xpose.msra.mxu0 0.0
    %1378 = vmatprep.subr.mxu0 0.0
    %1379 = vmatpush1.xpose.msra.mxu0 0.0
    %1380 = vmatprep.subr.mxu0 0.0
    %1381 = vmatpush1.xpose.msra.mxu0 %v1348
    %1382 = vmatprep.subr.mxu0 0.0
    %1383 = vmatpush2.xpose.msra.mxu0 0.0
    %1384 = vmatprep.subr.mxu0 0.0
    %1385 = vmatpush2.xpose.msra.mxu0 0.0
    %1386 = vmatprep.subr.mxu0 0.0
    %1387 = vmatpush2.xpose.msra.mxu0 0.0
    %1388 = vmatprep.subr.mxu0 0.0
    %1389 = vmatpush2.xpose.msra.mxu0 0.0
    %1390 = vmatprep.subr.mxu0 0.0
    %1391 = vmatpush2.xpose.msra.mxu0 0.0
    %1392 = vmatprep.subr.mxu0 0.0
    %1393 = vmatpush2.xpose.msra.mxu0 0.0
    %1394 = vmatprep.subr.mxu0 0.0
    %1395 = vmatpush2.xpose.msra.mxu0 0.0
    %1396 = vmatprep.subr.mxu0 0.0
    %1397 = vmatpush2.xpose.msra.mxu0 0.0
    %1398 = vmatprep.subr.mxu0 0.0
    %1399 = vmatpush2.xpose.msra.mxu0 0.0
    %1400 = vmatprep.subr.mxu0 0.0
    %1401 = vmatpush2.xpose.msra.mxu0 0.0
    %1402 = vmatprep.subr.mxu0 0.0
    %1403 = vmatpush2.xpose.msra.mxu0 0.0
    %1404 = vmatprep.subr.mxu0 0.0
    %1405 = vmatpush2.xpose.msra.mxu0 0.0
    %1406 = vmatprep.subr.mxu0 0.0
    %1407 = vmatpush2.xpose.msra.mxu0 0.0
    %1408 = vmatprep.subr.mxu0 0.0
    %1409 = vmatpush2.xpose.msra.mxu0 0.0
    %1410 = vmatprep.subr.mxu0 0.0
    %1411 = vmatpush2.xpose.msra.mxu0 0.0
    %1412 = vmatprep.subr.mxu0 0.0
    %1413 = vmatpush2.xpose.msra.mxu0 0.0
    %1414 = vmatprep.mubr.f32.mxu0 0.0
    %1415 = vmatmul.mubr.f32.gmra.mxu0 %v1346
    %v1416 = vpop.f32.mrf.mxu0
    %v1417 = vadd.f32 0.0, %v1416
    %v1418 = vpop.f32.mrf.mxu0
    %1419 = vdwg.mxu0
    %v1420 = vsel %vm1268, %v1340, -inf
    %1421 = vmax.xlane.f32.xlu0 %v1420
    %v1422 = vpop.xlane.xlu0 %1421
    %v1423 = vsel %vm1268, %v1417, -inf
    %1424 = vmax.xlane.f32.xlu0 %v1423
    %v1425 = vpop.xlane.xlu0 %1424
    %v1426 = vsub.f32 %v1340, %v1422
    %v1427 = vsub.f32 %v1417, %v1425
    %v1428 = vmul.f32 %v1426, 1.442695
    %v1429 = vpow.pop %v1428
    %v1430 = vmul.f32 %v1427, 1.442695
    %v1431 = vpow.pop %v1430
    %v1432 = vsel %vm1268, %v1429, 0.0
    %1433 = vadd.xlane.f32.xlu0 %v1432
    %v1434 = vpop.xlane.xlu0 %1433
    %v1435 = vsel %vm1268, %v1431, 0.0
    %1436 = vadd.xlane.f32.xlu0 %v1435
    %v1437 = vpop.xlane.xlu0 %1436
    %v1438 = vrcp.pop %v1434
    %v1439 = vrcp.pop %v1437
    %v1440 = vmul.f32 %v1429, %v1438
    %v1441 = vmul.f32 %v1431, %v1439
    %1442 = vrot.lane.b32.xlu0 %v1257, 64
    %v1443 = vpop.permute.xlu0 %1442
    %v1446 = vsel %vm1268, %v1440, 0
    %1448 = vmatprep.subr.mxu0 0.0
    %1449 = vmatpush1.msra.mxu0 0.0
    %1450 = vmatprep.subr.mxu0 0.0
    %1451 = vmatpush1.msra.mxu0 0.0
    %1452 = vmatprep.subr.mxu0 0.0
    %1453 = vmatpush1.msra.mxu0 0.0
    %1454 = vmatprep.subr.mxu0 0.0
    %1455 = vmatpush1.msra.mxu0 0.0
    %1456 = vmatprep.subr.mxu0 0.0
    %1457 = vmatpush1.msra.mxu0 0.0
    %1458 = vmatprep.subr.mxu0 0.0
    %1459 = vmatpush1.msra.mxu0 0.0
    %1460 = vmatprep.subr.mxu0 0.0
    %1461 = vmatpush1.msra.mxu0 0.0
    %1462 = vmatprep.subr.mxu0 0.0
    %1463 = vmatpush1.msra.mxu0 0.0
    %1464 = vmatprep.subr.mxu0 0.0
    %1465 = vmatpush1.msra.mxu0 0.0
    %1466 = vmatprep.subr.mxu0 0.0
    %1467 = vmatpush1.msra.mxu0 0.0
    %1468 = vmatprep.subr.mxu0 0.0
    %1469 = vmatpush1.msra.mxu0 0.0
    %1470 = vmatprep.subr.mxu0 0.0
    %1471 = vmatpush1.msra.mxu0 0.0
    %1472 = vmatprep.subr.mxu0 0.0
    %1473 = vmatpush1.msra.mxu0 0.0
    %1474 = vmatprep.subr.mxu0 0.0
    %1475 = vmatpush1.msra.mxu0 0.0
    %1476 = vmatprep.subr.mxu0 0.0
    %1477 = vmatpush1.msra.mxu0 0.0
    %1478 = vmatprep.subr.mxu0 0.0
    %1479 = vmatpush1.msra.mxu0 %v1443
    %1480 = vmatprep.subr.mxu0 0.0
    %1481 = vmatpush2.msra.mxu0 0.0
    %1482 = vmatprep.subr.mxu0 0.0
    %1483 = vmatpush2.msra.mxu0 0.0
    %1484 = vmatprep.subr.mxu0 0.0
    %1485 = vmatpush2.msra.mxu0 0.0
    %1486 = vmatprep.subr.mxu0 0.0
    %1487 = vmatpush2.msra.mxu0 0.0
    %1488 = vmatprep.subr.mxu0 0.0
    %1489 = vmatpush2.msra.mxu0 0.0
    %1490 = vmatprep.subr.mxu0 0.0
    %1491 = vmatpush2.msra.mxu0 0.0
    %1492 = vmatprep.subr.mxu0 0.0
    %1493 = vmatpush2.msra.mxu0 0.0
    %1494 = vmatprep.subr.mxu0 0.0
    %1495 = vmatpush2.msra.mxu0 0.0
    %1496 = vmatprep.subr.mxu0 0.0
    %1497 = vmatpush2.msra.mxu0 0.0
    %1498 = vmatprep.subr.mxu0 0.0
    %1499 = vmatpush2.msra.mxu0 0.0
    %1500 = vmatprep.subr.mxu0 0.0
    %1501 = vmatpush2.msra.mxu0 0.0
    %1502 = vmatprep.subr.mxu0 0.0
    %1503 = vmatpush2.msra.mxu0 0.0
    %1504 = vmatprep.subr.mxu0 0.0
    %1505 = vmatpush2.msra.mxu0 0.0
    %1506 = vmatprep.subr.mxu0 0.0
    %1507 = vmatpush2.msra.mxu0 0.0
    %1508 = vmatprep.subr.mxu0 0.0
    %1509 = vmatpush2.msra.mxu0 0.0
    %1510 = vmatprep.subr.mxu0 0.0
    %1511 = vmatpush2.msra.mxu0 0.0
    %1512 = vmatprep.mubr.f32.mxu0 0.0
    %1513 = vmatmul.mubr.f32.gmra.mxu0 %v1446
    %v1514 = vpop.f32.mrf.mxu0
    %v1515 = vadd.f32 0.0, %v1514
    %v1516 = vpop.f32.mrf.mxu0
    %1517 = vdwg.mxu0
    %1518 = vrot.lane.b32.xlu0 %v1262, 64
    %v1519 = vpop.permute.xlu0 %1518
    %v1522 = vsel %vm1268, %v1441, 0
    %1524 = vmatprep.subr.mxu0 0.0
    %1525 = vmatpush1.msra.mxu0 0.0
    %1526 = vmatprep.subr.mxu0 0.0
    %1527 = vmatpush1.msra.mxu0 0.0
    %1528 = vmatprep.subr.mxu0 0.0
    %1529 = vmatpush1.msra.mxu0 0.0
    %1530 = vmatprep.subr.mxu0 0.0
    %1531 = vmatpush1.msra.mxu0 0.0
    %1532 = vmatprep.subr.mxu0 0.0
    %1533 = vmatpush1.msra.mxu0 0.0
    %1534 = vmatprep.subr.mxu0 0.0
    %1535 = vmatpush1.msra.mxu0 0.0
    %1536 = vmatprep.subr.mxu0 0.0
    %1537 = vmatpush1.msra.mxu0 0.0
    %1538 = vmatprep.subr.mxu0 0.0
    %1539 = vmatpush1.msra.mxu0 0.0
    %1540 = vmatprep.subr.mxu0 0.0
    %1541 = vmatpush1.msra.mxu0 0.0
    %1542 = vmatprep.subr.mxu0 0.0
    %1543 = vmatpush1.msra.mxu0 0.0
    %1544 = vmatprep.subr.mxu0 0.0
    %1545 = vmatpush1.msra.mxu0 0.0
    %1546 = vmatprep.subr.mxu0 0.0
    %1547 = vmatpush1.msra.mxu0 0.0
    %1548 = vmatprep.subr.mxu0 0.0
    %1549 = vmatpush1.msra.mxu0 0.0
    %1550 = vmatprep.subr.mxu0 0.0
    %1551 = vmatpush1.msra.mxu0 0.0
    %1552 = vmatprep.subr.mxu0 0.0
    %1553 = vmatpush1.msra.mxu0 0.0
    %1554 = vmatprep.subr.mxu0 0.0
    %1555 = vmatpush1.msra.mxu0 %v1519
    %1556 = vmatprep.subr.mxu0 0.0
    %1557 = vmatpush2.msra.mxu0 0.0
    %1558 = vmatprep.subr.mxu0 0.0
    %1559 = vmatpush2.msra.mxu0 0.0
    %1560 = vmatprep.subr.mxu0 0.0
    %1561 = vmatpush2.msra.mxu0 0.0
    %1562 = vmatprep.subr.mxu0 0.0
    %1563 = vmatpush2.msra.mxu0 0.0
    %1564 = vmatprep.subr.mxu0 0.0
    %1565 = vmatpush2.msra.mxu0 0.0
    %1566 = vmatprep.subr.mxu0 0.0
    %1567 = vmatpush2.msra.mxu0 0.0
    %1568 = vmatprep.subr.mxu0 0.0
    %1569 = vmatpush2.msra.mxu0 0.0
    %1570 = vmatprep.subr.mxu0 0.0
    %1571 = vmatpush2.msra.mxu0 0.0
    %1572 = vmatprep.subr.mxu0 0.0
    %1573 = vmatpush2.msra.mxu0 0.0
    %1574 = vmatprep.subr.mxu0 0.0
    %1575 = vmatpush2.msra.mxu0 0.0
    %1576 = vmatprep.subr.mxu0 0.0
    %1577 = vmatpush2.msra.mxu0 0.0
    %1578 = vmatprep.subr.mxu0 0.0
    %1579 = vmatpush2.msra.mxu0 0.0
    %1580 = vmatprep.subr.mxu0 0.0
    %1581 = vmatpush2.msra.mxu0 0.0
    %1582 = vmatprep.subr.mxu0 0.0
    %1583 = vmatpush2.msra.mxu0 0.0
    %1584 = vmatprep.subr.mxu0 0.0
    %1585 = vmatpush2.msra.mxu0 0.0
    %1586 = vmatprep.subr.mxu0 0.0
    %1587 = vmatpush2.msra.mxu0 0.0
    %1588 = vmatprep.mubr.f32.mxu0 0.0
    %1589 = vmatmul.mubr.f32.gmra.mxu0 %v1522
    %v1590 = vpop.f32.mrf.mxu0
    %v1591 = vadd.f32 0.0, %v1590
    %v1592 = vpop.f32.mrf.mxu0
    %1593 = vdwg.mxu0
    %1594 = vrot.lane.b32.xlu0 %v1257, 120
    %v1595 = vpop.permute.xlu0 %1594
    %1596 = vrot.lane.b32.xlu0 %v1257, 88
    %v1597 = vpop.permute.xlu0 %1596
    %v1598 = vsel %vm1268, %v1595, 0
    %v1600 = vsel %vm1268, %v1597, 0
    %1602 = vmatprep.subr.mxu0 0.0
    %1603 = vmatpush1.xpose.msra.mxu0 0.0
    %1604 = vmatprep.subr.mxu0 0.0
    %1605 = vmatpush1.xpose.msra.mxu0 0.0
    %1606 = vmatprep.subr.mxu0 0.0
    %1607 = vmatpush1.xpose.msra.mxu0 0.0
    %1608 = vmatprep.subr.mxu0 0.0
    %1609 = vmatpush1.xpose.msra.mxu0 0.0
    %1610 = vmatprep.subr.mxu0 0.0
    %1611 = vmatpush1.xpose.msra.mxu0 0.0
    %1612 = vmatprep.subr.mxu0 0.0
    %1613 = vmatpush1.xpose.msra.mxu0 0.0
    %1614 = vmatprep.subr.mxu0 0.0
    %1615 = vmatpush1.xpose.msra.mxu0 0.0
    %1616 = vmatprep.subr.mxu0 0.0
    %1617 = vmatpush1.xpose.msra.mxu0 0.0
    %1618 = vmatprep.subr.mxu0 0.0
    %1619 = vmatpush1.xpose.msra.mxu0 0.0
    %1620 = vmatprep.subr.mxu0 0.0
    %1621 = vmatpush1.xpose.msra.mxu0 0.0
    %1622 = vmatprep.subr.mxu0 0.0
    %1623 = vmatpush1.xpose.msra.mxu0 0.0
    %1624 = vmatprep.subr.mxu0 0.0
    %1625 = vmatpush1.xpose.msra.mxu0 0.0
    %1626 = vmatprep.subr.mxu0 0.0
    %1627 = vmatpush1.xpose.msra.mxu0 0.0
    %1628 = vmatprep.subr.mxu0 0.0
    %1629 = vmatpush1.xpose.msra.mxu0 0.0
    %1630 = vmatprep.subr.mxu0 0.0
    %1631 = vmatpush1.xpose.msra.mxu0 0.0
    %1632 = vmatprep.subr.mxu0 0.0
    %1633 = vmatpush1.xpose.msra.mxu0 %v1600
    %1634 = vmatprep.subr.mxu0 0.0
    %1635 = vmatpush2.xpose.msra.mxu0 0.0
    %1636 = vmatprep.subr.mxu0 0.0
    %1637 = vmatpush2.xpose.msra.mxu0 0.0
    %1638 = vmatprep.subr.mxu0 0.0
    %1639 = vmatpush2.xpose.msra.mxu0 0.0
    %1640 = vmatprep.subr.mxu0 0.0
    %1641 = vmatpush2.xpose.msra.mxu0 0.0
    %1642 = vmatprep.subr.mxu0 0.0
    %1643 = vmatpush2.xpose.msra.mxu0 0.0
    %1644 = vmatprep.subr.mxu0 0.0
    %1645 = vmatpush2.xpose.msra.mxu0 0.0
    %1646 = vmatprep.subr.mxu0 0.0
    %1647 = vmatpush2.xpose.msra.mxu0 0.0
    %1648 = vmatprep.subr.mxu0 0.0
    %1649 = vmatpush2.xpose.msra.mxu0 0.0
    %1650 = vmatprep.subr.mxu0 0.0
    %1651 = vmatpush2.xpose.msra.mxu0 0.0
    %1652 = vmatprep.subr.mxu0 0.0
    %1653 = vmatpush2.xpose.msra.mxu0 0.0
    %1654 = vmatprep.subr.mxu0 0.0
    %1655 = vmatpush2.xpose.msra.mxu0 0.0
    %1656 = vmatprep.subr.mxu0 0.0
    %1657 = vmatpush2.xpose.msra.mxu0 0.0
    %1658 = vmatprep.subr.mxu0 0.0
    %1659 = vmatpush2.xpose.msra.mxu0 0.0
    %1660 = vmatprep.subr.mxu0 0.0
    %1661 = vmatpush2.xpose.msra.mxu0 0.0
    %1662 = vmatprep.subr.mxu0 0.0
    %1663 = vmatpush2.xpose.msra.mxu0 0.0
    %1664 = vmatprep.subr.mxu0 0.0
    %1665 = vmatpush2.xpose.msra.mxu0 0.0
    %1666 = vmatprep.mubr.f32.mxu0 0.0
    %1667 = vmatmul.mubr.f32.gmra.mxu0 %v1598
    %v1668 = vpop.f32.mrf.mxu0
    %v1669 = vadd.f32 0.0, %v1668
    %v1670 = vpop.f32.mrf.mxu0
    %1671 = vdwg.mxu0
    %1672 = vrot.lane.b32.xlu0 %v1262, 120
    %v1673 = vpop.permute.xlu0 %1672
    %1674 = vrot.lane.b32.xlu0 %v1262, 88
    %v1675 = vpop.permute.xlu0 %1674
    %v1676 = vsel %vm1268, %v1673, 0
    %v1678 = vsel %vm1268, %v1675, 0
    %1680 = vmatprep.subr.mxu0 0.0
    %1681 = vmatpush1.xpose.msra.mxu0 0.0
    %1682 = vmatprep.subr.mxu0 0.0
    %1683 = vmatpush1.xpose.msra.mxu0 0.0
    %1684 = vmatprep.subr.mxu0 0.0
    %1685 = vmatpush1.xpose.msra.mxu0 0.0
    %1686 = vmatprep.subr.mxu0 0.0
    %1687 = vmatpush1.xpose.msra.mxu0 0.0
    %1688 = vmatprep.subr.mxu0 0.0
    %1689 = vmatpush1.xpose.msra.mxu0 0.0
    %1690 = vmatprep.subr.mxu0 0.0
    %1691 = vmatpush1.xpose.msra.mxu0 0.0
    %1692 = vmatprep.subr.mxu0 0.0
    %1693 = vmatpush1.xpose.msra.mxu0 0.0
    %1694 = vmatprep.subr.mxu0 0.0
    %1695 = vmatpush1.xpose.msra.mxu0 0.0
    %1696 = vmatprep.subr.mxu0 0.0
    %1697 = vmatpush1.xpose.msra.mxu0 0.0
    %1698 = vmatprep.subr.mxu0 0.0
    %1699 = vmatpush1.xpose.msra.mxu0 0.0
    %1700 = vmatprep.subr.mxu0 0.0
    %1701 = vmatpush1.xpose.msra.mxu0 0.0
    %1702 = vmatprep.subr.mxu0 0.0
    %1703 = vmatpush1.xpose.msra.mxu0 0.0
    %1704 = vmatprep.subr.mxu0 0.0
    %1705 = vmatpush1.xpose.msra.mxu0 0.0
    %1706 = vmatprep.subr.mxu0 0.0
    %1707 = vmatpush1.xpose.msra.mxu0 0.0
    %1708 = vmatprep.subr.mxu0 0.0
    %1709 = vmatpush1.xpose.msra.mxu0 0.0
    %1710 = vmatprep.subr.mxu0 0.0
    %1711 = vmatpush1.xpose.msra.mxu0 %v1678
    %1712 = vmatprep.subr.mxu0 0.0
    %1713 = vmatpush2.xpose.msra.mxu0 0.0
    %1714 = vmatprep.subr.mxu0 0.0
    %1715 = vmatpush2.xpose.msra.mxu0 0.0
    %1716 = vmatprep.subr.mxu0 0.0
    %1717 = vmatpush2.xpose.msra.mxu0 0.0
    %1718 = vmatprep.subr.mxu0 0.0
    %1719 = vmatpush2.xpose.msra.mxu0 0.0
    %1720 = vmatprep.subr.mxu0 0.0
    %1721 = vmatpush2.xpose.msra.mxu0 0.0
    %1722 = vmatprep.subr.mxu0 0.0
    %1723 = vmatpush2.xpose.msra.mxu0 0.0
    %1724 = vmatprep.subr.mxu0 0.0
    %1725 = vmatpush2.xpose.msra.mxu0 0.0
    %1726 = vmatprep.subr.mxu0 0.0
    %1727 = vmatpush2.xpose.msra.mxu0 0.0
    %1728 = vmatprep.subr.mxu0 0.0
    %1729 = vmatpush2.xpose.msra.mxu0 0.0
    %1730 = vmatprep.subr.mxu0 0.0
    %1731 = vmatpush2.xpose.msra.mxu0 0.0
    %1732 = vmatprep.subr.mxu0 0.0
    %1733 = vmatpush2.xpose.msra.mxu0 0.0
    %1734 = vmatprep.subr.mxu0 0.0
    %1735 = vmatpush2.xpose.msra.mxu0 0.0
    %1736 = vmatprep.subr.mxu0 0.0
    %1737 = vmatpush2.xpose.msra.mxu0 0.0
    %1738 = vmatprep.subr.mxu0 0.0
    %1739 = vmatpush2.xpose.msra.mxu0 0.0
    %1740 = vmatprep.subr.mxu0 0.0
    %1741 = vmatpush2.xpose.msra.mxu0 0.0
    %1742 = vmatprep.subr.mxu0 0.0
    %1743 = vmatpush2.xpose.msra.mxu0 0.0
    %1744 = vmatprep.mubr.f32.mxu0 0.0
    %1745 = vmatmul.mubr.f32.gmra.mxu0 %v1676
    %v1746 = vpop.f32.mrf.mxu0
    %v1747 = vadd.f32 0.0, %v1746
    %v1748 = vpop.f32.mrf.mxu0
    %1749 = vdwg.mxu0
    %v1750 = vsel %vm1268, %v1669, -inf
    %1751 = vmax.xlane.f32.xlu0 %v1750
    %v1752 = vpop.xlane.xlu0 %1751
    %v1753 = vsel %vm1268, %v1747, -inf
    %1754 = vmax.xlane.f32.xlu0 %v1753
    %v1755 = vpop.xlane.xlu0 %1754
    %v1756 = vsub.f32 %v1669, %v1752
    %v1757 = vsub.f32 %v1747, %v1755
    %v1758 = vmul.f32 %v1756, 1.442695
    %v1759 = vpow.pop %v1758
    %v1760 = vmul.f32 %v1757, 1.442695
    %v1761 = vpow.pop %v1760
    %v1762 = vsel %vm1268, %v1759, 0.0
    %1763 = vadd.xlane.f32.xlu0 %v1762
    %v1764 = vpop.xlane.xlu0 %1763
    %v1765 = vsel %vm1268, %v1761, 0.0
    %1766 = vadd.xlane.f32.xlu0 %v1765
    %v1767 = vpop.xlane.xlu0 %1766
    %v1768 = vrcp.pop %v1764
    %v1769 = vrcp.pop %v1767
    %v1770 = vmul.f32 %v1759, %v1768
    %v1771 = vmul.f32 %v1761, %v1769
    %1772 = vrot.lane.b32.xlu0 %v1257, 56
    %v1773 = vpop.permute.xlu0 %1772
    %v1776 = vsel %vm1268, %v1770, 0
    %1778 = vmatprep.subr.mxu0 0.0
    %1779 = vmatpush1.msra.mxu0 0.0
    %1780 = vmatprep.subr.mxu0 0.0
    %1781 = vmatpush1.msra.mxu0 0.0
    %1782 = vmatprep.subr.mxu0 0.0
    %1783 = vmatpush1.msra.mxu0 0.0
    %1784 = vmatprep.subr.mxu0 0.0
    %1785 = vmatpush1.msra.mxu0 0.0
    %1786 = vmatprep.subr.mxu0 0.0
    %1787 = vmatpush1.msra.mxu0 0.0
    %1788 = vmatprep.subr.mxu0 0.0
    %1789 = vmatpush1.msra.mxu0 0.0
    %1790 = vmatprep.subr.mxu0 0.0
    %1791 = vmatpush1.msra.mxu0 0.0
    %1792 = vmatprep.subr.mxu0 0.0
    %1793 = vmatpush1.msra.mxu0 0.0
    %1794 = vmatprep.subr.mxu0 0.0
    %1795 = vmatpush1.msra.mxu0 0.0
    %1796 = vmatprep.subr.mxu0 0.0
    %1797 = vmatpush1.msra.mxu0 0.0
    %1798 = vmatprep.subr.mxu0 0.0
    %1799 = vmatpush1.msra.mxu0 0.0
    %1800 = vmatprep.subr.mxu0 0.0
    %1801 = vmatpush1.msra.mxu0 0.0
    %1802 = vmatprep.subr.mxu0 0.0
    %1803 = vmatpush1.msra.mxu0 0.0
    %1804 = vmatprep.subr.mxu0 0.0
    %1805 = vmatpush1.msra.mxu0 0.0
    %1806 = vmatprep.subr.mxu0 0.0
    %1807 = vmatpush1.msra.mxu0 0.0
    %1808 = vmatprep.subr.mxu0 0.0
    %1809 = vmatpush1.msra.mxu0 %v1773
    %1810 = vmatprep.subr.mxu0 0.0
    %1811 = vmatpush2.msra.mxu0 0.0
    %1812 = vmatprep.subr.mxu0 0.0
    %1813 = vmatpush2.msra.mxu0 0.0
    %1814 = vmatprep.subr.mxu0 0.0
    %1815 = vmatpush2.msra.mxu0 0.0
    %1816 = vmatprep.subr.mxu0 0.0
    %1817 = vmatpush2.msra.mxu0 0.0
    %1818 = vmatprep.subr.mxu0 0.0
    %1819 = vmatpush2.msra.mxu0 0.0
    %1820 = vmatprep.subr.mxu0 0.0
    %1821 = vmatpush2.msra.mxu0 0.0
    %1822 = vmatprep.subr.mxu0 0.0
    %1823 = vmatpush2.msra.mxu0 0.0
    %1824 = vmatprep.subr.mxu0 0.0
    %1825 = vmatpush2.msra.mxu0 0.0
    %1826 = vmatprep.subr.mxu0 0.0
    %1827 = vmatpush2.msra.mxu0 0.0
    %1828 = vmatprep.subr.mxu0 0.0
    %1829 = vmatpush2.msra.mxu0 0.0
    %1830 = vmatprep.subr.mxu0 0.0
    %1831 = vmatpush2.msra.mxu0 0.0
    %1832 = vmatprep.subr.mxu0 0.0
    %1833 = vmatpush2.msra.mxu0 0.0
    %1834 = vmatprep.subr.mxu0 0.0
    %1835 = vmatpush2.msra.mxu0 0.0
    %1836 = vmatprep.subr.mxu0 0.0
    %1837 = vmatpush2.msra.mxu0 0.0
    %1838 = vmatprep.subr.mxu0 0.0
    %1839 = vmatpush2.msra.mxu0 0.0
    %1840 = vmatprep.subr.mxu0 0.0
    %1841 = vmatpush2.msra.mxu0 0.0
    %1842 = vmatprep.mubr.f32.mxu0 0.0
    %1843 = vmatmul.mubr.f32.gmra.mxu0 %v1776
    %v1844 = vpop.f32.mrf.mxu0
    %v1845 = vadd.f32 0.0, %v1844
    %v1846 = vpop.f32.mrf.mxu0
    %1847 = vdwg.mxu0
    %1848 = vrot.lane.b32.xlu0 %v1262, 56
    %v1849 = vpop.permute.xlu0 %1848
    %v1852 = vsel %vm1268, %v1771, 0
    %1854 = vmatprep.subr.mxu0 0.0
    %1855 = vmatpush1.msra.mxu0 0.0
    %1856 = vmatprep.subr.mxu0 0.0
    %1857 = vmatpush1.msra.mxu0 0.0
    %1858 = vmatprep.subr.mxu0 0.0
    %1859 = vmatpush1.msra.mxu0 0.0
    %1860 = vmatprep.subr.mxu0 0.0
    %1861 = vmatpush1.msra.mxu0 0.0
    %1862 = vmatprep.subr.mxu0 0.0
    %1863 = vmatpush1.msra.mxu0 0.0
    %1864 = vmatprep.subr.mxu0 0.0
    %1865 = vmatpush1.msra.mxu0 0.0
    %1866 = vmatprep.subr.mxu0 0.0
    %1867 = vmatpush1.msra.mxu0 0.0
    %1868 = vmatprep.subr.mxu0 0.0
    %1869 = vmatpush1.msra.mxu0 0.0
    %1870 = vmatprep.subr.mxu0 0.0
    %1871 = vmatpush1.msra.mxu0 0.0
    %1872 = vmatprep.subr.mxu0 0.0
    %1873 = vmatpush1.msra.mxu0 0.0
    %1874 = vmatprep.subr.mxu0 0.0
    %1875 = vmatpush1.msra.mxu0 0.0
    %1876 = vmatprep.subr.mxu0 0.0
    %1877 = vmatpush1.msra.mxu0 0.0
    %1878 = vmatprep.subr.mxu0 0.0
    %1879 = vmatpush1.msra.mxu0 0.0
    %1880 = vmatprep.subr.mxu0 0.0
    %1881 = vmatpush1.msra.mxu0 0.0
    %1882 = vmatprep.subr.mxu0 0.0
    %1883 = vmatpush1.msra.mxu0 0.0
    %1884 = vmatprep.subr.mxu0 0.0
    %1885 = vmatpush1.msra.mxu0 %v1849
    %1886 = vmatprep.subr.mxu0 0.0
    %1887 = vmatpush2.msra.mxu0 0.0
    %1888 = vmatprep.subr.mxu0 0.0
    %1889 = vmatpush2.msra.mxu0 0.0
    %1890 = vmatprep.subr.mxu0 0.0
    %1891 = vmatpush2.msra.mxu0 0.0
    %1892 = vmatprep.subr.mxu0 0.0
    %1893 = vmatpush2.msra.mxu0 0.0
    %1894 = vmatprep.subr.mxu0 0.0
    %1895 = vmatpush2.msra.mxu0 0.0
    %1896 = vmatprep.subr.mxu0 0.0
    %1897 = vmatpush2.msra.mxu0 0.0
    %1898 = vmatprep.subr.mxu0 0.0
    %1899 = vmatpush2.msra.mxu0 0.0
    %1900 = vmatprep.subr.mxu0 0.0
    %1901 = vmatpush2.msra.mxu0 0.0
    %1902 = vmatprep.subr.mxu0 0.0
    %1903 = vmatpush2.msra.mxu0 0.0
    %1904 = vmatprep.subr.mxu0 0.0
    %1905 = vmatpush2.msra.mxu0 0.0
    %1906 = vmatprep.subr.mxu0 0.0
    %1907 = vmatpush2.msra.mxu0 0.0
    %1908 = vmatprep.subr.mxu0 0.0
    %1909 = vmatpush2.msra.mxu0 0.0
    %1910 = vmatprep.subr.mxu0 0.0
    %1911 = vmatpush2.msra.mxu0 0.0
    %1912 = vmatprep.subr.mxu0 0.0
    %1913 = vmatpush2.msra.mxu0 0.0
    %1914 = vmatprep.subr.mxu0 0.0
    %1915 = vmatpush2.msra.mxu0 0.0
    %1916 = vmatprep.subr.mxu0 0.0
    %1917 = vmatpush2.msra.mxu0 0.0
    %1918 = vmatprep.mubr.f32.mxu0 0.0
    %1919 = vmatmul.mubr.f32.gmra.mxu0 %v1852
    %v1920 = vpop.f32.mrf.mxu0
    %v1921 = vadd.f32 0.0, %v1920
    %v1922 = vpop.f32.mrf.mxu0
    %1923 = vdwg.mxu0
    %1924 = vrot.lane.b32.xlu0 %v1257, 112
    %v1925 = vpop.permute.xlu0 %1924
    %1926 = vrot.lane.b32.xlu0 %v1257, 80
    %v1927 = vpop.permute.xlu0 %1926
    %v1928 = vsel %vm1268, %v1925, 0
    %v1930 = vsel %vm1268, %v1927, 0
    %1932 = vmatprep.subr.mxu0 0.0
    %1933 = vmatpush1.xpose.msra.mxu0 0.0
    %1934 = vmatprep.subr.mxu0 0.0
    %1935 = vmatpush1.xpose.msra.mxu0 0.0
    %1936 = vmatprep.subr.mxu0 0.0
    %1937 = vmatpush1.xpose.msra.mxu0 0.0
    %1938 = vmatprep.subr.mxu0 0.0
    %1939 = vmatpush1.xpose.msra.mxu0 0.0
    %1940 = vmatprep.subr.mxu0 0.0
    %1941 = vmatpush1.xpose.msra.mxu0 0.0
    %1942 = vmatprep.subr.mxu0 0.0
    %1943 = vmatpush1.xpose.msra.mxu0 0.0
    %1944 = vmatprep.subr.mxu0 0.0
    %1945 = vmatpush1.xpose.msra.mxu0 0.0
    %1946 = vmatprep.subr.mxu0 0.0
    %1947 = vmatpush1.xpose.msra.mxu0 0.0
    %1948 = vmatprep.subr.mxu0 0.0
    %1949 = vmatpush1.xpose.msra.mxu0 0.0
    %1950 = vmatprep.subr.mxu0 0.0
    %1951 = vmatpush1.xpose.msra.mxu0 0.0
    %1952 = vmatprep.subr.mxu0 0.0
    %1953 = vmatpush1.xpose.msra.mxu0 0.0
    %1954 = vmatprep.subr.mxu0 0.0
    %1955 = vmatpush1.xpose.msra.mxu0 0.0
    %1956 = vmatprep.subr.mxu0 0.0
    %1957 = vmatpush1.xpose.msra.mxu0 0.0
    %1958 = vmatprep.subr.mxu0 0.0
    %1959 = vmatpush1.xpose.msra.mxu0 0.0
    %1960 = vmatprep.subr.mxu0 0.0
    %1961 = vmatpush1.xpose.msra.mxu0 0.0
    %1962 = vmatprep.subr.mxu0 0.0
    %1963 = vmatpush1.xpose.msra.mxu0 %v1930
    %1964 = vmatprep.subr.mxu0 0.0
    %1965 = vmatpush2.xpose.msra.mxu0 0.0
    %1966 = vmatprep.subr.mxu0 0.0
    %1967 = vmatpush2.xpose.msra.mxu0 0.0
    %1968 = vmatprep.subr.mxu0 0.0
    %1969 = vmatpush2.xpose.msra.mxu0 0.0
    %1970 = vmatprep.subr.mxu0 0.0
    %1971 = vmatpush2.xpose.msra.mxu0 0.0
    %1972 = vmatprep.subr.mxu0 0.0
    %1973 = vmatpush2.xpose.msra.mxu0 0.0
    %1974 = vmatprep.subr.mxu0 0.0
    %1975 = vmatpush2.xpose.msra.mxu0 0.0
    %1976 = vmatprep.subr.mxu0 0.0
    %1977 = vmatpush2.xpose.msra.mxu0 0.0
    %1978 = vmatprep.subr.mxu0 0.0
    %1979 = vmatpush2.xpose.msra.mxu0 0.0
    %1980 = vmatprep.subr.mxu0 0.0
    %1981 = vmatpush2.xpose.msra.mxu0 0.0
    %1982 = vmatprep.subr.mxu0 0.0
    %1983 = vmatpush2.xpose.msra.mxu0 0.0
    %1984 = vmatprep.subr.mxu0 0.0
    %1985 = vmatpush2.xpose.msra.mxu0 0.0
    %1986 = vmatprep.subr.mxu0 0.0
    %1987 = vmatpush2.xpose.msra.mxu0 0.0
    %1988 = vmatprep.subr.mxu0 0.0
    %1989 = vmatpush2.xpose.msra.mxu0 0.0
    %1990 = vmatprep.subr.mxu0 0.0
    %1991 = vmatpush2.xpose.msra.mxu0 0.0
    %1992 = vmatprep.subr.mxu0 0.0
    %1993 = vmatpush2.xpose.msra.mxu0 0.0
    %1994 = vmatprep.subr.mxu0 0.0
    %1995 = vmatpush2.xpose.msra.mxu0 0.0
    %1996 = vmatprep.mubr.f32.mxu0 0.0
    %1997 = vmatmul.mubr.f32.gmra.mxu0 %v1928
    %v1998 = vpop.f32.mrf.mxu0
    %v1999 = vadd.f32 0.0, %v1998
    %v2000 = vpop.f32.mrf.mxu0
    %2001 = vdwg.mxu0
    %2002 = vrot.lane.b32.xlu0 %v1262, 112
    %v2003 = vpop.permute.xlu0 %2002
    %2004 = vrot.lane.b32.xlu0 %v1262, 80
    %v2005 = vpop.permute.xlu0 %2004
    %v2006 = vsel %vm1268, %v2003, 0
    %v2008 = vsel %vm1268, %v2005, 0
    %2010 = vmatprep.subr.mxu0 0.0
    %2011 = vmatpush1.xpose.msra.mxu0 0.0
    %2012 = vmatprep.subr.mxu0 0.0
    %2013 = vmatpush1.xpose.msra.mxu0 0.0
    %2014 = vmatprep.subr.mxu0 0.0
    %2015 = vmatpush1.xpose.msra.mxu0 0.0
    %2016 = vmatprep.subr.mxu0 0.0
    %2017 = vmatpush1.xpose.msra.mxu0 0.0
    %2018 = vmatprep.subr.mxu0 0.0
    %2019 = vmatpush1.xpose.msra.mxu0 0.0
    %2020 = vmatprep.subr.mxu0 0.0
    %2021 = vmatpush1.xpose.msra.mxu0 0.0
    %2022 = vmatprep.subr.mxu0 0.0
    %2023 = vmatpush1.xpose.msra.mxu0 0.0
    %2024 = vmatprep.subr.mxu0 0.0
    %2025 = vmatpush1.xpose.msra.mxu0 0.0
    %2026 = vmatprep.subr.mxu0 0.0
    %2027 = vmatpush1.xpose.msra.mxu0 0.0
    %2028 = vmatprep.subr.mxu0 0.0
    %2029 = vmatpush1.xpose.msra.mxu0 0.0
    %2030 = vmatprep.subr.mxu0 0.0
    %2031 = vmatpush1.xpose.msra.mxu0 0.0
    %2032 = vmatprep.subr.mxu0 0.0
    %2033 = vmatpush1.xpose.msra.mxu0 0.0
    %2034 = vmatprep.subr.mxu0 0.0
    %2035 = vmatpush1.xpose.msra.mxu0 0.0
    %2036 = vmatprep.subr.mxu0 0.0
    %2037 = vmatpush1.xpose.msra.mxu0 0.0
    %2038 = vmatprep.subr.mxu0 0.0
    %2039 = vmatpush1.xpose.msra.mxu0 0.0
    %2040 = vmatprep.subr.mxu0 0.0
    %2041 = vmatpush1.xpose.msra.mxu0 %v2008
    %2042 = vmatprep.subr.mxu0 0.0
    %2043 = vmatpush2.xpose.msra.mxu0 0.0
    %2044 = vmatprep.subr.mxu0 0.0
    %2045 = vmatpush2.xpose.msra.mxu0 0.0
    %2046 = vmatprep.subr.mxu0 0.0
    %2047 = vmatpush2.xpose.msra.mxu0 0.0
    %2048 = vmatprep.subr.mxu0 0.0
    %2049 = vmatpush2.xpose.msra.mxu0 0.0
    %2050 = vmatprep.subr.mxu0 0.0
    %2051 = vmatpush2.xpose.msra.mxu0 0.0
    %2052 = vmatprep.subr.mxu0 0.0
    %2053 = vmatpush2.xpose.msra.mxu0 0.0
    %2054 = vmatprep.subr.mxu0 0.0
    %2055 = vmatpush2.xpose.msra.mxu0 0.0
    %2056 = vmatprep.subr.mxu0 0.0
    %2057 = vmatpush2.xpose.msra.mxu0 0.0
    %2058 = vmatprep.subr.mxu0 0.0
    %2059 = vmatpush2.xpose.msra.mxu0 0.0
    %2060 = vmatprep.subr.mxu0 0.0
    %2061 = vmatpush2.xpose.msra.mxu0 0.0
    %2062 = vmatprep.subr.mxu0 0.0
    %2063 = vmatpush2.xpose.msra.mxu0 0.0
    %2064 = vmatprep.subr.mxu0 0.0
    %2065 = vmatpush2.xpose.msra.mxu0 0.0
    %2066 = vmatprep.subr.mxu0 0.0
    %2067 = vmatpush2.xpose.msra.mxu0 0.0
    %2068 = vmatprep.subr.mxu0 0.0
    %2069 = vmatpush2.xpose.msra.mxu0 0.0
    %2070 = vmatprep.subr.mxu0 0.0
    %2071 = vmatpush2.xpose.msra.mxu0 0.0
    %2072 = vmatprep.subr.mxu0 0.0
    %2073 = vmatpush2.xpose.msra.mxu0 0.0
    %2074 = vmatprep.mubr.f32.mxu0 0.0
    %2075 = vmatmul.mubr.f32.gmra.mxu0 %v2006
    %v2076 = vpop.f32.mrf.mxu0
    %v2077 = vadd.f32 0.0, %v2076
    %v2078 = vpop.f32.mrf.mxu0
    %2079 = vdwg.mxu0
    %v2080 = vsel %vm1268, %v1999, -inf
    %2081 = vmax.xlane.f32.xlu0 %v2080
    %v2082 = vpop.xlane.xlu0 %2081
    %v2083 = vsel %vm1268, %v2077, -inf
    %2084 = vmax.xlane.f32.xlu0 %v2083
    %v2085 = vpop.xlane.xlu0 %2084
    %v2086 = vsub.f32 %v1999, %v2082
    %v2087 = vsub.f32 %v2077, %v2085
    %v2088 = vmul.f32 %v2086, 1.442695
    %v2089 = vpow.pop %v2088
    %v2090 = vmul.f32 %v2087, 1.442695
    %v2091 = vpow.pop %v2090
    %v2092 = vsel %vm1268, %v2089, 0.0
    %2093 = vadd.xlane.f32.xlu0 %v2092
    %v2094 = vpop.xlane.xlu0 %2093
    %v2095 = vsel %vm1268, %v2091, 0.0
    %2096 = vadd.xlane.f32.xlu0 %v2095
    %v2097 = vpop.xlane.xlu0 %2096
    %v2098 = vrcp.pop %v2094
    %v2099 = vrcp.pop %v2097
    %v2100 = vmul.f32 %v2089, %v2098
    %v2101 = vmul.f32 %v2091, %v2099
    %2102 = vrot.lane.b32.xlu0 %v1257, 48
    %v2103 = vpop.permute.xlu0 %2102
    %v2106 = vsel %vm1268, %v2100, 0
    %2108 = vmatprep.subr.mxu0 0.0
    %2109 = vmatpush1.msra.mxu0 0.0
    %2110 = vmatprep.subr.mxu0 0.0
    %2111 = vmatpush1.msra.mxu0 0.0
    %2112 = vmatprep.subr.mxu0 0.0
    %2113 = vmatpush1.msra.mxu0 0.0
    %2114 = vmatprep.subr.mxu0 0.0
    %2115 = vmatpush1.msra.mxu0 0.0
    %2116 = vmatprep.subr.mxu0 0.0
    %2117 = vmatpush1.msra.mxu0 0.0
    %2118 = vmatprep.subr.mxu0 0.0
    %2119 = vmatpush1.msra.mxu0 0.0
    %2120 = vmatprep.subr.mxu0 0.0
    %2121 = vmatpush1.msra.mxu0 0.0
    %2122 = vmatprep.subr.mxu0 0.0
    %2123 = vmatpush1.msra.mxu0 0.0
    %2124 = vmatprep.subr.mxu0 0.0
    %2125 = vmatpush1.msra.mxu0 0.0
    %2126 = vmatprep.subr.mxu0 0.0
    %2127 = vmatpush1.msra.mxu0 0.0
    %2128 = vmatprep.subr.mxu0 0.0
    %2129 = vmatpush1.msra.mxu0 0.0
    %2130 = vmatprep.subr.mxu0 0.0
    %2131 = vmatpush1.msra.mxu0 0.0
    %2132 = vmatprep.subr.mxu0 0.0
    %2133 = vmatpush1.msra.mxu0 0.0
    %2134 = vmatprep.subr.mxu0 0.0
    %2135 = vmatpush1.msra.mxu0 0.0
    %2136 = vmatprep.subr.mxu0 0.0
    %2137 = vmatpush1.msra.mxu0 0.0
    %2138 = vmatprep.subr.mxu0 0.0
    %2139 = vmatpush1.msra.mxu0 %v2103
    %2140 = vmatprep.subr.mxu0 0.0
    %2141 = vmatpush2.msra.mxu0 0.0
    %2142 = vmatprep.subr.mxu0 0.0
    %2143 = vmatpush2.msra.mxu0 0.0
    %2144 = vmatprep.subr.mxu0 0.0
    %2145 = vmatpush2.msra.mxu0 0.0
    %2146 = vmatprep.subr.mxu0 0.0
    %2147 = vmatpush2.msra.mxu0 0.0
    %2148 = vmatprep.subr.mxu0 0.0
    %2149 = vmatpush2.msra.mxu0 0.0
    %2150 = vmatprep.subr.mxu0 0.0
    %2151 = vmatpush2.msra.mxu0 0.0
    %2152 = vmatprep.subr.mxu0 0.0
    %2153 = vmatpush2.msra.mxu0 0.0
    %2154 = vmatprep.subr.mxu0 0.0
    %2155 = vmatpush2.msra.mxu0 0.0
    %2156 = vmatprep.subr.mxu0 0.0
    %2157 = vmatpush2.msra.mxu0 0.0
    %2158 = vmatprep.subr.mxu0 0.0
    %2159 = vmatpush2.msra.mxu0 0.0
    %2160 = vmatprep.subr.mxu0 0.0
    %2161 = vmatpush2.msra.mxu0 0.0
    %2162 = vmatprep.subr.mxu0 0.0
    %2163 = vmatpush2.msra.mxu0 0.0
    %2164 = vmatprep.subr.mxu0 0.0
    %2165 = vmatpush2.msra.mxu0 0.0
    %2166 = vmatprep.subr.mxu0 0.0
    %2167 = vmatpush2.msra.mxu0 0.0
    %2168 = vmatprep.subr.mxu0 0.0
    %2169 = vmatpush2.msra.mxu0 0.0
    %2170 = vmatprep.subr.mxu0 0.0
    %2171 = vmatpush2.msra.mxu0 0.0
    %2172 = vmatprep.mubr.f32.mxu0 0.0
    %2173 = vmatmul.mubr.f32.gmra.mxu0 %v2106
    %v2174 = vpop.f32.mrf.mxu0
    %v2175 = vadd.f32 0.0, %v2174
    %v2176 = vpop.f32.mrf.mxu0
    %2177 = vdwg.mxu0
    %2178 = vrot.lane.b32.xlu0 %v1262, 48
    %v2179 = vpop.permute.xlu0 %2178
    %v2182 = vsel %vm1268, %v2101, 0
    %2184 = vmatprep.subr.mxu0 0.0
    %2185 = vmatpush1.msra.mxu0 0.0
    %2186 = vmatprep.subr.mxu0 0.0
    %2187 = vmatpush1.msra.mxu0 0.0
    %2188 = vmatprep.subr.mxu0 0.0
    %2189 = vmatpush1.msra.mxu0 0.0
    %2190 = vmatprep.subr.mxu0 0.0
    %2191 = vmatpush1.msra.mxu0 0.0
    %2192 = vmatprep.subr.mxu0 0.0
    %2193 = vmatpush1.msra.mxu0 0.0
    %2194 = vmatprep.subr.mxu0 0.0
    %2195 = vmatpush1.msra.mxu0 0.0
    %2196 = vmatprep.subr.mxu0 0.0
    %2197 = vmatpush1.msra.mxu0 0.0
    %2198 = vmatprep.subr.mxu0 0.0
    %2199 = vmatpush1.msra.mxu0 0.0
    %2200 = vmatprep.subr.mxu0 0.0
    %2201 = vmatpush1.msra.mxu0 0.0
    %2202 = vmatprep.subr.mxu0 0.0
    %2203 = vmatpush1.msra.mxu0 0.0
    %2204 = vmatprep.subr.mxu0 0.0
    %2205 = vmatpush1.msra.mxu0 0.0
    %2206 = vmatprep.subr.mxu0 0.0
    %2207 = vmatpush1.msra.mxu0 0.0
    %2208 = vmatprep.subr.mxu0 0.0
    %2209 = vmatpush1.msra.mxu0 0.0
    %2210 = vmatprep.subr.mxu0 0.0
    %2211 = vmatpush1.msra.mxu0 0.0
    %2212 = vmatprep.subr.mxu0 0.0
    %2213 = vmatpush1.msra.mxu0 0.0
    %2214 = vmatprep.subr.mxu0 0.0
    %2215 = vmatpush1.msra.mxu0 %v2179
    %2216 = vmatprep.subr.mxu0 0.0
    %2217 = vmatpush2.msra.mxu0 0.0
    %2218 = vmatprep.subr.mxu0 0.0
    %2219 = vmatpush2.msra.mxu0 0.0
    %2220 = vmatprep.subr.mxu0 0.0
    %2221 = vmatpush2.msra.mxu0 0.0
    %2222 = vmatprep.subr.mxu0 0.0
    %2223 = vmatpush2.msra.mxu0 0.0
    %2224 = vmatprep.subr.mxu0 0.0
    %2225 = vmatpush2.msra.mxu0 0.0
    %2226 = vmatprep.subr.mxu0 0.0
    %2227 = vmatpush2.msra.mxu0 0.0
    %2228 = vmatprep.subr.mxu0 0.0
    %2229 = vmatpush2.msra.mxu0 0.0
    %2230 = vmatprep.subr.mxu0 0.0
    %2231 = vmatpush2.msra.mxu0 0.0
    %2232 = vmatprep.subr.mxu0 0.0
    %2233 = vmatpush2.msra.mxu0 0.0
    %2234 = vmatprep.subr.mxu0 0.0
    %2235 = vmatpush2.msra.mxu0 0.0
    %2236 = vmatprep.subr.mxu0 0.0
    %2237 = vmatpush2.msra.mxu0 0.0
    %2238 = vmatprep.subr.mxu0 0.0
    %2239 = vmatpush2.msra.mxu0 0.0
    %2240 = vmatprep.subr.mxu0 0.0
    %2241 = vmatpush2.msra.mxu0 0.0
    %2242 = vmatprep.subr.mxu0 0.0
    %2243 = vmatpush2.msra.mxu0 0.0
    %2244 = vmatprep.subr.mxu0 0.0
    %2245 = vmatpush2.msra.mxu0 0.0
    %2246 = vmatprep.subr.mxu0 0.0
    %2247 = vmatpush2.msra.mxu0 0.0
    %2248 = vmatprep.mubr.f32.mxu0 0.0
    %2249 = vmatmul.mubr.f32.gmra.mxu0 %v2182
    %v2250 = vpop.f32.mrf.mxu0
    %v2251 = vadd.f32 0.0, %v2250
    %v2252 = vpop.f32.mrf.mxu0
    %2253 = vdwg.mxu0
    %2254 = vrot.lane.b32.xlu0 %v1257, 104
    %v2255 = vpop.permute.xlu0 %2254
    %2256 = vrot.lane.b32.xlu0 %v1257, 72
    %v2257 = vpop.permute.xlu0 %2256
    %v2258 = vsel %vm1268, %v2255, 0
    %v2260 = vsel %vm1268, %v2257, 0
    %2262 = vmatprep.subr.mxu0 0.0
    %2263 = vmatpush1.xpose.msra.mxu0 0.0
    %2264 = vmatprep.subr.mxu0 0.0
    %2265 = vmatpush1.xpose.msra.mxu0 0.0
    %2266 = vmatprep.subr.mxu0 0.0
    %2267 = vmatpush1.xpose.msra.mxu0 0.0
    %2268 = vmatprep.subr.mxu0 0.0
    %2269 = vmatpush1.xpose.msra.mxu0 0.0
    %2270 = vmatprep.subr.mxu0 0.0
    %2271 = vmatpush1.xpose.msra.mxu0 0.0
    %2272 = vmatprep.subr.mxu0 0.0
    %2273 = vmatpush1.xpose.msra.mxu0 0.0
    %2274 = vmatprep.subr.mxu0 0.0
    %2275 = vmatpush1.xpose.msra.mxu0 0.0
    %2276 = vmatprep.subr.mxu0 0.0
    %2277 = vmatpush1.xpose.msra.mxu0 0.0
    %2278 = vmatprep.subr.mxu0 0.0
    %2279 = vmatpush1.xpose.msra.mxu0 0.0
    %2280 = vmatprep.subr.mxu0 0.0
    %2281 = vmatpush1.xpose.msra.mxu0 0.0
    %2282 = vmatprep.subr.mxu0 0.0
    %2283 = vmatpush1.xpose.msra.mxu0 0.0
    %2284 = vmatprep.subr.mxu0 0.0
    %2285 = vmatpush1.xpose.msra.mxu0 0.0
    %2286 = vmatprep.subr.mxu0 0.0
    %2287 = vmatpush1.xpose.msra.mxu0 0.0
    %2288 = vmatprep.subr.mxu0 0.0
    %2289 = vmatpush1.xpose.msra.mxu0 0.0
    %2290 = vmatprep.subr.mxu0 0.0
    %2291 = vmatpush1.xpose.msra.mxu0 0.0
    %2292 = vmatprep.subr.mxu0 0.0
    %2293 = vmatpush1.xpose.msra.mxu0 %v2260
    %2294 = vmatprep.subr.mxu0 0.0
    %2295 = vmatpush2.xpose.msra.mxu0 0.0
    %2296 = vmatprep.subr.mxu0 0.0
    %2297 = vmatpush2.xpose.msra.mxu0 0.0
    %2298 = vmatprep.subr.mxu0 0.0
    %2299 = vmatpush2.xpose.msra.mxu0 0.0
    %2300 = vmatprep.subr.mxu0 0.0
    %2301 = vmatpush2.xpose.msra.mxu0 0.0
    %2302 = vmatprep.subr.mxu0 0.0
    %2303 = vmatpush2.xpose.msra.mxu0 0.0
    %2304 = vmatprep.subr.mxu0 0.0
    %2305 = vmatpush2.xpose.msra.mxu0 0.0
    %2306 = vmatprep.subr.mxu0 0.0
    %2307 = vmatpush2.xpose.msra.mxu0 0.0
    %2308 = vmatprep.subr.mxu0 0.0
    %2309 = vmatpush2.xpose.msra.mxu0 0.0
    %2310 = vmatprep.subr.mxu0 0.0
    %2311 = vmatpush2.xpose.msra.mxu0 0.0
    %2312 = vmatprep.subr.mxu0 0.0
    %2313 = vmatpush2.xpose.msra.mxu0 0.0
    %2314 = vmatprep.subr.mxu0 0.0
    %2315 = vmatpush2.xpose.msra.mxu0 0.0
    %2316 = vmatprep.subr.mxu0 0.0
    %2317 = vmatpush2.xpose.msra.mxu0 0.0
    %2318 = vmatprep.subr.mxu0 0.0
    %2319 = vmatpush2.xpose.msra.mxu0 0.0
    %2320 = vmatprep.subr.mxu0 0.0
    %2321 = vmatpush2.xpose.msra.mxu0 0.0
    %2322 = vmatprep.subr.mxu0 0.0
    %2323 = vmatpush2.xpose.msra.mxu0 0.0
    %2324 = vmatprep.subr.mxu0 0.0
    %2325 = vmatpush2.xpose.msra.mxu0 0.0
    %2326 = vmatprep.mubr.f32.mxu0 0.0
    %2327 = vmatmul.mubr.f32.gmra.mxu0 %v2258
    %v2328 = vpop.f32.mrf.mxu0
    %v2329 = vadd.f32 0.0, %v2328
    %v2330 = vpop.f32.mrf.mxu0
    %2331 = vdwg.mxu0
    %2332 = vrot.lane.b32.xlu0 %v1262, 104
    %v2333 = vpop.permute.xlu0 %2332
    %2334 = vrot.lane.b32.xlu0 %v1262, 72
    %v2335 = vpop.permute.xlu0 %2334
    %v2336 = vsel %vm1268, %v2333, 0
    %v2338 = vsel %vm1268, %v2335, 0
    %2340 = vmatprep.subr.mxu0 0.0
    %2341 = vmatpush1.xpose.msra.mxu0 0.0
    %2342 = vmatprep.subr.mxu0 0.0
    %2343 = vmatpush1.xpose.msra.mxu0 0.0
    %2344 = vmatprep.subr.mxu0 0.0
    %2345 = vmatpush1.xpose.msra.mxu0 0.0
    %2346 = vmatprep.subr.mxu0 0.0
    %2347 = vmatpush1.xpose.msra.mxu0 0.0
    %2348 = vmatprep.subr.mxu0 0.0
    %2349 = vmatpush1.xpose.msra.mxu0 0.0
    %2350 = vmatprep.subr.mxu0 0.0
    %2351 = vmatpush1.xpose.msra.mxu0 0.0
    %2352 = vmatprep.subr.mxu0 0.0
    %2353 = vmatpush1.xpose.msra.mxu0 0.0
    %2354 = vmatprep.subr.mxu0 0.0
    %2355 = vmatpush1.xpose.msra.mxu0 0.0
    %2356 = vmatprep.subr.mxu0 0.0
    %2357 = vmatpush1.xpose.msra.mxu0 0.0
    %2358 = vmatprep.subr.mxu0 0.0
    %2359 = vmatpush1.xpose.msra.mxu0 0.0
    %2360 = vmatprep.subr.mxu0 0.0
    %2361 = vmatpush1.xpose.msra.mxu0 0.0
    %2362 = vmatprep.subr.mxu0 0.0
    %2363 = vmatpush1.xpose.msra.mxu0 0.0
    %2364 = vmatprep.subr.mxu0 0.0
    %2365 = vmatpush1.xpose.msra.mxu0 0.0
    %2366 = vmatprep.subr.mxu0 0.0
    %2367 = vmatpush1.xpose.msra.mxu0 0.0
    %2368 = vmatprep.subr.mxu0 0.0
    %2369 = vmatpush1.xpose.msra.mxu0 0.0
    %2370 = vmatprep.subr.mxu0 0.0
    %2371 = vmatpush1.xpose.msra.mxu0 %v2338
    %2372 = vmatprep.subr.mxu0 0.0
    %2373 = vmatpush2.xpose.msra.mxu0 0.0
    %2374 = vmatprep.subr.mxu0 0.0
    %2375 = vmatpush2.xpose.msra.mxu0 0.0
    %2376 = vmatprep.subr.mxu0 0.0
    %2377 = vmatpush2.xpose.msra.mxu0 0.0
    %2378 = vmatprep.subr.mxu0 0.0
    %2379 = vmatpush2.xpose.msra.mxu0 0.0
    %2380 = vmatprep.subr.mxu0 0.0
    %2381 = vmatpush2.xpose.msra.mxu0 0.0
    %2382 = vmatprep.subr.mxu0 0.0
    %2383 = vmatpush2.xpose.msra.mxu0 0.0
    %2384 = vmatprep.subr.mxu0 0.0
    %2385 = vmatpush2.xpose.msra.mxu0 0.0
    %2386 = vmatprep.subr.mxu0 0.0
    %2387 = vmatpush2.xpose.msra.mxu0 0.0
    %2388 = vmatprep.subr.mxu0 0.0
    %2389 = vmatpush2.xpose.msra.mxu0 0.0
    %2390 = vmatprep.subr.mxu0 0.0
    %2391 = vmatpush2.xpose.msra.mxu0 0.0
    %2392 = vmatprep.subr.mxu0 0.0
    %2393 = vmatpush2.xpose.msra.mxu0 0.0
    %2394 = vmatprep.subr.mxu0 0.0
    %2395 = vmatpush2.xpose.msra.mxu0 0.0
    %2396 = vmatprep.subr.mxu0 0.0
    %2397 = vmatpush2.xpose.msra.mxu0 0.0
    %2398 = vmatprep.subr.mxu0 0.0
    %2399 = vmatpush2.xpose.msra.mxu0 0.0
    %2400 = vmatprep.subr.mxu0 0.0
    %2401 = vmatpush2.xpose.msra.mxu0 0.0
    %2402 = vmatprep.subr.mxu0 0.0
    %2403 = vmatpush2.xpose.msra.mxu0 0.0
    %2404 = vmatprep.mubr.f32.mxu0 0.0
    %2405 = vmatmul.mubr.f32.gmra.mxu0 %v2336
    %v2406 = vpop.f32.mrf.mxu0
    %v2407 = vadd.f32 0.0, %v2406
    %v2408 = vpop.f32.mrf.mxu0
    %2409 = vdwg.mxu0
    %v2410 = vsel %vm1268, %v2329, -inf
    %2411 = vmax.xlane.f32.xlu0 %v2410
    %v2412 = vpop.xlane.xlu0 %2411
    %v2413 = vsel %vm1268, %v2407, -inf
    %2414 = vmax.xlane.f32.xlu0 %v2413
    %v2415 = vpop.xlane.xlu0 %2414
    %v2416 = vsub.f32 %v2329, %v2412
    %v2417 = vsub.f32 %v2407, %v2415
    %v2418 = vmul.f32 %v2416, 1.442695
    %v2419 = vpow.pop %v2418
    %v2420 = vmul.f32 %v2417, 1.442695
    %v2421 = vpow.pop %v2420
    %v2422 = vsel %vm1268, %v2419, 0.0
    %2423 = vadd.xlane.f32.xlu0 %v2422
    %v2424 = vpop.xlane.xlu0 %2423
    %v2425 = vsel %vm1268, %v2421, 0.0
    %2426 = vadd.xlane.f32.xlu0 %v2425
    %v2427 = vpop.xlane.xlu0 %2426
    %v2428 = vrcp.pop %v2424
    %v2429 = vrcp.pop %v2427
    %v2430 = vmul.f32 %v2419, %v2428
    %v2431 = vmul.f32 %v2421, %v2429
    %2432 = vrot.lane.b32.xlu0 %v1257, 40
    %v2433 = vpop.permute.xlu0 %2432
    %v2436 = vsel %vm1268, %v2430, 0
    %2438 = vmatprep.subr.mxu0 0.0
    %2439 = vmatpush1.msra.mxu0 0.0
    %2440 = vmatprep.subr.mxu0 0.0
    %2441 = vmatpush1.msra.mxu0 0.0
    %2442 = vmatprep.subr.mxu0 0.0
    %2443 = vmatpush1.msra.mxu0 0.0
    %2444 = vmatprep.subr.mxu0 0.0
    %2445 = vmatpush1.msra.mxu0 0.0
    %2446 = vmatprep.subr.mxu0 0.0
    %2447 = vmatpush1.msra.mxu0 0.0
    %2448 = vmatprep.subr.mxu0 0.0
    %2449 = vmatpush1.msra.mxu0 0.0
    %2450 = vmatprep.subr.mxu0 0.0
    %2451 = vmatpush1.msra.mxu0 0.0
    %2452 = vmatprep.subr.mxu0 0.0
    %2453 = vmatpush1.msra.mxu0 0.0
    %2454 = vmatprep.subr.mxu0 0.0
    %2455 = vmatpush1.msra.mxu0 0.0
    %2456 = vmatprep.subr.mxu0 0.0
    %2457 = vmatpush1.msra.mxu0 0.0
    %2458 = vmatprep.subr.mxu0 0.0
    %2459 = vmatpush1.msra.mxu0 0.0
    %2460 = vmatprep.subr.mxu0 0.0
    %2461 = vmatpush1.msra.mxu0 0.0
    %2462 = vmatprep.subr.mxu0 0.0
    %2463 = vmatpush1.msra.mxu0 0.0
    %2464 = vmatprep.subr.mxu0 0.0
    %2465 = vmatpush1.msra.mxu0 0.0
    %2466 = vmatprep.subr.mxu0 0.0
    %2467 = vmatpush1.msra.mxu0 0.0
    %2468 = vmatprep.subr.mxu0 0.0
    %2469 = vmatpush1.msra.mxu0 %v2433
    %2470 = vmatprep.subr.mxu0 0.0
    %2471 = vmatpush2.msra.mxu0 0.0
    %2472 = vmatprep.subr.mxu0 0.0
    %2473 = vmatpush2.msra.mxu0 0.0
    %2474 = vmatprep.subr.mxu0 0.0
    %2475 = vmatpush2.msra.mxu0 0.0
    %2476 = vmatprep.subr.mxu0 0.0
    %2477 = vmatpush2.msra.mxu0 0.0
    %2478 = vmatprep.subr.mxu0 0.0
    %2479 = vmatpush2.msra.mxu0 0.0
    %2480 = vmatprep.subr.mxu0 0.0
    %2481 = vmatpush2.msra.mxu0 0.0
    %2482 = vmatprep.subr.mxu0 0.0
    %2483 = vmatpush2.msra.mxu0 0.0
    %2484 = vmatprep.subr.mxu0 0.0
    %2485 = vmatpush2.msra.mxu0 0.0
    %2486 = vmatprep.subr.mxu0 0.0
    %2487 = vmatpush2.msra.mxu0 0.0
    %2488 = vmatprep.subr.mxu0 0.0
    %2489 = vmatpush2.msra.mxu0 0.0
    %2490 = vmatprep.subr.mxu0 0.0
    %2491 = vmatpush2.msra.mxu0 0.0
    %2492 = vmatprep.subr.mxu0 0.0
    %2493 = vmatpush2.msra.mxu0 0.0
    %2494 = vmatprep.subr.mxu0 0.0
    %2495 = vmatpush2.msra.mxu0 0.0
    %2496 = vmatprep.subr.mxu0 0.0
    %2497 = vmatpush2.msra.mxu0 0.0
    %2498 = vmatprep.subr.mxu0 0.0
    %2499 = vmatpush2.msra.mxu0 0.0
    %2500 = vmatprep.subr.mxu0 0.0
    %2501 = vmatpush2.msra.mxu0 0.0
    %2502 = vmatprep.mubr.f32.mxu0 0.0
    %2503 = vmatmul.mubr.f32.gmra.mxu0 %v2436
    %v2504 = vpop.f32.mrf.mxu0
    %v2505 = vadd.f32 0.0, %v2504
    %v2506 = vpop.f32.mrf.mxu0
    %2507 = vdwg.mxu0
    %2508 = vrot.lane.b32.xlu0 %v1262, 40
    %v2509 = vpop.permute.xlu0 %2508
    %v2512 = vsel %vm1268, %v2431, 0
    %2514 = vmatprep.subr.mxu0 0.0
    %2515 = vmatpush1.msra.mxu0 0.0
    %2516 = vmatprep.subr.mxu0 0.0
    %2517 = vmatpush1.msra.mxu0 0.0
    %2518 = vmatprep.subr.mxu0 0.0
    %2519 = vmatpush1.msra.mxu0 0.0
    %2520 = vmatprep.subr.mxu0 0.0
    %2521 = vmatpush1.msra.mxu0 0.0
    %2522 = vmatprep.subr.mxu0 0.0
    %2523 = vmatpush1.msra.mxu0 0.0
    %2524 = vmatprep.subr.mxu0 0.0
    %2525 = vmatpush1.msra.mxu0 0.0
    %2526 = vmatprep.subr.mxu0 0.0
    %2527 = vmatpush1.msra.mxu0 0.0
    %2528 = vmatprep.subr.mxu0 0.0
    %2529 = vmatpush1.msra.mxu0 0.0
    %2530 = vmatprep.subr.mxu0 0.0
    %2531 = vmatpush1.msra.mxu0 0.0
    %2532 = vmatprep.subr.mxu0 0.0
    %2533 = vmatpush1.msra.mxu0 0.0
    %2534 = vmatprep.subr.mxu0 0.0
    %2535 = vmatpush1.msra.mxu0 0.0
    %2536 = vmatprep.subr.mxu0 0.0
    %2537 = vmatpush1.msra.mxu0 0.0
    %2538 = vmatprep.subr.mxu0 0.0
    %2539 = vmatpush1.msra.mxu0 0.0
    %2540 = vmatprep.subr.mxu0 0.0
    %2541 = vmatpush1.msra.mxu0 0.0
    %2542 = vmatprep.subr.mxu0 0.0
    %2543 = vmatpush1.msra.mxu0 0.0
    %2544 = vmatprep.subr.mxu0 0.0
    %2545 = vmatpush1.msra.mxu0 %v2509
    %2546 = vmatprep.subr.mxu0 0.0
    %2547 = vmatpush2.msra.mxu0 0.0
    %2548 = vmatprep.subr.mxu0 0.0
    %2549 = vmatpush2.msra.mxu0 0.0
    %2550 = vmatprep.subr.mxu0 0.0
    %2551 = vmatpush2.msra.mxu0 0.0
    %2552 = vmatprep.subr.mxu0 0.0
    %2553 = vmatpush2.msra.mxu0 0.0
    %2554 = vmatprep.subr.mxu0 0.0
    %2555 = vmatpush2.msra.mxu0 0.0
    %2556 = vmatprep.subr.mxu0 0.0
    %2557 = vmatpush2.msra.mxu0 0.0
    %2558 = vmatprep.subr.mxu0 0.0
    %2559 = vmatpush2.msra.mxu0 0.0
    %2560 = vmatprep.subr.mxu0 0.0
    %2561 = vmatpush2.msra.mxu0 0.0
    %2562 = vmatprep.subr.mxu0 0.0
    %2563 = vmatpush2.msra.mxu0 0.0
    %2564 = vmatprep.subr.mxu0 0.0
    %2565 = vmatpush2.msra.mxu0 0.0
    %2566 = vmatprep.subr.mxu0 0.0
    %2567 = vmatpush2.msra.mxu0 0.0
    %2568 = vmatprep.subr.mxu0 0.0
    %2569 = vmatpush2.msra.mxu0 0.0
    %2570 = vmatprep.subr.mxu0 0.0
    %2571 = vmatpush2.msra.mxu0 0.0
    %2572 = vmatprep.subr.mxu0 0.0
    %2573 = vmatpush2.msra.mxu0 0.0
    %2574 = vmatprep.subr.mxu0 0.0
    %2575 = vmatpush2.msra.mxu0 0.0
    %2576 = vmatprep.subr.mxu0 0.0
    %2577 = vmatpush2.msra.mxu0 0.0
    %2578 = vmatprep.mubr.f32.mxu0 0.0
    %2579 = vmatmul.mubr.f32.gmra.mxu0 %v2512
    %v2580 = vpop.f32.mrf.mxu0
    %v2581 = vadd.f32 0.0, %v2580
    %v2582 = vpop.f32.mrf.mxu0
    %2583 = vdwg.mxu0
    %2586 = vrot.lane.b32.xlu0 %v1845, 8
    %v2587 = vpop.permute.xlu0 %2586
    %2588 = vrot.lane.b32.xlu0 %v1921, 8
    %v2589 = vpop.permute.xlu0 %2588
    %2594 = vrot.lane.b32.xlu0 %v2175, 16
    %v2595 = vpop.permute.xlu0 %2594
    %2596 = vrot.lane.b32.xlu0 %v2251, 16
    %v2597 = vpop.permute.xlu0 %2596
    %2602 = vrot.lane.b32.xlu0 %v2505, 24
    %v2603 = vpop.permute.xlu0 %2602
    %2604 = vrot.lane.b32.xlu0 %v2581, 24
    %v2605 = vpop.permute.xlu0 %2604
    %v2608 = vsel %vm1268, %v1515, %v2587
    %v2609 = vsel %vm1268, %v1591, %v2589
    %vm2610 = vcmask 130048
    %v2611 = vsel %vm2610, %v2608, %v2595
    %v2612 = vsel %vm2610, %v2609, %v2597
    %vm2613 = vcmask 195584
    %v2614 = vsel %vm2613, %v2611, %v2603
    %v2615 = vsel %vm2613, %v2612, %v2605
    %v2616 = vld [vmem:[%s16] sm:$0xff]
    %v2617 = vld [vmem:[%s16 + $0x8] sm:$0xff]
    %v2618 = vld [vmem:[%s16 + $0x10] sm:$0xff]
    %v2619 = vld [vmem:[%s16 + $0x18] sm:$0xff]
    %v2620 = vld [vmem:[%s17] sm:$0x1]
    %v2622 = vlaneseq
    %v2623 = vshrl.u32 %v2622, 7
    %v2624 = vsub.s32 0, %v2623
    %v2625 = vrot.slane %v2620, %v2624
    %v2628 = vsel %vm321, %v2614, 0
    %v2631 = vsel %vm321, %v2615, 0
    %2633 = vmatprep.subr.mxu0 0.0
    %2634 = vmatpush1.msra.mxu0 0.0
    %2635 = vmatprep.subr.mxu0 0.0
    %2636 = vmatpush1.msra.mxu0 0.0
    %2637 = vmatprep.subr.mxu0 0.0
    %2638 = vmatpush1.msra.mxu0 0.0
    %2639 = vmatprep.subr.mxu0 0.0
    %2640 = vmatpush1.msra.mxu0 0.0
    %2641 = vmatprep.subr.mxu0 0.0
    %2642 = vmatpush1.msra.mxu0 0.0
    %2643 = vmatprep.subr.mxu0 0.0
    %2644 = vmatpush1.msra.mxu0 0.0
    %2645 = vmatprep.subr.mxu0 0.0
    %2646 = vmatpush1.msra.mxu0 0.0
    %2647 = vmatprep.subr.mxu0 0.0
    %2648 = vmatpush1.msra.mxu0 0.0
    %2649 = vmatprep.subr.mxu0 0.0
    %2650 = vmatpush1.msra.mxu0 0.0
    %2651 = vmatprep.subr.mxu0 0.0
    %2652 = vmatpush1.msra.mxu0 0.0
    %2653 = vmatprep.subr.mxu0 0.0
    %2654 = vmatpush1.msra.mxu0 0.0
    %2655 = vmatprep.subr.mxu0 0.0
    %2656 = vmatpush1.msra.mxu0 0.0
    %2657 = vmatprep.subr.mxu0 0.0
    %2658 = vmatpush1.msra.mxu0 %v2619
    %2659 = vmatprep.subr.mxu0 0.0
    %2660 = vmatpush1.msra.mxu0 %v2618
    %2661 = vmatprep.subr.mxu0 0.0
    %2662 = vmatpush1.msra.mxu0 %v2617
    %2663 = vmatprep.subr.mxu0 0.0
    %2664 = vmatpush1.msra.mxu0 %v2616
    %2665 = vmatprep.subr.mxu0 0.0
    %2666 = vmatpush2.msra.mxu0 0.0
    %2667 = vmatprep.subr.mxu0 0.0
    %2668 = vmatpush2.msra.mxu0 0.0
    %2669 = vmatprep.subr.mxu0 0.0
    %2670 = vmatpush2.msra.mxu0 0.0
    %2671 = vmatprep.subr.mxu0 0.0
    %2672 = vmatpush2.msra.mxu0 0.0
    %2673 = vmatprep.subr.mxu0 0.0
    %2674 = vmatpush2.msra.mxu0 0.0
    %2675 = vmatprep.subr.mxu0 0.0
    %2676 = vmatpush2.msra.mxu0 0.0
    %2677 = vmatprep.subr.mxu0 0.0
    %2678 = vmatpush2.msra.mxu0 0.0
    %2679 = vmatprep.subr.mxu0 0.0
    %2680 = vmatpush2.msra.mxu0 0.0
    %2681 = vmatprep.subr.mxu0 0.0
    %2682 = vmatpush2.msra.mxu0 0.0
    %2683 = vmatprep.subr.mxu0 0.0
    %2684 = vmatpush2.msra.mxu0 0.0
    %2685 = vmatprep.subr.mxu0 0.0
    %2686 = vmatpush2.msra.mxu0 0.0
    %2687 = vmatprep.subr.mxu0 0.0
    %2688 = vmatpush2.msra.mxu0 0.0
    %2689 = vmatprep.subr.mxu0 0.0
    %2690 = vmatpush2.msra.mxu0 0.0
    %2691 = vmatprep.subr.mxu0 0.0
    %2692 = vmatpush2.msra.mxu0 0.0
    %2693 = vmatprep.subr.mxu0 0.0
    %2694 = vmatpush2.msra.mxu0 0.0
    %2695 = vmatprep.subr.mxu0 0.0
    %2696 = vmatpush2.msra.mxu0 0.0
    %2697 = vmatprep.mubr.f32.mxu0 0.0
    %2698 = vmatmul.mubr.f32.gmra.mxu0 %v2628
    %v2699 = vpop.f32.mrf.mxu0
    %v2700 = vadd.f32 %v2625, %v2699
    %v2701 = vpop.f32.mrf.mxu0
    %2702 = vmatprep.mubr.f32.mxu0 0.0
    %2703 = vmatmul.mubr.f32.gmra.mxu0 %v2631
    %v2704 = vpop.f32.mrf.mxu0
    %v2705 = vadd.f32 %v2625, %v2704
    %v2706 = vpop.f32.mrf.mxu0
    %2707 = vdwg.mxu0
    %2708 = vst.msk [vmem:[#allocation5] sm:$0xff] %vm321, %v2700
    %2709 = vst.msk [vmem:[#allocation5 + $0x8] sm:$0xff] %vm321, %v2705
    %v2710 = vld [vmem:[%s0] sm:$0xff]
    %v2711 = vld [vmem:[%s2] sm:$0xff]
    %v2712 = vld [vmem:[%s3] sm:$0x1]
    %v2714 = vlaneseq
    %v2715 = vshrl.u32 %v2714, 7
    %v2716 = vsub.s32 0, %v2715
    %v2717 = vrot.slane %v2712, %v2716
    %v2720 = vsel %vm1268, %v2710, 0
    %2722 = vmatprep.subr.mxu0 0.0
    %2723 = vmatpush1.msra.mxu0 0.0
    %2724 = vmatprep.subr.mxu0 0.0
    %2725 = vmatpush1.msra.mxu0 0.0
    %2726 = vmatprep.subr.mxu0 0.0
    %2727 = vmatpush1.msra.mxu0 0.0
    %2728 = vmatprep.subr.mxu0 0.0
    %2729 = vmatpush1.msra.mxu0 0.0
    %2730 = vmatprep.subr.mxu0 0.0
    %2731 = vmatpush1.msra.mxu0 0.0
    %2732 = vmatprep.subr.mxu0 0.0
    %2733 = vmatpush1.msra.mxu0 0.0
    %2734 = vmatprep.subr.mxu0 0.0
    %2735 = vmatpush1.msra.mxu0 0.0
    %2736 = vmatprep.subr.mxu0 0.0
    %2737 = vmatpush1.msra.mxu0 0.0
    %2738 = vmatprep.subr.mxu0 0.0
    %2739 = vmatpush1.msra.mxu0 0.0
    %2740 = vmatprep.subr.mxu0 0.0
    %2741 = vmatpush1.msra.mxu0 0.0
    %2742 = vmatprep.subr.mxu0 0.0
    %2743 = vmatpush1.msra.mxu0 0.0
    %2744 = vmatprep.subr.mxu0 0.0
    %2745 = vmatpush1.msra.mxu0 0.0
    %2746 = vmatprep.subr.mxu0 0.0
    %2747 = vmatpush1.msra.mxu0 0.0
    %2748 = vmatprep.subr.mxu0 0.0
    %2749 = vmatpush1.msra.mxu0 0.0
    %2750 = vmatprep.subr.mxu0 0.0
    %2751 = vmatpush1.msra.mxu0 0.0
    %2752 = vmatprep.subr.mxu0 0.0
    %2753 = vmatpush1.msra.mxu0 %v2711
    %2754 = vmatprep.subr.mxu0 0.0
    %2755 = vmatpush2.msra.mxu0 0.0
    %2756 = vmatprep.subr.mxu0 0.0
    %2757 = vmatpush2.msra.mxu0 0.0
    %2758 = vmatprep.subr.mxu0 0.0
    %2759 = vmatpush2.msra.mxu0 0.0
    %2760 = vmatprep.subr.mxu0 0.0
    %2761 = vmatpush2.msra.mxu0 0.0
    %2762 = vmatprep.subr.mxu0 0.0
    %2763 = vmatpush2.msra.mxu0 0.0
    %2764 = vmatprep.subr.mxu0 0.0
    %2765 = vmatpush2.msra.mxu0 0.0
    %2766 = vmatprep.subr.mxu0 0.0
    %2767 = vmatpush2.msra.mxu0 0.0
    %2768 = vmatprep.subr.mxu0 0.0
    %2769 = vmatpush2.msra.mxu0 0.0
    %2770 = vmatprep.subr.mxu0 0.0
    %2771 = vmatpush2.msra.mxu0 0.0
    %2772 = vmatprep.subr.mxu0 0.0
    %2773 = vmatpush2.msra.mxu0 0.0
    %2774 = vmatprep.subr.mxu0 0.0
    %2775 = vmatpush2.msra.mxu0 0.0
    %2776 = vmatprep.subr.mxu0 0.0
    %2777 = vmatpush2.msra.mxu0 0.0
    %2778 = vmatprep.subr.mxu0 0.0
    %2779 = vmatpush2.msra.mxu0 0.0
    %2780 = vmatprep.subr.mxu0 0.0
    %2781 = vmatpush2.msra.mxu0 0.0
    %2782 = vmatprep.subr.mxu0 0.0
    %2783 = vmatpush2.msra.mxu0 0.0
    %2784 = vmatprep.subr.mxu0 0.0
    %2785 = vmatpush2.msra.mxu0 0.0
    %2786 = vmatprep.mubr.f32.mxu0 0.0
    %2787 = vmatmul.mubr.f32.gmra.mxu0 %v2720
    %v2788 = vpop.f32.mrf.mxu0
    %v2789 = vadd.f32 %v2717, %v2788
    %v2790 = vpop.f32.mrf.mxu0
    %2791 = vdwg.mxu0
    %v2792 = vtanh.pop %v2789
    %v2793 = vld [vmem:[%s10] sm:$0xff]
    %v2794 = vld [vmem:[%s10 + $0x8] sm:$0xff]
    %v2795 = vld [vmem:[%s10 + $0x10] sm:$0xff]
    %v2796 = vld [vmem:[%s10 + $0x18] sm:$0xff]
    %v2797 = vld [vmem:[%s11] sm:$0x1]
    %v2799 = vlaneseq
    %v2800 = vshrl.u32 %v2799, 7
    %v2801 = vsub.s32 0, %v2800
    %v2802 = vrot.slane %v2797, %v2801
    %v2805 = vsel %vm321, %v2792, 0
    %2807 = vmatprep.subr.mxu0 0.0
    %2808 = vmatpush1.msra.mxu0 0.0
    %2809 = vmatprep.subr.mxu0 0.0
    %2810 = vmatpush1.msra.mxu0 0.0
    %2811 = vmatprep.subr.mxu0 0.0
    %2812 = vmatpush1.msra.mxu0 0.0
    %2813 = vmatprep.subr.mxu0 0.0
    %2814 = vmatpush1.msra.mxu0 0.0
    %2815 = vmatprep.subr.mxu0 0.0
    %2816 = vmatpush1.msra.mxu0 0.0
    %2817 = vmatprep.subr.mxu0 0.0
    %2818 = vmatpush1.msra.mxu0 0.0
    %2819 = vmatprep.subr.mxu0 0.0
    %2820 = vmatpush1.msra.mxu0 0.0
    %2821 = vmatprep.subr.mxu0 0.0
    %2822 = vmatpush1.msra.mxu0 0.0
    %2823 = vmatprep.subr.mxu0 0.0
    %2824 = vmatpush1.msra.mxu0 0.0
    %2825 = vmatprep.subr.mxu0 0.0
    %2826 = vmatpush1.msra.mxu0 0.0
    %2827 = vmatprep.subr.mxu0 0.0
    %2828 = vmatpush1.msra.mxu0 0.0
    %2829 = vmatprep.subr.mxu0 0.0
    %2830 = vmatpush1.msra.mxu0 0.0
    %2831 = vmatprep.subr.mxu0 0.0
    %2832 = vmatpush1.msra.mxu0 %v2796
    %2833 = vmatprep.subr.mxu0 0.0
    %2834 = vmatpush1.msra.mxu0 %v2795
    %2835 = vmatprep.subr.mxu0 0.0
    %2836 = vmatpush1.msra.mxu0 %v2794
    %2837 = vmatprep.subr.mxu0 0.0
    %2838 = vmatpush1.msra.mxu0 %v2793
    %2839 = vmatprep.subr.mxu0 0.0
    %2840 = vmatpush2.msra.mxu0 0.0
    %2841 = vmatprep.subr.mxu0 0.0
    %2842 = vmatpush2.msra.mxu0 0.0
    %2843 = vmatprep.subr.mxu0 0.0
    %2844 = vmatpush2.msra.mxu0 0.0
    %2845 = vmatprep.subr.mxu0 0.0
    %2846 = vmatpush2.msra.mxu0 0.0
    %2847 = vmatprep.subr.mxu0 0.0
    %2848 = vmatpush2.msra.mxu0 0.0
    %2849 = vmatprep.subr.mxu0 0.0
    %2850 = vmatpush2.msra.mxu0 0.0
    %2851 = vmatprep.subr.mxu0 0.0
    %2852 = vmatpush2.msra.mxu0 0.0
    %2853 = vmatprep.subr.mxu0 0.0
    %2854 = vmatpush2.msra.mxu0 0.0
    %2855 = vmatprep.subr.mxu0 0.0
    %2856 = vmatpush2.msra.mxu0 0.0
    %2857 = vmatprep.subr.mxu0 0.0
    %2858 = vmatpush2.msra.mxu0 0.0
    %2859 = vmatprep.subr.mxu0 0.0
    %2860 = vmatpush2.msra.mxu0 0.0
    %2861 = vmatprep.subr.mxu0 0.0
    %2862 = vmatpush2.msra.mxu0 0.0
    %2863 = vmatprep.subr.mxu0 0.0
    %2864 = vmatpush2.msra.mxu0 0.0
    %2865 = vmatprep.subr.mxu0 0.0
    %2866 = vmatpush2.msra.mxu0 0.0
    %2867 = vmatprep.subr.mxu0 0.0
    %2868 = vmatpush2.msra.mxu0 0.0
    %2869 = vmatprep.subr.mxu0 0.0
    %2870 = vmatpush2.msra.mxu0 0.0
    %2871 = vmatprep.mubr.f32.mxu0 0.0
    %2872 = vmatmul.mubr.f32.gmra.mxu0 %v2805
    %v2873 = vpop.f32.mrf.mxu0
    %v2874 = vadd.f32 %v2802, %v2873
    %v2875 = vpop.f32.mrf.mxu0
    %2876 = vdwg.mxu0
    %v2878 = vcombine.high %v2874, %v2874
    %2879 = vrot.lane.b32.xlu0 %v2874, 96
    %v2880 = vpop.permute.xlu0 %2879
    %v2881 = vsel %vm1268, %v2874, 0
    %v2883 = vsel %vm1268, %v2880, 0
    %2885 = vmatprep.subr.mxu0 0.0
    %2886 = vmatpush1.xpose.msra.mxu0 0.0
    %2887 = vmatprep.subr.mxu0 0.0
    %2888 = vmatpush1.xpose.msra.mxu0 0.0
    %2889 = vmatprep.subr.mxu0 0.0
    %2890 = vmatpush1.xpose.msra.mxu0 0.0
    %2891 = vmatprep.subr.mxu0 0.0
    %2892 = vmatpush1.xpose.msra.mxu0 0.0
    %2893 = vmatprep.subr.mxu0 0.0
    %2894 = vmatpush1.xpose.msra.mxu0 0.0
    %2895 = vmatprep.subr.mxu0 0.0
    %2896 = vmatpush1.xpose.msra.mxu0 0.0
    %2897 = vmatprep.subr.mxu0 0.0
    %2898 = vmatpush1.xpose.msra.mxu0 0.0
    %2899 = vmatprep.subr.mxu0 0.0
    %2900 = vmatpush1.xpose.msra.mxu0 0.0
    %2901 = vmatprep.subr.mxu0 0.0
    %2902 = vmatpush1.xpose.msra.mxu0 0.0
    %2903 = vmatprep.subr.mxu0 0.0
    %2904 = vmatpush1.xpose.msra.mxu0 0.0
    %2905 = vmatprep.subr.mxu0 0.0
    %2906 = vmatpush1.xpose.msra.mxu0 0.0
    %2907 = vmatprep.subr.mxu0 0.0
    %2908 = vmatpush1.xpose.msra.mxu0 0.0
    %2909 = vmatprep.subr.mxu0 0.0
    %2910 = vmatpush1.xpose.msra.mxu0 0.0
    %2911 = vmatprep.subr.mxu0 0.0
    %2912 = vmatpush1.xpose.msra.mxu0 0.0
    %2913 = vmatprep.subr.mxu0 0.0
    %2914 = vmatpush1.xpose.msra.mxu0 0.0
    %2915 = vmatprep.subr.mxu0 0.0
    %2916 = vmatpush1.xpose.msra.mxu0 %v2883
    %2917 = vmatprep.subr.mxu0 0.0
    %2918 = vmatpush2.xpose.msra.mxu0 0.0
    %2919 = vmatprep.subr.mxu0 0.0
    %2920 = vmatpush2.xpose.msra.mxu0 0.0
    %2921 = vmatprep.subr.mxu0 0.0
    %2922 = vmatpush2.xpose.msra.mxu0 0.0
    %2923 = vmatprep.subr.mxu0 0.0
    %2924 = vmatpush2.xpose.msra.mxu0 0.0
    %2925 = vmatprep.subr.mxu0 0.0
    %2926 = vmatpush2.xpose.msra.mxu0 0.0
    %2927 = vmatprep.subr.mxu0 0.0
    %2928 = vmatpush2.xpose.msra.mxu0 0.0
    %2929 = vmatprep.subr.mxu0 0.0
    %2930 = vmatpush2.xpose.msra.mxu0 0.0
    %2931 = vmatprep.subr.mxu0 0.0
    %2932 = vmatpush2.xpose.msra.mxu0 0.0
    %2933 = vmatprep.subr.mxu0 0.0
    %2934 = vmatpush2.xpose.msra.mxu0 0.0
    %2935 = vmatprep.subr.mxu0 0.0
    %2936 = vmatpush2.xpose.msra.mxu0 0.0
    %2937 = vmatprep.subr.mxu0 0.0
    %2938 = vmatpush2.xpose.msra.mxu0 0.0
    %2939 = vmatprep.subr.mxu0 0.0
    %2940 = vmatpush2.xpose.msra.mxu0 0.0
    %2941 = vmatprep.subr.mxu0 0.0
    %2942 = vmatpush2.xpose.msra.mxu0 0.0
    %2943 = vmatprep.subr.mxu0 0.0
    %2944 = vmatpush2.xpose.msra.mxu0 0.0
    %2945 = vmatprep.subr.mxu0 0.0
    %2946 = vmatpush2.xpose.msra.mxu0 0.0
    %2947 = vmatprep.subr.mxu0 0.0
    %2948 = vmatpush2.xpose.msra.mxu0 0.0
    %2949 = vmatprep.mubr.f32.mxu0 0.0
    %2950 = vmatmul.mubr.f32.gmra.mxu0 %v2881
    %v2951 = vpop.f32.mrf.mxu0
    %v2952 = vadd.f32 0.0, %v2951
    %v2953 = vpop.f32.mrf.mxu0
    %2954 = vdwg.mxu0
    %2955 = vrot.lane.b32.xlu0 %v2878, 96
    %v2956 = vpop.permute.xlu0 %2955
    %v2957 = vsel %vm1268, %v2878, 0
    %v2959 = vsel %vm1268, %v2956, 0
    %2961 = vmatprep.subr.mxu0 0.0
    %2962 = vmatpush1.xpose.msra.mxu0 0.0
    %2963 = vmatprep.subr.mxu0 0.0
    %2964 = vmatpush1.xpose.msra.mxu0 0.0
    %2965 = vmatprep.subr.mxu0 0.0
    %2966 = vmatpush1.xpose.msra.mxu0 0.0
    %2967 = vmatprep.subr.mxu0 0.0
    %2968 = vmatpush1.xpose.msra.mxu0 0.0
    %2969 = vmatprep.subr.mxu0 0.0
    %2970 = vmatpush1.xpose.msra.mxu0 0.0
    %2971 = vmatprep.subr.mxu0 0.0
    %2972 = vmatpush1.xpose.msra.mxu0 0.0
    %2973 = vmatprep.subr.mxu0 0.0
    %2974 = vmatpush1.xpose.msra.mxu0 0.0
    %2975 = vmatprep.subr.mxu0 0.0
    %2976 = vmatpush1.xpose.msra.mxu0 0.0
    %2977 = vmatprep.subr.mxu0 0.0
    %2978 = vmatpush1.xpose.msra.mxu0 0.0
    %2979 = vmatprep.subr.mxu0 0.0
    %2980 = vmatpush1.xpose.msra.mxu0 0.0
    %2981 = vmatprep.subr.mxu0 0.0
    %2982 = vmatpush1.xpose.msra.mxu0 0.0
    %2983 = vmatprep.subr.mxu0 0.0
    %2984 = vmatpush1.xpose.msra.mxu0 0.0
    %2985 = vmatprep.subr.mxu0 0.0
    %2986 = vmatpush1.xpose.msra.mxu0 0.0
    %2987 = vmatprep.subr.mxu0 0.0
    %2988 = vmatpush1.xpose.msra.mxu0 0.0
    %2989 = vmatprep.subr.mxu0 0.0
    %2990 = vmatpush1.xpose.msra.mxu0 0.0
    %2991 = vmatprep.subr.mxu0 0.0
    %2992 = vmatpush1.xpose.msra.mxu0 %v2959
    %2993 = vmatprep.subr.mxu0 0.0
    %2994 = vmatpush2.xpose.msra.mxu0 0.0
    %2995 = vmatprep.subr.mxu0 0.0
    %2996 = vmatpush2.xpose.msra.mxu0 0.0
    %2997 = vmatprep.subr.mxu0 0.0
    %2998 = vmatpush2.xpose.msra.mxu0 0.0
    %2999 = vmatprep.subr.mxu0 0.0
    %3000 = vmatpush2.xpose.msra.mxu0 0.0
    %3001 = vmatprep.subr.mxu0 0.0
    %3002 = vmatpush2.xpose.msra.mxu0 0.0
    %3003 = vmatprep.subr.mxu0 0.0
    %3004 = vmatpush2.xpose.msra.mxu0 0.0
    %3005 = vmatprep.subr.mxu0 0.0
    %3006 = vmatpush2.xpose.msra.mxu0 0.0
    %3007 = vmatprep.subr.mxu0 0.0
    %3008 = vmatpush2.xpose.msra.mxu0 0.0
    %3009 = vmatprep.subr.mxu0 0.0
    %3010 = vmatpush2.xpose.msra.mxu0 0.0
    %3011 = vmatprep.subr.mxu0 0.0
    %3012 = vmatpush2.xpose.msra.mxu0 0.0
    %3013 = vmatprep.subr.mxu0 0.0
    %3014 = vmatpush2.xpose.msra.mxu0 0.0
    %3015 = vmatprep.subr.mxu0 0.0
    %3016 = vmatpush2.xpose.msra.mxu0 0.0
    %3017 = vmatprep.subr.mxu0 0.0
    %3018 = vmatpush2.xpose.msra.mxu0 0.0
    %3019 = vmatprep.subr.mxu0 0.0
    %3020 = vmatpush2.xpose.msra.mxu0 0.0
    %3021 = vmatprep.subr.mxu0 0.0
    %3022 = vmatpush2.xpose.msra.mxu0 0.0
    %3023 = vmatprep.subr.mxu0 0.0
    %3024 = vmatpush2.xpose.msra.mxu0 0.0
    %3025 = vmatprep.mubr.f32.mxu0 0.0
    %3026 = vmatmul.mubr.f32.gmra.mxu0 %v2957
    %v3027 = vpop.f32.mrf.mxu0
    %v3028 = vadd.f32 0.0, %v3027
    %v3029 = vpop.f32.mrf.mxu0
    %3030 = vdwg.mxu0
    %vm3031 = vcmask 27648
    %v3032 = vsel %vm3031, %v2952, -inf
    %3033 = vmax.xlane.f32.xlu0 %v3032
    %v3034 = vpop.xlane.xlu0 %3033
    %v3035 = vsel %vm3031, %v3028, -inf
    %3036 = vmax.xlane.f32.xlu0 %v3035
    %v3037 = vpop.xlane.xlu0 %3036
    %v3038 = vsub.f32 %v2952, %v3034
    %v3039 = vsub.f32 %v3028, %v3037
    %v3040 = vmul.f32 %v3038, 1.442695
    %v3041 = vpow.pop %v3040
    %v3042 = vmul.f32 %v3039, 1.442695
    %v3043 = vpow.pop %v3042
    %v3044 = vsel %vm3031, %v3041, 0.0
    %3045 = vadd.xlane.f32.xlu0 %v3044
    %v3046 = vpop.xlane.xlu0 %3045
    %v3047 = vsel %vm3031, %v3043, 0.0
    %3048 = vadd.xlane.f32.xlu0 %v3047
    %v3049 = vpop.xlane.xlu0 %3048
    %v3050 = vrcp.pop %v3046
    %v3051 = vrcp.pop %v3049
    %v3052 = vmul.f32 %v3041, %v3050
    %v3053 = vmul.f32 %v3043, %v3051
    %3054 = vrot.lane.b32.xlu0 %v2874, 64
    %v3055 = vpop.permute.xlu0 %3054
    %vm3056 = vcmask 31744
    %v3058 = vsel %vm3056, %v3052, 0
    %vm3060 = vcmask 1043456
    %v3061 = vsel %vm3060, %v3055, 0
    %3063 = vmatprep.subr.mxu0 0.0
    %3064 = vmatpush1.msra.mxu0 0.0
    %3065 = vmatprep.subr.mxu0 0.0
    %3066 = vmatpush1.msra.mxu0 0.0
    %3067 = vmatprep.subr.mxu0 0.0
    %3068 = vmatpush1.msra.mxu0 0.0
    %3069 = vmatprep.subr.mxu0 0.0
    %3070 = vmatpush1.msra.mxu0 0.0
    %3071 = vmatprep.subr.mxu0 0.0
    %3072 = vmatpush1.msra.mxu0 0.0
    %3073 = vmatprep.subr.mxu0 0.0
    %3074 = vmatpush1.msra.mxu0 0.0
    %3075 = vmatprep.subr.mxu0 0.0
    %3076 = vmatpush1.msra.mxu0 0.0
    %3077 = vmatprep.subr.mxu0 0.0
    %3078 = vmatpush1.msra.mxu0 0.0
    %3079 = vmatprep.subr.mxu0 0.0
    %3080 = vmatpush1.msra.mxu0 0.0
    %3081 = vmatprep.subr.mxu0 0.0
    %3082 = vmatpush1.msra.mxu0 0.0
    %3083 = vmatprep.subr.mxu0 0.0
    %3084 = vmatpush1.msra.mxu0 0.0
    %3085 = vmatprep.subr.mxu0 0.0
    %3086 = vmatpush1.msra.mxu0 0.0
    %3087 = vmatprep.subr.mxu0 0.0
    %3088 = vmatpush1.msra.mxu0 0.0
    %3089 = vmatprep.subr.mxu0 0.0
    %3090 = vmatpush1.msra.mxu0 0.0
    %3091 = vmatprep.subr.mxu0 0.0
    %3092 = vmatpush1.msra.mxu0 0.0
    %3093 = vmatprep.subr.mxu0 0.0
    %3094 = vmatpush1.msra.mxu0 %v3061
    %3095 = vmatprep.subr.mxu0 0.0
    %3096 = vmatpush2.msra.mxu0 0.0
    %3097 = vmatprep.subr.mxu0 0.0
    %3098 = vmatpush2.msra.mxu0 0.0
    %3099 = vmatprep.subr.mxu0 0.0
    %3100 = vmatpush2.msra.mxu0 0.0
    %3101 = vmatprep.subr.mxu0 0.0
    %3102 = vmatpush2.msra.mxu0 0.0
    %3103 = vmatprep.subr.mxu0 0.0
    %3104 = vmatpush2.msra.mxu0 0.0
    %3105 = vmatprep.subr.mxu0 0.0
    %3106 = vmatpush2.msra.mxu0 0.0
    %3107 = vmatprep.subr.mxu0 0.0
    %3108 = vmatpush2.msra.mxu0 0.0
    %3109 = vmatprep.subr.mxu0 0.0
    %3110 = vmatpush2.msra.mxu0 0.0
    %3111 = vmatprep.subr.mxu0 0.0
    %3112 = vmatpush2.msra.mxu0 0.0
    %3113 = vmatprep.subr.mxu0 0.0
    %3114 = vmatpush2.msra.mxu0 0.0
    %3115 = vmatprep.subr.mxu0 0.0
    %3116 = vmatpush2.msra.mxu0 0.0
    %3117 = vmatprep.subr.mxu0 0.0
    %3118 = vmatpush2.msra.mxu0 0.0
    %3119 = vmatprep.subr.mxu0 0.0
    %3120 = vmatpush2.msra.mxu0 0.0
    %3121 = vmatprep.subr.mxu0 0.0
    %3122 = vmatpush2.msra.mxu0 0.0
    %3123 = vmatprep.subr.mxu0 0.0
    %3124 = vmatpush2.msra.mxu0 0.0
    %3125 = vmatprep.subr.mxu0 0.0
    %3126 = vmatpush2.msra.mxu0 0.0
    %3127 = vmatprep.mubr.f32.mxu0 0.0
    %3128 = vmatmul.mubr.f32.gmra.mxu0 %v3058
    %v3129 = vpop.f32.mrf.mxu0
    %v3130 = vadd.f32 0.0, %v3129
    %v3131 = vpop.f32.mrf.mxu0
    %3132 = vdwg.mxu0
    %3133 = vrot.lane.b32.xlu0 %v2878, 64
    %v3134 = vpop.permute.xlu0 %3133
    %v3136 = vsel %vm3056, %v3053, 0
    %v3138 = vsel %vm3060, %v3134, 0
    %3140 = vmatprep.subr.mxu0 0.0
    %3141 = vmatpush1.msra.mxu0 0.0
    %3142 = vmatprep.subr.mxu0 0.0
    %3143 = vmatpush1.msra.mxu0 0.0
    %3144 = vmatprep.subr.mxu0 0.0
    %3145 = vmatpush1.msra.mxu0 0.0
    %3146 = vmatprep.subr.mxu0 0.0
    %3147 = vmatpush1.msra.mxu0 0.0
    %3148 = vmatprep.subr.mxu0 0.0
    %3149 = vmatpush1.msra.mxu0 0.0
    %3150 = vmatprep.subr.mxu0 0.0
    %3151 = vmatpush1.msra.mxu0 0.0
    %3152 = vmatprep.subr.mxu0 0.0
    %3153 = vmatpush1.msra.mxu0 0.0
    %3154 = vmatprep.subr.mxu0 0.0
    %3155 = vmatpush1.msra.mxu0 0.0
    %3156 = vmatprep.subr.mxu0 0.0
    %3157 = vmatpush1.msra.mxu0 0.0
    %3158 = vmatprep.subr.mxu0 0.0
    %3159 = vmatpush1.msra.mxu0 0.0
    %3160 = vmatprep.subr.mxu0 0.0
    %3161 = vmatpush1.msra.mxu0 0.0
    %3162 = vmatprep.subr.mxu0 0.0
    %3163 = vmatpush1.msra.mxu0 0.0
    %3164 = vmatprep.subr.mxu0 0.0
    %3165 = vmatpush1.msra.mxu0 0.0
    %3166 = vmatprep.subr.mxu0 0.0
    %3167 = vmatpush1.msra.mxu0 0.0
    %3168 = vmatprep.subr.mxu0 0.0
    %3169 = vmatpush1.msra.mxu0 0.0
    %3170 = vmatprep.subr.mxu0 0.0
    %3171 = vmatpush1.msra.mxu0 %v3138
    %3172 = vmatprep.subr.mxu0 0.0
    %3173 = vmatpush2.msra.mxu0 0.0
    %3174 = vmatprep.subr.mxu0 0.0
    %3175 = vmatpush2.msra.mxu0 0.0
    %3176 = vmatprep.subr.mxu0 0.0
    %3177 = vmatpush2.msra.mxu0 0.0
    %3178 = vmatprep.subr.mxu0 0.0
    %3179 = vmatpush2.msra.mxu0 0.0
    %3180 = vmatprep.subr.mxu0 0.0
    %3181 = vmatpush2.msra.mxu0 0.0
    %3182 = vmatprep.subr.mxu0 0.0
    %3183 = vmatpush2.msra.mxu0 0.0
    %3184 = vmatprep.subr.mxu0 0.0
    %3185 = vmatpush2.msra.mxu0 0.0
    %3186 = vmatprep.subr.mxu0 0.0
    %3187 = vmatpush2.msra.mxu0 0.0
    %3188 = vmatprep.subr.mxu0 0.0
    %3189 = vmatpush2.msra.mxu0 0.0
    %3190 = vmatprep.subr.mxu0 0.0
    %3191 = vmatpush2.msra.mxu0 0.0
    %3192 = vmatprep.subr.mxu0 0.0
    %3193 = vmatpush2.msra.mxu0 0.0
    %3194 = vmatprep.subr.mxu0 0.0
    %3195 = vmatpush2.msra.mxu0 0.0
    %3196 = vmatprep.subr.mxu0 0.0
    %3197 = vmatpush2.msra.mxu0 0.0
    %3198 = vmatprep.subr.mxu0 0.0
    %3199 = vmatpush2.msra.mxu0 0.0
    %3200 = vmatprep.subr.mxu0 0.0
    %3201 = vmatpush2.msra.mxu0 0.0
    %3202 = vmatprep.subr.mxu0 0.0
    %3203 = vmatpush2.msra.mxu0 0.0
    %3204 = vmatprep.mubr.f32.mxu0 0.0
    %3205 = vmatmul.mubr.f32.gmra.mxu0 %v3136
    %v3206 = vpop.f32.mrf.mxu0
    %v3207 = vadd.f32 0.0, %v3206
    %v3208 = vpop.f32.mrf.mxu0
    %3209 = vdwg.mxu0
    %3210 = vrot.lane.b32.xlu0 %v2874, 120
    %v3211 = vpop.permute.xlu0 %3210
    %3212 = vrot.lane.b32.xlu0 %v2874, 88
    %v3213 = vpop.permute.xlu0 %3212
    %v3214 = vsel %vm1268, %v3211, 0
    %v3216 = vsel %vm1268, %v3213, 0
    %3218 = vmatprep.subr.mxu0 0.0
    %3219 = vmatpush1.xpose.msra.mxu0 0.0
    %3220 = vmatprep.subr.mxu0 0.0
    %3221 = vmatpush1.xpose.msra.mxu0 0.0
    %3222 = vmatprep.subr.mxu0 0.0
    %3223 = vmatpush1.xpose.msra.mxu0 0.0
    %3224 = vmatprep.subr.mxu0 0.0
    %3225 = vmatpush1.xpose.msra.mxu0 0.0
    %3226 = vmatprep.subr.mxu0 0.0
    %3227 = vmatpush1.xpose.msra.mxu0 0.0
    %3228 = vmatprep.subr.mxu0 0.0
    %3229 = vmatpush1.xpose.msra.mxu0 0.0
    %3230 = vmatprep.subr.mxu0 0.0
    %3231 = vmatpush1.xpose.msra.mxu0 0.0
    %3232 = vmatprep.subr.mxu0 0.0
    %3233 = vmatpush1.xpose.msra.mxu0 0.0
    %3234 = vmatprep.subr.mxu0 0.0
    %3235 = vmatpush1.xpose.msra.mxu0 0.0
    %3236 = vmatprep.subr.mxu0 0.0
    %3237 = vmatpush1.xpose.msra.mxu0 0.0
    %3238 = vmatprep.subr.mxu0 0.0
    %3239 = vmatpush1.xpose.msra.mxu0 0.0
    %3240 = vmatprep.subr.mxu0 0.0
    %3241 = vmatpush1.xpose.msra.mxu0 0.0
    %3242 = vmatprep.subr.mxu0 0.0
    %3243 = vmatpush1.xpose.msra.mxu0 0.0
    %3244 = vmatprep.subr.mxu0 0.0
    %3245 = vmatpush1.xpose.msra.mxu0 0.0
    %3246 = vmatprep.subr.mxu0 0.0
    %3247 = vmatpush1.xpose.msra.mxu0 0.0
    %3248 = vmatprep.subr.mxu0 0.0
    %3249 = vmatpush1.xpose.msra.mxu0 %v3216
    %3250 = vmatprep.subr.mxu0 0.0
    %3251 = vmatpush2.xpose.msra.mxu0 0.0
    %3252 = vmatprep.subr.mxu0 0.0
    %3253 = vmatpush2.xpose.msra.mxu0 0.0
    %3254 = vmatprep.subr.mxu0 0.0
    %3255 = vmatpush2.xpose.msra.mxu0 0.0
    %3256 = vmatprep.subr.mxu0 0.0
    %3257 = vmatpush2.xpose.msra.mxu0 0.0
    %3258 = vmatprep.subr.mxu0 0.0
    %3259 = vmatpush2.xpose.msra.mxu0 0.0
    %3260 = vmatprep.subr.mxu0 0.0
    %3261 = vmatpush2.xpose.msra.mxu0 0.0
    %3262 = vmatprep.subr.mxu0 0.0
    %3263 = vmatpush2.xpose.msra.mxu0 0.0
    %3264 = vmatprep.subr.mxu0 0.0
    %3265 = vmatpush2.xpose.msra.mxu0 0.0
    %3266 = vmatprep.subr.mxu0 0.0
    %3267 = vmatpush2.xpose.msra.mxu0 0.0
    %3268 = vmatprep.subr.mxu0 0.0
    %3269 = vmatpush2.xpose.msra.mxu0 0.0
    %3270 = vmatprep.subr.mxu0 0.0
    %3271 = vmatpush2.xpose.msra.mxu0 0.0
    %3272 = vmatprep.subr.mxu0 0.0
    %3273 = vmatpush2.xpose.msra.mxu0 0.0
    %3274 = vmatprep.subr.mxu0 0.0
    %3275 = vmatpush2.xpose.msra.mxu0 0.0
    %3276 = vmatprep.subr.mxu0 0.0
    %3277 = vmatpush2.xpose.msra.mxu0 0.0
    %3278 = vmatprep.subr.mxu0 0.0
    %3279 = vmatpush2.xpose.msra.mxu0 0.0
    %3280 = vmatprep.subr.mxu0 0.0
    %3281 = vmatpush2.xpose.msra.mxu0 0.0
    %3282 = vmatprep.mubr.f32.mxu0 0.0
    %3283 = vmatmul.mubr.f32.gmra.mxu0 %v3214
    %v3284 = vpop.f32.mrf.mxu0
    %v3285 = vadd.f32 0.0, %v3284
    %v3286 = vpop.f32.mrf.mxu0
    %3287 = vdwg.mxu0
    %3288 = vrot.lane.b32.xlu0 %v2878, 120
    %v3289 = vpop.permute.xlu0 %3288
    %3290 = vrot.lane.b32.xlu0 %v2878, 88
    %v3291 = vpop.permute.xlu0 %3290
    %v3292 = vsel %vm1268, %v3289, 0
    %v3294 = vsel %vm1268, %v3291, 0
    %3296 = vmatprep.subr.mxu0 0.0
    %3297 = vmatpush1.xpose.msra.mxu0 0.0
    %3298 = vmatprep.subr.mxu0 0.0
    %3299 = vmatpush1.xpose.msra.mxu0 0.0
    %3300 = vmatprep.subr.mxu0 0.0
    %3301 = vmatpush1.xpose.msra.mxu0 0.0
    %3302 = vmatprep.subr.mxu0 0.0
    %3303 = vmatpush1.xpose.msra.mxu0 0.0
    %3304 = vmatprep.subr.mxu0 0.0
    %3305 = vmatpush1.xpose.msra.mxu0 0.0
    %3306 = vmatprep.subr.mxu0 0.0
    %3307 = vmatpush1.xpose.msra.mxu0 0.0
    %3308 = vmatprep.subr.mxu0 0.0
    %3309 = vmatpush1.xpose.msra.mxu0 0.0
    %3310 = vmatprep.subr.mxu0 0.0
    %3311 = vmatpush1.xpose.msra.mxu0 0.0
    %3312 = vmatprep.subr.mxu0 0.0
    %3313 = vmatpush1.xpose.msra.mxu0 0.0
    %3314 = vmatprep.subr.mxu0 0.0
    %3315 = vmatpush1.xpose.msra.mxu0 0.0
    %3316 = vmatprep.subr.mxu0 0.0
    %3317 = vmatpush1.xpose.msra.mxu0 0.0
    %3318 = vmatprep.subr.mxu0 0.0
    %3319 = vmatpush1.xpose.msra.mxu0 0.0
    %3320 = vmatprep.subr.mxu0 0.0
    %3321 = vmatpush1.xpose.msra.mxu0 0.0
    %3322 = vmatprep.subr.mxu0 0.0
    %3323 = vmatpush1.xpose.msra.mxu0 0.0
    %3324 = vmatprep.subr.mxu0 0.0
    %3325 = vmatpush1.xpose.msra.mxu0 0.0
    %3326 = vmatprep.subr.mxu0 0.0
    %3327 = vmatpush1.xpose.msra.mxu0 %v3294
    %3328 = vmatprep.subr.mxu0 0.0
    %3329 = vmatpush2.xpose.msra.mxu0 0.0
    %3330 = vmatprep.subr.mxu0 0.0
    %3331 = vmatpush2.xpose.msra.mxu0 0.0
    %3332 = vmatprep.subr.mxu0 0.0
    %3333 = vmatpush2.xpose.msra.mxu0 0.0
    %3334 = vmatprep.subr.mxu0 0.0
    %3335 = vmatpush2.xpose.msra.mxu0 0.0
    %3336 = vmatprep.subr.mxu0 0.0
    %3337 = vmatpush2.xpose.msra.mxu0 0.0
    %3338 = vmatprep.subr.mxu0 0.0
    %3339 = vmatpush2.xpose.msra.mxu0 0.0
    %3340 = vmatprep.subr.mxu0 0.0
    %3341 = vmatpush2.xpose.msra.mxu0 0.0
    %3342 = vmatprep.subr.mxu0 0.0
    %3343 = vmatpush2.xpose.msra.mxu0 0.0
    %3344 = vmatprep.subr.mxu0 0.0
    %3345 = vmatpush2.xpose.msra.mxu0 0.0
    %3346 = vmatprep.subr.mxu0 0.0
    %3347 = vmatpush2.xpose.msra.mxu0 0.0
    %3348 = vmatprep.subr.mxu0 0.0
    %3349 = vmatpush2.xpose.msra.mxu0 0.0
    %3350 = vmatprep.subr.mxu0 0.0
    %3351 = vmatpush2.xpose.msra.mxu0 0.0
    %3352 = vmatprep.subr.mxu0 0.0
    %3353 = vmatpush2.xpose.msra.mxu0 0.0
    %3354 = vmatprep.subr.mxu0 0.0
    %3355 = vmatpush2.xpose.msra.mxu0 0.0
    %3356 = vmatprep.subr.mxu0 0.0
    %3357 = vmatpush2.xpose.msra.mxu0 0.0
    %3358 = vmatprep.subr.mxu0 0.0
    %3359 = vmatpush2.xpose.msra.mxu0 0.0
    %3360 = vmatprep.mubr.f32.mxu0 0.0
    %3361 = vmatmul.mubr.f32.gmra.mxu0 %v3292
    %v3362 = vpop.f32.mrf.mxu0
    %v3363 = vadd.f32 0.0, %v3362
    %v3364 = vpop.f32.mrf.mxu0
    %3365 = vdwg.mxu0
    %v3366 = vsel %vm3031, %v3285, -inf
    %3367 = vmax.xlane.f32.xlu0 %v3366
    %v3368 = vpop.xlane.xlu0 %3367
    %v3369 = vsel %vm3031, %v3363, -inf
    %3370 = vmax.xlane.f32.xlu0 %v3369
    %v3371 = vpop.xlane.xlu0 %3370
    %v3372 = vsub.f32 %v3285, %v3368
    %v3373 = vsub.f32 %v3363, %v3371
    %v3374 = vmul.f32 %v3372, 1.442695
    %v3375 = vpow.pop %v3374
    %v3376 = vmul.f32 %v3373, 1.442695
    %v3377 = vpow.pop %v3376
    %v3378 = vsel %vm3031, %v3375, 0.0
    %3379 = vadd.xlane.f32.xlu0 %v3378
    %v3380 = vpop.xlane.xlu0 %3379
    %v3381 = vsel %vm3031, %v3377, 0.0
    %3382 = vadd.xlane.f32.xlu0 %v3381
    %v3383 = vpop.xlane.xlu0 %3382
    %v3384 = vrcp.pop %v3380
    %v3385 = vrcp.pop %v3383
    %v3386 = vmul.f32 %v3375, %v3384
    %v3387 = vmul.f32 %v3377, %v3385
    %3388 = vrot.lane.b32.xlu0 %v2874, 56
    %v3389 = vpop.permute.xlu0 %3388
    %v3391 = vsel %vm3056, %v3386, 0
    %v3393 = vsel %vm3060, %v3389, 0
    %3395 = vmatprep.subr.mxu0 0.0
    %3396 = vmatpush1.msra.mxu0 0.0
    %3397 = vmatprep.subr.mxu0 0.0
    %3398 = vmatpush1.msra.mxu0 0.0
    %3399 = vmatprep.subr.mxu0 0.0
    %3400 = vmatpush1.msra.mxu0 0.0
    %3401 = vmatprep.subr.mxu0 0.0
    %3402 = vmatpush1.msra.mxu0 0.0
    %3403 = vmatprep.subr.mxu0 0.0
    %3404 = vmatpush1.msra.mxu0 0.0
    %3405 = vmatprep.subr.mxu0 0.0
    %3406 = vmatpush1.msra.mxu0 0.0
    %3407 = vmatprep.subr.mxu0 0.0
    %3408 = vmatpush1.msra.mxu0 0.0
    %3409 = vmatprep.subr.mxu0 0.0
    %3410 = vmatpush1.msra.mxu0 0.0
    %3411 = vmatprep.subr.mxu0 0.0
    %3412 = vmatpush1.msra.mxu0 0.0
    %3413 = vmatprep.subr.mxu0 0.0
    %3414 = vmatpush1.msra.mxu0 0.0
    %3415 = vmatprep.subr.mxu0 0.0
    %3416 = vmatpush1.msra.mxu0 0.0
    %3417 = vmatprep.subr.mxu0 0.0
    %3418 = vmatpush1.msra.mxu0 0.0
    %3419 = vmatprep.subr.mxu0 0.0
    %3420 = vmatpush1.msra.mxu0 0.0
    %3421 = vmatprep.subr.mxu0 0.0
    %3422 = vmatpush1.msra.mxu0 0.0
    %3423 = vmatprep.subr.mxu0 0.0
    %3424 = vmatpush1.msra.mxu0 0.0
    %3425 = vmatprep.subr.mxu0 0.0
    %3426 = vmatpush1.msra.mxu0 %v3393
    %3427 = vmatprep.subr.mxu0 0.0
    %3428 = vmatpush2.msra.mxu0 0.0
    %3429 = vmatprep.subr.mxu0 0.0
    %3430 = vmatpush2.msra.mxu0 0.0
    %3431 = vmatprep.subr.mxu0 0.0
    %3432 = vmatpush2.msra.mxu0 0.0
    %3433 = vmatprep.subr.mxu0 0.0
    %3434 = vmatpush2.msra.mxu0 0.0
    %3435 = vmatprep.subr.mxu0 0.0
    %3436 = vmatpush2.msra.mxu0 0.0
    %3437 = vmatprep.subr.mxu0 0.0
    %3438 = vmatpush2.msra.mxu0 0.0
    %3439 = vmatprep.subr.mxu0 0.0
    %3440 = vmatpush2.msra.mxu0 0.0
    %3441 = vmatprep.subr.mxu0 0.0
    %3442 = vmatpush2.msra.mxu0 0.0
    %3443 = vmatprep.subr.mxu0 0.0
    %3444 = vmatpush2.msra.mxu0 0.0
    %3445 = vmatprep.subr.mxu0 0.0
    %3446 = vmatpush2.msra.mxu0 0.0
    %3447 = vmatprep.subr.mxu0 0.0
    %3448 = vmatpush2.msra.mxu0 0.0
    %3449 = vmatprep.subr.mxu0 0.0
    %3450 = vmatpush2.msra.mxu0 0.0
    %3451 = vmatprep.subr.mxu0 0.0
    %3452 = vmatpush2.msra.mxu0 0.0
    %3453 = vmatprep.subr.mxu0 0.0
    %3454 = vmatpush2.msra.mxu0 0.0
    %3455 = vmatprep.subr.mxu0 0.0
    %3456 = vmatpush2.msra.mxu0 0.0
    %3457 = vmatprep.subr.mxu0 0.0
    %3458 = vmatpush2.msra.mxu0 0.0
    %3459 = vmatprep.mubr.f32.mxu0 0.0
    %3460 = vmatmul.mubr.f32.gmra.mxu0 %v3391
    %v3461 = vpop.f32.mrf.mxu0
    %v3462 = vadd.f32 0.0, %v3461
    %v3463 = vpop.f32.mrf.mxu0
    %3464 = vdwg.mxu0
    %3465 = vrot.lane.b32.xlu0 %v2878, 56
    %v3466 = vpop.permute.xlu0 %3465
    %v3468 = vsel %vm3056, %v3387, 0
    %v3470 = vsel %vm3060, %v3466, 0
    %3472 = vmatprep.subr.mxu0 0.0
    %3473 = vmatpush1.msra.mxu0 0.0
    %3474 = vmatprep.subr.mxu0 0.0
    %3475 = vmatpush1.msra.mxu0 0.0
    %3476 = vmatprep.subr.mxu0 0.0
    %3477 = vmatpush1.msra.mxu0 0.0
    %3478 = vmatprep.subr.mxu0 0.0
    %3479 = vmatpush1.msra.mxu0 0.0
    %3480 = vmatprep.subr.mxu0 0.0
    %3481 = vmatpush1.msra.mxu0 0.0
    %3482 = vmatprep.subr.mxu0 0.0
    %3483 = vmatpush1.msra.mxu0 0.0
    %3484 = vmatprep.subr.mxu0 0.0
    %3485 = vmatpush1.msra.mxu0 0.0
    %3486 = vmatprep.subr.mxu0 0.0
    %3487 = vmatpush1.msra.mxu0 0.0
    %3488 = vmatprep.subr.mxu0 0.0
    %3489 = vmatpush1.msra.mxu0 0.0
    %3490 = vmatprep.subr.mxu0 0.0
    %3491 = vmatpush1.msra.mxu0 0.0
    %3492 = vmatprep.subr.mxu0 0.0
    %3493 = vmatpush1.msra.mxu0 0.0
    %3494 = vmatprep.subr.mxu0 0.0
    %3495 = vmatpush1.msra.mxu0 0.0
    %3496 = vmatprep.subr.mxu0 0.0
    %3497 = vmatpush1.msra.mxu0 0.0
    %3498 = vmatprep.subr.mxu0 0.0
    %3499 = vmatpush1.msra.mxu0 0.0
    %3500 = vmatprep.subr.mxu0 0.0
    %3501 = vmatpush1.msra.mxu0 0.0
    %3502 = vmatprep.subr.mxu0 0.0
    %3503 = vmatpush1.msra.mxu0 %v3470
    %3504 = vmatprep.subr.mxu0 0.0
    %3505 = vmatpush2.msra.mxu0 0.0
    %3506 = vmatprep.subr.mxu0 0.0
    %3507 = vmatpush2.msra.mxu0 0.0
    %3508 = vmatprep.subr.mxu0 0.0
    %3509 = vmatpush2.msra.mxu0 0.0
    %3510 = vmatprep.subr.mxu0 0.0
    %3511 = vmatpush2.msra.mxu0 0.0
    %3512 = vmatprep.subr.mxu0 0.0
    %3513 = vmatpush2.msra.mxu0 0.0
    %3514 = vmatprep.subr.mxu0 0.0
    %3515 = vmatpush2.msra.mxu0 0.0
    %3516 = vmatprep.subr.mxu0 0.0
    %3517 = vmatpush2.msra.mxu0 0.0
    %3518 = vmatprep.subr.mxu0 0.0
    %3519 = vmatpush2.msra.mxu0 0.0
    %3520 = vmatprep.subr.mxu0 0.0
    %3521 = vmatpush2.msra.mxu0 0.0
    %3522 = vmatprep.subr.mxu0 0.0
    %3523 = vmatpush2.msra.mxu0 0.0
    %3524 = vmatprep.subr.mxu0 0.0
    %3525 = vmatpush2.msra.mxu0 0.0
    %3526 = vmatprep.subr.mxu0 0.0
    %3527 = vmatpush2.msra.mxu0 0.0
    %3528 = vmatprep.subr.mxu0 0.0
    %3529 = vmatpush2.msra.mxu0 0.0
    %3530 = vmatprep.subr.mxu0 0.0
    %3531 = vmatpush2.msra.mxu0 0.0
    %3532 = vmatprep.subr.mxu0 0.0
    %3533 = vmatpush2.msra.mxu0 0.0
    %3534 = vmatprep.subr.mxu0 0.0
    %3535 = vmatpush2.msra.mxu0 0.0
    %3536 = vmatprep.mubr.f32.mxu0 0.0
    %3537 = vmatmul.mubr.f32.gmra.mxu0 %v3468
    %v3538 = vpop.f32.mrf.mxu0
    %v3539 = vadd.f32 0.0, %v3538
    %v3540 = vpop.f32.mrf.mxu0
    %3541 = vdwg.mxu0
    %3542 = vrot.lane.b32.xlu0 %v2874, 112
    %v3543 = vpop.permute.xlu0 %3542
    %3544 = vrot.lane.b32.xlu0 %v2874, 80
    %v3545 = vpop.permute.xlu0 %3544
    %v3546 = vsel %vm1268, %v3543, 0
    %v3548 = vsel %vm1268, %v3545, 0
    %3550 = vmatprep.subr.mxu0 0.0
    %3551 = vmatpush1.xpose.msra.mxu0 0.0
    %3552 = vmatprep.subr.mxu0 0.0
    %3553 = vmatpush1.xpose.msra.mxu0 0.0
    %3554 = vmatprep.subr.mxu0 0.0
    %3555 = vmatpush1.xpose.msra.mxu0 0.0
    %3556 = vmatprep.subr.mxu0 0.0
    %3557 = vmatpush1.xpose.msra.mxu0 0.0
    %3558 = vmatprep.subr.mxu0 0.0
    %3559 = vmatpush1.xpose.msra.mxu0 0.0
    %3560 = vmatprep.subr.mxu0 0.0
    %3561 = vmatpush1.xpose.msra.mxu0 0.0
    %3562 = vmatprep.subr.mxu0 0.0
    %3563 = vmatpush1.xpose.msra.mxu0 0.0
    %3564 = vmatprep.subr.mxu0 0.0
    %3565 = vmatpush1.xpose.msra.mxu0 0.0
    %3566 = vmatprep.subr.mxu0 0.0
    %3567 = vmatpush1.xpose.msra.mxu0 0.0
    %3568 = vmatprep.subr.mxu0 0.0
    %3569 = vmatpush1.xpose.msra.mxu0 0.0
    %3570 = vmatprep.subr.mxu0 0.0
    %3571 = vmatpush1.xpose.msra.mxu0 0.0
    %3572 = vmatprep.subr.mxu0 0.0
    %3573 = vmatpush1.xpose.msra.mxu0 0.0
    %3574 = vmatprep.subr.mxu0 0.0
    %3575 = vmatpush1.xpose.msra.mxu0 0.0
    %3576 = vmatprep.subr.mxu0 0.0
    %3577 = vmatpush1.xpose.msra.mxu0 0.0
    %3578 = vmatprep.subr.mxu0 0.0
    %3579 = vmatpush1.xpose.msra.mxu0 0.0
    %3580 = vmatprep.subr.mxu0 0.0
    %3581 = vmatpush1.xpose.msra.mxu0 %v3548
    %3582 = vmatprep.subr.mxu0 0.0
    %3583 = vmatpush2.xpose.msra.mxu0 0.0
    %3584 = vmatprep.subr.mxu0 0.0
    %3585 = vmatpush2.xpose.msra.mxu0 0.0
    %3586 = vmatprep.subr.mxu0 0.0
    %3587 = vmatpush2.xpose.msra.mxu0 0.0
    %3588 = vmatprep.subr.mxu0 0.0
    %3589 = vmatpush2.xpose.msra.mxu0 0.0
    %3590 = vmatprep.subr.mxu0 0.0
    %3591 = vmatpush2.xpose.msra.mxu0 0.0
    %3592 = vmatprep.subr.mxu0 0.0
    %3593 = vmatpush2.xpose.msra.mxu0 0.0
    %3594 = vmatprep.subr.mxu0 0.0
    %3595 = vmatpush2.xpose.msra.mxu0 0.0
    %3596 = vmatprep.subr.mxu0 0.0
    %3597 = vmatpush2.xpose.msra.mxu0 0.0
    %3598 = vmatprep.subr.mxu0 0.0
    %3599 = vmatpush2.xpose.msra.mxu0 0.0
    %3600 = vmatprep.subr.mxu0 0.0
    %3601 = vmatpush2.xpose.msra.mxu0 0.0
    %3602 = vmatprep.subr.mxu0 0.0
    %3603 = vmatpush2.xpose.msra.mxu0 0.0
    %3604 = vmatprep.subr.mxu0 0.0
    %3605 = vmatpush2.xpose.msra.mxu0 0.0
    %3606 = vmatprep.subr.mxu0 0.0
    %3607 = vmatpush2.xpose.msra.mxu0 0.0
    %3608 = vmatprep.subr.mxu0 0.0
    %3609 = vmatpush2.xpose.msra.mxu0 0.0
    %3610 = vmatprep.subr.mxu0 0.0
    %3611 = vmatpush2.xpose.msra.mxu0 0.0
    %3612 = vmatprep.subr.mxu0 0.0
    %3613 = vmatpush2.xpose.msra.mxu0 0.0
    %3614 = vmatprep.mubr.f32.mxu0 0.0
    %3615 = vmatmul.mubr.f32.gmra.mxu0 %v3546
    %v3616 = vpop.f32.mrf.mxu0
    %v3617 = vadd.f32 0.0, %v3616
    %v3618 = vpop.f32.mrf.mxu0
    %3619 = vdwg.mxu0
    %3620 = vrot.lane.b32.xlu0 %v2878, 112
    %v3621 = vpop.permute.xlu0 %3620
    %3622 = vrot.lane.b32.xlu0 %v2878, 80
    %v3623 = vpop.permute.xlu0 %3622
    %v3624 = vsel %vm1268, %v3621, 0
    %v3626 = vsel %vm1268, %v3623, 0
    %3628 = vmatprep.subr.mxu0 0.0
    %3629 = vmatpush1.xpose.msra.mxu0 0.0
    %3630 = vmatprep.subr.mxu0 0.0
    %3631 = vmatpush1.xpose.msra.mxu0 0.0
    %3632 = vmatprep.subr.mxu0 0.0
    %3633 = vmatpush1.xpose.msra.mxu0 0.0
    %3634 = vmatprep.subr.mxu0 0.0
    %3635 = vmatpush1.xpose.msra.mxu0 0.0
    %3636 = vmatprep.subr.mxu0 0.0
    %3637 = vmatpush1.xpose.msra.mxu0 0.0
    %3638 = vmatprep.subr.mxu0 0.0
    %3639 = vmatpush1.xpose.msra.mxu0 0.0
    %3640 = vmatprep.subr.mxu0 0.0
    %3641 = vmatpush1.xpose.msra.mxu0 0.0
    %3642 = vmatprep.subr.mxu0 0.0
    %3643 = vmatpush1.xpose.msra.mxu0 0.0
    %3644 = vmatprep.subr.mxu0 0.0
    %3645 = vmatpush1.xpose.msra.mxu0 0.0
    %3646 = vmatprep.subr.mxu0 0.0
    %3647 = vmatpush1.xpose.msra.mxu0 0.0
    %3648 = vmatprep.subr.mxu0 0.0
    %3649 = vmatpush1.xpose.msra.mxu0 0.0
    %3650 = vmatprep.subr.mxu0 0.0
    %3651 = vmatpush1.xpose.msra.mxu0 0.0
    %3652 = vmatprep.subr.mxu0 0.0
    %3653 = vmatpush1.xpose.msra.mxu0 0.0
    %3654 = vmatprep.subr.mxu0 0.0
    %3655 = vmatpush1.xpose.msra.mxu0 0.0
    %3656 = vmatprep.subr.mxu0 0.0
    %3657 = vmatpush1.xpose.msra.mxu0 0.0
    %3658 = vmatprep.subr.mxu0 0.0
    %3659 = vmatpush1.xpose.msra.mxu0 %v3626
    %3660 = vmatprep.subr.mxu0 0.0
    %3661 = vmatpush2.xpose.msra.mxu0 0.0
    %3662 = vmatprep.subr.mxu0 0.0
    %3663 = vmatpush2.xpose.msra.mxu0 0.0
    %3664 = vmatprep.subr.mxu0 0.0
    %3665 = vmatpush2.xpose.msra.mxu0 0.0
    %3666 = vmatprep.subr.mxu0 0.0
    %3667 = vmatpush2.xpose.msra.mxu0 0.0
    %3668 = vmatprep.subr.mxu0 0.0
    %3669 = vmatpush2.xpose.msra.mxu0 0.0
    %3670 = vmatprep.subr.mxu0 0.0
    %3671 = vmatpush2.xpose.msra.mxu0 0.0
    %3672 = vmatprep.subr.mxu0 0.0
    %3673 = vmatpush2.xpose.msra.mxu0 0.0
    %3674 = vmatprep.subr.mxu0 0.0
    %3675 = vmatpush2.xpose.msra.mxu0 0.0
    %3676 = vmatprep.subr.mxu0 0.0
    %3677 = vmatpush2.xpose.msra.mxu0 0.0
    %3678 = vmatprep.subr.mxu0 0.0
    %3679 = vmatpush2.xpose.msra.mxu0 0.0
    %3680 = vmatprep.subr.mxu0 0.0
    %3681 = vmatpush2.xpose.msra.mxu0 0.0
    %3682 = vmatprep.subr.mxu0 0.0
    %3683 = vmatpush2.xpose.msra.mxu0 0.0
    %3684 = vmatprep.subr.mxu0 0.0
    %3685 = vmatpush2.xpose.msra.mxu0 0.0
    %3686 = vmatprep.subr.mxu0 0.0
    %3687 = vmatpush2.xpose.msra.mxu0 0.0
    %3688 = vmatprep.subr.mxu0 0.0
    %3689 = vmatpush2.xpose.msra.mxu0 0.0
    %3690 = vmatprep.subr.mxu0 0.0
    %3691 = vmatpush2.xpose.msra.mxu0 0.0
    %3692 = vmatprep.mubr.f32.mxu0 0.0
    %3693 = vmatmul.mubr.f32.gmra.mxu0 %v3624
    %v3694 = vpop.f32.mrf.mxu0
    %v3695 = vadd.f32 0.0, %v3694
    %v3696 = vpop.f32.mrf.mxu0
    %3697 = vdwg.mxu0
    %v3698 = vsel %vm3031, %v3617, -inf
    %3699 = vmax.xlane.f32.xlu0 %v3698
    %v3700 = vpop.xlane.xlu0 %3699
    %v3701 = vsel %vm3031, %v3695, -inf
    %3702 = vmax.xlane.f32.xlu0 %v3701
    %v3703 = vpop.xlane.xlu0 %3702
    %v3704 = vsub.f32 %v3617, %v3700
    %v3705 = vsub.f32 %v3695, %v3703
    %v3706 = vmul.f32 %v3704, 1.442695
    %v3707 = vpow.pop %v3706
    %v3708 = vmul.f32 %v3705, 1.442695
    %v3709 = vpow.pop %v3708
    %v3710 = vsel %vm3031, %v3707, 0.0
    %3711 = vadd.xlane.f32.xlu0 %v3710
    %v3712 = vpop.xlane.xlu0 %3711
    %v3713 = vsel %vm3031, %v3709, 0.0
    %3714 = vadd.xlane.f32.xlu0 %v3713
    %v3715 = vpop.xlane.xlu0 %3714
    %v3716 = vrcp.pop %v3712
    %v3717 = vrcp.pop %v3715
    %v3718 = vmul.f32 %v3707, %v3716
    %v3719 = vmul.f32 %v3709, %v3717
    %3720 = vrot.lane.b32.xlu0 %v2874, 48
    %v3721 = vpop.permute.xlu0 %3720
    %v3723 = vsel %vm3056, %v3718, 0
    %v3725 = vsel %vm3060, %v3721, 0
    %3727 = vmatprep.subr.mxu0 0.0
    %3728 = vmatpush1.msra.mxu0 0.0
    %3729 = vmatprep.subr.mxu0 0.0
    %3730 = vmatpush1.msra.mxu0 0.0
    %3731 = vmatprep.subr.mxu0 0.0
    %3732 = vmatpush1.msra.mxu0 0.0
    %3733 = vmatprep.subr.mxu0 0.0
    %3734 = vmatpush1.msra.mxu0 0.0
    %3735 = vmatprep.subr.mxu0 0.0
    %3736 = vmatpush1.msra.mxu0 0.0
    %3737 = vmatprep.subr.mxu0 0.0
    %3738 = vmatpush1.msra.mxu0 0.0
    %3739 = vmatprep.subr.mxu0 0.0
    %3740 = vmatpush1.msra.mxu0 0.0
    %3741 = vmatprep.subr.mxu0 0.0
    %3742 = vmatpush1.msra.mxu0 0.0
    %3743 = vmatprep.subr.mxu0 0.0
    %3744 = vmatpush1.msra.mxu0 0.0
    %3745 = vmatprep.subr.mxu0 0.0
    %3746 = vmatpush1.msra.mxu0 0.0
    %3747 = vmatprep.subr.mxu0 0.0
    %3748 = vmatpush1.msra.mxu0 0.0
    %3749 = vmatprep.subr.mxu0 0.0
    %3750 = vmatpush1.msra.mxu0 0.0
    %3751 = vmatprep.subr.mxu0 0.0
    %3752 = vmatpush1.msra.mxu0 0.0
    %3753 = vmatprep.subr.mxu0 0.0
    %3754 = vmatpush1.msra.mxu0 0.0
    %3755 = vmatprep.subr.mxu0 0.0
    %3756 = vmatpush1.msra.mxu0 0.0
    %3757 = vmatprep.subr.mxu0 0.0
    %3758 = vmatpush1.msra.mxu0 %v3725
    %3759 = vmatprep.subr.mxu0 0.0
    %3760 = vmatpush2.msra.mxu0 0.0
    %3761 = vmatprep.subr.mxu0 0.0
    %3762 = vmatpush2.msra.mxu0 0.0
    %3763 = vmatprep.subr.mxu0 0.0
    %3764 = vmatpush2.msra.mxu0 0.0
    %3765 = vmatprep.subr.mxu0 0.0
    %3766 = vmatpush2.msra.mxu0 0.0
    %3767 = vmatprep.subr.mxu0 0.0
    %3768 = vmatpush2.msra.mxu0 0.0
    %3769 = vmatprep.subr.mxu0 0.0
    %3770 = vmatpush2.msra.mxu0 0.0
    %3771 = vmatprep.subr.mxu0 0.0
    %3772 = vmatpush2.msra.mxu0 0.0
    %3773 = vmatprep.subr.mxu0 0.0
    %3774 = vmatpush2.msra.mxu0 0.0
    %3775 = vmatprep.subr.mxu0 0.0
    %3776 = vmatpush2.msra.mxu0 0.0
    %3777 = vmatprep.subr.mxu0 0.0
    %3778 = vmatpush2.msra.mxu0 0.0
    %3779 = vmatprep.subr.mxu0 0.0
    %3780 = vmatpush2.msra.mxu0 0.0
    %3781 = vmatprep.subr.mxu0 0.0
    %3782 = vmatpush2.msra.mxu0 0.0
    %3783 = vmatprep.subr.mxu0 0.0
    %3784 = vmatpush2.msra.mxu0 0.0
    %3785 = vmatprep.subr.mxu0 0.0
    %3786 = vmatpush2.msra.mxu0 0.0
    %3787 = vmatprep.subr.mxu0 0.0
    %3788 = vmatpush2.msra.mxu0 0.0
    %3789 = vmatprep.subr.mxu0 0.0
    %3790 = vmatpush2.msra.mxu0 0.0
    %3791 = vmatprep.mubr.f32.mxu0 0.0
    %3792 = vmatmul.mubr.f32.gmra.mxu0 %v3723
    %v3793 = vpop.f32.mrf.mxu0
    %v3794 = vadd.f32 0.0, %v3793
    %v3795 = vpop.f32.mrf.mxu0
    %3796 = vdwg.mxu0
    %3797 = vrot.lane.b32.xlu0 %v2878, 48
    %v3798 = vpop.permute.xlu0 %3797
    %v3800 = vsel %vm3056, %v3719, 0
    %v3802 = vsel %vm3060, %v3798, 0
    %3804 = vmatprep.subr.mxu0 0.0
    %3805 = vmatpush1.msra.mxu0 0.0
    %3806 = vmatprep.subr.mxu0 0.0
    %3807 = vmatpush1.msra.mxu0 0.0
    %3808 = vmatprep.subr.mxu0 0.0
    %3809 = vmatpush1.msra.mxu0 0.0
    %3810 = vmatprep.subr.mxu0 0.0
    %3811 = vmatpush1.msra.mxu0 0.0
    %3812 = vmatprep.subr.mxu0 0.0
    %3813 = vmatpush1.msra.mxu0 0.0
    %3814 = vmatprep.subr.mxu0 0.0
    %3815 = vmatpush1.msra.mxu0 0.0
    %3816 = vmatprep.subr.mxu0 0.0
    %3817 = vmatpush1.msra.mxu0 0.0
    %3818 = vmatprep.subr.mxu0 0.0
    %3819 = vmatpush1.msra.mxu0 0.0
    %3820 = vmatprep.subr.mxu0 0.0
    %3821 = vmatpush1.msra.mxu0 0.0
    %3822 = vmatprep.subr.mxu0 0.0
    %3823 = vmatpush1.msra.mxu0 0.0
    %3824 = vmatprep.subr.mxu0 0.0
    %3825 = vmatpush1.msra.mxu0 0.0
    %3826 = vmatprep.subr.mxu0 0.0
    %3827 = vmatpush1.msra.mxu0 0.0
    %3828 = vmatprep.subr.mxu0 0.0
    %3829 = vmatpush1.msra.mxu0 0.0
    %3830 = vmatprep.subr.mxu0 0.0
    %3831 = vmatpush1.msra.mxu0 0.0
    %3832 = vmatprep.subr.mxu0 0.0
    %3833 = vmatpush1.msra.mxu0 0.0
    %3834 = vmatprep.subr.mxu0 0.0
    %3835 = vmatpush1.msra.mxu0 %v3802
    %3836 = vmatprep.subr.mxu0 0.0
    %3837 = vmatpush2.msra.mxu0 0.0
    %3838 = vmatprep.subr.mxu0 0.0
    %3839 = vmatpush2.msra.mxu0 0.0
    %3840 = vmatprep.subr.mxu0 0.0
    %3841 = vmatpush2.msra.mxu0 0.0
    %3842 = vmatprep.subr.mxu0 0.0
    %3843 = vmatpush2.msra.mxu0 0.0
    %3844 = vmatprep.subr.mxu0 0.0
    %3845 = vmatpush2.msra.mxu0 0.0
    %3846 = vmatprep.subr.mxu0 0.0
    %3847 = vmatpush2.msra.mxu0 0.0
    %3848 = vmatprep.subr.mxu0 0.0
    %3849 = vmatpush2.msra.mxu0 0.0
    %3850 = vmatprep.subr.mxu0 0.0
    %3851 = vmatpush2.msra.mxu0 0.0
    %3852 = vmatprep.subr.mxu0 0.0
    %3853 = vmatpush2.msra.mxu0 0.0
    %3854 = vmatprep.subr.mxu0 0.0
    %3855 = vmatpush2.msra.mxu0 0.0
    %3856 = vmatprep.subr.mxu0 0.0
    %3857 = vmatpush2.msra.mxu0 0.0
    %3858 = vmatprep.subr.mxu0 0.0
    %3859 = vmatpush2.msra.mxu0 0.0
    %3860 = vmatprep.subr.mxu0 0.0
    %3861 = vmatpush2.msra.mxu0 0.0
    %3862 = vmatprep.subr.mxu0 0.0
    %3863 = vmatpush2.msra.mxu0 0.0
    %3864 = vmatprep.subr.mxu0 0.0
    %3865 = vmatpush2.msra.mxu0 0.0
    %3866 = vmatprep.subr.mxu0 0.0
    %3867 = vmatpush2.msra.mxu0 0.0
    %3868 = vmatprep.mubr.f32.mxu0 0.0
    %3869 = vmatmul.mubr.f32.gmra.mxu0 %v3800
    %v3870 = vpop.f32.mrf.mxu0
    %v3871 = vadd.f32 0.0, %v3870
    %v3872 = vpop.f32.mrf.mxu0
    %3873 = vdwg.mxu0
    %3874 = vrot.lane.b32.xlu0 %v2874, 104
    %v3875 = vpop.permute.xlu0 %3874
    %3876 = vrot.lane.b32.xlu0 %v2874, 72
    %v3877 = vpop.permute.xlu0 %3876
    %v3878 = vsel %vm1268, %v3875, 0
    %v3880 = vsel %vm1268, %v3877, 0
    %3882 = vmatprep.subr.mxu0 0.0
    %3883 = vmatpush1.xpose.msra.mxu0 0.0
    %3884 = vmatprep.subr.mxu0 0.0
    %3885 = vmatpush1.xpose.msra.mxu0 0.0
    %3886 = vmatprep.subr.mxu0 0.0
    %3887 = vmatpush1.xpose.msra.mxu0 0.0
    %3888 = vmatprep.subr.mxu0 0.0
    %3889 = vmatpush1.xpose.msra.mxu0 0.0
    %3890 = vmatprep.subr.mxu0 0.0
    %3891 = vmatpush1.xpose.msra.mxu0 0.0
    %3892 = vmatprep.subr.mxu0 0.0
    %3893 = vmatpush1.xpose.msra.mxu0 0.0
    %3894 = vmatprep.subr.mxu0 0.0
    %3895 = vmatpush1.xpose.msra.mxu0 0.0
    %3896 = vmatprep.subr.mxu0 0.0
    %3897 = vmatpush1.xpose.msra.mxu0 0.0
    %3898 = vmatprep.subr.mxu0 0.0
    %3899 = vmatpush1.xpose.msra.mxu0 0.0
    %3900 = vmatprep.subr.mxu0 0.0
    %3901 = vmatpush1.xpose.msra.mxu0 0.0
    %3902 = vmatprep.subr.mxu0 0.0
    %3903 = vmatpush1.xpose.msra.mxu0 0.0
    %3904 = vmatprep.subr.mxu0 0.0
    %3905 = vmatpush1.xpose.msra.mxu0 0.0
    %3906 = vmatprep.subr.mxu0 0.0
    %3907 = vmatpush1.xpose.msra.mxu0 0.0
    %3908 = vmatprep.subr.mxu0 0.0
    %3909 = vmatpush1.xpose.msra.mxu0 0.0
    %3910 = vmatprep.subr.mxu0 0.0
    %3911 = vmatpush1.xpose.msra.mxu0 0.0
    %3912 = vmatprep.subr.mxu0 0.0
    %3913 = vmatpush1.xpose.msra.mxu0 %v3880
    %3914 = vmatprep.subr.mxu0 0.0
    %3915 = vmatpush2.xpose.msra.mxu0 0.0
    %3916 = vmatprep.subr.mxu0 0.0
    %3917 = vmatpush2.xpose.msra.mxu0 0.0
    %3918 = vmatprep.subr.mxu0 0.0
    %3919 = vmatpush2.xpose.msra.mxu0 0.0
    %3920 = vmatprep.subr.mxu0 0.0
    %3921 = vmatpush2.xpose.msra.mxu0 0.0
    %3922 = vmatprep.subr.mxu0 0.0
    %3923 = vmatpush2.xpose.msra.mxu0 0.0
    %3924 = vmatprep.subr.mxu0 0.0
    %3925 = vmatpush2.xpose.msra.mxu0 0.0
    %3926 = vmatprep.subr.mxu0 0.0
    %3927 = vmatpush2.xpose.msra.mxu0 0.0
    %3928 = vmatprep.subr.mxu0 0.0
    %3929 = vmatpush2.xpose.msra.mxu0 0.0
    %3930 = vmatprep.subr.mxu0 0.0
    %3931 = vmatpush2.xpose.msra.mxu0 0.0
    %3932 = vmatprep.subr.mxu0 0.0
    %3933 = vmatpush2.xpose.msra.mxu0 0.0
    %3934 = vmatprep.subr.mxu0 0.0
    %3935 = vmatpush2.xpose.msra.mxu0 0.0
    %3936 = vmatprep.subr.mxu0 0.0
    %3937 = vmatpush2.xpose.msra.mxu0 0.0
    %3938 = vmatprep.subr.mxu0 0.0
    %3939 = vmatpush2.xpose.msra.mxu0 0.0
    %3940 = vmatprep.subr.mxu0 0.0
    %3941 = vmatpush2.xpose.msra.mxu0 0.0
    %3942 = vmatprep.subr.mxu0 0.0
    %3943 = vmatpush2.xpose.msra.mxu0 0.0
    %3944 = vmatprep.subr.mxu0 0.0
    %3945 = vmatpush2.xpose.msra.mxu0 0.0
    %3946 = vmatprep.mubr.f32.mxu0 0.0
    %3947 = vmatmul.mubr.f32.gmra.mxu0 %v3878
    %v3948 = vpop.f32.mrf.mxu0
    %v3949 = vadd.f32 0.0, %v3948
    %v3950 = vpop.f32.mrf.mxu0
    %3951 = vdwg.mxu0
    %3952 = vrot.lane.b32.xlu0 %v2878, 104
    %v3953 = vpop.permute.xlu0 %3952
    %3954 = vrot.lane.b32.xlu0 %v2878, 72
    %v3955 = vpop.permute.xlu0 %3954
    %v3956 = vsel %vm1268, %v3953, 0
    %v3958 = vsel %vm1268, %v3955, 0
    %3960 = vmatprep.subr.mxu0 0.0
    %3961 = vmatpush1.xpose.msra.mxu0 0.0
    %3962 = vmatprep.subr.mxu0 0.0
    %3963 = vmatpush1.xpose.msra.mxu0 0.0
    %3964 = vmatprep.subr.mxu0 0.0
    %3965 = vmatpush1.xpose.msra.mxu0 0.0
    %3966 = vmatprep.subr.mxu0 0.0
    %3967 = vmatpush1.xpose.msra.mxu0 0.0
    %3968 = vmatprep.subr.mxu0 0.0
    %3969 = vmatpush1.xpose.msra.mxu0 0.0
    %3970 = vmatprep.subr.mxu0 0.0
    %3971 = vmatpush1.xpose.msra.mxu0 0.0
    %3972 = vmatprep.subr.mxu0 0.0
    %3973 = vmatpush1.xpose.msra.mxu0 0.0
    %3974 = vmatprep.subr.mxu0 0.0
    %3975 = vmatpush1.xpose.msra.mxu0 0.0
    %3976 = vmatprep.subr.mxu0 0.0
    %3977 = vmatpush1.xpose.msra.mxu0 0.0
    %3978 = vmatprep.subr.mxu0 0.0
    %3979 = vmatpush1.xpose.msra.mxu0 0.0
    %3980 = vmatprep.subr.mxu0 0.0
    %3981 = vmatpush1.xpose.msra.mxu0 0.0
    %3982 = vmatprep.subr.mxu0 0.0
    %3983 = vmatpush1.xpose.msra.mxu0 0.0
    %3984 = vmatprep.subr.mxu0 0.0
    %3985 = vmatpush1.xpose.msra.mxu0 0.0
    %3986 = vmatprep.subr.mxu0 0.0
    %3987 = vmatpush1.xpose.msra.mxu0 0.0
    %3988 = vmatprep.subr.mxu0 0.0
    %3989 = vmatpush1.xpose.msra.mxu0 0.0
    %3990 = vmatprep.subr.mxu0 0.0
    %3991 = vmatpush1.xpose.msra.mxu0 %v3958
    %3992 = vmatprep.subr.mxu0 0.0
    %3993 = vmatpush2.xpose.msra.mxu0 0.0
    %3994 = vmatprep.subr.mxu0 0.0
    %3995 = vmatpush2.xpose.msra.mxu0 0.0
    %3996 = vmatprep.subr.mxu0 0.0
    %3997 = vmatpush2.xpose.msra.mxu0 0.0
    %3998 = vmatprep.subr.mxu0 0.0
    %3999 = vmatpush2.xpose.msra.mxu0 0.0
    %4000 = vmatprep.subr.mxu0 0.0
    %4001 = vmatpush2.xpose.msra.mxu0 0.0
    %4002 = vmatprep.subr.mxu0 0.0
    %4003 = vmatpush2.xpose.msra.mxu0 0.0
    %4004 = vmatprep.subr.mxu0 0.0
    %4005 = vmatpush2.xpose.msra.mxu0 0.0
    %4006 = vmatprep.subr.mxu0 0.0
    %4007 = vmatpush2.xpose.msra.mxu0 0.0
    %4008 = vmatprep.subr.mxu0 0.0
    %4009 = vmatpush2.xpose.msra.mxu0 0.0
    %4010 = vmatprep.subr.mxu0 0.0
    %4011 = vmatpush2.xpose.msra.mxu0 0.0
    %4012 = vmatprep.subr.mxu0 0.0
    %4013 = vmatpush2.xpose.msra.mxu0 0.0
    %4014 = vmatprep.subr.mxu0 0.0
    %4015 = vmatpush2.xpose.msra.mxu0 0.0
    %4016 = vmatprep.subr.mxu0 0.0
    %4017 = vmatpush2.xpose.msra.mxu0 0.0
    %4018 = vmatprep.subr.mxu0 0.0
    %4019 = vmatpush2.xpose.msra.mxu0 0.0
    %4020 = vmatprep.subr.mxu0 0.0
    %4021 = vmatpush2.xpose.msra.mxu0 0.0
    %4022 = vmatprep.subr.mxu0 0.0
    %4023 = vmatpush2.xpose.msra.mxu0 0.0
    %4024 = vmatprep.mubr.f32.mxu0 0.0
    %4025 = vmatmul.mubr.f32.gmra.mxu0 %v3956
    %v4026 = vpop.f32.mrf.mxu0
    %v4027 = vadd.f32 0.0, %v4026
    %v4028 = vpop.f32.mrf.mxu0
    %4029 = vdwg.mxu0
    %v4030 = vsel %vm3031, %v3949, -inf
    %4031 = vmax.xlane.f32.xlu0 %v4030
    %v4032 = vpop.xlane.xlu0 %4031
    %v4033 = vsel %vm3031, %v4027, -inf
    %4034 = vmax.xlane.f32.xlu0 %v4033
    %v4035 = vpop.xlane.xlu0 %4034
    %v4036 = vsub.f32 %v3949, %v4032
    %v4037 = vsub.f32 %v4027, %v4035
    %v4038 = vmul.f32 %v4036, 1.442695
    %v4039 = vpow.pop %v4038
    %v4040 = vmul.f32 %v4037, 1.442695
    %v4041 = vpow.pop %v4040
    %v4042 = vsel %vm3031, %v4039, 0.0
    %4043 = vadd.xlane.f32.xlu0 %v4042
    %v4044 = vpop.xlane.xlu0 %4043
    %v4045 = vsel %vm3031, %v4041, 0.0
    %4046 = vadd.xlane.f32.xlu0 %v4045
    %v4047 = vpop.xlane.xlu0 %4046
    %v4048 = vrcp.pop %v4044
    %v4049 = vrcp.pop %v4047
    %v4050 = vmul.f32 %v4039, %v4048
    %v4051 = vmul.f32 %v4041, %v4049
    %4052 = vrot.lane.b32.xlu0 %v2874, 40
    %v4053 = vpop.permute.xlu0 %4052
    %v4055 = vsel %vm3056, %v4050, 0
    %v4057 = vsel %vm3060, %v4053, 0
    %4059 = vmatprep.subr.mxu0 0.0
    %4060 = vmatpush1.msra.mxu0 0.0
    %4061 = vmatprep.subr.mxu0 0.0
    %4062 = vmatpush1.msra.mxu0 0.0
    %4063 = vmatprep.subr.mxu0 0.0
    %4064 = vmatpush1.msra.mxu0 0.0
    %4065 = vmatprep.subr.mxu0 0.0
    %4066 = vmatpush1.msra.mxu0 0.0
    %4067 = vmatprep.subr.mxu0 0.0
    %4068 = vmatpush1.msra.mxu0 0.0
    %4069 = vmatprep.subr.mxu0 0.0
    %4070 = vmatpush1.msra.mxu0 0.0
    %4071 = vmatprep.subr.mxu0 0.0
    %4072 = vmatpush1.msra.mxu0 0.0
    %4073 = vmatprep.subr.mxu0 0.0
    %4074 = vmatpush1.msra.mxu0 0.0
    %4075 = vmatprep.subr.mxu0 0.0
    %4076 = vmatpush1.msra.mxu0 0.0
    %4077 = vmatprep.subr.mxu0 0.0
    %4078 = vmatpush1.msra.mxu0 0.0
    %4079 = vmatprep.subr.mxu0 0.0
    %4080 = vmatpush1.msra.mxu0 0.0
    %4081 = vmatprep.subr.mxu0 0.0
    %4082 = vmatpush1.msra.mxu0 0.0
    %4083 = vmatprep.subr.mxu0 0.0
    %4084 = vmatpush1.msra.mxu0 0.0
    %4085 = vmatprep.subr.mxu0 0.0
    %4086 = vmatpush1.msra.mxu0 0.0
    %4087 = vmatprep.subr.mxu0 0.0
    %4088 = vmatpush1.msra.mxu0 0.0
    %4089 = vmatprep.subr.mxu0 0.0
    %4090 = vmatpush1.msra.mxu0 %v4057
    %4091 = vmatprep.subr.mxu0 0.0
    %4092 = vmatpush2.msra.mxu0 0.0
    %4093 = vmatprep.subr.mxu0 0.0
    %4094 = vmatpush2.msra.mxu0 0.0
    %4095 = vmatprep.subr.mxu0 0.0
    %4096 = vmatpush2.msra.mxu0 0.0
    %4097 = vmatprep.subr.mxu0 0.0
    %4098 = vmatpush2.msra.mxu0 0.0
    %4099 = vmatprep.subr.mxu0 0.0
    %4100 = vmatpush2.msra.mxu0 0.0
    %4101 = vmatprep.subr.mxu0 0.0
    %4102 = vmatpush2.msra.mxu0 0.0
    %4103 = vmatprep.subr.mxu0 0.0
    %4104 = vmatpush2.msra.mxu0 0.0
    %4105 = vmatprep.subr.mxu0 0.0
    %4106 = vmatpush2.msra.mxu0 0.0
    %4107 = vmatprep.subr.mxu0 0.0
    %4108 = vmatpush2.msra.mxu0 0.0
    %4109 = vmatprep.subr.mxu0 0.0
    %4110 = vmatpush2.msra.mxu0 0.0
    %4111 = vmatprep.subr.mxu0 0.0
    %4112 = vmatpush2.msra.mxu0 0.0
    %4113 = vmatprep.subr.mxu0 0.0
    %4114 = vmatpush2.msra.mxu0 0.0
    %4115 = vmatprep.subr.mxu0 0.0
    %4116 = vmatpush2.msra.mxu0 0.0
    %4117 = vmatprep.subr.mxu0 0.0
    %4118 = vmatpush2.msra.mxu0 0.0
    %4119 = vmatprep.subr.mxu0 0.0
    %4120 = vmatpush2.msra.mxu0 0.0
    %4121 = vmatprep.subr.mxu0 0.0
    %4122 = vmatpush2.msra.mxu0 0.0
    %4123 = vmatprep.mubr.f32.mxu0 0.0
    %4124 = vmatmul.mubr.f32.gmra.mxu0 %v4055
    %v4125 = vpop.f32.mrf.mxu0
    %v4126 = vadd.f32 0.0, %v4125
    %v4127 = vpop.f32.mrf.mxu0
    %4128 = vdwg.mxu0
    %4129 = vrot.lane.b32.xlu0 %v2878, 40
    %v4130 = vpop.permute.xlu0 %4129
    %v4132 = vsel %vm3056, %v4051, 0
    %v4134 = vsel %vm3060, %v4130, 0
    %4136 = vmatprep.subr.mxu0 0.0
    %4137 = vmatpush1.msra.mxu0 0.0
    %4138 = vmatprep.subr.mxu0 0.0
    %4139 = vmatpush1.msra.mxu0 0.0
    %4140 = vmatprep.subr.mxu0 0.0
    %4141 = vmatpush1.msra.mxu0 0.0
    %4142 = vmatprep.subr.mxu0 0.0
    %4143 = vmatpush1.msra.mxu0 0.0
    %4144 = vmatprep.subr.mxu0 0.0
    %4145 = vmatpush1.msra.mxu0 0.0
    %4146 = vmatprep.subr.mxu0 0.0
    %4147 = vmatpush1.msra.mxu0 0.0
    %4148 = vmatprep.subr.mxu0 0.0
    %4149 = vmatpush1.msra.mxu0 0.0
    %4150 = vmatprep.subr.mxu0 0.0
    %4151 = vmatpush1.msra.mxu0 0.0
    %4152 = vmatprep.subr.mxu0 0.0
    %4153 = vmatpush1.msra.mxu0 0.0
    %4154 = vmatprep.subr.mxu0 0.0
    %4155 = vmatpush1.msra.mxu0 0.0
    %4156 = vmatprep.subr.mxu0 0.0
    %4157 = vmatpush1.msra.mxu0 0.0
    %4158 = vmatprep.subr.mxu0 0.0
    %4159 = vmatpush1.msra.mxu0 0.0
    %4160 = vmatprep.subr.mxu0 0.0
    %4161 = vmatpush1.msra.mxu0 0.0
    %4162 = vmatprep.subr.mxu0 0.0
    %4163 = vmatpush1.msra.mxu0 0.0
    %4164 = vmatprep.subr.mxu0 0.0
    %4165 = vmatpush1.msra.mxu0 0.0
    %4166 = vmatprep.subr.mxu0 0.0
    %4167 = vmatpush1.msra.mxu0 %v4134
    %4168 = vmatprep.subr.mxu0 0.0
    %4169 = vmatpush2.msra.mxu0 0.0
    %4170 = vmatprep.subr.mxu0 0.0
    %4171 = vmatpush2.msra.mxu0 0.0
    %4172 = vmatprep.subr.mxu0 0.0
    %4173 = vmatpush2.msra.mxu0 0.0
    %4174 = vmatprep.subr.mxu0 0.0
    %4175 = vmatpush2.msra.mxu0 0.0
    %4176 = vmatprep.subr.mxu0 0.0
    %4177 = vmatpush2.msra.mxu0 0.0
    %4178 = vmatprep.subr.mxu0 0.0
    %4179 = vmatpush2.msra.mxu0 0.0
    %4180 = vmatprep.subr.mxu0 0.0
    %4181 = vmatpush2.msra.mxu0 0.0
    %4182 = vmatprep.subr.mxu0 0.0
    %4183 = vmatpush2.msra.mxu0 0.0
    %4184 = vmatprep.subr.mxu0 0.0
    %4185 = vmatpush2.msra.mxu0 0.0
    %4186 = vmatprep.subr.mxu0 0.0
    %4187 = vmatpush2.msra.mxu0 0.0
    %4188 = vmatprep.subr.mxu0 0.0
    %4189 = vmatpush2.msra.mxu0 0.0
    %4190 = vmatprep.subr.mxu0 0.0
    %4191 = vmatpush2.msra.mxu0 0.0
    %4192 = vmatprep.subr.mxu0 0.0
    %4193 = vmatpush2.msra.mxu0 0.0
    %4194 = vmatprep.subr.mxu0 0.0
    %4195 = vmatpush2.msra.mxu0 0.0
    %4196 = vmatprep.subr.mxu0 0.0
    %4197 = vmatpush2.msra.mxu0 0.0
    %4198 = vmatprep.subr.mxu0 0.0
    %4199 = vmatpush2.msra.mxu0 0.0
    %4200 = vmatprep.mubr.f32.mxu0 0.0
    %4201 = vmatmul.mubr.f32.gmra.mxu0 %v4132
    %v4202 = vpop.f32.mrf.mxu0
    %v4203 = vadd.f32 0.0, %v4202
    %v4204 = vpop.f32.mrf.mxu0
    %4205 = vdwg.mxu0
    %4208 = vrot.lane.b32.xlu0 %v3462, 8
    %v4209 = vpop.permute.xlu0 %4208
    %4210 = vrot.lane.b32.xlu0 %v3539, 8
    %v4211 = vpop.permute.xlu0 %4210
    %4216 = vrot.lane.b32.xlu0 %v3794, 16
    %v4217 = vpop.permute.xlu0 %4216
    %4218 = vrot.lane.b32.xlu0 %v3871, 16
    %v4219 = vpop.permute.xlu0 %4218
    %4224 = vrot.lane.b32.xlu0 %v4126, 24
    %v4225 = vpop.permute.xlu0 %4224
    %4226 = vrot.lane.b32.xlu0 %v4203, 24
    %v4227 = vpop.permute.xlu0 %4226
    %v4230 = vsel %vm1268, %v3130, %v4209
    %v4231 = vsel %vm1268, %v3207, %v4211
    %v4232 = vsel %vm2610, %v4230, %v4217
    %v4233 = vsel %vm2610, %v4231, %v4219
    %v4234 = vsel %vm2613, %v4232, %v4225
    %v4235 = vsel %vm2613, %v4233, %v4227
    %v4236 = vld [vmem:[%s12] sm:$0xff]
    %v4237 = vld [vmem:[%s12 + $0x8] sm:$0xff]
    %v4238 = vld [vmem:[%s12 + $0x10] sm:$0xff]
    %v4239 = vld [vmem:[%s12 + $0x18] sm:$0xff]
    %v4240 = vld [vmem:[%s13] sm:$0x1]
    %v4242 = vlaneseq
    %v4243 = vshrl.u32 %v4242, 7
    %v4244 = vsub.s32 0, %v4243
    %v4245 = vrot.slane %v4240, %v4244
    %v4249 = vcombine.low %v4234, %v4235
    %v4250 = vsel %vm321, %v4249, 0
    %4252 = vmatprep.subr.mxu0 0.0
    %4253 = vmatpush1.msra.mxu0 0.0
    %4254 = vmatprep.subr.mxu0 0.0
    %4255 = vmatpush1.msra.mxu0 0.0
    %4256 = vmatprep.subr.mxu0 0.0
    %4257 = vmatpush1.msra.mxu0 0.0
    %4258 = vmatprep.subr.mxu0 0.0
    %4259 = vmatpush1.msra.mxu0 0.0
    %4260 = vmatprep.subr.mxu0 0.0
    %4261 = vmatpush1.msra.mxu0 0.0
    %4262 = vmatprep.subr.mxu0 0.0
    %4263 = vmatpush1.msra.mxu0 0.0
    %4264 = vmatprep.subr.mxu0 0.0
    %4265 = vmatpush1.msra.mxu0 0.0
    %4266 = vmatprep.subr.mxu0 0.0
    %4267 = vmatpush1.msra.mxu0 0.0
    %4268 = vmatprep.subr.mxu0 0.0
    %4269 = vmatpush1.msra.mxu0 0.0
    %4270 = vmatprep.subr.mxu0 0.0
    %4271 = vmatpush1.msra.mxu0 0.0
    %4272 = vmatprep.subr.mxu0 0.0
    %4273 = vmatpush1.msra.mxu0 0.0
    %4274 = vmatprep.subr.mxu0 0.0
    %4275 = vmatpush1.msra.mxu0 0.0
    %4276 = vmatprep.subr.mxu0 0.0
    %4277 = vmatpush1.msra.mxu0 %v4239
    %4278 = vmatprep.subr.mxu0 0.0
    %4279 = vmatpush1.msra.mxu0 %v4238
    %4280 = vmatprep.subr.mxu0 0.0
    %4281 = vmatpush1.msra.mxu0 %v4237
    %4282 = vmatprep.subr.mxu0 0.0
    %4283 = vmatpush1.msra.mxu0 %v4236
    %4284 = vmatprep.subr.mxu0 0.0
    %4285 = vmatpush2.msra.mxu0 0.0
    %4286 = vmatprep.subr.mxu0 0.0
    %4287 = vmatpush2.msra.mxu0 0.0
    %4288 = vmatprep.subr.mxu0 0.0
    %4289 = vmatpush2.msra.mxu0 0.0
    %4290 = vmatprep.subr.mxu0 0.0
    %4291 = vmatpush2.msra.mxu0 0.0
    %4292 = vmatprep.subr.mxu0 0.0
    %4293 = vmatpush2.msra.mxu0 0.0
    %4294 = vmatprep.subr.mxu0 0.0
    %4295 = vmatpush2.msra.mxu0 0.0
    %4296 = vmatprep.subr.mxu0 0.0
    %4297 = vmatpush2.msra.mxu0 0.0
    %4298 = vmatprep.subr.mxu0 0.0
    %4299 = vmatpush2.msra.mxu0 0.0
    %4300 = vmatprep.subr.mxu0 0.0
    %4301 = vmatpush2.msra.mxu0 0.0
    %4302 = vmatprep.subr.mxu0 0.0
    %4303 = vmatpush2.msra.mxu0 0.0
    %4304 = vmatprep.subr.mxu0 0.0
    %4305 = vmatpush2.msra.mxu0 0.0
    %4306 = vmatprep.subr.mxu0 0.0
    %4307 = vmatpush2.msra.mxu0 0.0
    %4308 = vmatprep.subr.mxu0 0.0
    %4309 = vmatpush2.msra.mxu0 0.0
    %4310 = vmatprep.subr.mxu0 0.0
    %4311 = vmatpush2.msra.mxu0 0.0
    %4312 = vmatprep.subr.mxu0 0.0
    %4313 = vmatpush2.msra.mxu0 0.0
    %4314 = vmatprep.subr.mxu0 0.0
    %4315 = vmatpush2.msra.mxu0 0.0
    %4316 = vmatprep.mubr.f32.mxu0 0.0
    %4317 = vmatmul.mubr.f32.gmra.mxu0 %v4250
    %v4318 = vpop.f32.mrf.mxu0
    %v4319 = vadd.f32 %v4245, %v4318
    %v4320 = vpop.f32.mrf.mxu0
    %4321 = vdwg.mxu0
    %4322 = vst.msk [vmem:[#allocation4] sm:$0xff] %vm321, %v4319
    %v4323 = vld [vmem:[%s19] sm:$0x1]
    %v4325 = vlaneseq
    %v4326 = vshrl.u32 %v4325, 7
    %v4327 = vsub.s32 0, %v4326
    %v4328 = vrot.slane %v4323, %v4327
    %v4330 = vadd.f32 %v4328, 0.0
    %v4331 = vld [vmem:[#allocation4] ss:$4 sm:$0x3]
    %v4332 = vld [vmem:[%s18] sm:$0xff]
    %v4333 = vld [vmem:[%s18 + $0x8] sm:$0xff]
    %v4334 = vld [vmem:[%s18 + $0x10] sm:$0xff]
    %v4335 = vld [vmem:[%s18 + $0x18] sm:$0xff]
    %v4337 = vsel %vm321, %v4331, 0
    %4339 = vmatprep.subr.mxu0 0.0
    %4340 = vmatpush1.msra.mxu0 0.0
    %4341 = vmatprep.subr.mxu0 0.0
    %4342 = vmatpush1.msra.mxu0 0.0
    %4343 = vmatprep.subr.mxu0 0.0
    %4344 = vmatpush1.msra.mxu0 0.0
    %4345 = vmatprep.subr.mxu0 0.0
    %4346 = vmatpush1.msra.mxu0 0.0
    %4347 = vmatprep.subr.mxu0 0.0
    %4348 = vmatpush1.msra.mxu0 0.0
    %4349 = vmatprep.subr.mxu0 0.0
    %4350 = vmatpush1.msra.mxu0 0.0
    %4351 = vmatprep.subr.mxu0 0.0
    %4352 = vmatpush1.msra.mxu0 0.0
    %4353 = vmatprep.subr.mxu0 0.0
    %4354 = vmatpush1.msra.mxu0 0.0
    %4355 = vmatprep.subr.mxu0 0.0
    %4356 = vmatpush1.msra.mxu0 0.0
    %4357 = vmatprep.subr.mxu0 0.0
    %4358 = vmatpush1.msra.mxu0 0.0
    %4359 = vmatprep.subr.mxu0 0.0
    %4360 = vmatpush1.msra.mxu0 0.0
    %4361 = vmatprep.subr.mxu0 0.0
    %4362 = vmatpush1.msra.mxu0 0.0
    %4363 = vmatprep.subr.mxu0 0.0
    %4364 = vmatpush1.msra.mxu0 %v4335
    %4365 = vmatprep.subr.mxu0 0.0
    %4366 = vmatpush1.msra.mxu0 %v4334
    %4367 = vmatprep.subr.mxu0 0.0
    %4368 = vmatpush1.msra.mxu0 %v4333
    %4369 = vmatprep.subr.mxu0 0.0
    %4370 = vmatpush1.msra.mxu0 %v4332
    %4371 = vmatprep.subr.mxu0 0.0
    %4372 = vmatpush2.msra.mxu0 0.0
    %4373 = vmatprep.subr.mxu0 0.0
    %4374 = vmatpush2.msra.mxu0 0.0
    %4375 = vmatprep.subr.mxu0 0.0
    %4376 = vmatpush2.msra.mxu0 0.0
    %4377 = vmatprep.subr.mxu0 0.0
    %4378 = vmatpush2.msra.mxu0 0.0
    %4379 = vmatprep.subr.mxu0 0.0
    %4380 = vmatpush2.msra.mxu0 0.0
    %4381 = vmatprep.subr.mxu0 0.0
    %4382 = vmatpush2.msra.mxu0 0.0
    %4383 = vmatprep.subr.mxu0 0.0
    %4384 = vmatpush2.msra.mxu0 0.0
    %4385 = vmatprep.subr.mxu0 0.0
    %4386 = vmatpush2.msra.mxu0 0.0
    %4387 = vmatprep.subr.mxu0 0.0
    %4388 = vmatpush2.msra.mxu0 0.0
    %4389 = vmatprep.subr.mxu0 0.0
    %4390 = vmatpush2.msra.mxu0 0.0
    %4391 = vmatprep.subr.mxu0 0.0
    %4392 = vmatpush2.msra.mxu0 0.0
    %4393 = vmatprep.subr.mxu0 0.0
    %4394 = vmatpush2.msra.mxu0 0.0
    %4395 = vmatprep.subr.mxu0 0.0
    %4396 = vmatpush2.msra.mxu0 0.0
    %4397 = vmatprep.subr.mxu0 0.0
    %4398 = vmatpush2.msra.mxu0 0.0
    %4399 = vmatprep.subr.mxu0 0.0
    %4400 = vmatpush2.msra.mxu0 0.0
    %4401 = vmatprep.subr.mxu0 0.0
    %4402 = vmatpush2.msra.mxu0 0.0
    %4403 = vmatprep.mubr.f32.mxu0 0.0
    %4404 = vmatmul.mubr.f32.gmra.mxu0 %v4337
    %v4405 = vpop.f32.mrf.mxu0
    %v4406 = vadd.f32 0.0, %v4405
    %v4407 = vpop.f32.mrf.mxu0
    %4408 = vdwg.mxu0
    %v4409 = vadd.f32 %v4330, %v4406
    %s4410 = scalar_lea.vmem [#allocation4], 1
    %v4411 = vld [vmem:[%s4410] ss:$4 sm:$0x3]
    %v4412 = vld [vmem:[%s18 + $0x20] sm:$0xff]
    %v4413 = vld [vmem:[%s18 + $0x28] sm:$0xff]
    %v4414 = vld [vmem:[%s18 + $0x30] sm:$0xff]
    %v4415 = vld [vmem:[%s18 + $0x38] sm:$0xff]
    %v4417 = vsel %vm321, %v4411, 0
    %4419 = vmatprep.subr.mxu0 0.0
    %4420 = vmatpush1.msra.mxu0 0.0
    %4421 = vmatprep.subr.mxu0 0.0
    %4422 = vmatpush1.msra.mxu0 0.0
    %4423 = vmatprep.subr.mxu0 0.0
    %4424 = vmatpush1.msra.mxu0 0.0
    %4425 = vmatprep.subr.mxu0 0.0
    %4426 = vmatpush1.msra.mxu0 0.0
    %4427 = vmatprep.subr.mxu0 0.0
    %4428 = vmatpush1.msra.mxu0 0.0
    %4429 = vmatprep.subr.mxu0 0.0
    %4430 = vmatpush1.msra.mxu0 0.0
    %4431 = vmatprep.subr.mxu0 0.0
    %4432 = vmatpush1.msra.mxu0 0.0
    %4433 = vmatprep.subr.mxu0 0.0
    %4434 = vmatpush1.msra.mxu0 0.0
    %4435 = vmatprep.subr.mxu0 0.0
    %4436 = vmatpush1.msra.mxu0 0.0
    %4437 = vmatprep.subr.mxu0 0.0
    %4438 = vmatpush1.msra.mxu0 0.0
    %4439 = vmatprep.subr.mxu0 0.0
    %4440 = vmatpush1.msra.mxu0 0.0
    %4441 = vmatprep.subr.mxu0 0.0
    %4442 = vmatpush1.msra.mxu0 0.0
    %4443 = vmatprep.subr.mxu0 0.0
    %4444 = vmatpush1.msra.mxu0 %v4415
    %4445 = vmatprep.subr.mxu0 0.0
    %4446 = vmatpush1.msra.mxu0 %v4414
    %4447 = vmatprep.subr.mxu0 0.0
    %4448 = vmatpush1.msra.mxu0 %v4413
    %4449 = vmatprep.subr.mxu0 0.0
    %4450 = vmatpush1.msra.mxu0 %v4412
    %4451 = vmatprep.subr.mxu0 0.0
    %4452 = vmatpush2.msra.mxu0 0.0
    %4453 = vmatprep.subr.mxu0 0.0
    %4454 = vmatpush2.msra.mxu0 0.0
    %4455 = vmatprep.subr.mxu0 0.0
    %4456 = vmatpush2.msra.mxu0 0.0
    %4457 = vmatprep.subr.mxu0 0.0
    %4458 = vmatpush2.msra.mxu0 0.0
    %4459 = vmatprep.subr.mxu0 0.0
    %4460 = vmatpush2.msra.mxu0 0.0
    %4461 = vmatprep.subr.mxu0 0.0
    %4462 = vmatpush2.msra.mxu0 0.0
    %4463 = vmatprep.subr.mxu0 0.0
    %4464 = vmatpush2.msra.mxu0 0.0
    %4465 = vmatprep.subr.mxu0 0.0
    %4466 = vmatpush2.msra.mxu0 0.0
    %4467 = vmatprep.subr.mxu0 0.0
    %4468 = vmatpush2.msra.mxu0 0.0
    %4469 = vmatprep.subr.mxu0 0.0
    %4470 = vmatpush2.msra.mxu0 0.0
    %4471 = vmatprep.subr.mxu0 0.0
    %4472 = vmatpush2.msra.mxu0 0.0
    %4473 = vmatprep.subr.mxu0 0.0
    %4474 = vmatpush2.msra.mxu0 0.0
    %4475 = vmatprep.subr.mxu0 0.0
    %4476 = vmatpush2.msra.mxu0 0.0
    %4477 = vmatprep.subr.mxu0 0.0
    %4478 = vmatpush2.msra.mxu0 0.0
    %4479 = vmatprep.subr.mxu0 0.0
    %4480 = vmatpush2.msra.mxu0 0.0
    %4481 = vmatprep.subr.mxu0 0.0
    %4482 = vmatpush2.msra.mxu0 0.0
    %4483 = vmatprep.mubr.f32.mxu0 0.0
    %4484 = vmatmul.mubr.f32.gmra.mxu0 %v4417
    %v4485 = vpop.f32.mrf.mxu0
    %v4486 = vadd.f32 0.0, %v4485
    %v4487 = vpop.f32.mrf.mxu0
    %4488 = vdwg.mxu0
    %v4489 = vadd.f32 %v4409, %v4486
    %s4490 = scalar_lea.vmem [#allocation4], 2
    %v4491 = vld [vmem:[%s4490] ss:$4 sm:$0x3]
    %v4492 = vld [vmem:[%s18 + $0x40] sm:$0xff]
    %v4493 = vld [vmem:[%s18 + $0x48] sm:$0xff]
    %v4494 = vld [vmem:[%s18 + $0x50] sm:$0xff]
    %v4495 = vld [vmem:[%s18 + $0x58] sm:$0xff]
    %v4497 = vsel %vm321, %v4491, 0
    %4499 = vmatprep.subr.mxu0 0.0
    %4500 = vmatpush1.msra.mxu0 0.0
    %4501 = vmatprep.subr.mxu0 0.0
    %4502 = vmatpush1.msra.mxu0 0.0
    %4503 = vmatprep.subr.mxu0 0.0
    %4504 = vmatpush1.msra.mxu0 0.0
    %4505 = vmatprep.subr.mxu0 0.0
    %4506 = vmatpush1.msra.mxu0 0.0
    %4507 = vmatprep.subr.mxu0 0.0
    %4508 = vmatpush1.msra.mxu0 0.0
    %4509 = vmatprep.subr.mxu0 0.0
    %4510 = vmatpush1.msra.mxu0 0.0
    %4511 = vmatprep.subr.mxu0 0.0
    %4512 = vmatpush1.msra.mxu0 0.0
    %4513 = vmatprep.subr.mxu0 0.0
    %4514 = vmatpush1.msra.mxu0 0.0
    %4515 = vmatprep.subr.mxu0 0.0
    %4516 = vmatpush1.msra.mxu0 0.0
    %4517 = vmatprep.subr.mxu0 0.0
    %4518 = vmatpush1.msra.mxu0 0.0
    %4519 = vmatprep.subr.mxu0 0.0
    %4520 = vmatpush1.msra.mxu0 0.0
    %4521 = vmatprep.subr.mxu0 0.0
    %4522 = vmatpush1.msra.mxu0 0.0
    %4523 = vmatprep.subr.mxu0 0.0
    %4524 = vmatpush1.msra.mxu0 %v4495
    %4525 = vmatprep.subr.mxu0 0.0
    %4526 = vmatpush1.msra.mxu0 %v4494
    %4527 = vmatprep.subr.mxu0 0.0
    %4528 = vmatpush1.msra.mxu0 %v4493
    %4529 = vmatprep.subr.mxu0 0.0
    %4530 = vmatpush1.msra.mxu0 %v4492
    %4531 = vmatprep.subr.mxu0 0.0
    %4532 = vmatpush2.msra.mxu0 0.0
    %4533 = vmatprep.subr.mxu0 0.0
    %4534 = vmatpush2.msra.mxu0 0.0
    %4535 = vmatprep.subr.mxu0 0.0
    %4536 = vmatpush2.msra.mxu0 0.0
    %4537 = vmatprep.subr.mxu0 0.0
    %4538 = vmatpush2.msra.mxu0 0.0
    %4539 = vmatprep.subr.mxu0 0.0
    %4540 = vmatpush2.msra.mxu0 0.0
    %4541 = vmatprep.subr.mxu0 0.0
    %4542 = vmatpush2.msra.mxu0 0.0
    %4543 = vmatprep.subr.mxu0 0.0
    %4544 = vmatpush2.msra.mxu0 0.0
    %4545 = vmatprep.subr.mxu0 0.0
    %4546 = vmatpush2.msra.mxu0 0.0
    %4547 = vmatprep.subr.mxu0 0.0
    %4548 = vmatpush2.msra.mxu0 0.0
    %4549 = vmatprep.subr.mxu0 0.0
    %4550 = vmatpush2.msra.mxu0 0.0
    %4551 = vmatprep.subr.mxu0 0.0
    %4552 = vmatpush2.msra.mxu0 0.0
    %4553 = vmatprep.subr.mxu0 0.0
    %4554 = vmatpush2.msra.mxu0 0.0
    %4555 = vmatprep.subr.mxu0 0.0
    %4556 = vmatpush2.msra.mxu0 0.0
    %4557 = vmatprep.subr.mxu0 0.0
    %4558 = vmatpush2.msra.mxu0 0.0
    %4559 = vmatprep.subr.mxu0 0.0
    %4560 = vmatpush2.msra.mxu0 0.0
    %4561 = vmatprep.subr.mxu0 0.0
    %4562 = vmatpush2.msra.mxu0 0.0
    %4563 = vmatprep.mubr.f32.mxu0 0.0
    %4564 = vmatmul.mubr.f32.gmra.mxu0 %v4497
    %v4565 = vpop.f32.mrf.mxu0
    %v4566 = vadd.f32 0.0, %v4565
    %v4567 = vpop.f32.mrf.mxu0
    %4568 = vdwg.mxu0
    %v4569 = vadd.f32 %v4489, %v4566
    %s4570 = scalar_lea.vmem [#allocation4], 3
    %v4571 = vld [vmem:[%s4570] ss:$4 sm:$0x3]
    %v4572 = vld [vmem:[%s18 + $0x60] sm:$0xff]
    %v4573 = vld [vmem:[%s18 + $0x68] sm:$0xff]
    %v4574 = vld [vmem:[%s18 + $0x70] sm:$0xff]
    %v4575 = vld [vmem:[%s18 + $0x78] sm:$0xff]
    %v4577 = vsel %vm321, %v4571, 0
    %4579 = vmatprep.subr.mxu0 0.0
    %4580 = vmatpush1.msra.mxu0 0.0
    %4581 = vmatprep.subr.mxu0 0.0
    %4582 = vmatpush1.msra.mxu0 0.0
    %4583 = vmatprep.subr.mxu0 0.0
    %4584 = vmatpush1.msra.mxu0 0.0
    %4585 = vmatprep.subr.mxu0 0.0
    %4586 = vmatpush1.msra.mxu0 0.0
    %4587 = vmatprep.subr.mxu0 0.0
    %4588 = vmatpush1.msra.mxu0 0.0
    %4589 = vmatprep.subr.mxu0 0.0
    %4590 = vmatpush1.msra.mxu0 0.0
    %4591 = vmatprep.subr.mxu0 0.0
    %4592 = vmatpush1.msra.mxu0 0.0
    %4593 = vmatprep.subr.mxu0 0.0
    %4594 = vmatpush1.msra.mxu0 0.0
    %4595 = vmatprep.subr.mxu0 0.0
    %4596 = vmatpush1.msra.mxu0 0.0
    %4597 = vmatprep.subr.mxu0 0.0
    %4598 = vmatpush1.msra.mxu0 0.0
    %4599 = vmatprep.subr.mxu0 0.0
    %4600 = vmatpush1.msra.mxu0 0.0
    %4601 = vmatprep.subr.mxu0 0.0
    %4602 = vmatpush1.msra.mxu0 0.0
    %4603 = vmatprep.subr.mxu0 0.0
    %4604 = vmatpush1.msra.mxu0 %v4575
    %4605 = vmatprep.subr.mxu0 0.0
    %4606 = vmatpush1.msra.mxu0 %v4574
    %4607 = vmatprep.subr.mxu0 0.0
    %4608 = vmatpush1.msra.mxu0 %v4573
    %4609 = vmatprep.subr.mxu0 0.0
    %4610 = vmatpush1.msra.mxu0 %v4572
    %4611 = vmatprep.subr.mxu0 0.0
    %4612 = vmatpush2.msra.mxu0 0.0
    %4613 = vmatprep.subr.mxu0 0.0
    %4614 = vmatpush2.msra.mxu0 0.0
    %4615 = vmatprep.subr.mxu0 0.0
    %4616 = vmatpush2.msra.mxu0 0.0
    %4617 = vmatprep.subr.mxu0 0.0
    %4618 = vmatpush2.msra.mxu0 0.0
    %4619 = vmatprep.subr.mxu0 0.0
    %4620 = vmatpush2.msra.mxu0 0.0
    %4621 = vmatprep.subr.mxu0 0.0
    %4622 = vmatpush2.msra.mxu0 0.0
    %4623 = vmatprep.subr.mxu0 0.0
    %4624 = vmatpush2.msra.mxu0 0.0
    %4625 = vmatprep.subr.mxu0 0.0
    %4626 = vmatpush2.msra.mxu0 0.0
    %4627 = vmatprep.subr.mxu0 0.0
    %4628 = vmatpush2.msra.mxu0 0.0
    %4629 = vmatprep.subr.mxu0 0.0
    %4630 = vmatpush2.msra.mxu0 0.0
    %4631 = vmatprep.subr.mxu0 0.0
    %4632 = vmatpush2.msra.mxu0 0.0
    %4633 = vmatprep.subr.mxu0 0.0
    %4634 = vmatpush2.msra.mxu0 0.0
    %4635 = vmatprep.subr.mxu0 0.0
    %4636 = vmatpush2.msra.mxu0 0.0
    %4637 = vmatprep.subr.mxu0 0.0
    %4638 = vmatpush2.msra.mxu0 0.0
    %4639 = vmatprep.subr.mxu0 0.0
    %4640 = vmatpush2.msra.mxu0 0.0
    %4641 = vmatprep.subr.mxu0 0.0
    %4642 = vmatpush2.msra.mxu0 0.0
    %4643 = vmatprep.mubr.f32.mxu0 0.0
    %4644 = vmatmul.mubr.f32.gmra.mxu0 %v4577
    %v4645 = vpop.f32.mrf.mxu0
    %v4646 = vadd.f32 0.0, %v4645
    %v4647 = vpop.f32.mrf.mxu0
    %4648 = vdwg.mxu0
    %v4649 = vadd.f32 %v4569, %v4646
    %v4650 = vld [vmem:[#allocation5] ss:$8 sm:$0x3]
    %v4651 = vld [vmem:[%s18 + $0x80] sm:$0xff]
    %v4652 = vld [vmem:[%s18 + $0x88] sm:$0xff]
    %v4653 = vld [vmem:[%s18 + $0x90] sm:$0xff]
    %v4654 = vld [vmem:[%s18 + $0x98] sm:$0xff]
    %v4656 = vsel %vm321, %v4650, 0
    %4658 = vmatprep.subr.mxu0 0.0
    %4659 = vmatpush1.msra.mxu0 0.0
    %4660 = vmatprep.subr.mxu0 0.0
    %4661 = vmatpush1.msra.mxu0 0.0
    %4662 = vmatprep.subr.mxu0 0.0
    %4663 = vmatpush1.msra.mxu0 0.0
    %4664 = vmatprep.subr.mxu0 0.0
    %4665 = vmatpush1.msra.mxu0 0.0
    %4666 = vmatprep.subr.mxu0 0.0
    %4667 = vmatpush1.msra.mxu0 0.0
    %4668 = vmatprep.subr.mxu0 0.0
    %4669 = vmatpush1.msra.mxu0 0.0
    %4670 = vmatprep.subr.mxu0 0.0
    %4671 = vmatpush1.msra.mxu0 0.0
    %4672 = vmatprep.subr.mxu0 0.0
    %4673 = vmatpush1.msra.mxu0 0.0
    %4674 = vmatprep.subr.mxu0 0.0
    %4675 = vmatpush1.msra.mxu0 0.0
    %4676 = vmatprep.subr.mxu0 0.0
    %4677 = vmatpush1.msra.mxu0 0.0
    %4678 = vmatprep.subr.mxu0 0.0
    %4679 = vmatpush1.msra.mxu0 0.0
    %4680 = vmatprep.subr.mxu0 0.0
    %4681 = vmatpush1.msra.mxu0 0.0
    %4682 = vmatprep.subr.mxu0 0.0
    %4683 = vmatpush1.msra.mxu0 %v4654
    %4684 = vmatprep.subr.mxu0 0.0
    %4685 = vmatpush1.msra.mxu0 %v4653
    %4686 = vmatprep.subr.mxu0 0.0
    %4687 = vmatpush1.msra.mxu0 %v4652
    %4688 = vmatprep.subr.mxu0 0.0
    %4689 = vmatpush1.msra.mxu0 %v4651
    %4690 = vmatprep.subr.mxu0 0.0
    %4691 = vmatpush2.msra.mxu0 0.0
    %4692 = vmatprep.subr.mxu0 0.0
    %4693 = vmatpush2.msra.mxu0 0.0
    %4694 = vmatprep.subr.mxu0 0.0
    %4695 = vmatpush2.msra.mxu0 0.0
    %4696 = vmatprep.subr.mxu0 0.0
    %4697 = vmatpush2.msra.mxu0 0.0
    %4698 = vmatprep.subr.mxu0 0.0
    %4699 = vmatpush2.msra.mxu0 0.0
    %4700 = vmatprep.subr.mxu0 0.0
    %4701 = vmatpush2.msra.mxu0 0.0
    %4702 = vmatprep.subr.mxu0 0.0
    %4703 = vmatpush2.msra.mxu0 0.0
    %4704 = vmatprep.subr.mxu0 0.0
    %4705 = vmatpush2.msra.mxu0 0.0
    %4706 = vmatprep.subr.mxu0 0.0
    %4707 = vmatpush2.msra.mxu0 0.0
    %4708 = vmatprep.subr.mxu0 0.0
    %4709 = vmatpush2.msra.mxu0 0.0
    %4710 = vmatprep.subr.mxu0 0.0
    %4711 = vmatpush2.msra.mxu0 0.0
    %4712 = vmatprep.subr.mxu0 0.0
    %4713 = vmatpush2.msra.mxu0 0.0
    %4714 = vmatprep.subr.mxu0 0.0
    %4715 = vmatpush2.msra.mxu0 0.0
    %4716 = vmatprep.subr.mxu0 0.0
    %4717 = vmatpush2.msra.mxu0 0.0
    %4718 = vmatprep.subr.mxu0 0.0
    %4719 = vmatpush2.msra.mxu0 0.0
    %4720 = vmatprep.subr.mxu0 0.0
    %4721 = vmatpush2.msra.mxu0 0.0
    %4722 = vmatprep.mubr.f32.mxu0 0.0
    %4723 = vmatmul.mubr.f32.gmra.mxu0 %v4656
    %v4724 = vpop.f32.mrf.mxu0
    %v4725 = vadd.f32 0.0, %v4724
    %v4726 = vpop.f32.mrf.mxu0
    %4727 = vdwg.mxu0
    %v4728 = vadd.f32 %v4649, %v4725
    %s4729 = scalar_lea.vmem [#allocation5], 1
    %v4730 = vld [vmem:[%s4729] ss:$8 sm:$0x3]
    %v4731 = vld [vmem:[%s18 + $0xa0] sm:$0xff]
    %v4732 = vld [vmem:[%s18 + $0xa8] sm:$0xff]
    %v4733 = vld [vmem:[%s18 + $0xb0] sm:$0xff]
    %v4734 = vld [vmem:[%s18 + $0xb8] sm:$0xff]
    %v4736 = vsel %vm321, %v4730, 0
    %4738 = vmatprep.subr.mxu0 0.0
    %4739 = vmatpush1.msra.mxu0 0.0
    %4740 = vmatprep.subr.mxu0 0.0
    %4741 = vmatpush1.msra.mxu0 0.0
    %4742 = vmatprep.subr.mxu0 0.0
    %4743 = vmatpush1.msra.mxu0 0.0
    %4744 = vmatprep.subr.mxu0 0.0
    %4745 = vmatpush1.msra.mxu0 0.0
    %4746 = vmatprep.subr.mxu0 0.0
    %4747 = vmatpush1.msra.mxu0 0.0
    %4748 = vmatprep.subr.mxu0 0.0
    %4749 = vmatpush1.msra.mxu0 0.0
    %4750 = vmatprep.subr.mxu0 0.0
    %4751 = vmatpush1.msra.mxu0 0.0
    %4752 = vmatprep.subr.mxu0 0.0
    %4753 = vmatpush1.msra.mxu0 0.0
    %4754 = vmatprep.subr.mxu0 0.0
    %4755 = vmatpush1.msra.mxu0 0.0
    %4756 = vmatprep.subr.mxu0 0.0
    %4757 = vmatpush1.msra.mxu0 0.0
    %4758 = vmatprep.subr.mxu0 0.0
    %4759 = vmatpush1.msra.mxu0 0.0
    %4760 = vmatprep.subr.mxu0 0.0
    %4761 = vmatpush1.msra.mxu0 0.0
    %4762 = vmatprep.subr.mxu0 0.0
    %4763 = vmatpush1.msra.mxu0 %v4734
    %4764 = vmatprep.subr.mxu0 0.0
    %4765 = vmatpush1.msra.mxu0 %v4733
    %4766 = vmatprep.subr.mxu0 0.0
    %4767 = vmatpush1.msra.mxu0 %v4732
    %4768 = vmatprep.subr.mxu0 0.0
    %4769 = vmatpush1.msra.mxu0 %v4731
    %4770 = vmatprep.subr.mxu0 0.0
    %4771 = vmatpush2.msra.mxu0 0.0
    %4772 = vmatprep.subr.mxu0 0.0
    %4773 = vmatpush2.msra.mxu0 0.0
    %4774 = vmatprep.subr.mxu0 0.0
    %4775 = vmatpush2.msra.mxu0 0.0
    %4776 = vmatprep.subr.mxu0 0.0
    %4777 = vmatpush2.msra.mxu0 0.0
    %4778 = vmatprep.subr.mxu0 0.0
    %4779 = vmatpush2.msra.mxu0 0.0
    %4780 = vmatprep.subr.mxu0 0.0
    %4781 = vmatpush2.msra.mxu0 0.0
    %4782 = vmatprep.subr.mxu0 0.0
    %4783 = vmatpush2.msra.mxu0 0.0
    %4784 = vmatprep.subr.mxu0 0.0
    %4785 = vmatpush2.msra.mxu0 0.0
    %4786 = vmatprep.subr.mxu0 0.0
    %4787 = vmatpush2.msra.mxu0 0.0
    %4788 = vmatprep.subr.mxu0 0.0
    %4789 = vmatpush2.msra.mxu0 0.0
    %4790 = vmatprep.subr.mxu0 0.0
    %4791 = vmatpush2.msra.mxu0 0.0
    %4792 = vmatprep.subr.mxu0 0.0
    %4793 = vmatpush2.msra.mxu0 0.0
    %4794 = vmatprep.subr.mxu0 0.0
    %4795 = vmatpush2.msra.mxu0 0.0
    %4796 = vmatprep.subr.mxu0 0.0
    %4797 = vmatpush2.msra.mxu0 0.0
    %4798 = vmatprep.subr.mxu0 0.0
    %4799 = vmatpush2.msra.mxu0 0.0
    %4800 = vmatprep.subr.mxu0 0.0
    %4801 = vmatpush2.msra.mxu0 0.0
    %4802 = vmatprep.mubr.f32.mxu0 0.0
    %4803 = vmatmul.mubr.f32.gmra.mxu0 %v4736
    %v4804 = vpop.f32.mrf.mxu0
    %v4805 = vadd.f32 0.0, %v4804
    %v4806 = vpop.f32.mrf.mxu0
    %4807 = vdwg.mxu0
    %v4808 = vadd.f32 %v4728, %v4805
    %s4809 = scalar_lea.vmem [#allocation5], 2
    %v4810 = vld [vmem:[%s4809] ss:$8 sm:$0x3]
    %v4811 = vld [vmem:[%s18 + $0xc0] sm:$0xff]
    %v4812 = vld [vmem:[%s18 + $0xc8] sm:$0xff]
    %v4813 = vld [vmem:[%s18 + $0xd0] sm:$0xff]
    %v4814 = vld [vmem:[%s18 + $0xd8] sm:$0xff]
    %v4816 = vsel %vm321, %v4810, 0
    %4818 = vmatprep.subr.mxu0 0.0
    %4819 = vmatpush1.msra.mxu0 0.0
    %4820 = vmatprep.subr.mxu0 0.0
    %4821 = vmatpush1.msra.mxu0 0.0
    %4822 = vmatprep.subr.mxu0 0.0
    %4823 = vmatpush1.msra.mxu0 0.0
    %4824 = vmatprep.subr.mxu0 0.0
    %4825 = vmatpush1.msra.mxu0 0.0
    %4826 = vmatprep.subr.mxu0 0.0
    %4827 = vmatpush1.msra.mxu0 0.0
    %4828 = vmatprep.subr.mxu0 0.0
    %4829 = vmatpush1.msra.mxu0 0.0
    %4830 = vmatprep.subr.mxu0 0.0
    %4831 = vmatpush1.msra.mxu0 0.0
    %4832 = vmatprep.subr.mxu0 0.0
    %4833 = vmatpush1.msra.mxu0 0.0
    %4834 = vmatprep.subr.mxu0 0.0
    %4835 = vmatpush1.msra.mxu0 0.0
    %4836 = vmatprep.subr.mxu0 0.0
    %4837 = vmatpush1.msra.mxu0 0.0
    %4838 = vmatprep.subr.mxu0 0.0
    %4839 = vmatpush1.msra.mxu0 0.0
    %4840 = vmatprep.subr.mxu0 0.0
    %4841 = vmatpush1.msra.mxu0 0.0
    %4842 = vmatprep.subr.mxu0 0.0
    %4843 = vmatpush1.msra.mxu0 %v4814
    %4844 = vmatprep.subr.mxu0 0.0
    %4845 = vmatpush1.msra.mxu0 %v4813
    %4846 = vmatprep.subr.mxu0 0.0
    %4847 = vmatpush1.msra.mxu0 %v4812
    %4848 = vmatprep.subr.mxu0 0.0
    %4849 = vmatpush1.msra.mxu0 %v4811
    %4850 = vmatprep.subr.mxu0 0.0
    %4851 = vmatpush2.msra.mxu0 0.0
    %4852 = vmatprep.subr.mxu0 0.0
    %4853 = vmatpush2.msra.mxu0 0.0
    %4854 = vmatprep.subr.mxu0 0.0
    %4855 = vmatpush2.msra.mxu0 0.0
    %4856 = vmatprep.subr.mxu0 0.0
    %4857 = vmatpush2.msra.mxu0 0.0
    %4858 = vmatprep.subr.mxu0 0.0
    %4859 = vmatpush2.msra.mxu0 0.0
    %4860 = vmatprep.subr.mxu0 0.0
    %4861 = vmatpush2.msra.mxu0 0.0
    %4862 = vmatprep.subr.mxu0 0.0
    %4863 = vmatpush2.msra.mxu0 0.0
    %4864 = vmatprep.subr.mxu0 0.0
    %4865 = vmatpush2.msra.mxu0 0.0
    %4866 = vmatprep.subr.mxu0 0.0
    %4867 = vmatpush2.msra.mxu0 0.0
    %4868 = vmatprep.subr.mxu0 0.0
    %4869 = vmatpush2.msra.mxu0 0.0
    %4870 = vmatprep.subr.mxu0 0.0
    %4871 = vmatpush2.msra.mxu0 0.0
    %4872 = vmatprep.subr.mxu0 0.0
    %4873 = vmatpush2.msra.mxu0 0.0
    %4874 = vmatprep.subr.mxu0 0.0
    %4875 = vmatpush2.msra.mxu0 0.0
    %4876 = vmatprep.subr.mxu0 0.0
    %4877 = vmatpush2.msra.mxu0 0.0
    %4878 = vmatprep.subr.mxu0 0.0
    %4879 = vmatpush2.msra.mxu0 0.0
    %4880 = vmatprep.subr.mxu0 0.0
    %4881 = vmatpush2.msra.mxu0 0.0
    %4882 = vmatprep.mubr.f32.mxu0 0.0
    %4883 = vmatmul.mubr.f32.gmra.mxu0 %v4816
    %v4884 = vpop.f32.mrf.mxu0
    %v4885 = vadd.f32 0.0, %v4884
    %v4886 = vpop.f32.mrf.mxu0
    %4887 = vdwg.mxu0
    %v4888 = vadd.f32 %v4808, %v4885
    %s4889 = scalar_lea.vmem [#allocation5], 3
    %v4890 = vld [vmem:[%s4889] ss:$8 sm:$0x3]
    %v4891 = vld [vmem:[%s18 + $0xe0] sm:$0xff]
    %v4892 = vld [vmem:[%s18 + $0xe8] sm:$0xff]
    %v4893 = vld [vmem:[%s18 + $0xf0] sm:$0xff]
    %v4894 = vld [vmem:[%s18 + $0xf8] sm:$0xff]
    %v4896 = vsel %vm321, %v4890, 0
    %4898 = vmatprep.subr.mxu0 0.0
    %4899 = vmatpush1.msra.mxu0 0.0
    %4900 = vmatprep.subr.mxu0 0.0
    %4901 = vmatpush1.msra.mxu0 0.0
    %4902 = vmatprep.subr.mxu0 0.0
    %4903 = vmatpush1.msra.mxu0 0.0
    %4904 = vmatprep.subr.mxu0 0.0
    %4905 = vmatpush1.msra.mxu0 0.0
    %4906 = vmatprep.subr.mxu0 0.0
    %4907 = vmatpush1.msra.mxu0 0.0
    %4908 = vmatprep.subr.mxu0 0.0
    %4909 = vmatpush1.msra.mxu0 0.0
    %4910 = vmatprep.subr.mxu0 0.0
    %4911 = vmatpush1.msra.mxu0 0.0
    %4912 = vmatprep.subr.mxu0 0.0
    %4913 = vmatpush1.msra.mxu0 0.0
    %4914 = vmatprep.subr.mxu0 0.0
    %4915 = vmatpush1.msra.mxu0 0.0
    %4916 = vmatprep.subr.mxu0 0.0
    %4917 = vmatpush1.msra.mxu0 0.0
    %4918 = vmatprep.subr.mxu0 0.0
    %4919 = vmatpush1.msra.mxu0 0.0
    %4920 = vmatprep.subr.mxu0 0.0
    %4921 = vmatpush1.msra.mxu0 0.0
    %4922 = vmatprep.subr.mxu0 0.0
    %4923 = vmatpush1.msra.mxu0 %v4894
    %4924 = vmatprep.subr.mxu0 0.0
    %4925 = vmatpush1.msra.mxu0 %v4893
    %4926 = vmatprep.subr.mxu0 0.0
    %4927 = vmatpush1.msra.mxu0 %v4892
    %4928 = vmatprep.subr.mxu0 0.0
    %4929 = vmatpush1.msra.mxu0 %v4891
    %4930 = vmatprep.subr.mxu0 0.0
    %4931 = vmatpush2.msra.mxu0 0.0
    %4932 = vmatprep.subr.mxu0 0.0
    %4933 = vmatpush2.msra.mxu0 0.0
    %4934 = vmatprep.subr.mxu0 0.0
    %4935 = vmatpush2.msra.mxu0 0.0
    %4936 = vmatprep.subr.mxu0 0.0
    %4937 = vmatpush2.msra.mxu0 0.0
    %4938 = vmatprep.subr.mxu0 0.0
    %4939 = vmatpush2.msra.mxu0 0.0
    %4940 = vmatprep.subr.mxu0 0.0
    %4941 = vmatpush2.msra.mxu0 0.0
    %4942 = vmatprep.subr.mxu0 0.0
    %4943 = vmatpush2.msra.mxu0 0.0
    %4944 = vmatprep.subr.mxu0 0.0
    %4945 = vmatpush2.msra.mxu0 0.0
    %4946 = vmatprep.subr.mxu0 0.0
    %4947 = vmatpush2.msra.mxu0 0.0
    %4948 = vmatprep.subr.mxu0 0.0
    %4949 = vmatpush2.msra.mxu0 0.0
    %4950 = vmatprep.subr.mxu0 0.0
    %4951 = vmatpush2.msra.mxu0 0.0
    %4952 = vmatprep.subr.mxu0 0.0
    %4953 = vmatpush2.msra.mxu0 0.0
    %4954 = vmatprep.subr.mxu0 0.0
    %4955 = vmatpush2.msra.mxu0 0.0
    %4956 = vmatprep.subr.mxu0 0.0
    %4957 = vmatpush2.msra.mxu0 0.0
    %4958 = vmatprep.subr.mxu0 0.0
    %4959 = vmatpush2.msra.mxu0 0.0
    %4960 = vmatprep.subr.mxu0 0.0
    %4961 = vmatpush2.msra.mxu0 0.0
    %4962 = vmatprep.mubr.f32.mxu0 0.0
    %4963 = vmatmul.mubr.f32.gmra.mxu0 %v4896
    %v4964 = vpop.f32.mrf.mxu0
    %v4965 = vadd.f32 0.0, %v4964
    %v4966 = vpop.f32.mrf.mxu0
    %4967 = vdwg.mxu0
    %v4968 = vadd.f32 %v4888, %v4965
    %s4969 = scalar_lea.vmem [#allocation5], 4
    %v4970 = vld [vmem:[%s4969] ss:$8 sm:$0x3]
    %v4971 = vld [vmem:[%s18 + $0x100] sm:$0xff]
    %v4972 = vld [vmem:[%s18 + $0x108] sm:$0xff]
    %v4973 = vld [vmem:[%s18 + $0x110] sm:$0xff]
    %v4974 = vld [vmem:[%s18 + $0x118] sm:$0xff]
    %v4976 = vsel %vm321, %v4970, 0
    %4978 = vmatprep.subr.mxu0 0.0
    %4979 = vmatpush1.msra.mxu0 0.0
    %4980 = vmatprep.subr.mxu0 0.0
    %4981 = vmatpush1.msra.mxu0 0.0
    %4982 = vmatprep.subr.mxu0 0.0
    %4983 = vmatpush1.msra.mxu0 0.0
    %4984 = vmatprep.subr.mxu0 0.0
    %4985 = vmatpush1.msra.mxu0 0.0
    %4986 = vmatprep.subr.mxu0 0.0
    %4987 = vmatpush1.msra.mxu0 0.0
    %4988 = vmatprep.subr.mxu0 0.0
    %4989 = vmatpush1.msra.mxu0 0.0
    %4990 = vmatprep.subr.mxu0 0.0
    %4991 = vmatpush1.msra.mxu0 0.0
    %4992 = vmatprep.subr.mxu0 0.0
    %4993 = vmatpush1.msra.mxu0 0.0
    %4994 = vmatprep.subr.mxu0 0.0
    %4995 = vmatpush1.msra.mxu0 0.0
    %4996 = vmatprep.subr.mxu0 0.0
    %4997 = vmatpush1.msra.mxu0 0.0
    %4998 = vmatprep.subr.mxu0 0.0
    %4999 = vmatpush1.msra.mxu0 0.0
    %5000 = vmatprep.subr.mxu0 0.0
    %5001 = vmatpush1.msra.mxu0 0.0
    %5002 = vmatprep.subr.mxu0 0.0
    %5003 = vmatpush1.msra.mxu0 %v4974
    %5004 = vmatprep.subr.mxu0 0.0
    %5005 = vmatpush1.msra.mxu0 %v4973
    %5006 = vmatprep.subr.mxu0 0.0
    %5007 = vmatpush1.msra.mxu0 %v4972
    %5008 = vmatprep.subr.mxu0 0.0
    %5009 = vmatpush1.msra.mxu0 %v4971
    %5010 = vmatprep.subr.mxu0 0.0
    %5011 = vmatpush2.msra.mxu0 0.0
    %5012 = vmatprep.subr.mxu0 0.0
    %5013 = vmatpush2.msra.mxu0 0.0
    %5014 = vmatprep.subr.mxu0 0.0
    %5015 = vmatpush2.msra.mxu0 0.0
    %5016 = vmatprep.subr.mxu0 0.0
    %5017 = vmatpush2.msra.mxu0 0.0
    %5018 = vmatprep.subr.mxu0 0.0
    %5019 = vmatpush2.msra.mxu0 0.0
    %5020 = vmatprep.subr.mxu0 0.0
    %5021 = vmatpush2.msra.mxu0 0.0
    %5022 = vmatprep.subr.mxu0 0.0
    %5023 = vmatpush2.msra.mxu0 0.0
    %5024 = vmatprep.subr.mxu0 0.0
    %5025 = vmatpush2.msra.mxu0 0.0
    %5026 = vmatprep.subr.mxu0 0.0
    %5027 = vmatpush2.msra.mxu0 0.0
    %5028 = vmatprep.subr.mxu0 0.0
    %5029 = vmatpush2.msra.mxu0 0.0
    %5030 = vmatprep.subr.mxu0 0.0
    %5031 = vmatpush2.msra.mxu0 0.0
    %5032 = vmatprep.subr.mxu0 0.0
    %5033 = vmatpush2.msra.mxu0 0.0
    %5034 = vmatprep.subr.mxu0 0.0
    %5035 = vmatpush2.msra.mxu0 0.0
    %5036 = vmatprep.subr.mxu0 0.0
    %5037 = vmatpush2.msra.mxu0 0.0
    %5038 = vmatprep.subr.mxu0 0.0
    %5039 = vmatpush2.msra.mxu0 0.0
    %5040 = vmatprep.subr.mxu0 0.0
    %5041 = vmatpush2.msra.mxu0 0.0
    %5042 = vmatprep.mubr.f32.mxu0 0.0
    %5043 = vmatmul.mubr.f32.gmra.mxu0 %v4976
    %v5044 = vpop.f32.mrf.mxu0
    %v5045 = vadd.f32 0.0, %v5044
    %v5046 = vpop.f32.mrf.mxu0
    %5047 = vdwg.mxu0
    %v5048 = vadd.f32 %v4968, %v5045
    %s5049 = scalar_lea.vmem [#allocation5], 5
    %v5050 = vld [vmem:[%s5049] ss:$8 sm:$0x3]
    %v5051 = vld [vmem:[%s18 + $0x120] sm:$0xff]
    %v5052 = vld [vmem:[%s18 + $0x128] sm:$0xff]
    %v5053 = vld [vmem:[%s18 + $0x130] sm:$0xff]
    %v5054 = vld [vmem:[%s18 + $0x138] sm:$0xff]
    %v5056 = vsel %vm321, %v5050, 0
    %5058 = vmatprep.subr.mxu0 0.0
    %5059 = vmatpush1.msra.mxu0 0.0
    %5060 = vmatprep.subr.mxu0 0.0
    %5061 = vmatpush1.msra.mxu0 0.0
    %5062 = vmatprep.subr.mxu0 0.0
    %5063 = vmatpush1.msra.mxu0 0.0
    %5064 = vmatprep.subr.mxu0 0.0
    %5065 = vmatpush1.msra.mxu0 0.0
    %5066 = vmatprep.subr.mxu0 0.0
    %5067 = vmatpush1.msra.mxu0 0.0
    %5068 = vmatprep.subr.mxu0 0.0
    %5069 = vmatpush1.msra.mxu0 0.0
    %5070 = vmatprep.subr.mxu0 0.0
    %5071 = vmatpush1.msra.mxu0 0.0
    %5072 = vmatprep.subr.mxu0 0.0
    %5073 = vmatpush1.msra.mxu0 0.0
    %5074 = vmatprep.subr.mxu0 0.0
    %5075 = vmatpush1.msra.mxu0 0.0
    %5076 = vmatprep.subr.mxu0 0.0
    %5077 = vmatpush1.msra.mxu0 0.0
    %5078 = vmatprep.subr.mxu0 0.0
    %5079 = vmatpush1.msra.mxu0 0.0
    %5080 = vmatprep.subr.mxu0 0.0
    %5081 = vmatpush1.msra.mxu0 0.0
    %5082 = vmatprep.subr.mxu0 0.0
    %5083 = vmatpush1.msra.mxu0 %v5054
    %5084 = vmatprep.subr.mxu0 0.0
    %5085 = vmatpush1.msra.mxu0 %v5053
    %5086 = vmatprep.subr.mxu0 0.0
    %5087 = vmatpush1.msra.mxu0 %v5052
    %5088 = vmatprep.subr.mxu0 0.0
    %5089 = vmatpush1.msra.mxu0 %v5051
    %5090 = vmatprep.subr.mxu0 0.0
    %5091 = vmatpush2.msra.mxu0 0.0
    %5092 = vmatprep.subr.mxu0 0.0
    %5093 = vmatpush2.msra.mxu0 0.0
    %5094 = vmatprep.subr.mxu0 0.0
    %5095 = vmatpush2.msra.mxu0 0.0
    %5096 = vmatprep.subr.mxu0 0.0
    %5097 = vmatpush2.msra.mxu0 0.0
    %5098 = vmatprep.subr.mxu0 0.0
    %5099 = vmatpush2.msra.mxu0 0.0
    %5100 = vmatprep.subr.mxu0 0.0
    %5101 = vmatpush2.msra.mxu0 0.0
    %5102 = vmatprep.subr.mxu0 0.0
    %5103 = vmatpush2.msra.mxu0 0.0
    %5104 = vmatprep.subr.mxu0 0.0
    %5105 = vmatpush2.msra.mxu0 0.0
    %5106 = vmatprep.subr.mxu0 0.0
    %5107 = vmatpush2.msra.mxu0 0.0
    %5108 = vmatprep.subr.mxu0 0.0
    %5109 = vmatpush2.msra.mxu0 0.0
    %5110 = vmatprep.subr.mxu0 0.0
    %5111 = vmatpush2.msra.mxu0 0.0
    %5112 = vmatprep.subr.mxu0 0.0
    %5113 = vmatpush2.msra.mxu0 0.0
    %5114 = vmatprep.subr.mxu0 0.0
    %5115 = vmatpush2.msra.mxu0 0.0
    %5116 = vmatprep.subr.mxu0 0.0
    %5117 = vmatpush2.msra.mxu0 0.0
    %5118 = vmatprep.subr.mxu0 0.0
    %5119 = vmatpush2.msra.mxu0 0.0
    %5120 = vmatprep.subr.mxu0 0.0
    %5121 = vmatpush2.msra.mxu0 0.0
    %5122 = vmatprep.mubr.f32.mxu0 0.0
    %5123 = vmatmul.mubr.f32.gmra.mxu0 %v5056
    %v5124 = vpop.f32.mrf.mxu0
    %v5125 = vadd.f32 0.0, %v5124
    %v5126 = vpop.f32.mrf.mxu0
    %5127 = vdwg.mxu0
    %v5128 = vadd.f32 %v5048, %v5125
    %s5129 = scalar_lea.vmem [#allocation5], 6
    %v5130 = vld [vmem:[%s5129] ss:$8 sm:$0x3]
    %v5131 = vld [vmem:[%s18 + $0x140] sm:$0xff]
    %v5132 = vld [vmem:[%s18 + $0x148] sm:$0xff]
    %v5133 = vld [vmem:[%s18 + $0x150] sm:$0xff]
    %v5134 = vld [vmem:[%s18 + $0x158] sm:$0xff]
    %v5136 = vsel %vm321, %v5130, 0
    %5138 = vmatprep.subr.mxu0 0.0
    %5139 = vmatpush1.msra.mxu0 0.0
    %5140 = vmatprep.subr.mxu0 0.0
    %5141 = vmatpush1.msra.mxu0 0.0
    %5142 = vmatprep.subr.mxu0 0.0
    %5143 = vmatpush1.msra.mxu0 0.0
    %5144 = vmatprep.subr.mxu0 0.0
    %5145 = vmatpush1.msra.mxu0 0.0
    %5146 = vmatprep.subr.mxu0 0.0
    %5147 = vmatpush1.msra.mxu0 0.0
    %5148 = vmatprep.subr.mxu0 0.0
    %5149 = vmatpush1.msra.mxu0 0.0
    %5150 = vmatprep.subr.mxu0 0.0
    %5151 = vmatpush1.msra.mxu0 0.0
    %5152 = vmatprep.subr.mxu0 0.0
    %5153 = vmatpush1.msra.mxu0 0.0
    %5154 = vmatprep.subr.mxu0 0.0
    %5155 = vmatpush1.msra.mxu0 0.0
    %5156 = vmatprep.subr.mxu0 0.0
    %5157 = vmatpush1.msra.mxu0 0.0
    %5158 = vmatprep.subr.mxu0 0.0
    %5159 = vmatpush1.msra.mxu0 0.0
    %5160 = vmatprep.subr.mxu0 0.0
    %5161 = vmatpush1.msra.mxu0 0.0
    %5162 = vmatprep.subr.mxu0 0.0
    %5163 = vmatpush1.msra.mxu0 %v5134
    %5164 = vmatprep.subr.mxu0 0.0
    %5165 = vmatpush1.msra.mxu0 %v5133
    %5166 = vmatprep.subr.mxu0 0.0
    %5167 = vmatpush1.msra.mxu0 %v5132
    %5168 = vmatprep.subr.mxu0 0.0
    %5169 = vmatpush1.msra.mxu0 %v5131
    %5170 = vmatprep.subr.mxu0 0.0
    %5171 = vmatpush2.msra.mxu0 0.0
    %5172 = vmatprep.subr.mxu0 0.0
    %5173 = vmatpush2.msra.mxu0 0.0
    %5174 = vmatprep.subr.mxu0 0.0
    %5175 = vmatpush2.msra.mxu0 0.0
    %5176 = vmatprep.subr.mxu0 0.0
    %5177 = vmatpush2.msra.mxu0 0.0
    %5178 = vmatprep.subr.mxu0 0.0
    %5179 = vmatpush2.msra.mxu0 0.0
    %5180 = vmatprep.subr.mxu0 0.0
    %5181 = vmatpush2.msra.mxu0 0.0
    %5182 = vmatprep.subr.mxu0 0.0
    %5183 = vmatpush2.msra.mxu0 0.0
    %5184 = vmatprep.subr.mxu0 0.0
    %5185 = vmatpush2.msra.mxu0 0.0
    %5186 = vmatprep.subr.mxu0 0.0
    %5187 = vmatpush2.msra.mxu0 0.0
    %5188 = vmatprep.subr.mxu0 0.0
    %5189 = vmatpush2.msra.mxu0 0.0
    %5190 = vmatprep.subr.mxu0 0.0
    %5191 = vmatpush2.msra.mxu0 0.0
    %5192 = vmatprep.subr.mxu0 0.0
    %5193 = vmatpush2.msra.mxu0 0.0
    %5194 = vmatprep.subr.mxu0 0.0
    %5195 = vmatpush2.msra.mxu0 0.0
    %5196 = vmatprep.subr.mxu0 0.0
    %5197 = vmatpush2.msra.mxu0 0.0
    %5198 = vmatprep.subr.mxu0 0.0
    %5199 = vmatpush2.msra.mxu0 0.0
    %5200 = vmatprep.subr.mxu0 0.0
    %5201 = vmatpush2.msra.mxu0 0.0
    %5202 = vmatprep.mubr.f32.mxu0 0.0
    %5203 = vmatmul.mubr.f32.gmra.mxu0 %v5136
    %v5204 = vpop.f32.mrf.mxu0
    %v5205 = vadd.f32 0.0, %v5204
    %v5206 = vpop.f32.mrf.mxu0
    %5207 = vdwg.mxu0
    %v5208 = vadd.f32 %v5128, %v5205
    %s5209 = scalar_lea.vmem [#allocation5], 7
    %v5210 = vld [vmem:[%s5209] ss:$8 sm:$0x3]
    %v5211 = vld [vmem:[%s18 + $0x160] sm:$0xff]
    %v5212 = vld [vmem:[%s18 + $0x168] sm:$0xff]
    %v5213 = vld [vmem:[%s18 + $0x170] sm:$0xff]
    %v5214 = vld [vmem:[%s18 + $0x178] sm:$0xff]
    %v5216 = vsel %vm321, %v5210, 0
    %5218 = vmatprep.subr.mxu0 0.0
    %5219 = vmatpush1.msra.mxu0 0.0
    %5220 = vmatprep.subr.mxu0 0.0
    %5221 = vmatpush1.msra.mxu0 0.0
    %5222 = vmatprep.subr.mxu0 0.0
    %5223 = vmatpush1.msra.mxu0 0.0
    %5224 = vmatprep.subr.mxu0 0.0
    %5225 = vmatpush1.msra.mxu0 0.0
    %5226 = vmatprep.subr.mxu0 0.0
    %5227 = vmatpush1.msra.mxu0 0.0
    %5228 = vmatprep.subr.mxu0 0.0
    %5229 = vmatpush1.msra.mxu0 0.0
    %5230 = vmatprep.subr.mxu0 0.0
    %5231 = vmatpush1.msra.mxu0 0.0
    %5232 = vmatprep.subr.mxu0 0.0
    %5233 = vmatpush1.msra.mxu0 0.0
    %5234 = vmatprep.subr.mxu0 0.0
    %5235 = vmatpush1.msra.mxu0 0.0
    %5236 = vmatprep.subr.mxu0 0.0
    %5237 = vmatpush1.msra.mxu0 0.0
    %5238 = vmatprep.subr.mxu0 0.0
    %5239 = vmatpush1.msra.mxu0 0.0
    %5240 = vmatprep.subr.mxu0 0.0
    %5241 = vmatpush1.msra.mxu0 0.0
    %5242 = vmatprep.subr.mxu0 0.0
    %5243 = vmatpush1.msra.mxu0 %v5214
    %5244 = vmatprep.subr.mxu0 0.0
    %5245 = vmatpush1.msra.mxu0 %v5213
    %5246 = vmatprep.subr.mxu0 0.0
    %5247 = vmatpush1.msra.mxu0 %v5212
    %5248 = vmatprep.subr.mxu0 0.0
    %5249 = vmatpush1.msra.mxu0 %v5211
    %5250 = vmatprep.subr.mxu0 0.0
    %5251 = vmatpush2.msra.mxu0 0.0
    %5252 = vmatprep.subr.mxu0 0.0
    %5253 = vmatpush2.msra.mxu0 0.0
    %5254 = vmatprep.subr.mxu0 0.0
    %5255 = vmatpush2.msra.mxu0 0.0
    %5256 = vmatprep.subr.mxu0 0.0
    %5257 = vmatpush2.msra.mxu0 0.0
    %5258 = vmatprep.subr.mxu0 0.0
    %5259 = vmatpush2.msra.mxu0 0.0
    %5260 = vmatprep.subr.mxu0 0.0
    %5261 = vmatpush2.msra.mxu0 0.0
    %5262 = vmatprep.subr.mxu0 0.0
    %5263 = vmatpush2.msra.mxu0 0.0
    %5264 = vmatprep.subr.mxu0 0.0
    %5265 = vmatpush2.msra.mxu0 0.0
    %5266 = vmatprep.subr.mxu0 0.0
    %5267 = vmatpush2.msra.mxu0 0.0
    %5268 = vmatprep.subr.mxu0 0.0
    %5269 = vmatpush2.msra.mxu0 0.0
    %5270 = vmatprep.subr.mxu0 0.0
    %5271 = vmatpush2.msra.mxu0 0.0
    %5272 = vmatprep.subr.mxu0 0.0
    %5273 = vmatpush2.msra.mxu0 0.0
    %5274 = vmatprep.subr.mxu0 0.0
    %5275 = vmatpush2.msra.mxu0 0.0
    %5276 = vmatprep.subr.mxu0 0.0
    %5277 = vmatpush2.msra.mxu0 0.0
    %5278 = vmatprep.subr.mxu0 0.0
    %5279 = vmatpush2.msra.mxu0 0.0
    %5280 = vmatprep.subr.mxu0 0.0
    %5281 = vmatpush2.msra.mxu0 0.0
    %5282 = vmatprep.mubr.f32.mxu0 0.0
    %5283 = vmatmul.mubr.f32.gmra.mxu0 %v5216
    %v5284 = vpop.f32.mrf.mxu0
    %v5285 = vadd.f32 0.0, %v5284
    %v5286 = vpop.f32.mrf.mxu0
    %5287 = vdwg.mxu0
    %v5288 = vadd.f32 %v5208, %v5285
    %v5289 = vmax.f32 %v5288, 0.0
    %v5290 = vld [vmem:[%s20] sm:$0xff]
    %v5291 = vld [vmem:[%s20 + $0x8] sm:$0xff]
    %v5292 = vld [vmem:[%s20 + $0x10] sm:$0xff]
    %v5293 = vld [vmem:[%s20 + $0x18] sm:$0xff]
    %v5294 = vld [vmem:[%s20 + $0x20] sm:$0xff]
    %v5295 = vld [vmem:[%s20 + $0x28] sm:$0xff]
    %v5296 = vld [vmem:[%s20 + $0x30] sm:$0xff]
    %v5297 = vld [vmem:[%s20 + $0x38] sm:$0xff]
    %v5298 = vld [vmem:[%s21] sm:$0x1]
    %v5300 = vlaneseq
    %v5301 = vshrl.u32 %v5300, 7
    %v5302 = vsub.s32 0, %v5301
    %v5303 = vrot.slane %v5298, %v5302
    %vm5305 = vcmask 523264
    %v5307 = vsel %vm5305, %v5289, 0
    %5309 = vmatprep.subr.mxu0 0.0
    %5310 = vmatpush1.msra.mxu0 0.0
    %5311 = vmatprep.subr.mxu0 0.0
    %5312 = vmatpush1.msra.mxu0 0.0
    %5313 = vmatprep.subr.mxu0 0.0
    %5314 = vmatpush1.msra.mxu0 0.0
    %5315 = vmatprep.subr.mxu0 0.0
    %5316 = vmatpush1.msra.mxu0 0.0
    %5317 = vmatprep.subr.mxu0 0.0
    %5318 = vmatpush1.msra.mxu0 0.0
    %5319 = vmatprep.subr.mxu0 0.0
    %5320 = vmatpush1.msra.mxu0 0.0
    %5321 = vmatprep.subr.mxu0 0.0
    %5322 = vmatpush1.msra.mxu0 0.0
    %5323 = vmatprep.subr.mxu0 0.0
    %5324 = vmatpush1.msra.mxu0 0.0
    %5325 = vmatprep.subr.mxu0 0.0
    %5326 = vmatpush1.msra.mxu0 %v5297
    %5327 = vmatprep.subr.mxu0 0.0
    %5328 = vmatpush1.msra.mxu0 %v5296
    %5329 = vmatprep.subr.mxu0 0.0
    %5330 = vmatpush1.msra.mxu0 %v5295
    %5331 = vmatprep.subr.mxu0 0.0
    %5332 = vmatpush1.msra.mxu0 %v5294
    %5333 = vmatprep.subr.mxu0 0.0
    %5334 = vmatpush1.msra.mxu0 %v5293
    %5335 = vmatprep.subr.mxu0 0.0
    %5336 = vmatpush1.msra.mxu0 %v5292
    %5337 = vmatprep.subr.mxu0 0.0
    %5338 = vmatpush1.msra.mxu0 %v5291
    %5339 = vmatprep.subr.mxu0 0.0
    %5340 = vmatpush1.msra.mxu0 %v5290
    %5341 = vmatprep.subr.mxu0 0.0
    %5342 = vmatpush2.msra.mxu0 0.0
    %5343 = vmatprep.subr.mxu0 0.0
    %5344 = vmatpush2.msra.mxu0 0.0
    %5345 = vmatprep.subr.mxu0 0.0
    %5346 = vmatpush2.msra.mxu0 0.0
    %5347 = vmatprep.subr.mxu0 0.0
    %5348 = vmatpush2.msra.mxu0 0.0
    %5349 = vmatprep.subr.mxu0 0.0
    %5350 = vmatpush2.msra.mxu0 0.0
    %5351 = vmatprep.subr.mxu0 0.0
    %5352 = vmatpush2.msra.mxu0 0.0
    %5353 = vmatprep.subr.mxu0 0.0
    %5354 = vmatpush2.msra.mxu0 0.0
    %5355 = vmatprep.subr.mxu0 0.0
    %5356 = vmatpush2.msra.mxu0 0.0
    %5357 = vmatprep.subr.mxu0 0.0
    %5358 = vmatpush2.msra.mxu0 0.0
    %5359 = vmatprep.subr.mxu0 0.0
    %5360 = vmatpush2.msra.mxu0 0.0
    %5361 = vmatprep.subr.mxu0 0.0
    %5362 = vmatpush2.msra.mxu0 0.0
    %5363 = vmatprep.subr.mxu0 0.0
    %5364 = vmatpush2.msra.mxu0 0.0
    %5365 = vmatprep.subr.mxu0 0.0
    %5366 = vmatpush2.msra.mxu0 0.0
    %5367 = vmatprep.subr.mxu0 0.0
    %5368 = vmatpush2.msra.mxu0 0.0
    %5369 = vmatprep.subr.mxu0 0.0
    %5370 = vmatpush2.msra.mxu0 0.0
    %5371 = vmatprep.subr.mxu0 0.0
    %5372 = vmatpush2.msra.mxu0 0.0
    %5373 = vmatprep.mubr.f32.mxu0 0.0
    %5374 = vmatmul.mubr.f32.gmra.mxu0 %v5307
    %v5375 = vpop.f32.mrf.mxu0
    %v5376 = vadd.f32 %v5303, %v5375
    %v5377 = vpop.f32.mrf.mxu0
    %5378 = vdwg.mxu0
    %v5379 = vmax.f32 %v5376, 0.0
    %v5380 = vld [vmem:[%s22] sm:$0xff]
    %v5381 = vld [vmem:[%s22 + $0x8] sm:$0xff]
    %v5382 = vld [vmem:[%s22 + $0x10] sm:$0xff]
    %v5383 = vld [vmem:[%s22 + $0x18] sm:$0xff]
    %v5384 = vld [vmem:[%s23] sm:$0x1]
    %v5386 = vlaneseq
    %v5387 = vshrl.u32 %v5386, 7
    %v5388 = vsub.s32 0, %v5387
    %v5389 = vrot.slane %v5384, %v5388
    %v5392 = vsel %vm321, %v5379, 0
    %5394 = vmatprep.subr.mxu0 0.0
    %5395 = vmatpush1.msra.mxu0 0.0
    %5396 = vmatprep.subr.mxu0 0.0
    %5397 = vmatpush1.msra.mxu0 0.0
    %5398 = vmatprep.subr.mxu0 0.0
    %5399 = vmatpush1.msra.mxu0 0.0
    %5400 = vmatprep.subr.mxu0 0.0
    %5401 = vmatpush1.msra.mxu0 0.0
    %5402 = vmatprep.subr.mxu0 0.0
    %5403 = vmatpush1.msra.mxu0 0.0
    %5404 = vmatprep.subr.mxu0 0.0
    %5405 = vmatpush1.msra.mxu0 0.0
    %5406 = vmatprep.subr.mxu0 0.0
    %5407 = vmatpush1.msra.mxu0 0.0
    %5408 = vmatprep.subr.mxu0 0.0
    %5409 = vmatpush1.msra.mxu0 0.0
    %5410 = vmatprep.subr.mxu0 0.0
    %5411 = vmatpush1.msra.mxu0 0.0
    %5412 = vmatprep.subr.mxu0 0.0
    %5413 = vmatpush1.msra.mxu0 0.0
    %5414 = vmatprep.subr.mxu0 0.0
    %5415 = vmatpush1.msra.mxu0 0.0
    %5416 = vmatprep.subr.mxu0 0.0
    %5417 = vmatpush1.msra.mxu0 0.0
    %5418 = vmatprep.subr.mxu0 0.0
    %5419 = vmatpush1.msra.mxu0 %v5383
    %5420 = vmatprep.subr.mxu0 0.0
    %5421 = vmatpush1.msra.mxu0 %v5382
    %5422 = vmatprep.subr.mxu0 0.0
    %5423 = vmatpush1.msra.mxu0 %v5381
    %5424 = vmatprep.subr.mxu0 0.0
    %5425 = vmatpush1.msra.mxu0 %v5380
    %5426 = vmatprep.subr.mxu0 0.0
    %5427 = vmatpush2.msra.mxu0 0.0
    %5428 = vmatprep.subr.mxu0 0.0
    %5429 = vmatpush2.msra.mxu0 0.0
    %5430 = vmatprep.subr.mxu0 0.0
    %5431 = vmatpush2.msra.mxu0 0.0
    %5432 = vmatprep.subr.mxu0 0.0
    %5433 = vmatpush2.msra.mxu0 0.0
    %5434 = vmatprep.subr.mxu0 0.0
    %5435 = vmatpush2.msra.mxu0 0.0
    %5436 = vmatprep.subr.mxu0 0.0
    %5437 = vmatpush2.msra.mxu0 0.0
    %5438 = vmatprep.subr.mxu0 0.0
    %5439 = vmatpush2.msra.mxu0 0.0
    %5440 = vmatprep.subr.mxu0 0.0
    %5441 = vmatpush2.msra.mxu0 0.0
    %5442 = vmatprep.subr.mxu0 0.0
    %5443 = vmatpush2.msra.mxu0 0.0
    %5444 = vmatprep.subr.mxu0 0.0
    %5445 = vmatpush2.msra.mxu0 0.0
    %5446 = vmatprep.subr.mxu0 0.0
    %5447 = vmatpush2.msra.mxu0 0.0
    %5448 = vmatprep.subr.mxu0 0.0
    %5449 = vmatpush2.msra.mxu0 0.0
    %5450 = vmatprep.subr.mxu0 0.0
    %5451 = vmatpush2.msra.mxu0 0.0
    %5452 = vmatprep.subr.mxu0 0.0
    %5453 = vmatpush2.msra.mxu0 0.0
    %5454 = vmatprep.subr.mxu0 0.0
    %5455 = vmatpush2.msra.mxu0 0.0
    %5456 = vmatprep.subr.mxu0 0.0
    %5457 = vmatpush2.msra.mxu0 0.0
    %5458 = vmatprep.mubr.f32.mxu0 0.0
    %5459 = vmatmul.mubr.f32.gmra.mxu0 %v5392
    %v5460 = vpop.f32.mrf.mxu0
    %v5461 = vadd.f32 %v5389, %v5460
    %v5462 = vpop.f32.mrf.mxu0
    %5463 = vdwg.mxu0
    %vm5464 = vcmask 123904
    %v5465 = vsel %vm5464, %v5461, -inf
    %5466 = vmax.xlane.f32.xlu0 %v5465
    %v5467 = vpop.xlane.xlu0 %5466
    %v5468 = vsub.f32 %v5461, %v5467
    %v5469 = vmul.f32 %v5468, 1.442695
    %v5470 = vpow.pop %v5469
    %v5471 = vsel %vm5464, %v5470, 0.0
    %5472 = vadd.xlane.f32.xlu0 %v5471
    %v5473 = vpop.xlane.xlu0 %5472
    %v5474 = vlog2.pop %v5473
    %v5475 = vmul.f32 %v5474, 0.6931472
    %v5476 = vadd.f32 %v5467, %v5475
    %v5477 = vsub.f32 %v5461, %v5476
    %5478 = vst.msk [vmem:[#allocation6] sm:$0x3] %vm5464, %v5477
    // Predicated region
    $region98: #{simulator_v5_forward.1} parent=1 // pred_check
      _
    $region99: #{simulator_v5_forward.1} parent=1 // pred_check_branch
      %5480 = sbr.rel (0) target = $region101
    $region100: #{simulator_v5_forward.1} parent=1 // pred_region
      %s5482 = ssub.s32 32, 32
      %5483 = vsyncadd [#allocation7], %s5482
      %s5485 = sshll.u32 [#allocation6], 4
      %s5486 = int_to_ptr.vmem [resolvable:$true] %s5485
      %5488 = dma.vmem_to_hbm [thread:$0]  %s5486, 32, %s24, [#allocation7]
    $region101: #{simulator_v5_forward.1} parent=1 // pred_fallthru
      _
    // Predicated region
    $region102: #{simulator_v5_forward.1} parent=1 // pred_check
      _
    $region103: #{simulator_v5_forward.1} parent=1 // pred_check_branch
      %5490 = sbr.rel (0) target = $region105
    $region104: #{simulator_v5_forward.1} parent=1 // pred_region
      %5491 = dma.done [#allocation7], 32
    $region105: #{simulator_v5_forward.1} parent=1 // pred_fallthru
      _
    %5492 = vsyncpa [#allocation7], 1

</llo_original>
